<compile_context>
chip_gen: v5e
topology: v5e:2x2
jax: 0.10.0
libtpu: 0.0.40
codegen_flags: <defaults>
</compile_context>

<pallas_src>
import math

import jax
import jax.numpy as jnp
from jax.experimental import pallas as pl
from jax.experimental.pallas import tpu as pltpu

IN_FEATURES = 28 * 28        # 784 (full last dim of x -> satisfies the (8,128) rule)
HIDDEN = 512
OUT_FEATURES = 10
OUT_PAD = 128                # lane-dense output width -> unmasked vector stores
TILE_B = 512                 # batch tile (MXU M dim); ~8 MiB VMEM footprint, fits
                             # v5e's 16 MiB scoped default with headroom


def _mlp_kernel(x_ref, w1_ref, b1_ref, w2_ref, b2_ref, w3_ref, b3_ref, o_ref):
    """Fused 3-layer MLP on one (TILE_B, ...) batch tile.

    bf16 matmuls on the MXU with f32 accumulation; biases in f32.  The module is
    Linear-ReLU-Linear-ReLU-Linear-ReLU (the trailing ReLU is part of the PyTorch
    spec), so the final ReLU is kept.
    """
    x = x_ref[...].astype(jnp.bfloat16)                             # (TILE_B, 784)
    h1 = jnp.dot(x, w1_ref[...], preferred_element_type=jnp.float32) + b1_ref[...]
    h1 = jnp.maximum(h1, 0.0).astype(jnp.bfloat16)                  # (TILE_B, 512)
    h2 = jnp.dot(h1, w2_ref[...], preferred_element_type=jnp.float32) + b2_ref[...]
    h2 = jnp.maximum(h2, 0.0).astype(jnp.bfloat16)                  # (TILE_B, 512)
    h3 = jnp.dot(h2, w3_ref[...], preferred_element_type=jnp.float32) + b3_ref[...]
    o_ref[...] = jnp.maximum(h3, 0.0).astype(o_ref.dtype)           # (TILE_B, 128) bf16


def prepare_kernel_params(params):
    """Cast / pad the logical f32 params for the kernel.

    w1 stays at its natural 784 rows (K=784 is handled by the MXU directly; no
    row padding), w3/b3 columns are zero-padded 10 -> 128.  Weights -> bf16,
    biases stay f32.
    """
    w1, b1, w2, b2, w3, b3 = params
    w1p = w1.astype(jnp.bfloat16)
    w2p = w2.astype(jnp.bfloat16)
    w3p = jnp.pad(w3, ((0, 0), (0, OUT_PAD - OUT_FEATURES))).astype(jnp.bfloat16)
    b3p = jnp.pad(b3, ((0, 0), (0, OUT_PAD - OUT_FEATURES)))
    return w1p, b1, w2p, b2, w3p, b3p


@jax.jit
def neural_network_forward(x, kernel_params):
    """Forward pass of the PyTorch `NeuralNetwork` module.

    x: (B, 28, 28) float32  ->  logits: (B, 10) float32
    kernel_params: output of prepare_kernel_params().
    """
    w1, b1, w2, b2, w3, b3 = kernel_params
    B = x.shape[0]

    x_flat = x.reshape(B, IN_FEATURES)                   # nn.Flatten(): free reshape
    b_pad = pl.cdiv(B, TILE_B) * TILE_B
    if b_pad != B:                                       # static shapes -> Python cond
        x_flat = jnp.pad(x_flat, ((0, b_pad - B), (0, 0)))

    # Weights/biases index block (0, 0) every grid step -> VMEM-resident,
    # re-DMA is skipped across grid iterations.
    resident = lambda shape: pl.BlockSpec(shape, lambda i: (0, 0))

    out = pl.pallas_call(
        _mlp_kernel,
        out_shape=jax.ShapeDtypeStruct((b_pad, OUT_PAD), jnp.bfloat16),
        grid=(b_pad // TILE_B,),
        in_specs=[
            pl.BlockSpec((TILE_B, IN_FEATURES), lambda i: (i, 0)),   # batch tile of x (f32)
            resident((IN_FEATURES, HIDDEN)),
            resident((1, HIDDEN)),
            resident((HIDDEN, HIDDEN)),
            resident((1, HIDDEN)),
            resident((HIDDEN, OUT_PAD)),
            resident((1, OUT_PAD)),
        ],
        out_specs=pl.BlockSpec((TILE_B, OUT_PAD), lambda i: (i, 0)),
        compiler_params=pltpu.CompilerParams(
            # Batch axis is embarrassingly parallel -> megacore sharding on v7x
            # (needs B >= 2*TILE_B to actually use both TensorCores).
            dimension_semantics=("parallel",),
        ),
    )(x_flat, w1, b1, w2, b2, w3, b3)

    return out[:B, :OUT_FEATURES].astype(jnp.float32)


def init_params(key):
    """Deterministic init matching nn.Linear default: U(-1/sqrt(fan_in), 1/sqrt(fan_in)).

    Weights are stored already transposed to (in, out), in f32 (logical params).
    """
    dims = [(IN_FEATURES, HIDDEN), (HIDDEN, HIDDEN), (HIDDEN, OUT_FEATURES)]
    params = []
    keys = jax.random.split(key, 2 * len(dims))
    for i, (fan_in, fan_out) in enumerate(dims):
        bound = 1.0 / math.sqrt(fan_in)
        w = jax.random.uniform(keys[2 * i], (fan_in, fan_out),
                               minval=-bound, maxval=bound, dtype=jnp.float32)
        b = jax.random.uniform(keys[2 * i + 1], (1, fan_out),
                               minval=-bound, maxval=bound, dtype=jnp.float32)
        params.extend([w, b])
    return tuple(params)


def reference_forward(x, params):
    """Pure-JAX reference with matching numerics (bf16 matmul inputs, f32 accumulation)."""
    w1, b1, w2, b2, w3, b3 = params
    h = x.reshape(x.shape[0], IN_FEATURES).astype(jnp.bfloat16)
    h = jnp.dot(h, w1.astype(jnp.bfloat16), preferred_element_type=jnp.float32) + b1
    h = jnp.maximum(h, 0.0).astype(jnp.bfloat16)
    h = jnp.dot(h, w2.astype(jnp.bfloat16), preferred_element_type=jnp.float32) + b2
    h = jnp.maximum(h, 0.0).astype(jnp.bfloat16)
    h = jnp.dot(h, w3.astype(jnp.bfloat16), preferred_element_type=jnp.float32) + b3
    return jnp.maximum(h, 0.0)


if __name__ == "__main__":
    key = jax.random.PRNGKey(0)
    k_params, k_x = jax.random.split(key)
    params = init_params(k_params)
    kernel_params = prepare_kernel_params(params)

    batch = 2
    x = jax.random.uniform(k_x, (batch, 28, 28), dtype=jnp.float32)

    logits = neural_network_forward(x, kernel_params)
    logits = jax.block_until_ready(logits)

    ref = reference_forward(x, params)
    assert logits.shape == (batch, OUT_FEATURES), logits.shape
    # Kernel output is bf16-rounded on store; tolerance covers that rounding.
    assert jnp.allclose(logits, ref, atol=2e-2, rtol=2e-2), "mismatch vs reference"

    print("KERNEL_OK")
</pallas_src>

<mosaic_0001>
module attributes {stable_mosaic.version = 11 : i64} {
  func.func @_mlp_kernel(%arg0: i32, %arg1: memref<512x784xf32, #tpu.memory_space<vmem>>, %arg2: memref<784x512xbf16, #tpu.memory_space<vmem>>, %arg3: memref<1x512xf32, #tpu.memory_space<vmem>>, %arg4: memref<512x512xbf16, #tpu.memory_space<vmem>>, %arg5: memref<1x512xf32, #tpu.memory_space<vmem>>, %arg6: memref<512x128xbf16, #tpu.memory_space<vmem>>, %arg7: memref<1x128xf32, #tpu.memory_space<vmem>>, %arg8: memref<512x128xbf16, #tpu.memory_space<vmem>>) attributes {dimension_semantics = [#tpu.dimension_semantics<parallel>], iteration_bounds = array<i64: 1>, scalar_prefetch = 0 : i64, scratch_operands = 0 : i64, tpu.core_type = #tpu.core_type<tc>, window_params = [{transform_indices = @transform_0, window_bounds = array<i64: 512, 784>}, {pipeline_mode = #tpu.pipeline_mode<synchronous>, transform_indices = @transform_1, window_bounds = array<i64: 784, 512>}, {pipeline_mode = #tpu.pipeline_mode<synchronous>, transform_indices = @transform_2, window_bounds = array<i64: 1, 512>}, {pipeline_mode = #tpu.pipeline_mode<synchronous>, transform_indices = @transform_3, window_bounds = array<i64: 512, 512>}, {pipeline_mode = #tpu.pipeline_mode<synchronous>, transform_indices = @transform_4, window_bounds = array<i64: 1, 512>}, {pipeline_mode = #tpu.pipeline_mode<synchronous>, transform_indices = @transform_5, window_bounds = array<i64: 512, 128>}, {pipeline_mode = #tpu.pipeline_mode<synchronous>, transform_indices = @transform_6, window_bounds = array<i64: 1, 128>}, {transform_indices = @transform_7, window_bounds = array<i64: 512, 128>}]} {
    %c0 = arith.constant 0 : index
    %c0_0 = arith.constant 0 : index
    %0 = vector.load %arg1[%c0, %c0_0] : memref<512x784xf32, #tpu.memory_space<vmem>>, vector<512x784xf32>
    %1 = arith.truncf %0 : vector<512x784xf32> to vector<512x784xbf16>
    %c0_1 = arith.constant 0 : index
    %c0_2 = arith.constant 0 : index
    %2 = vector.load %arg2[%c0_1, %c0_2] : memref<784x512xbf16, #tpu.memory_space<vmem>>, vector<784x512xbf16>
    %cst = arith.constant dense<0.000000e+00> : vector<512x512xf32>
    %3 = tpu.matmul %1, %2, %cst {dimension_numbers = #tpu.dot_dimension_numbers<[1], [0], [0], [1], [0, 0, 1, 1], [], []>} : vector<512x784xbf16>, vector<784x512xbf16>, vector<512x512xf32> -> vector<512x512xf32>
    %c0_3 = arith.constant 0 : index
    %c0_4 = arith.constant 0 : index
    %4 = vector.load %arg3[%c0_3, %c0_4] : memref<1x512xf32, #tpu.memory_space<vmem>>, vector<1x512xf32>
    %5 = vector.broadcast %4 : vector<1x512xf32> to vector<512x512xf32>
    %6 = arith.addf %3, %5 : vector<512x512xf32>
    %cst_5 = arith.constant 0.000000e+00 : f32
    %7 = vector.broadcast %cst_5 : f32 to vector<512x512xf32>
    %8 = arith.maximumf %6, %7 : vector<512x512xf32>
    %9 = arith.truncf %8 : vector<512x512xf32> to vector<512x512xbf16>
    %c0_6 = arith.constant 0 : index
    %c0_7 = arith.constant 0 : index
    %10 = vector.load %arg4[%c0_6, %c0_7] : memref<512x512xbf16, #tpu.memory_space<vmem>>, vector<512x512xbf16>
    %cst_8 = arith.constant dense<0.000000e+00> : vector<512x512xf32>
    %11 = tpu.matmul %9, %10, %cst_8 {dimension_numbers = #tpu.dot_dimension_numbers<[1], [0], [0], [1], [0, 0, 1, 1], [], []>} : vector<512x512xbf16>, vector<512x512xbf16>, vector<512x512xf32> -> vector<512x512xf32>
    %c0_9 = arith.constant 0 : index
    %c0_10 = arith.constant 0 : index
    %12 = vector.load %arg5[%c0_9, %c0_10] : memref<1x512xf32, #tpu.memory_space<vmem>>, vector<1x512xf32>
    %13 = vector.broadcast %12 : vector<1x512xf32> to vector<512x512xf32>
    %14 = arith.addf %11, %13 : vector<512x512xf32>
    %cst_11 = arith.constant 0.000000e+00 : f32
    %15 = vector.broadcast %cst_11 : f32 to vector<512x512xf32>
    %16 = arith.maximumf %14, %15 : vector<512x512xf32>
    %17 = arith.truncf %16 : vector<512x512xf32> to vector<512x512xbf16>
    %c0_12 = arith.constant 0 : index
    %c0_13 = arith.constant 0 : index
    %18 = vector.load %arg6[%c0_12, %c0_13] : memref<512x128xbf16, #tpu.memory_space<vmem>>, vector<512x128xbf16>
    %cst_14 = arith.constant dense<0.000000e+00> : vector<512x128xf32>
    %19 = tpu.matmul %17, %18, %cst_14 {dimension_numbers = #tpu.dot_dimension_numbers<[1], [0], [0], [1], [0, 0, 1, 1], [], []>} : vector<512x512xbf16>, vector<512x128xbf16>, vector<512x128xf32> -> vector<512x128xf32>
    %c0_15 = arith.constant 0 : index
    %c0_16 = arith.constant 0 : index
    %20 = vector.load %arg7[%c0_15, %c0_16] : memref<1x128xf32, #tpu.memory_space<vmem>>, vector<1x128xf32>
    %21 = vector.broadcast %20 : vector<1x128xf32> to vector<512x128xf32>
    %22 = arith.addf %19, %21 : vector<512x128xf32>
    %cst_17 = arith.constant 0.000000e+00 : f32
    %23 = vector.broadcast %cst_17 : f32 to vector<512x128xf32>
    %24 = arith.maximumf %22, %23 : vector<512x128xf32>
    %25 = arith.truncf %24 : vector<512x128xf32> to vector<512x128xbf16>
    %c0_18 = arith.constant 0 : index
    %c0_19 = arith.constant 0 : index
    %26 = vector.load %arg8[%c0_18, %c0_19] : memref<512x128xbf16, #tpu.memory_space<vmem>>, vector<512x128xbf16>
    tpu.vector_store %arg8[%c0_18, %c0_19], %25 {strides = array<i32>} : memref<512x128xbf16, #tpu.memory_space<vmem>>, vector<512x128xbf16>,
    return
  }
  func.func @transform_0(%arg0: i32) -> (i32, i32) {
    %c0_i32 = arith.constant 0 : i32
    %c0_i32_0 = arith.constant 0 : i32
    return %arg0, %c0_i32 : i32, i32
  }
  func.func @transform_1(%arg0: i32) -> (i32, i32) {
    %c0_i32 = arith.constant 0 : i32
    %c0_i32_0 = arith.constant 0 : i32
    %c0_i32_1 = arith.constant 0 : i32
    return %c0_i32, %c0_i32_0 : i32, i32
  }
  func.func @transform_2(%arg0: i32) -> (i32, i32) {
    %c0_i32 = arith.constant 0 : i32
    %c0_i32_0 = arith.constant 0 : i32
    %c0_i32_1 = arith.constant 0 : i32
    return %c0_i32, %c0_i32_0 : i32, i32
  }
  func.func @transform_3(%arg0: i32) -> (i32, i32) {
    %c0_i32 = arith.constant 0 : i32
    %c0_i32_0 = arith.constant 0 : i32
    %c0_i32_1 = arith.constant 0 : i32
    return %c0_i32, %c0_i32_0 : i32, i32
  }
  func.func @transform_4(%arg0: i32) -> (i32, i32) {
    %c0_i32 = arith.constant 0 : i32
    %c0_i32_0 = arith.constant 0 : i32
    %c0_i32_1 = arith.constant 0 : i32
    return %c0_i32, %c0_i32_0 : i32, i32
  }
  func.func @transform_5(%arg0: i32) -> (i32, i32) {
    %c0_i32 = arith.constant 0 : i32
    %c0_i32_0 = arith.constant 0 : i32
    %c0_i32_1 = arith.constant 0 : i32
    return %c0_i32, %c0_i32_0 : i32, i32
  }
  func.func @transform_6(%arg0: i32) -> (i32, i32) {
    %c0_i32 = arith.constant 0 : i32
    %c0_i32_0 = arith.constant 0 : i32
    %c0_i32_1 = arith.constant 0 : i32
    return %c0_i32, %c0_i32_0 : i32, i32
  }
  func.func @transform_7(%arg0: i32) -> (i32, i32) {
    %c0_i32 = arith.constant 0 : i32
    %c0_i32_0 = arith.constant 0 : i32
    return %arg0, %c0_i32 : i32, i32
  }
}

</mosaic_0001>

<llo_original>
// kernel: neural_network_forward.1
$region0: #{neural_network_forward.1}
  #allocation0 [shape = 'u32[]', space=smem, size = 0x4, offset = 0x4, fixed_abs, tag = 'smem constant byte address 0x4 - core index']
  #allocation1 [shape = 'u32[72,128]{1,0:T(1,128)}', space=vmem, size = 0x9000, scoped, tag = 'internal scratch']
  %s0 = inlined_call_operand.vmem [shape: f32[512,784], index: 0, kind: input, shape index: {}]
  %s1 = inlined_call_operand.vmem [shape: bf16[784,512], index: 1, kind: input, shape index: {}]
  %s2 = inlined_call_operand.vmem [shape: f32[1,512], index: 2, kind: input, shape index: {}]
  %s3 = inlined_call_operand.vmem [shape: bf16[512,512], index: 3, kind: input, shape index: {}]
  %s4 = inlined_call_operand.vmem [shape: f32[1,512], index: 4, kind: input, shape index: {}]
  %s5 = inlined_call_operand.vmem [shape: bf16[512,128], index: 5, kind: input, shape index: {}]
  %s6 = inlined_call_operand.vmem [shape: f32[1,128], index: 6, kind: input, shape index: {}]
  %s7 = inlined_call_operand.vmem [shape: bf16[512,128], index: 7, kind: output, shape index: {}]
  %s8 = sld [smem:[#allocation0]]
  $region38: #{neural_network_forward.1} parent=0
    _
  %s10 = ssub.s32 1, %s8
  %s11 = scalar_select 0, %s10, %s8
  // Predicated region
  $region2: #{neural_network_forward.1} parent=0 // pred_check
    _
  $region3: #{neural_network_forward.1} parent=0 // pred_check_branch
    %13 = sbr.rel (0) target = $region5
  $region4: #{neural_network_forward.1} parent=0 // pred_region
    _
  $region5: #{neural_network_forward.1} parent=0 // pred_fallthru
    _
  // Predicated region
  $region6: #{neural_network_forward.1} parent=0 // pred_check
    _
  $region7: #{neural_network_forward.1} parent=0 // pred_check_branch
    %15 = sbr.rel (0) target = $region9
  $region8: #{neural_network_forward.1} parent=0 // pred_region
    _
  $region9: #{neural_network_forward.1} parent=0 // pred_fallthru
    _
  // Predicated region
  $region10: #{neural_network_forward.1} parent=0 // pred_check
    _
  $region11: #{neural_network_forward.1} parent=0 // pred_check_branch
    %17 = sbr.rel (0) target = $region13
  $region12: #{neural_network_forward.1} parent=0 // pred_region
    _
  $region13: #{neural_network_forward.1} parent=0 // pred_fallthru
    _
  // Predicated region
  $region14: #{neural_network_forward.1} parent=0 // pred_check
    _
  $region15: #{neural_network_forward.1} parent=0 // pred_check_branch
    %19 = sbr.rel (0) target = $region17
  $region16: #{neural_network_forward.1} parent=0 // pred_region
    _
  $region17: #{neural_network_forward.1} parent=0 // pred_fallthru
    _
  // Predicated region
  $region18: #{neural_network_forward.1} parent=0 // pred_check
    _
  $region19: #{neural_network_forward.1} parent=0 // pred_check_branch
    %21 = sbr.rel (0) target = $region21
  $region20: #{neural_network_forward.1} parent=0 // pred_region
    _
  $region21: #{neural_network_forward.1} parent=0 // pred_fallthru
    _
  // Predicated region
  $region22: #{neural_network_forward.1} parent=0 // pred_check
    _
  $region23: #{neural_network_forward.1} parent=0 // pred_check_branch
    %23 = sbr.rel (0) target = $region25
  $region24: #{neural_network_forward.1} parent=0 // pred_region
    _
  $region25: #{neural_network_forward.1} parent=0 // pred_fallthru
    _
  // Predicated region
  $region26: #{neural_network_forward.1} parent=0 // pred_check
    _
  $region27: #{neural_network_forward.1} parent=0 // pred_check_branch
    %25 = sbr.rel (0) target = $region29
  $region28: #{neural_network_forward.1} parent=0 // pred_region
    _
  $region29: #{neural_network_forward.1} parent=0 // pred_fallthru
    _
  %v27 = vld [vmem:[%s0] sm:$0xff]
  %v28 = vld [vmem:[%s0 + $0x8] sm:$0xff]
  %v29 = vld [vmem:[%s0 + $0x10] sm:$0xff]
  %v30 = vld [vmem:[%s0 + $0x18] sm:$0xff]
  %v31 = vld [vmem:[%s0 + $0x20] sm:$0xff]
  %v32 = vld [vmem:[%s0 + $0x28] sm:$0xff]
  %v33 = vld [vmem:[%s0 + $0x30] sm:$0xff]
  %v34 = vld [vmem:[%s0 + $0x38] sm:$0xff]
  %v35 = vld [vmem:[%s0 + $0x40] sm:$0xff]
  %v36 = vld [vmem:[%s0 + $0x48] sm:$0xff]
  %v37 = vld [vmem:[%s0 + $0x50] sm:$0xff]
  %v38 = vld [vmem:[%s0 + $0x58] sm:$0xff]
  %v39 = vld [vmem:[%s0 + $0x60] sm:$0xff]
  %v40 = vld [vmem:[%s0 + $0x68] sm:$0xff]
  %v41 = vld [vmem:[%s0 + $0x70] sm:$0xff]
  %v42 = vld [vmem:[%s0 + $0x78] sm:$0xff]
  %v43 = vld [vmem:[%s0 + $0x80] sm:$0xff]
  %v44 = vld [vmem:[%s0 + $0x88] sm:$0xff]
  %v45 = vld [vmem:[%s0 + $0x90] sm:$0xff]
  %v46 = vld [vmem:[%s0 + $0x98] sm:$0xff]
  %v47 = vld [vmem:[%s0 + $0xa0] sm:$0xff]
  %v48 = vld [vmem:[%s0 + $0xa8] sm:$0xff]
  %v49 = vld [vmem:[%s0 + $0xb0] sm:$0xff]
  %v50 = vld [vmem:[%s0 + $0xb8] sm:$0xff]
  %v51 = vld [vmem:[%s0 + $0xc0] sm:$0xff]
  %v52 = vld [vmem:[%s0 + $0xc8] sm:$0xff]
  %v53 = vld [vmem:[%s0 + $0xd0] sm:$0xff]
  %v54 = vld [vmem:[%s0 + $0xd8] sm:$0xff]
  %v55 = vld [vmem:[%s0 + $0xe0] sm:$0xff]
  %v56 = vld [vmem:[%s0 + $0xe8] sm:$0xff]
  %v57 = vld [vmem:[%s0 + $0xf0] sm:$0xff]
  %v58 = vld [vmem:[%s0 + $0xf8] sm:$0xff]
  %v59 = vld [vmem:[%s0 + $0x100] sm:$0xff]
  %v60 = vld [vmem:[%s0 + $0x108] sm:$0xff]
  %v61 = vld [vmem:[%s0 + $0x110] sm:$0xff]
  %v62 = vld [vmem:[%s0 + $0x118] sm:$0xff]
  %v63 = vld [vmem:[%s0 + $0x120] sm:$0xff]
  %v64 = vld [vmem:[%s0 + $0x128] sm:$0xff]
  %v65 = vld [vmem:[%s0 + $0x130] sm:$0xff]
  %v66 = vld [vmem:[%s0 + $0x138] sm:$0xff]
  %v67 = vld [vmem:[%s0 + $0x140] sm:$0xff]
  %v68 = vld [vmem:[%s0 + $0x148] sm:$0xff]
  %v69 = vld [vmem:[%s0 + $0x150] sm:$0xff]
  %v70 = vld [vmem:[%s0 + $0x158] sm:$0xff]
  %v71 = vld [vmem:[%s0 + $0x160] sm:$0xff]
  %v72 = vld [vmem:[%s0 + $0x168] sm:$0xff]
  %v73 = vld [vmem:[%s0 + $0x170] sm:$0xff]
  %v74 = vld [vmem:[%s0 + $0x178] sm:$0xff]
  %v75 = vld [vmem:[%s0 + $0x180] sm:$0xff]
  %v76 = vld [vmem:[%s0 + $0x188] sm:$0xff]
  %v77 = vld [vmem:[%s0 + $0x190] sm:$0xff]
  %v78 = vld [vmem:[%s0 + $0x198] sm:$0xff]
  %v79 = vld [vmem:[%s0 + $0x1a0] sm:$0xff]
  %v80 = vld [vmem:[%s0 + $0x1a8] sm:$0xff]
  %v81 = vld [vmem:[%s0 + $0x1b0] sm:$0xff]
  %v82 = vld [vmem:[%s0 + $0x1b8] sm:$0xff]
  %v83 = vld [vmem:[%s0 + $0x1c0] sm:$0xff]
  %v84 = vld [vmem:[%s0 + $0x1c8] sm:$0xff]
  %v85 = vld [vmem:[%s0 + $0x1d0] sm:$0xff]
  %v86 = vld [vmem:[%s0 + $0x1d8] sm:$0xff]
  %v87 = vld [vmem:[%s0 + $0x1e0] sm:$0xff]
  %v88 = vld [vmem:[%s0 + $0x1e8] sm:$0xff]
  %v89 = vld [vmem:[%s0 + $0x1f0] sm:$0xff]
  %v90 = vld [vmem:[%s0 + $0x1f8] sm:$0xff]
  %v91 = vld [vmem:[%s0 + $0x200] sm:$0xff]
  %v92 = vld [vmem:[%s0 + $0x208] sm:$0xff]
  %v93 = vld [vmem:[%s0 + $0x210] sm:$0xff]
  %v94 = vld [vmem:[%s0 + $0x218] sm:$0xff]
  %v95 = vld [vmem:[%s0 + $0x220] sm:$0xff]
  %v96 = vld [vmem:[%s0 + $0x228] sm:$0xff]
  %v97 = vld [vmem:[%s0 + $0x230] sm:$0xff]
  %v98 = vld [vmem:[%s0 + $0x238] sm:$0xff]
  %v99 = vld [vmem:[%s0 + $0x240] sm:$0xff]
  %v100 = vld [vmem:[%s0 + $0x248] sm:$0xff]
  %v101 = vld [vmem:[%s0 + $0x250] sm:$0xff]
  %v102 = vld [vmem:[%s0 + $0x258] sm:$0xff]
  %v103 = vld [vmem:[%s0 + $0x260] sm:$0xff]
  %v104 = vld [vmem:[%s0 + $0x268] sm:$0xff]
  %v105 = vld [vmem:[%s0 + $0x270] sm:$0xff]
  %v106 = vld [vmem:[%s0 + $0x278] sm:$0xff]
  %v107 = vld [vmem:[%s0 + $0x280] sm:$0xff]
  %v108 = vld [vmem:[%s0 + $0x288] sm:$0xff]
  %v109 = vld [vmem:[%s0 + $0x290] sm:$0xff]
  %v110 = vld [vmem:[%s0 + $0x298] sm:$0xff]
  %v111 = vld [vmem:[%s0 + $0x2a0] sm:$0xff]
  %v112 = vld [vmem:[%s0 + $0x2a8] sm:$0xff]
  %v113 = vld [vmem:[%s0 + $0x2b0] sm:$0xff]
  %v114 = vld [vmem:[%s0 + $0x2b8] sm:$0xff]
  %v115 = vld [vmem:[%s0 + $0x2c0] sm:$0xff]
  %v116 = vld [vmem:[%s0 + $0x2c8] sm:$0xff]
  %v117 = vld [vmem:[%s0 + $0x2d0] sm:$0xff]
  %v118 = vld [vmem:[%s0 + $0x2d8] sm:$0xff]
  %v119 = vld [vmem:[%s0 + $0x2e0] sm:$0xff]
  %v120 = vld [vmem:[%s0 + $0x2e8] sm:$0xff]
  %v121 = vld [vmem:[%s0 + $0x2f0] sm:$0xff]
  %v122 = vld [vmem:[%s0 + $0x2f8] sm:$0xff]
  %v123 = vld [vmem:[%s0 + $0x300] sm:$0xff]
  %v124 = vld [vmem:[%s0 + $0x308] sm:$0xff]
  %v125 = vld [vmem:[%s0 + $0x310] sm:$0xff]
  %v126 = vld [vmem:[%s0 + $0x318] sm:$0xff]
  %v127 = vld [vmem:[%s0 + $0x320] sm:$0xff]
  %v128 = vld [vmem:[%s0 + $0x328] sm:$0xff]
  %v129 = vld [vmem:[%s0 + $0x330] sm:$0xff]
  %v130 = vld [vmem:[%s0 + $0x338] sm:$0xff]
  %v131 = vld [vmem:[%s0 + $0x340] sm:$0xff]
  %v132 = vld [vmem:[%s0 + $0x348] sm:$0xff]
  %v133 = vld [vmem:[%s0 + $0x350] sm:$0xff]
  %v134 = vld [vmem:[%s0 + $0x358] sm:$0xff]
  %v135 = vld [vmem:[%s0 + $0x360] sm:$0xff]
  %v136 = vld [vmem:[%s0 + $0x368] sm:$0xff]
  %v137 = vld [vmem:[%s0 + $0x370] sm:$0xff]
  %v138 = vld [vmem:[%s0 + $0x378] sm:$0xff]
  %v139 = vld [vmem:[%s0 + $0x380] sm:$0xff]
  %v140 = vld [vmem:[%s0 + $0x388] sm:$0xff]
  %v141 = vld [vmem:[%s0 + $0x390] sm:$0xff]
  %v142 = vld [vmem:[%s0 + $0x398] sm:$0xff]
  %v143 = vld [vmem:[%s0 + $0x3a0] sm:$0xff]
  %v144 = vld [vmem:[%s0 + $0x3a8] sm:$0xff]
  %v145 = vld [vmem:[%s0 + $0x3b0] sm:$0xff]
  %v146 = vld [vmem:[%s0 + $0x3b8] sm:$0xff]
  %v147 = vld [vmem:[%s0 + $0x3c0] sm:$0xff]
  %v148 = vld [vmem:[%s0 + $0x3c8] sm:$0xff]
  %v149 = vld [vmem:[%s0 + $0x3d0] sm:$0xff]
  %v150 = vld [vmem:[%s0 + $0x3d8] sm:$0xff]
  %v151 = vld [vmem:[%s0 + $0x3e0] sm:$0xff]
  %v152 = vld [vmem:[%s0 + $0x3e8] sm:$0xff]
  %v153 = vld [vmem:[%s0 + $0x3f0] sm:$0xff]
  %v154 = vld [vmem:[%s0 + $0x3f8] sm:$0xff]
  %v155 = vld [vmem:[%s0 + $0x400] sm:$0xff]
  %v156 = vld [vmem:[%s0 + $0x408] sm:$0xff]
  %v157 = vld [vmem:[%s0 + $0x410] sm:$0xff]
  %v158 = vld [vmem:[%s0 + $0x418] sm:$0xff]
  %v159 = vld [vmem:[%s0 + $0x420] sm:$0xff]
  %v160 = vld [vmem:[%s0 + $0x428] sm:$0xff]
  %v161 = vld [vmem:[%s0 + $0x430] sm:$0xff]
  %v162 = vld [vmem:[%s0 + $0x438] sm:$0xff]
  %v163 = vld [vmem:[%s0 + $0x440] sm:$0xff]
  %v164 = vld [vmem:[%s0 + $0x448] sm:$0xff]
  %v165 = vld [vmem:[%s0 + $0x450] sm:$0xff]
  %v166 = vld [vmem:[%s0 + $0x458] sm:$0xff]
  %v167 = vld [vmem:[%s0 + $0x460] sm:$0xff]
  %v168 = vld [vmem:[%s0 + $0x468] sm:$0xff]
  %v169 = vld [vmem:[%s0 + $0x470] sm:$0xff]
  %v170 = vld [vmem:[%s0 + $0x478] sm:$0xff]
  %v171 = vld [vmem:[%s0 + $0x480] sm:$0xff]
  %v172 = vld [vmem:[%s0 + $0x488] sm:$0xff]
  %v173 = vld [vmem:[%s0 + $0x490] sm:$0xff]
  %v174 = vld [vmem:[%s0 + $0x498] sm:$0xff]
  %v175 = vld [vmem:[%s0 + $0x4a0] sm:$0xff]
  %v176 = vld [vmem:[%s0 + $0x4a8] sm:$0xff]
  %v177 = vld [vmem:[%s0 + $0x4b0] sm:$0xff]
  %v178 = vld [vmem:[%s0 + $0x4b8] sm:$0xff]
  %v179 = vld [vmem:[%s0 + $0x4c0] sm:$0xff]
  %v180 = vld [vmem:[%s0 + $0x4c8] sm:$0xff]
  %v181 = vld [vmem:[%s0 + $0x4d0] sm:$0xff]
  %v182 = vld [vmem:[%s0 + $0x4d8] sm:$0xff]
  %v183 = vld [vmem:[%s0 + $0x4e0] sm:$0xff]
  %v184 = vld [vmem:[%s0 + $0x4e8] sm:$0xff]
  %v185 = vld [vmem:[%s0 + $0x4f0] sm:$0xff]
  %v186 = vld [vmem:[%s0 + $0x4f8] sm:$0xff]
  %v187 = vld [vmem:[%s0 + $0x500] sm:$0xff]
  %v188 = vld [vmem:[%s0 + $0x508] sm:$0xff]
  %v189 = vld [vmem:[%s0 + $0x510] sm:$0xff]
  %v190 = vld [vmem:[%s0 + $0x518] sm:$0xff]
  %v191 = vld [vmem:[%s0 + $0x520] sm:$0xff]
  %v192 = vld [vmem:[%s0 + $0x528] sm:$0xff]
  %v193 = vld [vmem:[%s0 + $0x530] sm:$0xff]
  %v194 = vld [vmem:[%s0 + $0x538] sm:$0xff]
  %v195 = vld [vmem:[%s0 + $0x540] sm:$0xff]
  %v196 = vld [vmem:[%s0 + $0x548] sm:$0xff]
  %v197 = vld [vmem:[%s0 + $0x550] sm:$0xff]
  %v198 = vld [vmem:[%s0 + $0x558] sm:$0xff]
  %v199 = vld [vmem:[%s0 + $0x560] sm:$0xff]
  %v200 = vld [vmem:[%s0 + $0x568] sm:$0xff]
  %v201 = vld [vmem:[%s0 + $0x570] sm:$0xff]
  %v202 = vld [vmem:[%s0 + $0x578] sm:$0xff]
  %v203 = vld [vmem:[%s0 + $0x580] sm:$0xff]
  %v204 = vld [vmem:[%s0 + $0x588] sm:$0xff]
  %v205 = vld [vmem:[%s0 + $0x590] sm:$0xff]
  %v206 = vld [vmem:[%s0 + $0x598] sm:$0xff]
  %v207 = vld [vmem:[%s0 + $0x5a0] sm:$0xff]
  %v208 = vld [vmem:[%s0 + $0x5a8] sm:$0xff]
  %v209 = vld [vmem:[%s0 + $0x5b0] sm:$0xff]
  %v210 = vld [vmem:[%s0 + $0x5b8] sm:$0xff]
  %v211 = vld [vmem:[%s0 + $0x5c0] sm:$0xff]
  %v212 = vld [vmem:[%s0 + $0x5c8] sm:$0xff]
  %v213 = vld [vmem:[%s0 + $0x5d0] sm:$0xff]
  %v214 = vld [vmem:[%s0 + $0x5d8] sm:$0xff]
  %v215 = vld [vmem:[%s0 + $0x5e0] sm:$0xff]
  %v216 = vld [vmem:[%s0 + $0x5e8] sm:$0xff]
  %v217 = vld [vmem:[%s0 + $0x5f0] sm:$0xff]
  %v218 = vld [vmem:[%s0 + $0x5f8] sm:$0xff]
  %v219 = vld [vmem:[%s0 + $0x600] sm:$0xff]
  %v220 = vld [vmem:[%s0 + $0x608] sm:$0xff]
  %v221 = vld [vmem:[%s0 + $0x610] sm:$0xff]
  %v222 = vld [vmem:[%s0 + $0x618] sm:$0xff]
  %v223 = vld [vmem:[%s0 + $0x620] sm:$0xff]
  %v224 = vld [vmem:[%s0 + $0x628] sm:$0xff]
  %v225 = vld [vmem:[%s0 + $0x630] sm:$0xff]
  %v226 = vld [vmem:[%s0 + $0x638] sm:$0xff]
  %v227 = vld [vmem:[%s0 + $0x640] sm:$0xff]
  %v228 = vld [vmem:[%s0 + $0x648] sm:$0xff]
  %v229 = vld [vmem:[%s0 + $0x650] sm:$0xff]
  %v230 = vld [vmem:[%s0 + $0x658] sm:$0xff]
  %v231 = vld [vmem:[%s0 + $0x660] sm:$0xff]
  %v232 = vld [vmem:[%s0 + $0x668] sm:$0xff]
  %v233 = vld [vmem:[%s0 + $0x670] sm:$0xff]
  %v234 = vld [vmem:[%s0 + $0x678] sm:$0xff]
  %v235 = vld [vmem:[%s0 + $0x680] sm:$0xff]
  %v236 = vld [vmem:[%s0 + $0x688] sm:$0xff]
  %v237 = vld [vmem:[%s0 + $0x690] sm:$0xff]
  %v238 = vld [vmem:[%s0 + $0x698] sm:$0xff]
  %v239 = vld [vmem:[%s0 + $0x6a0] sm:$0xff]
  %v240 = vld [vmem:[%s0 + $0x6a8] sm:$0xff]
  %v241 = vld [vmem:[%s0 + $0x6b0] sm:$0xff]
  %v242 = vld [vmem:[%s0 + $0x6b8] sm:$0xff]
  %v243 = vld [vmem:[%s0 + $0x6c0] sm:$0xff]
  %v244 = vld [vmem:[%s0 + $0x6c8] sm:$0xff]
  %v245 = vld [vmem:[%s0 + $0x6d0] sm:$0xff]
  %v246 = vld [vmem:[%s0 + $0x6d8] sm:$0xff]
  %v247 = vld [vmem:[%s0 + $0x6e0] sm:$0xff]
  %v248 = vld [vmem:[%s0 + $0x6e8] sm:$0xff]
  %v249 = vld [vmem:[%s0 + $0x6f0] sm:$0xff]
  %v250 = vld [vmem:[%s0 + $0x6f8] sm:$0xff]
  %v251 = vld [vmem:[%s0 + $0x700] sm:$0xff]
  %v252 = vld [vmem:[%s0 + $0x708] sm:$0xff]
  %v253 = vld [vmem:[%s0 + $0x710] sm:$0xff]
  %v254 = vld [vmem:[%s0 + $0x718] sm:$0xff]
  %v255 = vld [vmem:[%s0 + $0x720] sm:$0xff]
  %v256 = vld [vmem:[%s0 + $0x728] sm:$0xff]
  %v257 = vld [vmem:[%s0 + $0x730] sm:$0xff]
  %v258 = vld [vmem:[%s0 + $0x738] sm:$0xff]
  %v259 = vld [vmem:[%s0 + $0x740] sm:$0xff]
  %v260 = vld [vmem:[%s0 + $0x748] sm:$0xff]
  %v261 = vld [vmem:[%s0 + $0x750] sm:$0xff]
  %v262 = vld [vmem:[%s0 + $0x758] sm:$0xff]
  %v263 = vld [vmem:[%s0 + $0x760] sm:$0xff]
  %v264 = vld [vmem:[%s0 + $0x768] sm:$0xff]
  %v265 = vld [vmem:[%s0 + $0x770] sm:$0xff]
  %v266 = vld [vmem:[%s0 + $0x778] sm:$0xff]
  %v267 = vld [vmem:[%s0 + $0x780] sm:$0xff]
  %v268 = vld [vmem:[%s0 + $0x788] sm:$0xff]
  %v269 = vld [vmem:[%s0 + $0x790] sm:$0xff]
  %v270 = vld [vmem:[%s0 + $0x798] sm:$0xff]
  %v271 = vld [vmem:[%s0 + $0x7a0] sm:$0xff]
  %v272 = vld [vmem:[%s0 + $0x7a8] sm:$0xff]
  %v273 = vld [vmem:[%s0 + $0x7b0] sm:$0xff]
  %v274 = vld [vmem:[%s0 + $0x7b8] sm:$0xff]
  %v275 = vld [vmem:[%s0 + $0x7c0] sm:$0xff]
  %v276 = vld [vmem:[%s0 + $0x7c8] sm:$0xff]
  %v277 = vld [vmem:[%s0 + $0x7d0] sm:$0xff]
  %v278 = vld [vmem:[%s0 + $0x7d8] sm:$0xff]
  %v279 = vld [vmem:[%s0 + $0x7e0] sm:$0xff]
  %v280 = vld [vmem:[%s0 + $0x7e8] sm:$0xff]
  %v281 = vld [vmem:[%s0 + $0x7f0] sm:$0xff]
  %v282 = vld [vmem:[%s0 + $0x7f8] sm:$0xff]
  %v283 = vld [vmem:[%s0 + $0x800] sm:$0xff]
  %v284 = vld [vmem:[%s0 + $0x808] sm:$0xff]
  %v285 = vld [vmem:[%s0 + $0x810] sm:$0xff]
  %v286 = vld [vmem:[%s0 + $0x818] sm:$0xff]
  %v287 = vld [vmem:[%s0 + $0x820] sm:$0xff]
  %v288 = vld [vmem:[%s0 + $0x828] sm:$0xff]
  %v289 = vld [vmem:[%s0 + $0x830] sm:$0xff]
  %v290 = vld [vmem:[%s0 + $0x838] sm:$0xff]
  %v291 = vld [vmem:[%s0 + $0x840] sm:$0xff]
  %v292 = vld [vmem:[%s0 + $0x848] sm:$0xff]
  %v293 = vld [vmem:[%s0 + $0x850] sm:$0xff]
  %v294 = vld [vmem:[%s0 + $0x858] sm:$0xff]
  %v295 = vld [vmem:[%s0 + $0x860] sm:$0xff]
  %v296 = vld [vmem:[%s0 + $0x868] sm:$0xff]
  %v297 = vld [vmem:[%s0 + $0x870] sm:$0xff]
  %v298 = vld [vmem:[%s0 + $0x878] sm:$0xff]
  %v299 = vld [vmem:[%s0 + $0x880] sm:$0xff]
  %v300 = vld [vmem:[%s0 + $0x888] sm:$0xff]
  %v301 = vld [vmem:[%s0 + $0x890] sm:$0xff]
  %v302 = vld [vmem:[%s0 + $0x898] sm:$0xff]
  %v303 = vld [vmem:[%s0 + $0x8a0] sm:$0xff]
  %v304 = vld [vmem:[%s0 + $0x8a8] sm:$0xff]
  %v305 = vld [vmem:[%s0 + $0x8b0] sm:$0xff]
  %v306 = vld [vmem:[%s0 + $0x8b8] sm:$0xff]
  %v307 = vld [vmem:[%s0 + $0x8c0] sm:$0xff]
  %v308 = vld [vmem:[%s0 + $0x8c8] sm:$0xff]
  %v309 = vld [vmem:[%s0 + $0x8d0] sm:$0xff]
  %v310 = vld [vmem:[%s0 + $0x8d8] sm:$0xff]
  %v311 = vld [vmem:[%s0 + $0x8e0] sm:$0xff]
  %v312 = vld [vmem:[%s0 + $0x8e8] sm:$0xff]
  %v313 = vld [vmem:[%s0 + $0x8f0] sm:$0xff]
  %v314 = vld [vmem:[%s0 + $0x8f8] sm:$0xff]
  %v315 = vld [vmem:[%s0 + $0x900] sm:$0xff]
  %v316 = vld [vmem:[%s0 + $0x908] sm:$0xff]
  %v317 = vld [vmem:[%s0 + $0x910] sm:$0xff]
  %v318 = vld [vmem:[%s0 + $0x918] sm:$0xff]
  %v319 = vld [vmem:[%s0 + $0x920] sm:$0xff]
  %v320 = vld [vmem:[%s0 + $0x928] sm:$0xff]
  %v321 = vld [vmem:[%s0 + $0x930] sm:$0xff]
  %v322 = vld [vmem:[%s0 + $0x938] sm:$0xff]
  %v323 = vld [vmem:[%s0 + $0x940] sm:$0xff]
  %v324 = vld [vmem:[%s0 + $0x948] sm:$0xff]
  %v325 = vld [vmem:[%s0 + $0x950] sm:$0xff]
  %v326 = vld [vmem:[%s0 + $0x958] sm:$0xff]
  %v327 = vld [vmem:[%s0 + $0x960] sm:$0xff]
  %v328 = vld [vmem:[%s0 + $0x968] sm:$0xff]
  %v329 = vld [vmem:[%s0 + $0x970] sm:$0xff]
  %v330 = vld [vmem:[%s0 + $0x978] sm:$0xff]
  %v331 = vld [vmem:[%s0 + $0x980] sm:$0xff]
  %v332 = vld [vmem:[%s0 + $0x988] sm:$0xff]
  %v333 = vld [vmem:[%s0 + $0x990] sm:$0xff]
  %v334 = vld [vmem:[%s0 + $0x998] sm:$0xff]
  %v335 = vld [vmem:[%s0 + $0x9a0] sm:$0xff]
  %v336 = vld [vmem:[%s0 + $0x9a8] sm:$0xff]
  %v337 = vld [vmem:[%s0 + $0x9b0] sm:$0xff]
  %v338 = vld [vmem:[%s0 + $0x9b8] sm:$0xff]
  %v339 = vld [vmem:[%s0 + $0x9c0] sm:$0xff]
  %v340 = vld [vmem:[%s0 + $0x9c8] sm:$0xff]
  %v341 = vld [vmem:[%s0 + $0x9d0] sm:$0xff]
  %v342 = vld [vmem:[%s0 + $0x9d8] sm:$0xff]
  %v343 = vld [vmem:[%s0 + $0x9e0] sm:$0xff]
  %v344 = vld [vmem:[%s0 + $0x9e8] sm:$0xff]
  %v345 = vld [vmem:[%s0 + $0x9f0] sm:$0xff]
  %v346 = vld [vmem:[%s0 + $0x9f8] sm:$0xff]
  %v347 = vld [vmem:[%s0 + $0xa00] sm:$0xff]
  %v348 = vld [vmem:[%s0 + $0xa08] sm:$0xff]
  %v349 = vld [vmem:[%s0 + $0xa10] sm:$0xff]
  %v350 = vld [vmem:[%s0 + $0xa18] sm:$0xff]
  %v351 = vld [vmem:[%s0 + $0xa20] sm:$0xff]
  %v352 = vld [vmem:[%s0 + $0xa28] sm:$0xff]
  %v353 = vld [vmem:[%s0 + $0xa30] sm:$0xff]
  %v354 = vld [vmem:[%s0 + $0xa38] sm:$0xff]
  %v355 = vld [vmem:[%s0 + $0xa40] sm:$0xff]
  %v356 = vld [vmem:[%s0 + $0xa48] sm:$0xff]
  %v357 = vld [vmem:[%s0 + $0xa50] sm:$0xff]
  %v358 = vld [vmem:[%s0 + $0xa58] sm:$0xff]
  %v359 = vld [vmem:[%s0 + $0xa60] sm:$0xff]
  %v360 = vld [vmem:[%s0 + $0xa68] sm:$0xff]
  %v361 = vld [vmem:[%s0 + $0xa70] sm:$0xff]
  %v362 = vld [vmem:[%s0 + $0xa78] sm:$0xff]
  %v363 = vld [vmem:[%s0 + $0xa80] sm:$0xff]
  %v364 = vld [vmem:[%s0 + $0xa88] sm:$0xff]
  %v365 = vld [vmem:[%s0 + $0xa90] sm:$0xff]
  %v366 = vld [vmem:[%s0 + $0xa98] sm:$0xff]
  %v367 = vld [vmem:[%s0 + $0xaa0] sm:$0xff]
  %v368 = vld [vmem:[%s0 + $0xaa8] sm:$0xff]
  %v369 = vld [vmem:[%s0 + $0xab0] sm:$0xff]
  %v370 = vld [vmem:[%s0 + $0xab8] sm:$0xff]
  %v371 = vld [vmem:[%s0 + $0xac0] sm:$0xff]
  %v372 = vld [vmem:[%s0 + $0xac8] sm:$0xff]
  %v373 = vld [vmem:[%s0 + $0xad0] sm:$0xff]
  %v374 = vld [vmem:[%s0 + $0xad8] sm:$0xff]
  %v375 = vld [vmem:[%s0 + $0xae0] sm:$0xff]
  %v376 = vld [vmem:[%s0 + $0xae8] sm:$0xff]
  %v377 = vld [vmem:[%s0 + $0xaf0] sm:$0xff]
  %v378 = vld [vmem:[%s0 + $0xaf8] sm:$0xff]
  %v379 = vld [vmem:[%s0 + $0xb00] sm:$0xff]
  %v380 = vld [vmem:[%s0 + $0xb08] sm:$0xff]
  %v381 = vld [vmem:[%s0 + $0xb10] sm:$0xff]
  %v382 = vld [vmem:[%s0 + $0xb18] sm:$0xff]
  %v383 = vld [vmem:[%s0 + $0xb20] sm:$0xff]
  %v384 = vld [vmem:[%s0 + $0xb28] sm:$0xff]
  %v385 = vld [vmem:[%s0 + $0xb30] sm:$0xff]
  %v386 = vld [vmem:[%s0 + $0xb38] sm:$0xff]
  %v387 = vld [vmem:[%s0 + $0xb40] sm:$0xff]
  %v388 = vld [vmem:[%s0 + $0xb48] sm:$0xff]
  %v389 = vld [vmem:[%s0 + $0xb50] sm:$0xff]
  %v390 = vld [vmem:[%s0 + $0xb58] sm:$0xff]
  %v391 = vld [vmem:[%s0 + $0xb60] sm:$0xff]
  %v392 = vld [vmem:[%s0 + $0xb68] sm:$0xff]
  %v393 = vld [vmem:[%s0 + $0xb70] sm:$0xff]
  %v394 = vld [vmem:[%s0 + $0xb78] sm:$0xff]
  %v395 = vld [vmem:[%s0 + $0xb80] sm:$0xff]
  %v396 = vld [vmem:[%s0 + $0xb88] sm:$0xff]
  %v397 = vld [vmem:[%s0 + $0xb90] sm:$0xff]
  %v398 = vld [vmem:[%s0 + $0xb98] sm:$0xff]
  %v399 = vld [vmem:[%s0 + $0xba0] sm:$0xff]
  %v400 = vld [vmem:[%s0 + $0xba8] sm:$0xff]
  %v401 = vld [vmem:[%s0 + $0xbb0] sm:$0xff]
  %v402 = vld [vmem:[%s0 + $0xbb8] sm:$0xff]
  %v403 = vld [vmem:[%s0 + $0xbc0] sm:$0xff]
  %v404 = vld [vmem:[%s0 + $0xbc8] sm:$0xff]
  %v405 = vld [vmem:[%s0 + $0xbd0] sm:$0xff]
  %v406 = vld [vmem:[%s0 + $0xbd8] sm:$0xff]
  %v407 = vld [vmem:[%s0 + $0xbe0] sm:$0xff]
  %v408 = vld [vmem:[%s0 + $0xbe8] sm:$0xff]
  %v409 = vld [vmem:[%s0 + $0xbf0] sm:$0xff]
  %v410 = vld [vmem:[%s0 + $0xbf8] sm:$0xff]
  %v411 = vld [vmem:[%s0 + $0xc00] sm:$0xff]
  %v412 = vld [vmem:[%s0 + $0xc08] sm:$0xff]
  %v413 = vld [vmem:[%s0 + $0xc10] sm:$0xff]
  %v414 = vld [vmem:[%s0 + $0xc18] sm:$0xff]
  %v415 = vld [vmem:[%s0 + $0xc20] sm:$0xff]
  %v416 = vld [vmem:[%s0 + $0xc28] sm:$0xff]
  %v417 = vld [vmem:[%s0 + $0xc30] sm:$0xff]
  %v418 = vld [vmem:[%s0 + $0xc38] sm:$0xff]
  %v419 = vld [vmem:[%s0 + $0xc40] sm:$0xff]
  %v420 = vld [vmem:[%s0 + $0xc48] sm:$0xff]
  %v421 = vld [vmem:[%s0 + $0xc50] sm:$0xff]
  %v422 = vld [vmem:[%s0 + $0xc58] sm:$0xff]
  %v423 = vld [vmem:[%s0 + $0xc60] sm:$0xff]
  %v424 = vld [vmem:[%s0 + $0xc68] sm:$0xff]
  %v425 = vld [vmem:[%s0 + $0xc70] sm:$0xff]
  %v426 = vld [vmem:[%s0 + $0xc78] sm:$0xff]
  %v427 = vld [vmem:[%s0 + $0xc80] sm:$0xff]
  %v428 = vld [vmem:[%s0 + $0xc88] sm:$0xff]
  %v429 = vld [vmem:[%s0 + $0xc90] sm:$0xff]
  %v430 = vld [vmem:[%s0 + $0xc98] sm:$0xff]
  %v431 = vld [vmem:[%s0 + $0xca0] sm:$0xff]
  %v432 = vld [vmem:[%s0 + $0xca8] sm:$0xff]
  %v433 = vld [vmem:[%s0 + $0xcb0] sm:$0xff]
  %v434 = vld [vmem:[%s0 + $0xcb8] sm:$0xff]
  %v435 = vld [vmem:[%s0 + $0xcc0] sm:$0xff]
  %v436 = vld [vmem:[%s0 + $0xcc8] sm:$0xff]
  %v437 = vld [vmem:[%s0 + $0xcd0] sm:$0xff]
  %v438 = vld [vmem:[%s0 + $0xcd8] sm:$0xff]
  %v439 = vld [vmem:[%s0 + $0xce0] sm:$0xff]
  %v440 = vld [vmem:[%s0 + $0xce8] sm:$0xff]
  %v441 = vld [vmem:[%s0 + $0xcf0] sm:$0xff]
  %v442 = vld [vmem:[%s0 + $0xcf8] sm:$0xff]
  %v443 = vld [vmem:[%s0 + $0xd00] sm:$0xff]
  %v444 = vld [vmem:[%s0 + $0xd08] sm:$0xff]
  %v445 = vld [vmem:[%s0 + $0xd10] sm:$0xff]
  %v446 = vld [vmem:[%s0 + $0xd18] sm:$0xff]
  %v447 = vld [vmem:[%s0 + $0xd20] sm:$0xff]
  %v448 = vld [vmem:[%s0 + $0xd28] sm:$0xff]
  %v449 = vld [vmem:[%s0 + $0xd30] sm:$0xff]
  %v450 = vld [vmem:[%s0 + $0xd38] sm:$0xff]
  %v451 = vld [vmem:[%s0 + $0xd40] sm:$0xff]
  %v452 = vld [vmem:[%s0 + $0xd48] sm:$0xff]
  %v453 = vld [vmem:[%s0 + $0xd50] sm:$0xff]
  %v454 = vld [vmem:[%s0 + $0xd58] sm:$0xff]
  %v455 = vld [vmem:[%s0 + $0xd60] sm:$0xff]
  %v456 = vld [vmem:[%s0 + $0xd68] sm:$0xff]
  %v457 = vld [vmem:[%s0 + $0xd70] sm:$0xff]
  %v458 = vld [vmem:[%s0 + $0xd78] sm:$0xff]
  %v459 = vld [vmem:[%s0 + $0xd80] sm:$0xff]
  %v460 = vld [vmem:[%s0 + $0xd88] sm:$0xff]
  %v461 = vld [vmem:[%s0 + $0xd90] sm:$0xff]
  %v462 = vld [vmem:[%s0 + $0xd98] sm:$0xff]
  %v463 = vld [vmem:[%s0 + $0xda0] sm:$0xff]
  %v464 = vld [vmem:[%s0 + $0xda8] sm:$0xff]
  %v465 = vld [vmem:[%s0 + $0xdb0] sm:$0xff]
  %v466 = vld [vmem:[%s0 + $0xdb8] sm:$0xff]
  %v467 = vld [vmem:[%s0 + $0xdc0] sm:$0xff]
  %v468 = vld [vmem:[%s0 + $0xdc8] sm:$0xff]
  %v469 = vld [vmem:[%s0 + $0xdd0] sm:$0xff]
  %v470 = vld [vmem:[%s0 + $0xdd8] sm:$0xff]
  %v471 = vld [vmem:[%s0 + $0xde0] sm:$0xff]
  %v472 = vld [vmem:[%s0 + $0xde8] sm:$0xff]
  %v473 = vld [vmem:[%s0 + $0xdf0] sm:$0xff]
  %v474 = vld [vmem:[%s0 + $0xdf8] sm:$0xff]
  %v475 = vpack.c.bf16 %v34, %v27
  %v476 = vpack.c.bf16 %v35, %v28
  %v477 = vpack.c.bf16 %v36, %v29
  %v478 = vpack.c.bf16 %v37, %v30
  %v479 = vpack.c.bf16 %v38, %v31
  %v480 = vpack.c.bf16 %v39, %v32
  %v481 = vpack.c.bf16 %v40, %v33
  %v482 = vpack.c.bf16 %v48, %v41
  %v483 = vpack.c.bf16 %v49, %v42
  %v484 = vpack.c.bf16 %v50, %v43
  %v485 = vpack.c.bf16 %v51, %v44
  %v486 = vpack.c.bf16 %v52, %v45
  %v487 = vpack.c.bf16 %v53, %v46
  %v488 = vpack.c.bf16 %v54, %v47
  %v489 = vpack.c.bf16 %v62, %v55
  %v490 = vpack.c.bf16 %v63, %v56
  %v491 = vpack.c.bf16 %v64, %v57
  %v492 = vpack.c.bf16 %v65, %v58
  %v493 = vpack.c.bf16 %v66, %v59
  %v494 = vpack.c.bf16 %v67, %v60
  %v495 = vpack.c.bf16 %v68, %v61
  %v496 = vpack.c.bf16 %v76, %v69
  %v497 = vpack.c.bf16 %v77, %v70
  %v498 = vpack.c.bf16 %v78, %v71
  %v499 = vpack.c.bf16 %v79, %v72
  %v500 = vpack.c.bf16 %v80, %v73
  %v501 = vpack.c.bf16 %v81, %v74
  %v502 = vpack.c.bf16 %v82, %v75
  %v503 = vpack.c.bf16 %v90, %v83
  %v504 = vpack.c.bf16 %v91, %v84
  %v505 = vpack.c.bf16 %v92, %v85
  %v506 = vpack.c.bf16 %v93, %v86
  %v507 = vpack.c.bf16 %v94, %v87
  %v508 = vpack.c.bf16 %v95, %v88
  %v509 = vpack.c.bf16 %v96, %v89
  %v510 = vpack.c.bf16 %v104, %v97
  %v511 = vpack.c.bf16 %v105, %v98
  %v512 = vpack.c.bf16 %v106, %v99
  %v513 = vpack.c.bf16 %v107, %v100
  %v514 = vpack.c.bf16 %v108, %v101
  %v515 = vpack.c.bf16 %v109, %v102
  %v516 = vpack.c.bf16 %v110, %v103
  %v517 = vpack.c.bf16 %v118, %v111
  %v518 = vpack.c.bf16 %v119, %v112
  %v519 = vpack.c.bf16 %v120, %v113
  %v520 = vpack.c.bf16 %v121, %v114
  %v521 = vpack.c.bf16 %v122, %v115
  %v522 = vpack.c.bf16 %v123, %v116
  %v523 = vpack.c.bf16 %v124, %v117
  %v524 = vpack.c.bf16 %v132, %v125
  %v525 = vpack.c.bf16 %v133, %v126
  %v526 = vpack.c.bf16 %v134, %v127
  %v527 = vpack.c.bf16 %v135, %v128
  %v528 = vpack.c.bf16 %v136, %v129
  %v529 = vpack.c.bf16 %v137, %v130
  %v530 = vpack.c.bf16 %v138, %v131
  %v531 = vpack.c.bf16 %v146, %v139
  %v532 = vpack.c.bf16 %v147, %v140
  %v533 = vpack.c.bf16 %v148, %v141
  %v534 = vpack.c.bf16 %v149, %v142
  %v535 = vpack.c.bf16 %v150, %v143
  %v536 = vpack.c.bf16 %v151, %v144
  %v537 = vpack.c.bf16 %v152, %v145
  %v538 = vpack.c.bf16 %v160, %v153
  %v539 = vpack.c.bf16 %v161, %v154
  %v540 = vpack.c.bf16 %v162, %v155
  %v541 = vpack.c.bf16 %v163, %v156
  %v542 = vpack.c.bf16 %v164, %v157
  %v543 = vpack.c.bf16 %v165, %v158
  %v544 = vpack.c.bf16 %v166, %v159
  %v545 = vpack.c.bf16 %v174, %v167
  %v546 = vpack.c.bf16 %v175, %v168
  %v547 = vpack.c.bf16 %v176, %v169
  %v548 = vpack.c.bf16 %v177, %v170
  %v549 = vpack.c.bf16 %v178, %v171
  %v550 = vpack.c.bf16 %v179, %v172
  %v551 = vpack.c.bf16 %v180, %v173
  %v552 = vpack.c.bf16 %v188, %v181
  %v553 = vpack.c.bf16 %v189, %v182
  %v554 = vpack.c.bf16 %v190, %v183
  %v555 = vpack.c.bf16 %v191, %v184
  %v556 = vpack.c.bf16 %v192, %v185
  %v557 = vpack.c.bf16 %v193, %v186
  %v558 = vpack.c.bf16 %v194, %v187
  %v559 = vpack.c.bf16 %v202, %v195
  %v560 = vpack.c.bf16 %v203, %v196
  %v561 = vpack.c.bf16 %v204, %v197
  %v562 = vpack.c.bf16 %v205, %v198
  %v563 = vpack.c.bf16 %v206, %v199
  %v564 = vpack.c.bf16 %v207, %v200
  %v565 = vpack.c.bf16 %v208, %v201
  %v566 = vpack.c.bf16 %v216, %v209
  %v567 = vpack.c.bf16 %v217, %v210
  %v568 = vpack.c.bf16 %v218, %v211
  %v569 = vpack.c.bf16 %v219, %v212
  %v570 = vpack.c.bf16 %v220, %v213
  %v571 = vpack.c.bf16 %v221, %v214
  %v572 = vpack.c.bf16 %v222, %v215
  %v573 = vpack.c.bf16 %v230, %v223
  %v574 = vpack.c.bf16 %v231, %v224
  %v575 = vpack.c.bf16 %v232, %v225
  %v576 = vpack.c.bf16 %v233, %v226
  %v577 = vpack.c.bf16 %v234, %v227
  %v578 = vpack.c.bf16 %v235, %v228
  %v579 = vpack.c.bf16 %v236, %v229
  %v580 = vpack.c.bf16 %v244, %v237
  %v581 = vpack.c.bf16 %v245, %v238
  %v582 = vpack.c.bf16 %v246, %v239
  %v583 = vpack.c.bf16 %v247, %v240
  %v584 = vpack.c.bf16 %v248, %v241
  %v585 = vpack.c.bf16 %v249, %v242
  %v586 = vpack.c.bf16 %v250, %v243
  %v587 = vpack.c.bf16 %v258, %v251
  %v588 = vpack.c.bf16 %v259, %v252
  %v589 = vpack.c.bf16 %v260, %v253
  %v590 = vpack.c.bf16 %v261, %v254
  %v591 = vpack.c.bf16 %v262, %v255
  %v592 = vpack.c.bf16 %v263, %v256
  %v593 = vpack.c.bf16 %v264, %v257
  %v594 = vpack.c.bf16 %v272, %v265
  %v595 = vpack.c.bf16 %v273, %v266
  %v596 = vpack.c.bf16 %v274, %v267
  %v597 = vpack.c.bf16 %v275, %v268
  %v598 = vpack.c.bf16 %v276, %v269
  %v599 = vpack.c.bf16 %v277, %v270
  %v600 = vpack.c.bf16 %v278, %v271
  %v601 = vpack.c.bf16 %v286, %v279
  %v602 = vpack.c.bf16 %v287, %v280
  %v603 = vpack.c.bf16 %v288, %v281
  %v604 = vpack.c.bf16 %v289, %v282
  %v605 = vpack.c.bf16 %v290, %v283
  %v606 = vpack.c.bf16 %v291, %v284
  %v607 = vpack.c.bf16 %v292, %v285
  %v608 = vpack.c.bf16 %v300, %v293
  %v609 = vpack.c.bf16 %v301, %v294
  %v610 = vpack.c.bf16 %v302, %v295
  %v611 = vpack.c.bf16 %v303, %v296
  %v612 = vpack.c.bf16 %v304, %v297
  %v613 = vpack.c.bf16 %v305, %v298
  %v614 = vpack.c.bf16 %v306, %v299
  %v615 = vpack.c.bf16 %v314, %v307
  %v616 = vpack.c.bf16 %v315, %v308
  %v617 = vpack.c.bf16 %v316, %v309
  %v618 = vpack.c.bf16 %v317, %v310
  %v619 = vpack.c.bf16 %v318, %v311
  %v620 = vpack.c.bf16 %v319, %v312
  %v621 = vpack.c.bf16 %v320, %v313
  %v622 = vpack.c.bf16 %v328, %v321
  %v623 = vpack.c.bf16 %v329, %v322
  %v624 = vpack.c.bf16 %v330, %v323
  %v625 = vpack.c.bf16 %v331, %v324
  %v626 = vpack.c.bf16 %v332, %v325
  %v627 = vpack.c.bf16 %v333, %v326
  %v628 = vpack.c.bf16 %v334, %v327
  %v629 = vpack.c.bf16 %v342, %v335
  %v630 = vpack.c.bf16 %v343, %v336
  %v631 = vpack.c.bf16 %v344, %v337
  %v632 = vpack.c.bf16 %v345, %v338
  %v633 = vpack.c.bf16 %v346, %v339
  %v634 = vpack.c.bf16 %v347, %v340
  %v635 = vpack.c.bf16 %v348, %v341
  %v636 = vpack.c.bf16 %v356, %v349
  %v637 = vpack.c.bf16 %v357, %v350
  %v638 = vpack.c.bf16 %v358, %v351
  %v639 = vpack.c.bf16 %v359, %v352
  %v640 = vpack.c.bf16 %v360, %v353
  %v641 = vpack.c.bf16 %v361, %v354
  %v642 = vpack.c.bf16 %v362, %v355
  %v643 = vpack.c.bf16 %v370, %v363
  %v644 = vpack.c.bf16 %v371, %v364
  %v645 = vpack.c.bf16 %v372, %v365
  %v646 = vpack.c.bf16 %v373, %v366
  %v647 = vpack.c.bf16 %v374, %v367
  %v648 = vpack.c.bf16 %v375, %v368
  %v649 = vpack.c.bf16 %v376, %v369
  %v650 = vpack.c.bf16 %v384, %v377
  %v651 = vpack.c.bf16 %v385, %v378
  %v652 = vpack.c.bf16 %v386, %v379
  %v653 = vpack.c.bf16 %v387, %v380
  %v654 = vpack.c.bf16 %v388, %v381
  %v655 = vpack.c.bf16 %v389, %v382
  %v656 = vpack.c.bf16 %v390, %v383
  %v657 = vpack.c.bf16 %v398, %v391
  %v658 = vpack.c.bf16 %v399, %v392
  %v659 = vpack.c.bf16 %v400, %v393
  %v660 = vpack.c.bf16 %v401, %v394
  %v661 = vpack.c.bf16 %v402, %v395
  %v662 = vpack.c.bf16 %v403, %v396
  %v663 = vpack.c.bf16 %v404, %v397
  %v664 = vpack.c.bf16 %v412, %v405
  %v665 = vpack.c.bf16 %v413, %v406
  %v666 = vpack.c.bf16 %v414, %v407
  %v667 = vpack.c.bf16 %v415, %v408
  %v668 = vpack.c.bf16 %v416, %v409
  %v669 = vpack.c.bf16 %v417, %v410
  %v670 = vpack.c.bf16 %v418, %v411
  %v671 = vpack.c.bf16 %v426, %v419
  %v672 = vpack.c.bf16 %v427, %v420
  %v673 = vpack.c.bf16 %v428, %v421
  %v674 = vpack.c.bf16 %v429, %v422
  %v675 = vpack.c.bf16 %v430, %v423
  %v676 = vpack.c.bf16 %v431, %v424
  %v677 = vpack.c.bf16 %v432, %v425
  %v678 = vpack.c.bf16 %v440, %v433
  %v679 = vpack.c.bf16 %v441, %v434
  %v680 = vpack.c.bf16 %v442, %v435
  %v681 = vpack.c.bf16 %v443, %v436
  %v682 = vpack.c.bf16 %v444, %v437
  %v683 = vpack.c.bf16 %v445, %v438
  %v684 = vpack.c.bf16 %v446, %v439
  %v685 = vpack.c.bf16 %v454, %v447
  %v686 = vpack.c.bf16 %v455, %v448
  %v687 = vpack.c.bf16 %v456, %v449
  %v688 = vpack.c.bf16 %v457, %v450
  %v689 = vpack.c.bf16 %v458, %v451
  %v690 = vpack.c.bf16 %v459, %v452
  %v691 = vpack.c.bf16 %v460, %v453
  %v692 = vpack.c.bf16 %v468, %v461
  %v693 = vpack.c.bf16 %v469, %v462
  %v694 = vpack.c.bf16 %v470, %v463
  %v695 = vpack.c.bf16 %v471, %v464
  %v696 = vpack.c.bf16 %v472, %v465
  %v697 = vpack.c.bf16 %v473, %v466
  %v698 = vpack.c.bf16 %v474, %v467
  %v699 = vld [vmem:[%s1] sm:$0xff]
  %v700 = vld [vmem:[%s1 + $0x8] sm:$0xff]
  %v701 = vld [vmem:[%s1 + $0x10] sm:$0xff]
  %v702 = vld [vmem:[%s1 + $0x18] sm:$0xff]
  %v703 = vld [vmem:[%s1 + $0x20] sm:$0xff]
  %v704 = vld [vmem:[%s1 + $0x28] sm:$0xff]
  %v705 = vld [vmem:[%s1 + $0x30] sm:$0xff]
  %v706 = vld [vmem:[%s1 + $0x38] sm:$0xff]
  %v707 = vld [vmem:[%s1 + $0x40] sm:$0xff]
  %v708 = vld [vmem:[%s1 + $0x48] sm:$0xff]
  %v709 = vld [vmem:[%s1 + $0x50] sm:$0xff]
  %v710 = vld [vmem:[%s1 + $0x58] sm:$0xff]
  %v711 = vld [vmem:[%s1 + $0x60] sm:$0xff]
  %v712 = vld [vmem:[%s1 + $0x68] sm:$0xff]
  %v713 = vld [vmem:[%s1 + $0x70] sm:$0xff]
  %v714 = vld [vmem:[%s1 + $0x78] sm:$0xff]
  %v715 = vld [vmem:[%s1 + $0x80] sm:$0xff]
  %v716 = vld [vmem:[%s1 + $0x88] sm:$0xff]
  %v717 = vld [vmem:[%s1 + $0x90] sm:$0xff]
  %v718 = vld [vmem:[%s1 + $0x98] sm:$0xff]
  %v719 = vld [vmem:[%s1 + $0xa0] sm:$0xff]
  %v720 = vld [vmem:[%s1 + $0xa8] sm:$0xff]
  %v721 = vld [vmem:[%s1 + $0xb0] sm:$0xff]
  %v722 = vld [vmem:[%s1 + $0xb8] sm:$0xff]
  %v723 = vld [vmem:[%s1 + $0xc0] sm:$0xff]
  %v724 = vld [vmem:[%s1 + $0xc8] sm:$0xff]
  %v725 = vld [vmem:[%s1 + $0xd0] sm:$0xff]
  %v726 = vld [vmem:[%s1 + $0xd8] sm:$0xff]
  %v727 = vld [vmem:[%s1 + $0xe0] sm:$0xff]
  %v728 = vld [vmem:[%s1 + $0xe8] sm:$0xff]
  %v729 = vld [vmem:[%s1 + $0xf0] sm:$0xff]
  %v730 = vld [vmem:[%s1 + $0xf8] sm:$0xff]
  %v731 = vld [vmem:[%s1 + $0x100] sm:$0xff]
  %v732 = vld [vmem:[%s1 + $0x108] sm:$0xff]
  %v733 = vld [vmem:[%s1 + $0x110] sm:$0xff]
  %v734 = vld [vmem:[%s1 + $0x118] sm:$0xff]
  %v735 = vld [vmem:[%s1 + $0x120] sm:$0xff]
  %v736 = vld [vmem:[%s1 + $0x128] sm:$0xff]
  %v737 = vld [vmem:[%s1 + $0x130] sm:$0xff]
  %v738 = vld [vmem:[%s1 + $0x138] sm:$0xff]
  %v739 = vld [vmem:[%s1 + $0x140] sm:$0xff]
  %v740 = vld [vmem:[%s1 + $0x148] sm:$0xff]
  %v741 = vld [vmem:[%s1 + $0x150] sm:$0xff]
  %v742 = vld [vmem:[%s1 + $0x158] sm:$0xff]
  %v743 = vld [vmem:[%s1 + $0x160] sm:$0xff]
  %v744 = vld [vmem:[%s1 + $0x168] sm:$0xff]
  %v745 = vld [vmem:[%s1 + $0x170] sm:$0xff]
  %v746 = vld [vmem:[%s1 + $0x178] sm:$0xff]
  %v747 = vld [vmem:[%s1 + $0x180] sm:$0xff]
  %v748 = vld [vmem:[%s1 + $0x188] sm:$0xff]
  %v749 = vld [vmem:[%s1 + $0x190] sm:$0xff]
  %v750 = vld [vmem:[%s1 + $0x198] sm:$0xff]
  %v751 = vld [vmem:[%s1 + $0x1a0] sm:$0xff]
  %v752 = vld [vmem:[%s1 + $0x1a8] sm:$0xff]
  %v753 = vld [vmem:[%s1 + $0x1b0] sm:$0xff]
  %v754 = vld [vmem:[%s1 + $0x1b8] sm:$0xff]
  %v755 = vld [vmem:[%s1 + $0x1c0] sm:$0xff]
  %v756 = vld [vmem:[%s1 + $0x1c8] sm:$0xff]
  %v757 = vld [vmem:[%s1 + $0x1d0] sm:$0xff]
  %v758 = vld [vmem:[%s1 + $0x1d8] sm:$0xff]
  %v759 = vld [vmem:[%s1 + $0x1e0] sm:$0xff]
  %v760 = vld [vmem:[%s1 + $0x1e8] sm:$0xff]
  %v761 = vld [vmem:[%s1 + $0x1f0] sm:$0xff]
  %v762 = vld [vmem:[%s1 + $0x1f8] sm:$0xff]
  %v763 = vld [vmem:[%s1 + $0x200] sm:$0xff]
  %v764 = vld [vmem:[%s1 + $0x208] sm:$0xff]
  %v765 = vld [vmem:[%s1 + $0x210] sm:$0xff]
  %v766 = vld [vmem:[%s1 + $0x218] sm:$0xff]
  %v767 = vld [vmem:[%s1 + $0x220] sm:$0xff]
  %v768 = vld [vmem:[%s1 + $0x228] sm:$0xff]
  %v769 = vld [vmem:[%s1 + $0x230] sm:$0xff]
  %v770 = vld [vmem:[%s1 + $0x238] sm:$0xff]
  %v771 = vld [vmem:[%s1 + $0x240] sm:$0xff]
  %v772 = vld [vmem:[%s1 + $0x248] sm:$0xff]
  %v773 = vld [vmem:[%s1 + $0x250] sm:$0xff]
  %v774 = vld [vmem:[%s1 + $0x258] sm:$0xff]
  %v775 = vld [vmem:[%s1 + $0x260] sm:$0xff]
  %v776 = vld [vmem:[%s1 + $0x268] sm:$0xff]
  %v777 = vld [vmem:[%s1 + $0x270] sm:$0xff]
  %v778 = vld [vmem:[%s1 + $0x278] sm:$0xff]
  %v779 = vld [vmem:[%s1 + $0x280] sm:$0xff]
  %v780 = vld [vmem:[%s1 + $0x288] sm:$0xff]
  %v781 = vld [vmem:[%s1 + $0x290] sm:$0xff]
  %v782 = vld [vmem:[%s1 + $0x298] sm:$0xff]
  %v783 = vld [vmem:[%s1 + $0x2a0] sm:$0xff]
  %v784 = vld [vmem:[%s1 + $0x2a8] sm:$0xff]
  %v785 = vld [vmem:[%s1 + $0x2b0] sm:$0xff]
  %v786 = vld [vmem:[%s1 + $0x2b8] sm:$0xff]
  %v787 = vld [vmem:[%s1 + $0x2c0] sm:$0xff]
  %v788 = vld [vmem:[%s1 + $0x2c8] sm:$0xff]
  %v789 = vld [vmem:[%s1 + $0x2d0] sm:$0xff]
  %v790 = vld [vmem:[%s1 + $0x2d8] sm:$0xff]
  %v791 = vld [vmem:[%s1 + $0x2e0] sm:$0xff]
  %v792 = vld [vmem:[%s1 + $0x2e8] sm:$0xff]
  %v793 = vld [vmem:[%s1 + $0x2f0] sm:$0xff]
  %v794 = vld [vmem:[%s1 + $0x2f8] sm:$0xff]
  %v795 = vld [vmem:[%s1 + $0x300] sm:$0xff]
  %v796 = vld [vmem:[%s1 + $0x308] sm:$0xff]
  %v797 = vld [vmem:[%s1 + $0x310] sm:$0xff]
  %v798 = vld [vmem:[%s1 + $0x318] sm:$0xff]
  %v799 = vld [vmem:[%s1 + $0x320] sm:$0xff]
  %v800 = vld [vmem:[%s1 + $0x328] sm:$0xff]
  %v801 = vld [vmem:[%s1 + $0x330] sm:$0xff]
  %v802 = vld [vmem:[%s1 + $0x338] sm:$0xff]
  %v803 = vld [vmem:[%s1 + $0x340] sm:$0xff]
  %v804 = vld [vmem:[%s1 + $0x348] sm:$0xff]
  %v805 = vld [vmem:[%s1 + $0x350] sm:$0xff]
  %v806 = vld [vmem:[%s1 + $0x358] sm:$0xff]
  %v807 = vld [vmem:[%s1 + $0x360] sm:$0xff]
  %v808 = vld [vmem:[%s1 + $0x368] sm:$0xff]
  %v809 = vld [vmem:[%s1 + $0x370] sm:$0xff]
  %v810 = vld [vmem:[%s1 + $0x378] sm:$0xff]
  %v811 = vld [vmem:[%s1 + $0x380] sm:$0xff]
  %v812 = vld [vmem:[%s1 + $0x388] sm:$0xff]
  %v813 = vld [vmem:[%s1 + $0x390] sm:$0xff]
  %v814 = vld [vmem:[%s1 + $0x398] sm:$0xff]
  %v815 = vld [vmem:[%s1 + $0x3a0] sm:$0xff]
  %v816 = vld [vmem:[%s1 + $0x3a8] sm:$0xff]
  %v817 = vld [vmem:[%s1 + $0x3b0] sm:$0xff]
  %v818 = vld [vmem:[%s1 + $0x3b8] sm:$0xff]
  %v819 = vld [vmem:[%s1 + $0x3c0] sm:$0xff]
  %v820 = vld [vmem:[%s1 + $0x3c8] sm:$0xff]
  %v821 = vld [vmem:[%s1 + $0x3d0] sm:$0xff]
  %v822 = vld [vmem:[%s1 + $0x3d8] sm:$0xff]
  %v823 = vld [vmem:[%s1 + $0x3e0] sm:$0xff]
  %v824 = vld [vmem:[%s1 + $0x3e8] sm:$0xff]
  %v825 = vld [vmem:[%s1 + $0x3f0] sm:$0xff]
  %v826 = vld [vmem:[%s1 + $0x3f8] sm:$0xff]
  %v827 = vld [vmem:[%s1 + $0x400] sm:$0xff]
  %v828 = vld [vmem:[%s1 + $0x408] sm:$0xff]
  %v829 = vld [vmem:[%s1 + $0x410] sm:$0xff]
  %v830 = vld [vmem:[%s1 + $0x418] sm:$0xff]
  %v831 = vld [vmem:[%s1 + $0x420] sm:$0xff]
  %v832 = vld [vmem:[%s1 + $0x428] sm:$0xff]
  %v833 = vld [vmem:[%s1 + $0x430] sm:$0xff]
  %v834 = vld [vmem:[%s1 + $0x438] sm:$0xff]
  %v835 = vld [vmem:[%s1 + $0x440] sm:$0xff]
  %v836 = vld [vmem:[%s1 + $0x448] sm:$0xff]
  %v837 = vld [vmem:[%s1 + $0x450] sm:$0xff]
  %v838 = vld [vmem:[%s1 + $0x458] sm:$0xff]
  %v839 = vld [vmem:[%s1 + $0x460] sm:$0xff]
  %v840 = vld [vmem:[%s1 + $0x468] sm:$0xff]
  %v841 = vld [vmem:[%s1 + $0x470] sm:$0xff]
  %v842 = vld [vmem:[%s1 + $0x478] sm:$0xff]
  %v843 = vld [vmem:[%s1 + $0x480] sm:$0xff]
  %v844 = vld [vmem:[%s1 + $0x488] sm:$0xff]
  %v845 = vld [vmem:[%s1 + $0x490] sm:$0xff]
  %v846 = vld [vmem:[%s1 + $0x498] sm:$0xff]
  %v847 = vld [vmem:[%s1 + $0x4a0] sm:$0xff]
  %v848 = vld [vmem:[%s1 + $0x4a8] sm:$0xff]
  %v849 = vld [vmem:[%s1 + $0x4b0] sm:$0xff]
  %v850 = vld [vmem:[%s1 + $0x4b8] sm:$0xff]
  %v851 = vld [vmem:[%s1 + $0x4c0] sm:$0xff]
  %v852 = vld [vmem:[%s1 + $0x4c8] sm:$0xff]
  %v853 = vld [vmem:[%s1 + $0x4d0] sm:$0xff]
  %v854 = vld [vmem:[%s1 + $0x4d8] sm:$0xff]
  %v855 = vld [vmem:[%s1 + $0x4e0] sm:$0xff]
  %v856 = vld [vmem:[%s1 + $0x4e8] sm:$0xff]
  %v857 = vld [vmem:[%s1 + $0x4f0] sm:$0xff]
  %v858 = vld [vmem:[%s1 + $0x4f8] sm:$0xff]
  %v859 = vld [vmem:[%s1 + $0x500] sm:$0xff]
  %v860 = vld [vmem:[%s1 + $0x508] sm:$0xff]
  %v861 = vld [vmem:[%s1 + $0x510] sm:$0xff]
  %v862 = vld [vmem:[%s1 + $0x518] sm:$0xff]
  %v863 = vld [vmem:[%s1 + $0x520] sm:$0xff]
  %v864 = vld [vmem:[%s1 + $0x528] sm:$0xff]
  %v865 = vld [vmem:[%s1 + $0x530] sm:$0xff]
  %v866 = vld [vmem:[%s1 + $0x538] sm:$0xff]
  %v867 = vld [vmem:[%s1 + $0x540] sm:$0xff]
  %v868 = vld [vmem:[%s1 + $0x548] sm:$0xff]
  %v869 = vld [vmem:[%s1 + $0x550] sm:$0xff]
  %v870 = vld [vmem:[%s1 + $0x558] sm:$0xff]
  %v871 = vld [vmem:[%s1 + $0x560] sm:$0xff]
  %v872 = vld [vmem:[%s1 + $0x568] sm:$0xff]
  %v873 = vld [vmem:[%s1 + $0x570] sm:$0xff]
  %v874 = vld [vmem:[%s1 + $0x578] sm:$0xff]
  %v875 = vld [vmem:[%s1 + $0x580] sm:$0xff]
  %v876 = vld [vmem:[%s1 + $0x588] sm:$0xff]
  %v877 = vld [vmem:[%s1 + $0x590] sm:$0xff]
  %v878 = vld [vmem:[%s1 + $0x598] sm:$0xff]
  %v879 = vld [vmem:[%s1 + $0x5a0] sm:$0xff]
  %v880 = vld [vmem:[%s1 + $0x5a8] sm:$0xff]
  %v881 = vld [vmem:[%s1 + $0x5b0] sm:$0xff]
  %v882 = vld [vmem:[%s1 + $0x5b8] sm:$0xff]
  %v883 = vld [vmem:[%s1 + $0x5c0] sm:$0xff]
  %v884 = vld [vmem:[%s1 + $0x5c8] sm:$0xff]
  %v885 = vld [vmem:[%s1 + $0x5d0] sm:$0xff]
  %v886 = vld [vmem:[%s1 + $0x5d8] sm:$0xff]
  %v887 = vld [vmem:[%s1 + $0x5e0] sm:$0xff]
  %v888 = vld [vmem:[%s1 + $0x5e8] sm:$0xff]
  %v889 = vld [vmem:[%s1 + $0x5f0] sm:$0xff]
  %v890 = vld [vmem:[%s1 + $0x5f8] sm:$0xff]
  %v891 = vld [vmem:[%s1 + $0x600] sm:$0xff]
  %v892 = vld [vmem:[%s1 + $0x608] sm:$0xff]
  %v893 = vld [vmem:[%s1 + $0x610] sm:$0xff]
  %v894 = vld [vmem:[%s1 + $0x618] sm:$0xff]
  %v895 = vld [vmem:[%s2] sm:$0xf]
  %v897 = vperm.slane %v895, 0
  %v898 = vperm.slane %v895, 1
  %v899 = vperm.slane %v895, 2
  %v900 = vperm.slane %v895, 3
  %v1101 = vunpack.c.l.b16 %v699
  %v1102 = vunpack.c.h.b16 %v699
  %v1103 = vunpack.c.l.b16 %v700
  %v1104 = vunpack.c.h.b16 %v700
  %v1105 = vunpack.c.l.b16 %v701
  %v1106 = vunpack.c.h.b16 %v701
  %v1107 = vunpack.c.l.b16 %v702
  %v1108 = vunpack.c.h.b16 %v702
  %v1109 = vunpack.c.l.b16 %v703
  %v1110 = vunpack.c.h.b16 %v703
  %v1111 = vunpack.c.l.b16 %v704
  %v1112 = vunpack.c.h.b16 %v704
  %v1113 = vunpack.c.l.b16 %v705
  %v1114 = vunpack.c.h.b16 %v705
  %v1115 = vunpack.c.l.b16 %v706
  %v1116 = vunpack.c.h.b16 %v706
  %v1117 = vunpack.c.l.b16 %v707
  %v1118 = vunpack.c.h.b16 %v707
  %v1119 = vunpack.c.l.b16 %v708
  %v1120 = vunpack.c.h.b16 %v708
  %v1121 = vunpack.c.l.b16 %v709
  %v1122 = vunpack.c.h.b16 %v709
  %v1123 = vunpack.c.l.b16 %v710
  %v1124 = vunpack.c.h.b16 %v710
  %v1125 = vunpack.c.l.b16 %v711
  %v1126 = vunpack.c.h.b16 %v711
  %v1127 = vunpack.c.l.b16 %v712
  %v1128 = vunpack.c.h.b16 %v712
  %v1129 = vunpack.c.l.b16 %v713
  %v1130 = vunpack.c.h.b16 %v713
  %v1131 = vunpack.c.l.b16 %v714
  %v1132 = vunpack.c.h.b16 %v714
  %v1133 = vunpack.c.l.b16 %v715
  %v1134 = vunpack.c.h.b16 %v715
  %v1135 = vunpack.c.l.b16 %v716
  %v1136 = vunpack.c.h.b16 %v716
  %v1137 = vunpack.c.l.b16 %v717
  %v1138 = vunpack.c.h.b16 %v717
  %v1139 = vunpack.c.l.b16 %v718
  %v1140 = vunpack.c.h.b16 %v718
  %v1141 = vunpack.c.l.b16 %v719
  %v1142 = vunpack.c.h.b16 %v719
  %v1143 = vunpack.c.l.b16 %v720
  %v1144 = vunpack.c.h.b16 %v720
  %v1145 = vunpack.c.l.b16 %v721
  %v1146 = vunpack.c.h.b16 %v721
  %v1147 = vunpack.c.l.b16 %v722
  %v1148 = vunpack.c.h.b16 %v722
  %v1149 = vunpack.c.l.b16 %v723
  %v1150 = vunpack.c.h.b16 %v723
  %v1151 = vunpack.c.l.b16 %v724
  %v1152 = vunpack.c.h.b16 %v724
  %v1153 = vunpack.c.l.b16 %v725
  %v1154 = vunpack.c.h.b16 %v725
  %v1155 = vunpack.c.l.b16 %v726
  %v1156 = vunpack.c.h.b16 %v726
  %v1157 = vunpack.c.l.b16 %v727
  %v1158 = vunpack.c.h.b16 %v727
  %v1159 = vunpack.c.l.b16 %v728
  %v1160 = vunpack.c.h.b16 %v728
  %v1161 = vunpack.c.l.b16 %v729
  %v1162 = vunpack.c.h.b16 %v729
  %v1163 = vunpack.c.l.b16 %v730
  %v1164 = vunpack.c.h.b16 %v730
  %v1165 = vunpack.c.l.b16 %v731
  %v1166 = vunpack.c.h.b16 %v731
  %v1167 = vunpack.c.l.b16 %v732
  %v1168 = vunpack.c.h.b16 %v732
  %v1169 = vunpack.c.l.b16 %v733
  %v1170 = vunpack.c.h.b16 %v733
  %v1171 = vunpack.c.l.b16 %v734
  %v1172 = vunpack.c.h.b16 %v734
  %v1173 = vunpack.c.l.b16 %v735
  %v1174 = vunpack.c.h.b16 %v735
  %v1175 = vunpack.c.l.b16 %v736
  %v1176 = vunpack.c.h.b16 %v736
  %v1177 = vunpack.c.l.b16 %v737
  %v1178 = vunpack.c.h.b16 %v737
  %v1179 = vunpack.c.l.b16 %v738
  %v1180 = vunpack.c.h.b16 %v738
  %v1181 = vunpack.c.l.b16 %v739
  %v1182 = vunpack.c.h.b16 %v739
  %v1183 = vunpack.c.l.b16 %v740
  %v1184 = vunpack.c.h.b16 %v740
  %v1185 = vunpack.c.l.b16 %v741
  %v1186 = vunpack.c.h.b16 %v741
  %v1187 = vunpack.c.l.b16 %v742
  %v1188 = vunpack.c.h.b16 %v742
  %v1189 = vunpack.c.l.b16 %v743
  %v1190 = vunpack.c.h.b16 %v743
  %v1191 = vunpack.c.l.b16 %v744
  %v1192 = vunpack.c.h.b16 %v744
  %v1193 = vunpack.c.l.b16 %v745
  %v1194 = vunpack.c.h.b16 %v745
  %v1195 = vunpack.c.l.b16 %v746
  %v1196 = vunpack.c.h.b16 %v746
  %v1197 = vunpack.c.l.b16 %v747
  %v1198 = vunpack.c.h.b16 %v747
  %v1199 = vunpack.c.l.b16 %v748
  %v1200 = vunpack.c.h.b16 %v748
  %v1201 = vunpack.c.l.b16 %v749
  %v1202 = vunpack.c.h.b16 %v749
  %v1203 = vunpack.c.l.b16 %v750
  %v1204 = vunpack.c.h.b16 %v750
  %v1205 = vunpack.c.l.b16 %v751
  %v1206 = vunpack.c.h.b16 %v751
  %v1207 = vunpack.c.l.b16 %v752
  %v1208 = vunpack.c.h.b16 %v752
  %v1209 = vunpack.c.l.b16 %v753
  %v1210 = vunpack.c.h.b16 %v753
  %v1211 = vunpack.c.l.b16 %v754
  %v1212 = vunpack.c.h.b16 %v754
  %v1213 = vunpack.c.l.b16 %v755
  %v1214 = vunpack.c.h.b16 %v755
  %v1215 = vunpack.c.l.b16 %v756
  %v1216 = vunpack.c.h.b16 %v756
  %v1217 = vunpack.c.l.b16 %v757
  %v1218 = vunpack.c.h.b16 %v757
  %v1219 = vunpack.c.l.b16 %v758
  %v1220 = vunpack.c.h.b16 %v758
  %v1221 = vunpack.c.l.b16 %v759
  %v1222 = vunpack.c.h.b16 %v759
  %v1223 = vunpack.c.l.b16 %v760
  %v1224 = vunpack.c.h.b16 %v760
  %v1225 = vunpack.c.l.b16 %v761
  %v1226 = vunpack.c.h.b16 %v761
  %v1227 = vunpack.c.l.b16 %v762
  %v1228 = vunpack.c.h.b16 %v762
  %v1229 = vunpack.c.l.b16 %v763
  %v1230 = vunpack.c.h.b16 %v763
  %v1231 = vunpack.c.l.b16 %v764
  %v1232 = vunpack.c.h.b16 %v764
  %v1233 = vunpack.c.l.b16 %v765
  %v1234 = vunpack.c.h.b16 %v765
  %v1235 = vunpack.c.l.b16 %v766
  %v1236 = vunpack.c.h.b16 %v766
  %v1237 = vunpack.c.l.b16 %v767
  %v1238 = vunpack.c.h.b16 %v767
  %v1239 = vunpack.c.l.b16 %v768
  %v1240 = vunpack.c.h.b16 %v768
  %v1241 = vunpack.c.l.b16 %v769
  %v1242 = vunpack.c.h.b16 %v769
  %v1243 = vunpack.c.l.b16 %v770
  %v1244 = vunpack.c.h.b16 %v770
  %v1245 = vunpack.c.l.b16 %v771
  %v1246 = vunpack.c.h.b16 %v771
  %v1247 = vunpack.c.l.b16 %v772
  %v1248 = vunpack.c.h.b16 %v772
  %v1249 = vunpack.c.l.b16 %v773
  %v1250 = vunpack.c.h.b16 %v773
  %v1251 = vunpack.c.l.b16 %v774
  %v1252 = vunpack.c.h.b16 %v774
  %v1253 = vunpack.c.l.b16 %v775
  %v1254 = vunpack.c.h.b16 %v775
  %v1255 = vunpack.c.l.b16 %v776
  %v1256 = vunpack.c.h.b16 %v776
  %v1257 = vunpack.c.l.b16 %v777
  %v1258 = vunpack.c.h.b16 %v777
  %v1259 = vunpack.c.l.b16 %v778
  %v1260 = vunpack.c.h.b16 %v778
  %v1261 = vunpack.c.l.b16 %v779
  %v1262 = vunpack.c.h.b16 %v779
  %v1263 = vunpack.c.l.b16 %v780
  %v1264 = vunpack.c.h.b16 %v780
  %v1265 = vunpack.c.l.b16 %v781
  %v1266 = vunpack.c.h.b16 %v781
  %v1267 = vunpack.c.l.b16 %v782
  %v1268 = vunpack.c.h.b16 %v782
  %v1269 = vunpack.c.l.b16 %v783
  %v1270 = vunpack.c.h.b16 %v783
  %v1271 = vunpack.c.l.b16 %v784
  %v1272 = vunpack.c.h.b16 %v784
  %v1273 = vunpack.c.l.b16 %v785
  %v1274 = vunpack.c.h.b16 %v785
  %v1275 = vunpack.c.l.b16 %v786
  %v1276 = vunpack.c.h.b16 %v786
  %v1277 = vunpack.c.l.b16 %v787
  %v1278 = vunpack.c.h.b16 %v787
  %v1279 = vunpack.c.l.b16 %v788
  %v1280 = vunpack.c.h.b16 %v788
  %v1281 = vunpack.c.l.b16 %v789
  %v1282 = vunpack.c.h.b16 %v789
  %v1283 = vunpack.c.l.b16 %v790
  %v1284 = vunpack.c.h.b16 %v790
  %v1285 = vunpack.c.l.b16 %v791
  %v1286 = vunpack.c.h.b16 %v791
  %v1287 = vunpack.c.l.b16 %v792
  %v1288 = vunpack.c.h.b16 %v792
  %v1289 = vunpack.c.l.b16 %v793
  %v1290 = vunpack.c.h.b16 %v793
  %v1291 = vunpack.c.l.b16 %v794
  %v1292 = vunpack.c.h.b16 %v794
  %v1293 = vunpack.c.l.b16 %v795
  %v1294 = vunpack.c.h.b16 %v795
  %v1295 = vunpack.c.l.b16 %v796
  %v1296 = vunpack.c.h.b16 %v796
  %v1297 = vunpack.c.l.b16 %v797
  %v1298 = vunpack.c.h.b16 %v797
  %v1299 = vunpack.c.l.b16 %v798
  %v1300 = vunpack.c.h.b16 %v798
  %v1301 = vunpack.c.l.b16 %v799
  %v1302 = vunpack.c.h.b16 %v799
  %v1303 = vunpack.c.l.b16 %v800
  %v1304 = vunpack.c.h.b16 %v800
  %v1305 = vunpack.c.l.b16 %v801
  %v1306 = vunpack.c.h.b16 %v801
  %v1307 = vunpack.c.l.b16 %v802
  %v1308 = vunpack.c.h.b16 %v802
  %v1309 = vunpack.c.l.b16 %v803
  %v1310 = vunpack.c.h.b16 %v803
  %v1311 = vunpack.c.l.b16 %v804
  %v1312 = vunpack.c.h.b16 %v804
  %v1313 = vunpack.c.l.b16 %v805
  %v1314 = vunpack.c.h.b16 %v805
  %v1315 = vunpack.c.l.b16 %v806
  %v1316 = vunpack.c.h.b16 %v806
  %v1317 = vunpack.c.l.b16 %v807
  %v1318 = vunpack.c.h.b16 %v807
  %v1319 = vunpack.c.l.b16 %v808
  %v1320 = vunpack.c.h.b16 %v808
  %v1321 = vunpack.c.l.b16 %v809
  %v1322 = vunpack.c.h.b16 %v809
  %v1323 = vunpack.c.l.b16 %v810
  %v1324 = vunpack.c.h.b16 %v810
  %v1325 = vunpack.c.l.b16 %v811
  %v1326 = vunpack.c.h.b16 %v811
  %v1327 = vunpack.c.l.b16 %v812
  %v1328 = vunpack.c.h.b16 %v812
  %v1329 = vunpack.c.l.b16 %v813
  %v1330 = vunpack.c.h.b16 %v813
  %v1331 = vunpack.c.l.b16 %v814
  %v1332 = vunpack.c.h.b16 %v814
  %v1333 = vunpack.c.l.b16 %v815
  %v1334 = vunpack.c.h.b16 %v815
  %v1335 = vunpack.c.l.b16 %v816
  %v1336 = vunpack.c.h.b16 %v816
  %v1337 = vunpack.c.l.b16 %v817
  %v1338 = vunpack.c.h.b16 %v817
  %v1339 = vunpack.c.l.b16 %v818
  %v1340 = vunpack.c.h.b16 %v818
  %v1341 = vunpack.c.l.b16 %v819
  %v1342 = vunpack.c.h.b16 %v819
  %v1343 = vunpack.c.l.b16 %v820
  %v1344 = vunpack.c.h.b16 %v820
  %v1345 = vunpack.c.l.b16 %v821
  %v1346 = vunpack.c.h.b16 %v821
  %v1347 = vunpack.c.l.b16 %v822
  %v1348 = vunpack.c.h.b16 %v822
  %v1349 = vunpack.c.l.b16 %v823
  %v1350 = vunpack.c.h.b16 %v823
  %v1351 = vunpack.c.l.b16 %v824
  %v1352 = vunpack.c.h.b16 %v824
  %v1353 = vunpack.c.l.b16 %v825
  %v1354 = vunpack.c.h.b16 %v825
  %v1355 = vunpack.c.l.b16 %v826
  %v1356 = vunpack.c.h.b16 %v826
  %v1357 = vunpack.c.l.b16 %v827
  %v1358 = vunpack.c.h.b16 %v827
  %v1359 = vunpack.c.l.b16 %v828
  %v1360 = vunpack.c.h.b16 %v828
  %v1361 = vunpack.c.l.b16 %v829
  %v1362 = vunpack.c.h.b16 %v829
  %v1363 = vunpack.c.l.b16 %v830
  %v1364 = vunpack.c.h.b16 %v830
  %v1365 = vunpack.c.l.b16 %v831
  %v1366 = vunpack.c.h.b16 %v831
  %v1367 = vunpack.c.l.b16 %v832
  %v1368 = vunpack.c.h.b16 %v832
  %v1369 = vunpack.c.l.b16 %v833
  %v1370 = vunpack.c.h.b16 %v833
  %v1371 = vunpack.c.l.b16 %v834
  %v1372 = vunpack.c.h.b16 %v834
  %v1373 = vunpack.c.l.b16 %v835
  %v1374 = vunpack.c.h.b16 %v835
  %v1375 = vunpack.c.l.b16 %v836
  %v1376 = vunpack.c.h.b16 %v836
  %v1377 = vunpack.c.l.b16 %v837
  %v1378 = vunpack.c.h.b16 %v837
  %v1379 = vunpack.c.l.b16 %v838
  %v1380 = vunpack.c.h.b16 %v838
  %v1381 = vunpack.c.l.b16 %v839
  %v1382 = vunpack.c.h.b16 %v839
  %v1383 = vunpack.c.l.b16 %v840
  %v1384 = vunpack.c.h.b16 %v840
  %v1385 = vunpack.c.l.b16 %v841
  %v1386 = vunpack.c.h.b16 %v841
  %v1387 = vunpack.c.l.b16 %v842
  %v1388 = vunpack.c.h.b16 %v842
  %v1389 = vunpack.c.l.b16 %v843
  %v1390 = vunpack.c.h.b16 %v843
  %v1391 = vunpack.c.l.b16 %v844
  %v1392 = vunpack.c.h.b16 %v844
  %v1393 = vunpack.c.l.b16 %v845
  %v1394 = vunpack.c.h.b16 %v845
  %v1395 = vunpack.c.l.b16 %v846
  %v1396 = vunpack.c.h.b16 %v846
  %v1397 = vunpack.c.l.b16 %v847
  %v1398 = vunpack.c.h.b16 %v847
  %v1399 = vunpack.c.l.b16 %v848
  %v1400 = vunpack.c.h.b16 %v848
  %v1401 = vunpack.c.l.b16 %v849
  %v1402 = vunpack.c.h.b16 %v849
  %v1403 = vunpack.c.l.b16 %v850
  %v1404 = vunpack.c.h.b16 %v850
  %v1405 = vunpack.c.l.b16 %v851
  %v1406 = vunpack.c.h.b16 %v851
  %v1407 = vunpack.c.l.b16 %v852
  %v1408 = vunpack.c.h.b16 %v852
  %v1409 = vunpack.c.l.b16 %v853
  %v1410 = vunpack.c.h.b16 %v853
  %v1411 = vunpack.c.l.b16 %v854
  %v1412 = vunpack.c.h.b16 %v854
  %v1413 = vunpack.c.l.b16 %v855
  %v1414 = vunpack.c.h.b16 %v855
  %v1415 = vunpack.c.l.b16 %v856
  %v1416 = vunpack.c.h.b16 %v856
  %v1417 = vunpack.c.l.b16 %v857
  %v1418 = vunpack.c.h.b16 %v857
  %v1419 = vunpack.c.l.b16 %v858
  %v1420 = vunpack.c.h.b16 %v858
  %v1421 = vunpack.c.l.b16 %v859
  %v1422 = vunpack.c.h.b16 %v859
  %v1423 = vunpack.c.l.b16 %v860
  %v1424 = vunpack.c.h.b16 %v860
  %v1425 = vunpack.c.l.b16 %v861
  %v1426 = vunpack.c.h.b16 %v861
  %v1427 = vunpack.c.l.b16 %v862
  %v1428 = vunpack.c.h.b16 %v862
  %v1429 = vunpack.c.l.b16 %v863
  %v1430 = vunpack.c.h.b16 %v863
  %v1431 = vunpack.c.l.b16 %v864
  %v1432 = vunpack.c.h.b16 %v864
  %v1433 = vunpack.c.l.b16 %v865
  %v1434 = vunpack.c.h.b16 %v865
  %v1435 = vunpack.c.l.b16 %v866
  %v1436 = vunpack.c.h.b16 %v866
  %v1437 = vunpack.c.l.b16 %v867
  %v1438 = vunpack.c.h.b16 %v867
  %v1439 = vunpack.c.l.b16 %v868
  %v1440 = vunpack.c.h.b16 %v868
  %v1441 = vunpack.c.l.b16 %v869
  %v1442 = vunpack.c.h.b16 %v869
  %v1443 = vunpack.c.l.b16 %v870
  %v1444 = vunpack.c.h.b16 %v870
  %v1445 = vunpack.c.l.b16 %v871
  %v1446 = vunpack.c.h.b16 %v871
  %v1447 = vunpack.c.l.b16 %v872
  %v1448 = vunpack.c.h.b16 %v872
  %v1449 = vunpack.c.l.b16 %v873
  %v1450 = vunpack.c.h.b16 %v873
  %v1451 = vunpack.c.l.b16 %v874
  %v1452 = vunpack.c.h.b16 %v874
  %v1453 = vunpack.c.l.b16 %v875
  %v1454 = vunpack.c.h.b16 %v875
  %v1455 = vunpack.c.l.b16 %v876
  %v1456 = vunpack.c.h.b16 %v876
  %v1457 = vunpack.c.l.b16 %v877
  %v1458 = vunpack.c.h.b16 %v877
  %v1459 = vunpack.c.l.b16 %v878
  %v1460 = vunpack.c.h.b16 %v878
  %v1461 = vunpack.c.l.b16 %v879
  %v1462 = vunpack.c.h.b16 %v879
  %v1463 = vunpack.c.l.b16 %v880
  %v1464 = vunpack.c.h.b16 %v880
  %v1465 = vunpack.c.l.b16 %v881
  %v1466 = vunpack.c.h.b16 %v881
  %v1467 = vunpack.c.l.b16 %v882
  %v1468 = vunpack.c.h.b16 %v882
  %v1469 = vunpack.c.l.b16 %v883
  %v1470 = vunpack.c.h.b16 %v883
  %v1471 = vunpack.c.l.b16 %v884
  %v1472 = vunpack.c.h.b16 %v884
  %v1473 = vunpack.c.l.b16 %v885
  %v1474 = vunpack.c.h.b16 %v885
  %v1475 = vunpack.c.l.b16 %v886
  %v1476 = vunpack.c.h.b16 %v886
  %v1477 = vunpack.c.l.b16 %v887
  %v1478 = vunpack.c.h.b16 %v887
  %v1479 = vunpack.c.l.b16 %v888
  %v1480 = vunpack.c.h.b16 %v888
  %v1481 = vunpack.c.l.b16 %v889
  %v1482 = vunpack.c.h.b16 %v889
  %v1483 = vunpack.c.l.b16 %v890
  %v1484 = vunpack.c.h.b16 %v890
  %v1485 = vunpack.c.l.b16 %v891
  %v1486 = vunpack.c.h.b16 %v891
  %v1487 = vunpack.c.l.b16 %v892
  %v1488 = vunpack.c.h.b16 %v892
  %v1489 = vunpack.c.l.b16 %v893
  %v1490 = vunpack.c.h.b16 %v893
  %v1491 = vunpack.c.l.b16 %v894
  %v1492 = vunpack.c.h.b16 %v894
  %v1493 = vpack.c.b16 %v1105, %v1101
  %v1494 = vpack.c.b16 %v1106, %v1102
  %v1495 = vpack.c.b16 %v1107, %v1103
  %v1496 = vpack.c.b16 %v1108, %v1104
  %v1497 = vpack.c.b16 %v1113, %v1109
  %v1498 = vpack.c.b16 %v1114, %v1110
  %v1499 = vpack.c.b16 %v1115, %v1111
  %v1500 = vpack.c.b16 %v1116, %v1112
  %v1501 = vpack.c.b16 %v1121, %v1117
  %v1502 = vpack.c.b16 %v1122, %v1118
  %v1503 = vpack.c.b16 %v1123, %v1119
  %v1504 = vpack.c.b16 %v1124, %v1120
  %v1505 = vpack.c.b16 %v1129, %v1125
  %v1506 = vpack.c.b16 %v1130, %v1126
  %v1507 = vpack.c.b16 %v1131, %v1127
  %v1508 = vpack.c.b16 %v1132, %v1128
  %v1509 = vpack.c.b16 %v1137, %v1133
  %v1510 = vpack.c.b16 %v1138, %v1134
  %v1511 = vpack.c.b16 %v1139, %v1135
  %v1512 = vpack.c.b16 %v1140, %v1136
  %v1513 = vpack.c.b16 %v1145, %v1141
  %v1514 = vpack.c.b16 %v1146, %v1142
  %v1515 = vpack.c.b16 %v1147, %v1143
  %v1516 = vpack.c.b16 %v1148, %v1144
  %v1517 = vpack.c.b16 %v1153, %v1149
  %v1518 = vpack.c.b16 %v1154, %v1150
  %v1519 = vpack.c.b16 %v1155, %v1151
  %v1520 = vpack.c.b16 %v1156, %v1152
  %v1521 = vpack.c.b16 %v1161, %v1157
  %v1522 = vpack.c.b16 %v1162, %v1158
  %v1523 = vpack.c.b16 %v1163, %v1159
  %v1524 = vpack.c.b16 %v1164, %v1160
  %v1525 = vpack.c.b16 %v1169, %v1165
  %v1526 = vpack.c.b16 %v1170, %v1166
  %v1527 = vpack.c.b16 %v1171, %v1167
  %v1528 = vpack.c.b16 %v1172, %v1168
  %v1529 = vpack.c.b16 %v1177, %v1173
  %v1530 = vpack.c.b16 %v1178, %v1174
  %v1531 = vpack.c.b16 %v1179, %v1175
  %v1532 = vpack.c.b16 %v1180, %v1176
  %v1533 = vpack.c.b16 %v1185, %v1181
  %v1534 = vpack.c.b16 %v1186, %v1182
  %v1535 = vpack.c.b16 %v1187, %v1183
  %v1536 = vpack.c.b16 %v1188, %v1184
  %v1537 = vpack.c.b16 %v1193, %v1189
  %v1538 = vpack.c.b16 %v1194, %v1190
  %v1539 = vpack.c.b16 %v1195, %v1191
  %v1540 = vpack.c.b16 %v1196, %v1192
  %v1541 = vpack.c.b16 %v1201, %v1197
  %v1542 = vpack.c.b16 %v1202, %v1198
  %v1543 = vpack.c.b16 %v1203, %v1199
  %v1544 = vpack.c.b16 %v1204, %v1200
  %v1545 = vpack.c.b16 %v1209, %v1205
  %v1546 = vpack.c.b16 %v1210, %v1206
  %v1547 = vpack.c.b16 %v1211, %v1207
  %v1548 = vpack.c.b16 %v1212, %v1208
  %v1549 = vpack.c.b16 %v1217, %v1213
  %v1550 = vpack.c.b16 %v1218, %v1214
  %v1551 = vpack.c.b16 %v1219, %v1215
  %v1552 = vpack.c.b16 %v1220, %v1216
  %v1553 = vpack.c.b16 %v1225, %v1221
  %v1554 = vpack.c.b16 %v1226, %v1222
  %v1555 = vpack.c.b16 %v1227, %v1223
  %v1556 = vpack.c.b16 %v1228, %v1224
  %v1557 = vpack.c.b16 %v1233, %v1229
  %v1558 = vpack.c.b16 %v1234, %v1230
  %v1559 = vpack.c.b16 %v1235, %v1231
  %v1560 = vpack.c.b16 %v1236, %v1232
  %v1561 = vpack.c.b16 %v1241, %v1237
  %v1562 = vpack.c.b16 %v1242, %v1238
  %v1563 = vpack.c.b16 %v1243, %v1239
  %v1564 = vpack.c.b16 %v1244, %v1240
  %v1565 = vpack.c.b16 %v1249, %v1245
  %v1566 = vpack.c.b16 %v1250, %v1246
  %v1567 = vpack.c.b16 %v1251, %v1247
  %v1568 = vpack.c.b16 %v1252, %v1248
  %v1569 = vpack.c.b16 %v1257, %v1253
  %v1570 = vpack.c.b16 %v1258, %v1254
  %v1571 = vpack.c.b16 %v1259, %v1255
  %v1572 = vpack.c.b16 %v1260, %v1256
  %v1573 = vpack.c.b16 %v1265, %v1261
  %v1574 = vpack.c.b16 %v1266, %v1262
  %v1575 = vpack.c.b16 %v1267, %v1263
  %v1576 = vpack.c.b16 %v1268, %v1264
  %v1577 = vpack.c.b16 %v1273, %v1269
  %v1578 = vpack.c.b16 %v1274, %v1270
  %v1579 = vpack.c.b16 %v1275, %v1271
  %v1580 = vpack.c.b16 %v1276, %v1272
  %v1581 = vpack.c.b16 %v1281, %v1277
  %v1582 = vpack.c.b16 %v1282, %v1278
  %v1583 = vpack.c.b16 %v1283, %v1279
  %v1584 = vpack.c.b16 %v1284, %v1280
  %v1585 = vpack.c.b16 %v1289, %v1285
  %v1586 = vpack.c.b16 %v1290, %v1286
  %v1587 = vpack.c.b16 %v1291, %v1287
  %v1588 = vpack.c.b16 %v1292, %v1288
  %v1589 = vpack.c.b16 %v1297, %v1293
  %v1590 = vpack.c.b16 %v1298, %v1294
  %v1591 = vpack.c.b16 %v1299, %v1295
  %v1592 = vpack.c.b16 %v1300, %v1296
  %v1593 = vpack.c.b16 %v1305, %v1301
  %v1594 = vpack.c.b16 %v1306, %v1302
  %v1595 = vpack.c.b16 %v1307, %v1303
  %v1596 = vpack.c.b16 %v1308, %v1304
  %v1597 = vpack.c.b16 %v1313, %v1309
  %v1598 = vpack.c.b16 %v1314, %v1310
  %v1599 = vpack.c.b16 %v1315, %v1311
  %v1600 = vpack.c.b16 %v1316, %v1312
  %v1601 = vpack.c.b16 %v1321, %v1317
  %v1602 = vpack.c.b16 %v1322, %v1318
  %v1603 = vpack.c.b16 %v1323, %v1319
  %v1604 = vpack.c.b16 %v1324, %v1320
  %v1605 = vpack.c.b16 %v1329, %v1325
  %v1606 = vpack.c.b16 %v1330, %v1326
  %v1607 = vpack.c.b16 %v1331, %v1327
  %v1608 = vpack.c.b16 %v1332, %v1328
  %v1609 = vpack.c.b16 %v1337, %v1333
  %v1610 = vpack.c.b16 %v1338, %v1334
  %v1611 = vpack.c.b16 %v1339, %v1335
  %v1612 = vpack.c.b16 %v1340, %v1336
  %v1613 = vpack.c.b16 %v1345, %v1341
  %v1614 = vpack.c.b16 %v1346, %v1342
  %v1615 = vpack.c.b16 %v1347, %v1343
  %v1616 = vpack.c.b16 %v1348, %v1344
  %v1617 = vpack.c.b16 %v1353, %v1349
  %v1618 = vpack.c.b16 %v1354, %v1350
  %v1619 = vpack.c.b16 %v1355, %v1351
  %v1620 = vpack.c.b16 %v1356, %v1352
  %v1621 = vpack.c.b16 %v1361, %v1357
  %v1622 = vpack.c.b16 %v1362, %v1358
  %v1623 = vpack.c.b16 %v1363, %v1359
  %v1624 = vpack.c.b16 %v1364, %v1360
  %v1625 = vpack.c.b16 %v1369, %v1365
  %v1626 = vpack.c.b16 %v1370, %v1366
  %v1627 = vpack.c.b16 %v1371, %v1367
  %v1628 = vpack.c.b16 %v1372, %v1368
  %v1629 = vpack.c.b16 %v1377, %v1373
  %v1630 = vpack.c.b16 %v1378, %v1374
  %v1631 = vpack.c.b16 %v1379, %v1375
  %v1632 = vpack.c.b16 %v1380, %v1376
  %v1633 = vpack.c.b16 %v1385, %v1381
  %v1634 = vpack.c.b16 %v1386, %v1382
  %v1635 = vpack.c.b16 %v1387, %v1383
  %v1636 = vpack.c.b16 %v1388, %v1384
  %v1637 = vpack.c.b16 %v1393, %v1389
  %v1638 = vpack.c.b16 %v1394, %v1390
  %v1639 = vpack.c.b16 %v1395, %v1391
  %v1640 = vpack.c.b16 %v1396, %v1392
  %v1641 = vpack.c.b16 %v1401, %v1397
  %v1642 = vpack.c.b16 %v1402, %v1398
  %v1643 = vpack.c.b16 %v1403, %v1399
  %v1644 = vpack.c.b16 %v1404, %v1400
  %v1645 = vpack.c.b16 %v1409, %v1405
  %v1646 = vpack.c.b16 %v1410, %v1406
  %v1647 = vpack.c.b16 %v1411, %v1407
  %v1648 = vpack.c.b16 %v1412, %v1408
  %v1649 = vpack.c.b16 %v1417, %v1413
  %v1650 = vpack.c.b16 %v1418, %v1414
  %v1651 = vpack.c.b16 %v1419, %v1415
  %v1652 = vpack.c.b16 %v1420, %v1416
  %v1653 = vpack.c.b16 %v1425, %v1421
  %v1654 = vpack.c.b16 %v1426, %v1422
  %v1655 = vpack.c.b16 %v1427, %v1423
  %v1656 = vpack.c.b16 %v1428, %v1424
  %v1657 = vpack.c.b16 %v1433, %v1429
  %v1658 = vpack.c.b16 %v1434, %v1430
  %v1659 = vpack.c.b16 %v1435, %v1431
  %v1660 = vpack.c.b16 %v1436, %v1432
  %v1661 = vpack.c.b16 %v1441, %v1437
  %v1662 = vpack.c.b16 %v1442, %v1438
  %v1663 = vpack.c.b16 %v1443, %v1439
  %v1664 = vpack.c.b16 %v1444, %v1440
  %v1665 = vpack.c.b16 %v1449, %v1445
  %v1666 = vpack.c.b16 %v1450, %v1446
  %v1667 = vpack.c.b16 %v1451, %v1447
  %v1668 = vpack.c.b16 %v1452, %v1448
  %v1669 = vpack.c.b16 %v1457, %v1453
  %v1670 = vpack.c.b16 %v1458, %v1454
  %v1671 = vpack.c.b16 %v1459, %v1455
  %v1672 = vpack.c.b16 %v1460, %v1456
  %v1673 = vpack.c.b16 %v1465, %v1461
  %v1674 = vpack.c.b16 %v1466, %v1462
  %v1675 = vpack.c.b16 %v1467, %v1463
  %v1676 = vpack.c.b16 %v1468, %v1464
  %v1677 = vpack.c.b16 %v1473, %v1469
  %v1678 = vpack.c.b16 %v1474, %v1470
  %v1679 = vpack.c.b16 %v1475, %v1471
  %v1680 = vpack.c.b16 %v1476, %v1472
  %v1681 = vpack.c.b16 %v1481, %v1477
  %v1682 = vpack.c.b16 %v1482, %v1478
  %v1683 = vpack.c.b16 %v1483, %v1479
  %v1684 = vpack.c.b16 %v1484, %v1480
  %v1685 = vpack.c.b16 %v1489, %v1485
  %v1686 = vpack.c.b16 %v1490, %v1486
  %v1687 = vpack.c.b16 %v1491, %v1487
  %v1688 = vpack.c.b16 %v1492, %v1488
  %vm1885 = vcmask 130048
  %v1887 = vsel %vm1885, %v481, 0
  %v1890 = vsel %vm1885, %v488, 0
  %v1893 = vsel %vm1885, %v495, 0
  %v1896 = vsel %vm1885, %v502, 0
  %v1899 = vsel %vm1885, %v509, 0
  %v1902 = vsel %vm1885, %v516, 0
  %v1905 = vsel %vm1885, %v523, 0
  %v1908 = vsel %vm1885, %v530, 0
  %v1911 = vsel %vm1885, %v537, 0
  %v1914 = vsel %vm1885, %v544, 0
  %v1917 = vsel %vm1885, %v551, 0
  %v1920 = vsel %vm1885, %v558, 0
  %v1923 = vsel %vm1885, %v565, 0
  %v1926 = vsel %vm1885, %v572, 0
  %v1929 = vsel %vm1885, %v579, 0
  %v1932 = vsel %vm1885, %v586, 0
  %v1935 = vsel %vm1885, %v593, 0
  %v1938 = vsel %vm1885, %v600, 0
  %v1941 = vsel %vm1885, %v607, 0
  %v1944 = vsel %vm1885, %v614, 0
  %v1947 = vsel %vm1885, %v621, 0
  %v1950 = vsel %vm1885, %v628, 0
  %v1953 = vsel %vm1885, %v635, 0
  %v1956 = vsel %vm1885, %v642, 0
  %v1959 = vsel %vm1885, %v649, 0
  %v1962 = vsel %vm1885, %v656, 0
  %v1965 = vsel %vm1885, %v663, 0
  %v1968 = vsel %vm1885, %v670, 0
  %v1971 = vsel %vm1885, %v677, 0
  %v1974 = vsel %vm1885, %v684, 0
  %v1977 = vsel %vm1885, %v691, 0
  %v1980 = vsel %vm1885, %v698, 0
  %1982 = vmatpush.bf16.msra.mxu0 %v1521
  %1983 = vmatpush.bf16.msra.mxu0 %v1517
  %1984 = vmatpush.bf16.msra.mxu0 %v1513
  %1985 = vmatpush.bf16.msra.mxu0 %v1509
  %1986 = vmatpush.bf16.msra.mxu0 %v1505
  %1987 = vmatpush.bf16.msra.mxu0 %v1501
  %1988 = vmatpush.bf16.msra.mxu0 %v1497
  %1989 = vmatpush.bf16.msra.mxu0 %v1493
  %1990 = vmatmul.bf16.gmra.mxu0 %v475
  %v1991 = vpop.f32.mrf.mxu0
  %v1992 = vadd.f32 %v897, %v1991
  %v1993 = vpop.f32.mrf.mxu0
  %v1994 = vadd.f32 %v897, %v1993
  %1995 = vmatmul.bf16.gmra.mxu0 %v482
  %v1996 = vpop.f32.mrf.mxu0
  %v1997 = vadd.f32 %v897, %v1996
  %v1998 = vpop.f32.mrf.mxu0
  %v1999 = vadd.f32 %v897, %v1998
  %2000 = vmatmul.bf16.gmra.mxu0 %v489
  %v2001 = vpop.f32.mrf.mxu0
  %v2002 = vadd.f32 %v897, %v2001
  %v2003 = vpop.f32.mrf.mxu0
  %v2004 = vadd.f32 %v897, %v2003
  %2005 = vmatmul.bf16.gmra.mxu0 %v496
  %v2006 = vpop.f32.mrf.mxu0
  %v2007 = vadd.f32 %v897, %v2006
  %v2008 = vpop.f32.mrf.mxu0
  %v2009 = vadd.f32 %v897, %v2008
  %2010 = vmatmul.bf16.gmra.mxu0 %v503
  %v2011 = vpop.f32.mrf.mxu0
  %v2012 = vadd.f32 %v897, %v2011
  %v2013 = vpop.f32.mrf.mxu0
  %v2014 = vadd.f32 %v897, %v2013
  %2015 = vmatmul.bf16.gmra.mxu0 %v510
  %v2016 = vpop.f32.mrf.mxu0
  %v2017 = vadd.f32 %v897, %v2016
  %v2018 = vpop.f32.mrf.mxu0
  %v2019 = vadd.f32 %v897, %v2018
  %2020 = vmatmul.bf16.gmra.mxu0 %v517
  %v2021 = vpop.f32.mrf.mxu0
  %v2022 = vadd.f32 %v897, %v2021
  %v2023 = vpop.f32.mrf.mxu0
  %v2024 = vadd.f32 %v897, %v2023
  %2025 = vmatmul.bf16.gmra.mxu0 %v524
  %v2026 = vpop.f32.mrf.mxu0
  %v2027 = vadd.f32 %v897, %v2026
  %v2028 = vpop.f32.mrf.mxu0
  %v2029 = vadd.f32 %v897, %v2028
  %2030 = vmatmul.bf16.gmra.mxu0 %v531
  %v2031 = vpop.f32.mrf.mxu0
  %v2032 = vadd.f32 %v897, %v2031
  %v2033 = vpop.f32.mrf.mxu0
  %v2034 = vadd.f32 %v897, %v2033
  %2035 = vmatmul.bf16.gmra.mxu0 %v538
  %v2036 = vpop.f32.mrf.mxu0
  %v2037 = vadd.f32 %v897, %v2036
  %v2038 = vpop.f32.mrf.mxu0
  %v2039 = vadd.f32 %v897, %v2038
  %2040 = vmatmul.bf16.gmra.mxu0 %v545
  %v2041 = vpop.f32.mrf.mxu0
  %v2042 = vadd.f32 %v897, %v2041
  %v2043 = vpop.f32.mrf.mxu0
  %v2044 = vadd.f32 %v897, %v2043
  %2045 = vmatmul.bf16.gmra.mxu0 %v552
  %v2046 = vpop.f32.mrf.mxu0
  %v2047 = vadd.f32 %v897, %v2046
  %v2048 = vpop.f32.mrf.mxu0
  %v2049 = vadd.f32 %v897, %v2048
  %2050 = vmatmul.bf16.gmra.mxu0 %v559
  %v2051 = vpop.f32.mrf.mxu0
  %v2052 = vadd.f32 %v897, %v2051
  %v2053 = vpop.f32.mrf.mxu0
  %v2054 = vadd.f32 %v897, %v2053
  %2055 = vmatmul.bf16.gmra.mxu0 %v566
  %v2056 = vpop.f32.mrf.mxu0
  %v2057 = vadd.f32 %v897, %v2056
  %v2058 = vpop.f32.mrf.mxu0
  %v2059 = vadd.f32 %v897, %v2058
  %2060 = vmatmul.bf16.gmra.mxu0 %v573
  %v2061 = vpop.f32.mrf.mxu0
  %v2062 = vadd.f32 %v897, %v2061
  %v2063 = vpop.f32.mrf.mxu0
  %v2064 = vadd.f32 %v897, %v2063
  %2065 = vmatmul.bf16.gmra.mxu0 %v580
  %v2066 = vpop.f32.mrf.mxu0
  %v2067 = vadd.f32 %v897, %v2066
  %v2068 = vpop.f32.mrf.mxu0
  %v2069 = vadd.f32 %v897, %v2068
  %2070 = vmatmul.bf16.gmra.mxu0 %v587
  %v2071 = vpop.f32.mrf.mxu0
  %v2072 = vadd.f32 %v897, %v2071
  %v2073 = vpop.f32.mrf.mxu0
  %v2074 = vadd.f32 %v897, %v2073
  %2075 = vmatmul.bf16.gmra.mxu0 %v594
  %v2076 = vpop.f32.mrf.mxu0
  %v2077 = vadd.f32 %v897, %v2076
  %v2078 = vpop.f32.mrf.mxu0
  %v2079 = vadd.f32 %v897, %v2078
  %2080 = vmatmul.bf16.gmra.mxu0 %v601
  %v2081 = vpop.f32.mrf.mxu0
  %v2082 = vadd.f32 %v897, %v2081
  %v2083 = vpop.f32.mrf.mxu0
  %v2084 = vadd.f32 %v897, %v2083
  %2085 = vmatmul.bf16.gmra.mxu0 %v608
  %v2086 = vpop.f32.mrf.mxu0
  %v2087 = vadd.f32 %v897, %v2086
  %v2088 = vpop.f32.mrf.mxu0
  %v2089 = vadd.f32 %v897, %v2088
  %2090 = vmatmul.bf16.gmra.mxu0 %v615
  %v2091 = vpop.f32.mrf.mxu0
  %v2092 = vadd.f32 %v897, %v2091
  %v2093 = vpop.f32.mrf.mxu0
  %v2094 = vadd.f32 %v897, %v2093
  %2095 = vmatmul.bf16.gmra.mxu0 %v622
  %v2096 = vpop.f32.mrf.mxu0
  %v2097 = vadd.f32 %v897, %v2096
  %v2098 = vpop.f32.mrf.mxu0
  %v2099 = vadd.f32 %v897, %v2098
  %2100 = vmatmul.bf16.gmra.mxu0 %v629
  %v2101 = vpop.f32.mrf.mxu0
  %v2102 = vadd.f32 %v897, %v2101
  %v2103 = vpop.f32.mrf.mxu0
  %v2104 = vadd.f32 %v897, %v2103
  %2105 = vmatmul.bf16.gmra.mxu0 %v636
  %v2106 = vpop.f32.mrf.mxu0
  %v2107 = vadd.f32 %v897, %v2106
  %v2108 = vpop.f32.mrf.mxu0
  %v2109 = vadd.f32 %v897, %v2108
  %2110 = vmatmul.bf16.gmra.mxu0 %v643
  %v2111 = vpop.f32.mrf.mxu0
  %v2112 = vadd.f32 %v897, %v2111
  %v2113 = vpop.f32.mrf.mxu0
  %v2114 = vadd.f32 %v897, %v2113
  %2115 = vmatmul.bf16.gmra.mxu0 %v650
  %v2116 = vpop.f32.mrf.mxu0
  %v2117 = vadd.f32 %v897, %v2116
  %v2118 = vpop.f32.mrf.mxu0
  %v2119 = vadd.f32 %v897, %v2118
  %2120 = vmatmul.bf16.gmra.mxu0 %v657
  %v2121 = vpop.f32.mrf.mxu0
  %v2122 = vadd.f32 %v897, %v2121
  %v2123 = vpop.f32.mrf.mxu0
  %v2124 = vadd.f32 %v897, %v2123
  %2125 = vmatmul.bf16.gmra.mxu0 %v664
  %v2126 = vpop.f32.mrf.mxu0
  %v2127 = vadd.f32 %v897, %v2126
  %v2128 = vpop.f32.mrf.mxu0
  %v2129 = vadd.f32 %v897, %v2128
  %2130 = vmatmul.bf16.gmra.mxu0 %v671
  %v2131 = vpop.f32.mrf.mxu0
  %v2132 = vadd.f32 %v897, %v2131
  %v2133 = vpop.f32.mrf.mxu0
  %v2134 = vadd.f32 %v897, %v2133
  %2135 = vmatmul.bf16.gmra.mxu0 %v678
  %v2136 = vpop.f32.mrf.mxu0
  %v2137 = vadd.f32 %v897, %v2136
  %v2138 = vpop.f32.mrf.mxu0
  %v2139 = vadd.f32 %v897, %v2138
  %2140 = vmatmul.bf16.gmra.mxu0 %v685
  %v2141 = vpop.f32.mrf.mxu0
  %v2142 = vadd.f32 %v897, %v2141
  %v2143 = vpop.f32.mrf.mxu0
  %v2144 = vadd.f32 %v897, %v2143
  %2145 = vmatmul.bf16.gmra.mxu0 %v692
  %v2146 = vpop.f32.mrf.mxu0
  %v2147 = vadd.f32 %v897, %v2146
  %v2148 = vpop.f32.mrf.mxu0
  %v2149 = vadd.f32 %v897, %v2148
  %2150 = vdwg.mxu0
  %2151 = vmatpush.bf16.msra.mxu0 %v1553
  %2152 = vmatpush.bf16.msra.mxu0 %v1549
  %2153 = vmatpush.bf16.msra.mxu0 %v1545
  %2154 = vmatpush.bf16.msra.mxu0 %v1541
  %2155 = vmatpush.bf16.msra.mxu0 %v1537
  %2156 = vmatpush.bf16.msra.mxu0 %v1533
  %2157 = vmatpush.bf16.msra.mxu0 %v1529
  %2158 = vmatpush.bf16.msra.mxu0 %v1525
  %2159 = vmatmul.bf16.gmra.mxu0 %v476
  %v2160 = vpop.f32.mrf.mxu0
  %v2161 = vadd.f32 %v1992, %v2160
  %v2162 = vpop.f32.mrf.mxu0
  %v2163 = vadd.f32 %v1994, %v2162
  %2164 = vmatmul.bf16.gmra.mxu0 %v483
  %v2165 = vpop.f32.mrf.mxu0
  %v2166 = vadd.f32 %v1997, %v2165
  %v2167 = vpop.f32.mrf.mxu0
  %v2168 = vadd.f32 %v1999, %v2167
  %2169 = vmatmul.bf16.gmra.mxu0 %v490
  %v2170 = vpop.f32.mrf.mxu0
  %v2171 = vadd.f32 %v2002, %v2170
  %v2172 = vpop.f32.mrf.mxu0
  %v2173 = vadd.f32 %v2004, %v2172
  %2174 = vmatmul.bf16.gmra.mxu0 %v497
  %v2175 = vpop.f32.mrf.mxu0
  %v2176 = vadd.f32 %v2007, %v2175
  %v2177 = vpop.f32.mrf.mxu0
  %v2178 = vadd.f32 %v2009, %v2177
  %2179 = vmatmul.bf16.gmra.mxu0 %v504
  %v2180 = vpop.f32.mrf.mxu0
  %v2181 = vadd.f32 %v2012, %v2180
  %v2182 = vpop.f32.mrf.mxu0
  %v2183 = vadd.f32 %v2014, %v2182
  %2184 = vmatmul.bf16.gmra.mxu0 %v511
  %v2185 = vpop.f32.mrf.mxu0
  %v2186 = vadd.f32 %v2017, %v2185
  %v2187 = vpop.f32.mrf.mxu0
  %v2188 = vadd.f32 %v2019, %v2187
  %2189 = vmatmul.bf16.gmra.mxu0 %v518
  %v2190 = vpop.f32.mrf.mxu0
  %v2191 = vadd.f32 %v2022, %v2190
  %v2192 = vpop.f32.mrf.mxu0
  %v2193 = vadd.f32 %v2024, %v2192
  %2194 = vmatmul.bf16.gmra.mxu0 %v525
  %v2195 = vpop.f32.mrf.mxu0
  %v2196 = vadd.f32 %v2027, %v2195
  %v2197 = vpop.f32.mrf.mxu0
  %v2198 = vadd.f32 %v2029, %v2197
  %2199 = vmatmul.bf16.gmra.mxu0 %v532
  %v2200 = vpop.f32.mrf.mxu0
  %v2201 = vadd.f32 %v2032, %v2200
  %v2202 = vpop.f32.mrf.mxu0
  %v2203 = vadd.f32 %v2034, %v2202
  %2204 = vmatmul.bf16.gmra.mxu0 %v539
  %v2205 = vpop.f32.mrf.mxu0
  %v2206 = vadd.f32 %v2037, %v2205
  %v2207 = vpop.f32.mrf.mxu0
  %v2208 = vadd.f32 %v2039, %v2207
  %2209 = vmatmul.bf16.gmra.mxu0 %v546
  %v2210 = vpop.f32.mrf.mxu0
  %v2211 = vadd.f32 %v2042, %v2210
  %v2212 = vpop.f32.mrf.mxu0
  %v2213 = vadd.f32 %v2044, %v2212
  %2214 = vmatmul.bf16.gmra.mxu0 %v553
  %v2215 = vpop.f32.mrf.mxu0
  %v2216 = vadd.f32 %v2047, %v2215
  %v2217 = vpop.f32.mrf.mxu0
  %v2218 = vadd.f32 %v2049, %v2217
  %2219 = vmatmul.bf16.gmra.mxu0 %v560
  %v2220 = vpop.f32.mrf.mxu0
  %v2221 = vadd.f32 %v2052, %v2220
  %v2222 = vpop.f32.mrf.mxu0
  %v2223 = vadd.f32 %v2054, %v2222
  %2224 = vmatmul.bf16.gmra.mxu0 %v567
  %v2225 = vpop.f32.mrf.mxu0
  %v2226 = vadd.f32 %v2057, %v2225
  %v2227 = vpop.f32.mrf.mxu0
  %v2228 = vadd.f32 %v2059, %v2227
  %2229 = vmatmul.bf16.gmra.mxu0 %v574
  %v2230 = vpop.f32.mrf.mxu0
  %v2231 = vadd.f32 %v2062, %v2230
  %v2232 = vpop.f32.mrf.mxu0
  %v2233 = vadd.f32 %v2064, %v2232
  %2234 = vmatmul.bf16.gmra.mxu0 %v581
  %v2235 = vpop.f32.mrf.mxu0
  %v2236 = vadd.f32 %v2067, %v2235
  %v2237 = vpop.f32.mrf.mxu0
  %v2238 = vadd.f32 %v2069, %v2237
  %2239 = vmatmul.bf16.gmra.mxu0 %v588
  %v2240 = vpop.f32.mrf.mxu0
  %v2241 = vadd.f32 %v2072, %v2240
  %v2242 = vpop.f32.mrf.mxu0
  %v2243 = vadd.f32 %v2074, %v2242
  %2244 = vmatmul.bf16.gmra.mxu0 %v595
  %v2245 = vpop.f32.mrf.mxu0
  %v2246 = vadd.f32 %v2077, %v2245
  %v2247 = vpop.f32.mrf.mxu0
  %v2248 = vadd.f32 %v2079, %v2247
  %2249 = vmatmul.bf16.gmra.mxu0 %v602
  %v2250 = vpop.f32.mrf.mxu0
  %v2251 = vadd.f32 %v2082, %v2250
  %v2252 = vpop.f32.mrf.mxu0
  %v2253 = vadd.f32 %v2084, %v2252
  %2254 = vmatmul.bf16.gmra.mxu0 %v609
  %v2255 = vpop.f32.mrf.mxu0
  %v2256 = vadd.f32 %v2087, %v2255
  %v2257 = vpop.f32.mrf.mxu0
  %v2258 = vadd.f32 %v2089, %v2257
  %2259 = vmatmul.bf16.gmra.mxu0 %v616
  %v2260 = vpop.f32.mrf.mxu0
  %v2261 = vadd.f32 %v2092, %v2260
  %v2262 = vpop.f32.mrf.mxu0
  %v2263 = vadd.f32 %v2094, %v2262
  %2264 = vmatmul.bf16.gmra.mxu0 %v623
  %v2265 = vpop.f32.mrf.mxu0
  %v2266 = vadd.f32 %v2097, %v2265
  %v2267 = vpop.f32.mrf.mxu0
  %v2268 = vadd.f32 %v2099, %v2267
  %2269 = vmatmul.bf16.gmra.mxu0 %v630
  %v2270 = vpop.f32.mrf.mxu0
  %v2271 = vadd.f32 %v2102, %v2270
  %v2272 = vpop.f32.mrf.mxu0
  %v2273 = vadd.f32 %v2104, %v2272
  %2274 = vmatmul.bf16.gmra.mxu0 %v637
  %v2275 = vpop.f32.mrf.mxu0
  %v2276 = vadd.f32 %v2107, %v2275
  %v2277 = vpop.f32.mrf.mxu0
  %v2278 = vadd.f32 %v2109, %v2277
  %2279 = vmatmul.bf16.gmra.mxu0 %v644
  %v2280 = vpop.f32.mrf.mxu0
  %v2281 = vadd.f32 %v2112, %v2280
  %v2282 = vpop.f32.mrf.mxu0
  %v2283 = vadd.f32 %v2114, %v2282
  %2284 = vmatmul.bf16.gmra.mxu0 %v651
  %v2285 = vpop.f32.mrf.mxu0
  %v2286 = vadd.f32 %v2117, %v2285
  %v2287 = vpop.f32.mrf.mxu0
  %v2288 = vadd.f32 %v2119, %v2287
  %2289 = vmatmul.bf16.gmra.mxu0 %v658
  %v2290 = vpop.f32.mrf.mxu0
  %v2291 = vadd.f32 %v2122, %v2290
  %v2292 = vpop.f32.mrf.mxu0
  %v2293 = vadd.f32 %v2124, %v2292
  %2294 = vmatmul.bf16.gmra.mxu0 %v665
  %v2295 = vpop.f32.mrf.mxu0
  %v2296 = vadd.f32 %v2127, %v2295
  %v2297 = vpop.f32.mrf.mxu0
  %v2298 = vadd.f32 %v2129, %v2297
  %2299 = vmatmul.bf16.gmra.mxu0 %v672
  %v2300 = vpop.f32.mrf.mxu0
  %v2301 = vadd.f32 %v2132, %v2300
  %v2302 = vpop.f32.mrf.mxu0
  %v2303 = vadd.f32 %v2134, %v2302
  %2304 = vmatmul.bf16.gmra.mxu0 %v679
  %v2305 = vpop.f32.mrf.mxu0
  %v2306 = vadd.f32 %v2137, %v2305
  %v2307 = vpop.f32.mrf.mxu0
  %v2308 = vadd.f32 %v2139, %v2307
  %2309 = vmatmul.bf16.gmra.mxu0 %v686
  %v2310 = vpop.f32.mrf.mxu0
  %v2311 = vadd.f32 %v2142, %v2310
  %v2312 = vpop.f32.mrf.mxu0
  %v2313 = vadd.f32 %v2144, %v2312
  %2314 = vmatmul.bf16.gmra.mxu0 %v693
  %v2315 = vpop.f32.mrf.mxu0
  %v2316 = vadd.f32 %v2147, %v2315
  %v2317 = vpop.f32.mrf.mxu0
  %v2318 = vadd.f32 %v2149, %v2317
  %2319 = vdwg.mxu0
  %2320 = vmatpush.bf16.msra.mxu0 %v1585
  %2321 = vmatpush.bf16.msra.mxu0 %v1581
  %2322 = vmatpush.bf16.msra.mxu0 %v1577
  %2323 = vmatpush.bf16.msra.mxu0 %v1573
  %2324 = vmatpush.bf16.msra.mxu0 %v1569
  %2325 = vmatpush.bf16.msra.mxu0 %v1565
  %2326 = vmatpush.bf16.msra.mxu0 %v1561
  %2327 = vmatpush.bf16.msra.mxu0 %v1557
  %2328 = vmatmul.bf16.gmra.mxu0 %v477
  %v2329 = vpop.f32.mrf.mxu0
  %v2330 = vadd.f32 %v2161, %v2329
  %v2331 = vpop.f32.mrf.mxu0
  %v2332 = vadd.f32 %v2163, %v2331
  %2333 = vmatmul.bf16.gmra.mxu0 %v484
  %v2334 = vpop.f32.mrf.mxu0
  %v2335 = vadd.f32 %v2166, %v2334
  %v2336 = vpop.f32.mrf.mxu0
  %v2337 = vadd.f32 %v2168, %v2336
  %2338 = vmatmul.bf16.gmra.mxu0 %v491
  %v2339 = vpop.f32.mrf.mxu0
  %v2340 = vadd.f32 %v2171, %v2339
  %v2341 = vpop.f32.mrf.mxu0
  %v2342 = vadd.f32 %v2173, %v2341
  %2343 = vmatmul.bf16.gmra.mxu0 %v498
  %v2344 = vpop.f32.mrf.mxu0
  %v2345 = vadd.f32 %v2176, %v2344
  %v2346 = vpop.f32.mrf.mxu0
  %v2347 = vadd.f32 %v2178, %v2346
  %2348 = vmatmul.bf16.gmra.mxu0 %v505
  %v2349 = vpop.f32.mrf.mxu0
  %v2350 = vadd.f32 %v2181, %v2349
  %v2351 = vpop.f32.mrf.mxu0
  %v2352 = vadd.f32 %v2183, %v2351
  %2353 = vmatmul.bf16.gmra.mxu0 %v512
  %v2354 = vpop.f32.mrf.mxu0
  %v2355 = vadd.f32 %v2186, %v2354
  %v2356 = vpop.f32.mrf.mxu0
  %v2357 = vadd.f32 %v2188, %v2356
  %2358 = vmatmul.bf16.gmra.mxu0 %v519
  %v2359 = vpop.f32.mrf.mxu0
  %v2360 = vadd.f32 %v2191, %v2359
  %v2361 = vpop.f32.mrf.mxu0
  %v2362 = vadd.f32 %v2193, %v2361
  %2363 = vmatmul.bf16.gmra.mxu0 %v526
  %v2364 = vpop.f32.mrf.mxu0
  %v2365 = vadd.f32 %v2196, %v2364
  %v2366 = vpop.f32.mrf.mxu0
  %v2367 = vadd.f32 %v2198, %v2366
  %2368 = vmatmul.bf16.gmra.mxu0 %v533
  %v2369 = vpop.f32.mrf.mxu0
  %v2370 = vadd.f32 %v2201, %v2369
  %v2371 = vpop.f32.mrf.mxu0
  %v2372 = vadd.f32 %v2203, %v2371
  %2373 = vmatmul.bf16.gmra.mxu0 %v540
  %v2374 = vpop.f32.mrf.mxu0
  %v2375 = vadd.f32 %v2206, %v2374
  %v2376 = vpop.f32.mrf.mxu0
  %v2377 = vadd.f32 %v2208, %v2376
  %2378 = vmatmul.bf16.gmra.mxu0 %v547
  %v2379 = vpop.f32.mrf.mxu0
  %v2380 = vadd.f32 %v2211, %v2379
  %v2381 = vpop.f32.mrf.mxu0
  %v2382 = vadd.f32 %v2213, %v2381
  %2383 = vmatmul.bf16.gmra.mxu0 %v554
  %v2384 = vpop.f32.mrf.mxu0
  %v2385 = vadd.f32 %v2216, %v2384
  %v2386 = vpop.f32.mrf.mxu0
  %v2387 = vadd.f32 %v2218, %v2386
  %2388 = vmatmul.bf16.gmra.mxu0 %v561
  %v2389 = vpop.f32.mrf.mxu0
  %v2390 = vadd.f32 %v2221, %v2389
  %v2391 = vpop.f32.mrf.mxu0
  %v2392 = vadd.f32 %v2223, %v2391
  %2393 = vmatmul.bf16.gmra.mxu0 %v568
  %v2394 = vpop.f32.mrf.mxu0
  %v2395 = vadd.f32 %v2226, %v2394
  %v2396 = vpop.f32.mrf.mxu0
  %v2397 = vadd.f32 %v2228, %v2396
  %2398 = vmatmul.bf16.gmra.mxu0 %v575
  %v2399 = vpop.f32.mrf.mxu0
  %v2400 = vadd.f32 %v2231, %v2399
  %v2401 = vpop.f32.mrf.mxu0
  %v2402 = vadd.f32 %v2233, %v2401
  %2403 = vmatmul.bf16.gmra.mxu0 %v582
  %v2404 = vpop.f32.mrf.mxu0
  %v2405 = vadd.f32 %v2236, %v2404
  %v2406 = vpop.f32.mrf.mxu0
  %v2407 = vadd.f32 %v2238, %v2406
  %2408 = vmatmul.bf16.gmra.mxu0 %v589
  %v2409 = vpop.f32.mrf.mxu0
  %v2410 = vadd.f32 %v2241, %v2409
  %v2411 = vpop.f32.mrf.mxu0
  %v2412 = vadd.f32 %v2243, %v2411
  %2413 = vmatmul.bf16.gmra.mxu0 %v596
  %v2414 = vpop.f32.mrf.mxu0
  %v2415 = vadd.f32 %v2246, %v2414
  %v2416 = vpop.f32.mrf.mxu0
  %v2417 = vadd.f32 %v2248, %v2416
  %2418 = vmatmul.bf16.gmra.mxu0 %v603
  %v2419 = vpop.f32.mrf.mxu0
  %v2420 = vadd.f32 %v2251, %v2419
  %v2421 = vpop.f32.mrf.mxu0
  %v2422 = vadd.f32 %v2253, %v2421
  %2423 = vmatmul.bf16.gmra.mxu0 %v610
  %v2424 = vpop.f32.mrf.mxu0
  %v2425 = vadd.f32 %v2256, %v2424
  %v2426 = vpop.f32.mrf.mxu0
  %v2427 = vadd.f32 %v2258, %v2426
  %2428 = vmatmul.bf16.gmra.mxu0 %v617
  %v2429 = vpop.f32.mrf.mxu0
  %v2430 = vadd.f32 %v2261, %v2429
  %v2431 = vpop.f32.mrf.mxu0
  %v2432 = vadd.f32 %v2263, %v2431
  %2433 = vmatmul.bf16.gmra.mxu0 %v624
  %v2434 = vpop.f32.mrf.mxu0
  %v2435 = vadd.f32 %v2266, %v2434
  %v2436 = vpop.f32.mrf.mxu0
  %v2437 = vadd.f32 %v2268, %v2436
  %2438 = vmatmul.bf16.gmra.mxu0 %v631
  %v2439 = vpop.f32.mrf.mxu0
  %v2440 = vadd.f32 %v2271, %v2439
  %v2441 = vpop.f32.mrf.mxu0
  %v2442 = vadd.f32 %v2273, %v2441
  %2443 = vmatmul.bf16.gmra.mxu0 %v638
  %v2444 = vpop.f32.mrf.mxu0
  %v2445 = vadd.f32 %v2276, %v2444
  %v2446 = vpop.f32.mrf.mxu0
  %v2447 = vadd.f32 %v2278, %v2446
  %2448 = vmatmul.bf16.gmra.mxu0 %v645
  %v2449 = vpop.f32.mrf.mxu0
  %v2450 = vadd.f32 %v2281, %v2449
  %v2451 = vpop.f32.mrf.mxu0
  %v2452 = vadd.f32 %v2283, %v2451
  %2453 = vmatmul.bf16.gmra.mxu0 %v652
  %v2454 = vpop.f32.mrf.mxu0
  %v2455 = vadd.f32 %v2286, %v2454
  %v2456 = vpop.f32.mrf.mxu0
  %v2457 = vadd.f32 %v2288, %v2456
  %2458 = vmatmul.bf16.gmra.mxu0 %v659
  %v2459 = vpop.f32.mrf.mxu0
  %v2460 = vadd.f32 %v2291, %v2459
  %v2461 = vpop.f32.mrf.mxu0
  %v2462 = vadd.f32 %v2293, %v2461
  %2463 = vmatmul.bf16.gmra.mxu0 %v666
  %v2464 = vpop.f32.mrf.mxu0
  %v2465 = vadd.f32 %v2296, %v2464
  %v2466 = vpop.f32.mrf.mxu0
  %v2467 = vadd.f32 %v2298, %v2466
  %2468 = vmatmul.bf16.gmra.mxu0 %v673
  %v2469 = vpop.f32.mrf.mxu0
  %v2470 = vadd.f32 %v2301, %v2469
  %v2471 = vpop.f32.mrf.mxu0
  %v2472 = vadd.f32 %v2303, %v2471
  %2473 = vmatmul.bf16.gmra.mxu0 %v680
  %v2474 = vpop.f32.mrf.mxu0
  %v2475 = vadd.f32 %v2306, %v2474
  %v2476 = vpop.f32.mrf.mxu0
  %v2477 = vadd.f32 %v2308, %v2476
  %2478 = vmatmul.bf16.gmra.mxu0 %v687
  %v2479 = vpop.f32.mrf.mxu0
  %v2480 = vadd.f32 %v2311, %v2479
  %v2481 = vpop.f32.mrf.mxu0
  %v2482 = vadd.f32 %v2313, %v2481
  %2483 = vmatmul.bf16.gmra.mxu0 %v694
  %v2484 = vpop.f32.mrf.mxu0
  %v2485 = vadd.f32 %v2316, %v2484
  %v2486 = vpop.f32.mrf.mxu0
  %v2487 = vadd.f32 %v2318, %v2486
  %2488 = vdwg.mxu0
  %2489 = vmatpush.bf16.msra.mxu0 %v1617
  %2490 = vmatpush.bf16.msra.mxu0 %v1613
  %2491 = vmatpush.bf16.msra.mxu0 %v1609
  %2492 = vmatpush.bf16.msra.mxu0 %v1605
  %2493 = vmatpush.bf16.msra.mxu0 %v1601
  %2494 = vmatpush.bf16.msra.mxu0 %v1597
  %2495 = vmatpush.bf16.msra.mxu0 %v1593
  %2496 = vmatpush.bf16.msra.mxu0 %v1589
  %2497 = vmatmul.bf16.gmra.mxu0 %v478
  %v2498 = vpop.f32.mrf.mxu0
  %v2499 = vadd.f32 %v2330, %v2498
  %v2500 = vpop.f32.mrf.mxu0
  %v2501 = vadd.f32 %v2332, %v2500
  %2502 = vmatmul.bf16.gmra.mxu0 %v485
  %v2503 = vpop.f32.mrf.mxu0
  %v2504 = vadd.f32 %v2335, %v2503
  %v2505 = vpop.f32.mrf.mxu0
  %v2506 = vadd.f32 %v2337, %v2505
  %2507 = vmatmul.bf16.gmra.mxu0 %v492
  %v2508 = vpop.f32.mrf.mxu0
  %v2509 = vadd.f32 %v2340, %v2508
  %v2510 = vpop.f32.mrf.mxu0
  %v2511 = vadd.f32 %v2342, %v2510
  %2512 = vmatmul.bf16.gmra.mxu0 %v499
  %v2513 = vpop.f32.mrf.mxu0
  %v2514 = vadd.f32 %v2345, %v2513
  %v2515 = vpop.f32.mrf.mxu0
  %v2516 = vadd.f32 %v2347, %v2515
  %2517 = vmatmul.bf16.gmra.mxu0 %v506
  %v2518 = vpop.f32.mrf.mxu0
  %v2519 = vadd.f32 %v2350, %v2518
  %v2520 = vpop.f32.mrf.mxu0
  %v2521 = vadd.f32 %v2352, %v2520
  %2522 = vmatmul.bf16.gmra.mxu0 %v513
  %v2523 = vpop.f32.mrf.mxu0
  %v2524 = vadd.f32 %v2355, %v2523
  %v2525 = vpop.f32.mrf.mxu0
  %v2526 = vadd.f32 %v2357, %v2525
  %2527 = vmatmul.bf16.gmra.mxu0 %v520
  %v2528 = vpop.f32.mrf.mxu0
  %v2529 = vadd.f32 %v2360, %v2528
  %v2530 = vpop.f32.mrf.mxu0
  %v2531 = vadd.f32 %v2362, %v2530
  %2532 = vmatmul.bf16.gmra.mxu0 %v527
  %v2533 = vpop.f32.mrf.mxu0
  %v2534 = vadd.f32 %v2365, %v2533
  %v2535 = vpop.f32.mrf.mxu0
  %v2536 = vadd.f32 %v2367, %v2535
  %2537 = vmatmul.bf16.gmra.mxu0 %v534
  %v2538 = vpop.f32.mrf.mxu0
  %v2539 = vadd.f32 %v2370, %v2538
  %v2540 = vpop.f32.mrf.mxu0
  %v2541 = vadd.f32 %v2372, %v2540
  %2542 = vmatmul.bf16.gmra.mxu0 %v541
  %v2543 = vpop.f32.mrf.mxu0
  %v2544 = vadd.f32 %v2375, %v2543
  %v2545 = vpop.f32.mrf.mxu0
  %v2546 = vadd.f32 %v2377, %v2545
  %2547 = vmatmul.bf16.gmra.mxu0 %v548
  %v2548 = vpop.f32.mrf.mxu0
  %v2549 = vadd.f32 %v2380, %v2548
  %v2550 = vpop.f32.mrf.mxu0
  %v2551 = vadd.f32 %v2382, %v2550
  %2552 = vmatmul.bf16.gmra.mxu0 %v555
  %v2553 = vpop.f32.mrf.mxu0
  %v2554 = vadd.f32 %v2385, %v2553
  %v2555 = vpop.f32.mrf.mxu0
  %v2556 = vadd.f32 %v2387, %v2555
  %2557 = vmatmul.bf16.gmra.mxu0 %v562
  %v2558 = vpop.f32.mrf.mxu0
  %v2559 = vadd.f32 %v2390, %v2558
  %v2560 = vpop.f32.mrf.mxu0
  %v2561 = vadd.f32 %v2392, %v2560
  %2562 = vmatmul.bf16.gmra.mxu0 %v569
  %v2563 = vpop.f32.mrf.mxu0
  %v2564 = vadd.f32 %v2395, %v2563
  %v2565 = vpop.f32.mrf.mxu0
  %v2566 = vadd.f32 %v2397, %v2565
  %2567 = vmatmul.bf16.gmra.mxu0 %v576
  %v2568 = vpop.f32.mrf.mxu0
  %v2569 = vadd.f32 %v2400, %v2568
  %v2570 = vpop.f32.mrf.mxu0
  %v2571 = vadd.f32 %v2402, %v2570
  %2572 = vmatmul.bf16.gmra.mxu0 %v583
  %v2573 = vpop.f32.mrf.mxu0
  %v2574 = vadd.f32 %v2405, %v2573
  %v2575 = vpop.f32.mrf.mxu0
  %v2576 = vadd.f32 %v2407, %v2575
  %2577 = vmatmul.bf16.gmra.mxu0 %v590
  %v2578 = vpop.f32.mrf.mxu0
  %v2579 = vadd.f32 %v2410, %v2578
  %v2580 = vpop.f32.mrf.mxu0
  %v2581 = vadd.f32 %v2412, %v2580
  %2582 = vmatmul.bf16.gmra.mxu0 %v597
  %v2583 = vpop.f32.mrf.mxu0
  %v2584 = vadd.f32 %v2415, %v2583
  %v2585 = vpop.f32.mrf.mxu0
  %v2586 = vadd.f32 %v2417, %v2585
  %2587 = vmatmul.bf16.gmra.mxu0 %v604
  %v2588 = vpop.f32.mrf.mxu0
  %v2589 = vadd.f32 %v2420, %v2588
  %v2590 = vpop.f32.mrf.mxu0
  %v2591 = vadd.f32 %v2422, %v2590
  %2592 = vmatmul.bf16.gmra.mxu0 %v611
  %v2593 = vpop.f32.mrf.mxu0
  %v2594 = vadd.f32 %v2425, %v2593
  %v2595 = vpop.f32.mrf.mxu0
  %v2596 = vadd.f32 %v2427, %v2595
  %2597 = vmatmul.bf16.gmra.mxu0 %v618
  %v2598 = vpop.f32.mrf.mxu0
  %v2599 = vadd.f32 %v2430, %v2598
  %v2600 = vpop.f32.mrf.mxu0
  %v2601 = vadd.f32 %v2432, %v2600
  %2602 = vmatmul.bf16.gmra.mxu0 %v625
  %v2603 = vpop.f32.mrf.mxu0
  %v2604 = vadd.f32 %v2435, %v2603
  %v2605 = vpop.f32.mrf.mxu0
  %v2606 = vadd.f32 %v2437, %v2605
  %2607 = vmatmul.bf16.gmra.mxu0 %v632
  %v2608 = vpop.f32.mrf.mxu0
  %v2609 = vadd.f32 %v2440, %v2608
  %v2610 = vpop.f32.mrf.mxu0
  %v2611 = vadd.f32 %v2442, %v2610
  %2612 = vmatmul.bf16.gmra.mxu0 %v639
  %v2613 = vpop.f32.mrf.mxu0
  %v2614 = vadd.f32 %v2445, %v2613
  %v2615 = vpop.f32.mrf.mxu0
  %v2616 = vadd.f32 %v2447, %v2615
  %2617 = vmatmul.bf16.gmra.mxu0 %v646
  %v2618 = vpop.f32.mrf.mxu0
  %v2619 = vadd.f32 %v2450, %v2618
  %v2620 = vpop.f32.mrf.mxu0
  %v2621 = vadd.f32 %v2452, %v2620
  %2622 = vmatmul.bf16.gmra.mxu0 %v653
  %v2623 = vpop.f32.mrf.mxu0
  %v2624 = vadd.f32 %v2455, %v2623
  %v2625 = vpop.f32.mrf.mxu0
  %v2626 = vadd.f32 %v2457, %v2625
  %2627 = vmatmul.bf16.gmra.mxu0 %v660
  %v2628 = vpop.f32.mrf.mxu0
  %v2629 = vadd.f32 %v2460, %v2628
  %v2630 = vpop.f32.mrf.mxu0
  %v2631 = vadd.f32 %v2462, %v2630
  %2632 = vmatmul.bf16.gmra.mxu0 %v667
  %v2633 = vpop.f32.mrf.mxu0
  %v2634 = vadd.f32 %v2465, %v2633
  %v2635 = vpop.f32.mrf.mxu0
  %v2636 = vadd.f32 %v2467, %v2635
  %2637 = vmatmul.bf16.gmra.mxu0 %v674
  %v2638 = vpop.f32.mrf.mxu0
  %v2639 = vadd.f32 %v2470, %v2638
  %v2640 = vpop.f32.mrf.mxu0
  %v2641 = vadd.f32 %v2472, %v2640
  %2642 = vmatmul.bf16.gmra.mxu0 %v681
  %v2643 = vpop.f32.mrf.mxu0
  %v2644 = vadd.f32 %v2475, %v2643
  %v2645 = vpop.f32.mrf.mxu0
  %v2646 = vadd.f32 %v2477, %v2645
  %2647 = vmatmul.bf16.gmra.mxu0 %v688
  %v2648 = vpop.f32.mrf.mxu0
  %v2649 = vadd.f32 %v2480, %v2648
  %v2650 = vpop.f32.mrf.mxu0
  %v2651 = vadd.f32 %v2482, %v2650
  %2652 = vmatmul.bf16.gmra.mxu0 %v695
  %v2653 = vpop.f32.mrf.mxu0
  %v2654 = vadd.f32 %v2485, %v2653
  %v2655 = vpop.f32.mrf.mxu0
  %v2656 = vadd.f32 %v2487, %v2655
  %2657 = vdwg.mxu0
  %2658 = vmatpush.bf16.msra.mxu0 %v1649
  %2659 = vmatpush.bf16.msra.mxu0 %v1645
  %2660 = vmatpush.bf16.msra.mxu0 %v1641
  %2661 = vmatpush.bf16.msra.mxu0 %v1637
  %2662 = vmatpush.bf16.msra.mxu0 %v1633
  %2663 = vmatpush.bf16.msra.mxu0 %v1629
  %2664 = vmatpush.bf16.msra.mxu0 %v1625
  %2665 = vmatpush.bf16.msra.mxu0 %v1621
  %2666 = vmatmul.bf16.gmra.mxu0 %v479
  %v2667 = vpop.f32.mrf.mxu0
  %v2668 = vadd.f32 %v2499, %v2667
  %v2669 = vpop.f32.mrf.mxu0
  %v2670 = vadd.f32 %v2501, %v2669
  %2671 = vmatmul.bf16.gmra.mxu0 %v486
  %v2672 = vpop.f32.mrf.mxu0
  %v2673 = vadd.f32 %v2504, %v2672
  %v2674 = vpop.f32.mrf.mxu0
  %v2675 = vadd.f32 %v2506, %v2674
  %2676 = vmatmul.bf16.gmra.mxu0 %v493
  %v2677 = vpop.f32.mrf.mxu0
  %v2678 = vadd.f32 %v2509, %v2677
  %v2679 = vpop.f32.mrf.mxu0
  %v2680 = vadd.f32 %v2511, %v2679
  %2681 = vmatmul.bf16.gmra.mxu0 %v500
  %v2682 = vpop.f32.mrf.mxu0
  %v2683 = vadd.f32 %v2514, %v2682
  %v2684 = vpop.f32.mrf.mxu0
  %v2685 = vadd.f32 %v2516, %v2684
  %2686 = vmatmul.bf16.gmra.mxu0 %v507
  %v2687 = vpop.f32.mrf.mxu0
  %v2688 = vadd.f32 %v2519, %v2687
  %v2689 = vpop.f32.mrf.mxu0
  %v2690 = vadd.f32 %v2521, %v2689
  %2691 = vmatmul.bf16.gmra.mxu0 %v514
  %v2692 = vpop.f32.mrf.mxu0
  %v2693 = vadd.f32 %v2524, %v2692
  %v2694 = vpop.f32.mrf.mxu0
  %v2695 = vadd.f32 %v2526, %v2694
  %2696 = vmatmul.bf16.gmra.mxu0 %v521
  %v2697 = vpop.f32.mrf.mxu0
  %v2698 = vadd.f32 %v2529, %v2697
  %v2699 = vpop.f32.mrf.mxu0
  %v2700 = vadd.f32 %v2531, %v2699
  %2701 = vmatmul.bf16.gmra.mxu0 %v528
  %v2702 = vpop.f32.mrf.mxu0
  %v2703 = vadd.f32 %v2534, %v2702
  %v2704 = vpop.f32.mrf.mxu0
  %v2705 = vadd.f32 %v2536, %v2704
  %2706 = vmatmul.bf16.gmra.mxu0 %v535
  %v2707 = vpop.f32.mrf.mxu0
  %v2708 = vadd.f32 %v2539, %v2707
  %v2709 = vpop.f32.mrf.mxu0
  %v2710 = vadd.f32 %v2541, %v2709
  %2711 = vmatmul.bf16.gmra.mxu0 %v542
  %v2712 = vpop.f32.mrf.mxu0
  %v2713 = vadd.f32 %v2544, %v2712
  %v2714 = vpop.f32.mrf.mxu0
  %v2715 = vadd.f32 %v2546, %v2714
  %2716 = vmatmul.bf16.gmra.mxu0 %v549
  %v2717 = vpop.f32.mrf.mxu0
  %v2718 = vadd.f32 %v2549, %v2717
  %v2719 = vpop.f32.mrf.mxu0
  %v2720 = vadd.f32 %v2551, %v2719
  %2721 = vmatmul.bf16.gmra.mxu0 %v556
  %v2722 = vpop.f32.mrf.mxu0
  %v2723 = vadd.f32 %v2554, %v2722
  %v2724 = vpop.f32.mrf.mxu0
  %v2725 = vadd.f32 %v2556, %v2724
  %2726 = vmatmul.bf16.gmra.mxu0 %v563
  %v2727 = vpop.f32.mrf.mxu0
  %v2728 = vadd.f32 %v2559, %v2727
  %v2729 = vpop.f32.mrf.mxu0
  %v2730 = vadd.f32 %v2561, %v2729
  %2731 = vmatmul.bf16.gmra.mxu0 %v570
  %v2732 = vpop.f32.mrf.mxu0
  %v2733 = vadd.f32 %v2564, %v2732
  %v2734 = vpop.f32.mrf.mxu0
  %v2735 = vadd.f32 %v2566, %v2734
  %2736 = vmatmul.bf16.gmra.mxu0 %v577
  %v2737 = vpop.f32.mrf.mxu0
  %v2738 = vadd.f32 %v2569, %v2737
  %v2739 = vpop.f32.mrf.mxu0
  %v2740 = vadd.f32 %v2571, %v2739
  %2741 = vmatmul.bf16.gmra.mxu0 %v584
  %v2742 = vpop.f32.mrf.mxu0
  %v2743 = vadd.f32 %v2574, %v2742
  %v2744 = vpop.f32.mrf.mxu0
  %v2745 = vadd.f32 %v2576, %v2744
  %2746 = vmatmul.bf16.gmra.mxu0 %v591
  %v2747 = vpop.f32.mrf.mxu0
  %v2748 = vadd.f32 %v2579, %v2747
  %v2749 = vpop.f32.mrf.mxu0
  %v2750 = vadd.f32 %v2581, %v2749
  %2751 = vmatmul.bf16.gmra.mxu0 %v598
  %v2752 = vpop.f32.mrf.mxu0
  %v2753 = vadd.f32 %v2584, %v2752
  %v2754 = vpop.f32.mrf.mxu0
  %v2755 = vadd.f32 %v2586, %v2754
  %2756 = vmatmul.bf16.gmra.mxu0 %v605
  %v2757 = vpop.f32.mrf.mxu0
  %v2758 = vadd.f32 %v2589, %v2757
  %v2759 = vpop.f32.mrf.mxu0
  %v2760 = vadd.f32 %v2591, %v2759
  %2761 = vmatmul.bf16.gmra.mxu0 %v612
  %v2762 = vpop.f32.mrf.mxu0
  %v2763 = vadd.f32 %v2594, %v2762
  %v2764 = vpop.f32.mrf.mxu0
  %v2765 = vadd.f32 %v2596, %v2764
  %2766 = vmatmul.bf16.gmra.mxu0 %v619
  %v2767 = vpop.f32.mrf.mxu0
  %v2768 = vadd.f32 %v2599, %v2767
  %v2769 = vpop.f32.mrf.mxu0
  %v2770 = vadd.f32 %v2601, %v2769
  %2771 = vmatmul.bf16.gmra.mxu0 %v626
  %v2772 = vpop.f32.mrf.mxu0
  %v2773 = vadd.f32 %v2604, %v2772
  %v2774 = vpop.f32.mrf.mxu0
  %v2775 = vadd.f32 %v2606, %v2774
  %2776 = vmatmul.bf16.gmra.mxu0 %v633
  %v2777 = vpop.f32.mrf.mxu0
  %v2778 = vadd.f32 %v2609, %v2777
  %v2779 = vpop.f32.mrf.mxu0
  %v2780 = vadd.f32 %v2611, %v2779
  %2781 = vmatmul.bf16.gmra.mxu0 %v640
  %v2782 = vpop.f32.mrf.mxu0
  %v2783 = vadd.f32 %v2614, %v2782
  %v2784 = vpop.f32.mrf.mxu0
  %v2785 = vadd.f32 %v2616, %v2784
  %2786 = vmatmul.bf16.gmra.mxu0 %v647
  %v2787 = vpop.f32.mrf.mxu0
  %v2788 = vadd.f32 %v2619, %v2787
  %v2789 = vpop.f32.mrf.mxu0
  %v2790 = vadd.f32 %v2621, %v2789
  %2791 = vmatmul.bf16.gmra.mxu0 %v654
  %v2792 = vpop.f32.mrf.mxu0
  %v2793 = vadd.f32 %v2624, %v2792
  %v2794 = vpop.f32.mrf.mxu0
  %v2795 = vadd.f32 %v2626, %v2794
  %2796 = vmatmul.bf16.gmra.mxu0 %v661
  %v2797 = vpop.f32.mrf.mxu0
  %v2798 = vadd.f32 %v2629, %v2797
  %v2799 = vpop.f32.mrf.mxu0
  %v2800 = vadd.f32 %v2631, %v2799
  %2801 = vmatmul.bf16.gmra.mxu0 %v668
  %v2802 = vpop.f32.mrf.mxu0
  %v2803 = vadd.f32 %v2634, %v2802
  %v2804 = vpop.f32.mrf.mxu0
  %v2805 = vadd.f32 %v2636, %v2804
  %2806 = vmatmul.bf16.gmra.mxu0 %v675
  %v2807 = vpop.f32.mrf.mxu0
  %v2808 = vadd.f32 %v2639, %v2807
  %v2809 = vpop.f32.mrf.mxu0
  %v2810 = vadd.f32 %v2641, %v2809
  %2811 = vmatmul.bf16.gmra.mxu0 %v682
  %v2812 = vpop.f32.mrf.mxu0
  %v2813 = vadd.f32 %v2644, %v2812
  %v2814 = vpop.f32.mrf.mxu0
  %v2815 = vadd.f32 %v2646, %v2814
  %2816 = vmatmul.bf16.gmra.mxu0 %v689
  %v2817 = vpop.f32.mrf.mxu0
  %v2818 = vadd.f32 %v2649, %v2817
  %v2819 = vpop.f32.mrf.mxu0
  %v2820 = vadd.f32 %v2651, %v2819
  %2821 = vmatmul.bf16.gmra.mxu0 %v696
  %v2822 = vpop.f32.mrf.mxu0
  %v2823 = vadd.f32 %v2654, %v2822
  %v2824 = vpop.f32.mrf.mxu0
  %v2825 = vadd.f32 %v2656, %v2824
  %2826 = vdwg.mxu0
  %2827 = vmatpush.bf16.msra.mxu0 %v1681
  %2828 = vmatpush.bf16.msra.mxu0 %v1677
  %2829 = vmatpush.bf16.msra.mxu0 %v1673
  %2830 = vmatpush.bf16.msra.mxu0 %v1669
  %2831 = vmatpush.bf16.msra.mxu0 %v1665
  %2832 = vmatpush.bf16.msra.mxu0 %v1661
  %2833 = vmatpush.bf16.msra.mxu0 %v1657
  %2834 = vmatpush.bf16.msra.mxu0 %v1653
  %2835 = vmatmul.bf16.gmra.mxu0 %v480
  %v2836 = vpop.f32.mrf.mxu0
  %v2837 = vadd.f32 %v2668, %v2836
  %v2838 = vpop.f32.mrf.mxu0
  %v2839 = vadd.f32 %v2670, %v2838
  %2840 = vmatmul.bf16.gmra.mxu0 %v487
  %v2841 = vpop.f32.mrf.mxu0
  %v2842 = vadd.f32 %v2673, %v2841
  %v2843 = vpop.f32.mrf.mxu0
  %v2844 = vadd.f32 %v2675, %v2843
  %2845 = vmatmul.bf16.gmra.mxu0 %v494
  %v2846 = vpop.f32.mrf.mxu0
  %v2847 = vadd.f32 %v2678, %v2846
  %v2848 = vpop.f32.mrf.mxu0
  %v2849 = vadd.f32 %v2680, %v2848
  %2850 = vmatmul.bf16.gmra.mxu0 %v501
  %v2851 = vpop.f32.mrf.mxu0
  %v2852 = vadd.f32 %v2683, %v2851
  %v2853 = vpop.f32.mrf.mxu0
  %v2854 = vadd.f32 %v2685, %v2853
  %2855 = vmatmul.bf16.gmra.mxu0 %v508
  %v2856 = vpop.f32.mrf.mxu0
  %v2857 = vadd.f32 %v2688, %v2856
  %v2858 = vpop.f32.mrf.mxu0
  %v2859 = vadd.f32 %v2690, %v2858
  %2860 = vmatmul.bf16.gmra.mxu0 %v515
  %v2861 = vpop.f32.mrf.mxu0
  %v2862 = vadd.f32 %v2693, %v2861
  %v2863 = vpop.f32.mrf.mxu0
  %v2864 = vadd.f32 %v2695, %v2863
  %2865 = vmatmul.bf16.gmra.mxu0 %v522
  %v2866 = vpop.f32.mrf.mxu0
  %v2867 = vadd.f32 %v2698, %v2866
  %v2868 = vpop.f32.mrf.mxu0
  %v2869 = vadd.f32 %v2700, %v2868
  %2870 = vmatmul.bf16.gmra.mxu0 %v529
  %v2871 = vpop.f32.mrf.mxu0
  %v2872 = vadd.f32 %v2703, %v2871
  %v2873 = vpop.f32.mrf.mxu0
  %v2874 = vadd.f32 %v2705, %v2873
  %2875 = vmatmul.bf16.gmra.mxu0 %v536
  %v2876 = vpop.f32.mrf.mxu0
  %v2877 = vadd.f32 %v2708, %v2876
  %v2878 = vpop.f32.mrf.mxu0
  %v2879 = vadd.f32 %v2710, %v2878
  %2880 = vmatmul.bf16.gmra.mxu0 %v543
  %v2881 = vpop.f32.mrf.mxu0
  %v2882 = vadd.f32 %v2713, %v2881
  %v2883 = vpop.f32.mrf.mxu0
  %v2884 = vadd.f32 %v2715, %v2883
  %2885 = vmatmul.bf16.gmra.mxu0 %v550
  %v2886 = vpop.f32.mrf.mxu0
  %v2887 = vadd.f32 %v2718, %v2886
  %v2888 = vpop.f32.mrf.mxu0
  %v2889 = vadd.f32 %v2720, %v2888
  %2890 = vmatmul.bf16.gmra.mxu0 %v557
  %v2891 = vpop.f32.mrf.mxu0
  %v2892 = vadd.f32 %v2723, %v2891
  %v2893 = vpop.f32.mrf.mxu0
  %v2894 = vadd.f32 %v2725, %v2893
  %2895 = vmatmul.bf16.gmra.mxu0 %v564
  %v2896 = vpop.f32.mrf.mxu0
  %v2897 = vadd.f32 %v2728, %v2896
  %v2898 = vpop.f32.mrf.mxu0
  %v2899 = vadd.f32 %v2730, %v2898
  %2900 = vmatmul.bf16.gmra.mxu0 %v571
  %v2901 = vpop.f32.mrf.mxu0
  %v2902 = vadd.f32 %v2733, %v2901
  %v2903 = vpop.f32.mrf.mxu0
  %v2904 = vadd.f32 %v2735, %v2903
  %2905 = vmatmul.bf16.gmra.mxu0 %v578
  %v2906 = vpop.f32.mrf.mxu0
  %v2907 = vadd.f32 %v2738, %v2906
  %v2908 = vpop.f32.mrf.mxu0
  %v2909 = vadd.f32 %v2740, %v2908
  %2910 = vmatmul.bf16.gmra.mxu0 %v585
  %v2911 = vpop.f32.mrf.mxu0
  %v2912 = vadd.f32 %v2743, %v2911
  %v2913 = vpop.f32.mrf.mxu0
  %v2914 = vadd.f32 %v2745, %v2913
  %2915 = vmatmul.bf16.gmra.mxu0 %v592
  %v2916 = vpop.f32.mrf.mxu0
  %v2917 = vadd.f32 %v2748, %v2916
  %v2918 = vpop.f32.mrf.mxu0
  %v2919 = vadd.f32 %v2750, %v2918
  %2920 = vmatmul.bf16.gmra.mxu0 %v599
  %v2921 = vpop.f32.mrf.mxu0
  %v2922 = vadd.f32 %v2753, %v2921
  %v2923 = vpop.f32.mrf.mxu0
  %v2924 = vadd.f32 %v2755, %v2923
  %2925 = vmatmul.bf16.gmra.mxu0 %v606
  %v2926 = vpop.f32.mrf.mxu0
  %v2927 = vadd.f32 %v2758, %v2926
  %v2928 = vpop.f32.mrf.mxu0
  %v2929 = vadd.f32 %v2760, %v2928
  %2930 = vmatmul.bf16.gmra.mxu0 %v613
  %v2931 = vpop.f32.mrf.mxu0
  %v2932 = vadd.f32 %v2763, %v2931
  %v2933 = vpop.f32.mrf.mxu0
  %v2934 = vadd.f32 %v2765, %v2933
  %2935 = vmatmul.bf16.gmra.mxu0 %v620
  %v2936 = vpop.f32.mrf.mxu0
  %v2937 = vadd.f32 %v2768, %v2936
  %v2938 = vpop.f32.mrf.mxu0
  %v2939 = vadd.f32 %v2770, %v2938
  %2940 = vmatmul.bf16.gmra.mxu0 %v627
  %v2941 = vpop.f32.mrf.mxu0
  %v2942 = vadd.f32 %v2773, %v2941
  %v2943 = vpop.f32.mrf.mxu0
  %v2944 = vadd.f32 %v2775, %v2943
  %2945 = vmatmul.bf16.gmra.mxu0 %v634
  %v2946 = vpop.f32.mrf.mxu0
  %v2947 = vadd.f32 %v2778, %v2946
  %v2948 = vpop.f32.mrf.mxu0
  %v2949 = vadd.f32 %v2780, %v2948
  %2950 = vmatmul.bf16.gmra.mxu0 %v641
  %v2951 = vpop.f32.mrf.mxu0
  %v2952 = vadd.f32 %v2783, %v2951
  %v2953 = vpop.f32.mrf.mxu0
  %v2954 = vadd.f32 %v2785, %v2953
  %2955 = vmatmul.bf16.gmra.mxu0 %v648
  %v2956 = vpop.f32.mrf.mxu0
  %v2957 = vadd.f32 %v2788, %v2956
  %v2958 = vpop.f32.mrf.mxu0
  %v2959 = vadd.f32 %v2790, %v2958
  %2960 = vmatmul.bf16.gmra.mxu0 %v655
  %v2961 = vpop.f32.mrf.mxu0
  %v2962 = vadd.f32 %v2793, %v2961
  %v2963 = vpop.f32.mrf.mxu0
  %v2964 = vadd.f32 %v2795, %v2963
  %2965 = vmatmul.bf16.gmra.mxu0 %v662
  %v2966 = vpop.f32.mrf.mxu0
  %v2967 = vadd.f32 %v2798, %v2966
  %v2968 = vpop.f32.mrf.mxu0
  %v2969 = vadd.f32 %v2800, %v2968
  %2970 = vmatmul.bf16.gmra.mxu0 %v669
  %v2971 = vpop.f32.mrf.mxu0
  %v2972 = vadd.f32 %v2803, %v2971
  %v2973 = vpop.f32.mrf.mxu0
  %v2974 = vadd.f32 %v2805, %v2973
  %2975 = vmatmul.bf16.gmra.mxu0 %v676
  %v2976 = vpop.f32.mrf.mxu0
  %v2977 = vadd.f32 %v2808, %v2976
  %v2978 = vpop.f32.mrf.mxu0
  %v2979 = vadd.f32 %v2810, %v2978
  %2980 = vmatmul.bf16.gmra.mxu0 %v683
  %v2981 = vpop.f32.mrf.mxu0
  %v2982 = vadd.f32 %v2813, %v2981
  %v2983 = vpop.f32.mrf.mxu0
  %v2984 = vadd.f32 %v2815, %v2983
  %2985 = vmatmul.bf16.gmra.mxu0 %v690
  %v2986 = vpop.f32.mrf.mxu0
  %v2987 = vadd.f32 %v2818, %v2986
  %v2988 = vpop.f32.mrf.mxu0
  %v2989 = vadd.f32 %v2820, %v2988
  %2990 = vmatmul.bf16.gmra.mxu0 %v697
  %v2991 = vpop.f32.mrf.mxu0
  %v2992 = vadd.f32 %v2823, %v2991
  %v2993 = vpop.f32.mrf.mxu0
  %v2994 = vadd.f32 %v2825, %v2993
  %2995 = vdwg.mxu0
  %2996 = vmatpush.bf16.msra.mxu0 0
  %2997 = vmatpush.bf16.msra.mxu0 0
  %2998 = vmatpush.bf16.msra.mxu0 0
  %2999 = vmatpush.bf16.msra.mxu0 0
  %3000 = vmatpush.bf16.msra.mxu0 0
  %3001 = vmatpush.bf16.msra.mxu0 0
  %3002 = vmatpush.bf16.msra.mxu0 0
  %3003 = vmatpush.bf16.msra.mxu0 %v1685
  %3004 = vmatmul.bf16.gmra.mxu0 %v1887
  %v3005 = vpop.f32.mrf.mxu0
  %v3006 = vadd.f32 %v2837, %v3005
  %v3007 = vpop.f32.mrf.mxu0
  %v3008 = vadd.f32 %v2839, %v3007
  %3009 = vmatmul.bf16.gmra.mxu0 %v1890
  %v3010 = vpop.f32.mrf.mxu0
  %v3011 = vadd.f32 %v2842, %v3010
  %v3012 = vpop.f32.mrf.mxu0
  %v3013 = vadd.f32 %v2844, %v3012
  %3014 = vmatmul.bf16.gmra.mxu0 %v1893
  %v3015 = vpop.f32.mrf.mxu0
  %v3016 = vadd.f32 %v2847, %v3015
  %v3017 = vpop.f32.mrf.mxu0
  %v3018 = vadd.f32 %v2849, %v3017
  %3019 = vmatmul.bf16.gmra.mxu0 %v1896
  %v3020 = vpop.f32.mrf.mxu0
  %v3021 = vadd.f32 %v2852, %v3020
  %v3022 = vpop.f32.mrf.mxu0
  %v3023 = vadd.f32 %v2854, %v3022
  %3024 = vmatmul.bf16.gmra.mxu0 %v1899
  %v3025 = vpop.f32.mrf.mxu0
  %v3026 = vadd.f32 %v2857, %v3025
  %v3027 = vpop.f32.mrf.mxu0
  %v3028 = vadd.f32 %v2859, %v3027
  %3029 = vmatmul.bf16.gmra.mxu0 %v1902
  %v3030 = vpop.f32.mrf.mxu0
  %v3031 = vadd.f32 %v2862, %v3030
  %v3032 = vpop.f32.mrf.mxu0
  %v3033 = vadd.f32 %v2864, %v3032
  %3034 = vmatmul.bf16.gmra.mxu0 %v1905
  %v3035 = vpop.f32.mrf.mxu0
  %v3036 = vadd.f32 %v2867, %v3035
  %v3037 = vpop.f32.mrf.mxu0
  %v3038 = vadd.f32 %v2869, %v3037
  %3039 = vmatmul.bf16.gmra.mxu0 %v1908
  %v3040 = vpop.f32.mrf.mxu0
  %v3041 = vadd.f32 %v2872, %v3040
  %v3042 = vpop.f32.mrf.mxu0
  %v3043 = vadd.f32 %v2874, %v3042
  %3044 = vmatmul.bf16.gmra.mxu0 %v1911
  %v3045 = vpop.f32.mrf.mxu0
  %v3046 = vadd.f32 %v2877, %v3045
  %v3047 = vpop.f32.mrf.mxu0
  %v3048 = vadd.f32 %v2879, %v3047
  %3049 = vmatmul.bf16.gmra.mxu0 %v1914
  %v3050 = vpop.f32.mrf.mxu0
  %v3051 = vadd.f32 %v2882, %v3050
  %v3052 = vpop.f32.mrf.mxu0
  %v3053 = vadd.f32 %v2884, %v3052
  %3054 = vmatmul.bf16.gmra.mxu0 %v1917
  %v3055 = vpop.f32.mrf.mxu0
  %v3056 = vadd.f32 %v2887, %v3055
  %v3057 = vpop.f32.mrf.mxu0
  %v3058 = vadd.f32 %v2889, %v3057
  %3059 = vmatmul.bf16.gmra.mxu0 %v1920
  %v3060 = vpop.f32.mrf.mxu0
  %v3061 = vadd.f32 %v2892, %v3060
  %v3062 = vpop.f32.mrf.mxu0
  %v3063 = vadd.f32 %v2894, %v3062
  %3064 = vmatmul.bf16.gmra.mxu0 %v1923
  %v3065 = vpop.f32.mrf.mxu0
  %v3066 = vadd.f32 %v2897, %v3065
  %v3067 = vpop.f32.mrf.mxu0
  %v3068 = vadd.f32 %v2899, %v3067
  %3069 = vmatmul.bf16.gmra.mxu0 %v1926
  %v3070 = vpop.f32.mrf.mxu0
  %v3071 = vadd.f32 %v2902, %v3070
  %v3072 = vpop.f32.mrf.mxu0
  %v3073 = vadd.f32 %v2904, %v3072
  %3074 = vmatmul.bf16.gmra.mxu0 %v1929
  %v3075 = vpop.f32.mrf.mxu0
  %v3076 = vadd.f32 %v2907, %v3075
  %v3077 = vpop.f32.mrf.mxu0
  %v3078 = vadd.f32 %v2909, %v3077
  %3079 = vmatmul.bf16.gmra.mxu0 %v1932
  %v3080 = vpop.f32.mrf.mxu0
  %v3081 = vadd.f32 %v2912, %v3080
  %v3082 = vpop.f32.mrf.mxu0
  %v3083 = vadd.f32 %v2914, %v3082
  %3084 = vmatmul.bf16.gmra.mxu0 %v1935
  %v3085 = vpop.f32.mrf.mxu0
  %v3086 = vadd.f32 %v2917, %v3085
  %v3087 = vpop.f32.mrf.mxu0
  %v3088 = vadd.f32 %v2919, %v3087
  %3089 = vmatmul.bf16.gmra.mxu0 %v1938
  %v3090 = vpop.f32.mrf.mxu0
  %v3091 = vadd.f32 %v2922, %v3090
  %v3092 = vpop.f32.mrf.mxu0
  %v3093 = vadd.f32 %v2924, %v3092
  %3094 = vmatmul.bf16.gmra.mxu0 %v1941
  %v3095 = vpop.f32.mrf.mxu0
  %v3096 = vadd.f32 %v2927, %v3095
  %v3097 = vpop.f32.mrf.mxu0
  %v3098 = vadd.f32 %v2929, %v3097
  %3099 = vmatmul.bf16.gmra.mxu0 %v1944
  %v3100 = vpop.f32.mrf.mxu0
  %v3101 = vadd.f32 %v2932, %v3100
  %v3102 = vpop.f32.mrf.mxu0
  %v3103 = vadd.f32 %v2934, %v3102
  %3104 = vmatmul.bf16.gmra.mxu0 %v1947
  %v3105 = vpop.f32.mrf.mxu0
  %v3106 = vadd.f32 %v2937, %v3105
  %v3107 = vpop.f32.mrf.mxu0
  %v3108 = vadd.f32 %v2939, %v3107
  %3109 = vmatmul.bf16.gmra.mxu0 %v1950
  %v3110 = vpop.f32.mrf.mxu0
  %v3111 = vadd.f32 %v2942, %v3110
  %v3112 = vpop.f32.mrf.mxu0
  %v3113 = vadd.f32 %v2944, %v3112
  %3114 = vmatmul.bf16.gmra.mxu0 %v1953
  %v3115 = vpop.f32.mrf.mxu0
  %v3116 = vadd.f32 %v2947, %v3115
  %v3117 = vpop.f32.mrf.mxu0
  %v3118 = vadd.f32 %v2949, %v3117
  %3119 = vmatmul.bf16.gmra.mxu0 %v1956
  %v3120 = vpop.f32.mrf.mxu0
  %v3121 = vadd.f32 %v2952, %v3120
  %v3122 = vpop.f32.mrf.mxu0
  %v3123 = vadd.f32 %v2954, %v3122
  %3124 = vmatmul.bf16.gmra.mxu0 %v1959
  %v3125 = vpop.f32.mrf.mxu0
  %v3126 = vadd.f32 %v2957, %v3125
  %v3127 = vpop.f32.mrf.mxu0
  %v3128 = vadd.f32 %v2959, %v3127
  %3129 = vmatmul.bf16.gmra.mxu0 %v1962
  %v3130 = vpop.f32.mrf.mxu0
  %v3131 = vadd.f32 %v2962, %v3130
  %v3132 = vpop.f32.mrf.mxu0
  %v3133 = vadd.f32 %v2964, %v3132
  %3134 = vmatmul.bf16.gmra.mxu0 %v1965
  %v3135 = vpop.f32.mrf.mxu0
  %v3136 = vadd.f32 %v2967, %v3135
  %v3137 = vpop.f32.mrf.mxu0
  %v3138 = vadd.f32 %v2969, %v3137
  %3139 = vmatmul.bf16.gmra.mxu0 %v1968
  %v3140 = vpop.f32.mrf.mxu0
  %v3141 = vadd.f32 %v2972, %v3140
  %v3142 = vpop.f32.mrf.mxu0
  %v3143 = vadd.f32 %v2974, %v3142
  %3144 = vmatmul.bf16.gmra.mxu0 %v1971
  %v3145 = vpop.f32.mrf.mxu0
  %v3146 = vadd.f32 %v2977, %v3145
  %v3147 = vpop.f32.mrf.mxu0
  %v3148 = vadd.f32 %v2979, %v3147
  %3149 = vmatmul.bf16.gmra.mxu0 %v1974
  %v3150 = vpop.f32.mrf.mxu0
  %v3151 = vadd.f32 %v2982, %v3150
  %v3152 = vpop.f32.mrf.mxu0
  %v3153 = vadd.f32 %v2984, %v3152
  %3154 = vmatmul.bf16.gmra.mxu0 %v1977
  %v3155 = vpop.f32.mrf.mxu0
  %v3156 = vadd.f32 %v2987, %v3155
  %v3157 = vpop.f32.mrf.mxu0
  %v3158 = vadd.f32 %v2989, %v3157
  %3159 = vmatmul.bf16.gmra.mxu0 %v1980
  %v3160 = vpop.f32.mrf.mxu0
  %v3161 = vadd.f32 %v2992, %v3160
  %v3162 = vpop.f32.mrf.mxu0
  %v3163 = vadd.f32 %v2994, %v3162
  %3164 = vdwg.mxu0
  %3165 = vmatpush.bf16.msra.mxu0 %v1522
  %3166 = vmatpush.bf16.msra.mxu0 %v1518
  %3167 = vmatpush.bf16.msra.mxu0 %v1514
  %3168 = vmatpush.bf16.msra.mxu0 %v1510
  %3169 = vmatpush.bf16.msra.mxu0 %v1506
  %3170 = vmatpush.bf16.msra.mxu0 %v1502
  %3171 = vmatpush.bf16.msra.mxu0 %v1498
  %3172 = vmatpush.bf16.msra.mxu0 %v1494
  %3173 = vmatmul.bf16.gmra.mxu0 %v475
  %v3174 = vpop.f32.mrf.mxu0
  %v3175 = vadd.f32 %v898, %v3174
  %v3176 = vpop.f32.mrf.mxu0
  %v3177 = vadd.f32 %v898, %v3176
  %3178 = vmatmul.bf16.gmra.mxu0 %v482
  %v3179 = vpop.f32.mrf.mxu0
  %v3180 = vadd.f32 %v898, %v3179
  %v3181 = vpop.f32.mrf.mxu0
  %v3182 = vadd.f32 %v898, %v3181
  %3183 = vmatmul.bf16.gmra.mxu0 %v489
  %v3184 = vpop.f32.mrf.mxu0
  %v3185 = vadd.f32 %v898, %v3184
  %v3186 = vpop.f32.mrf.mxu0
  %v3187 = vadd.f32 %v898, %v3186
  %3188 = vmatmul.bf16.gmra.mxu0 %v496
  %v3189 = vpop.f32.mrf.mxu0
  %v3190 = vadd.f32 %v898, %v3189
  %v3191 = vpop.f32.mrf.mxu0
  %v3192 = vadd.f32 %v898, %v3191
  %3193 = vmatmul.bf16.gmra.mxu0 %v503
  %v3194 = vpop.f32.mrf.mxu0
  %v3195 = vadd.f32 %v898, %v3194
  %v3196 = vpop.f32.mrf.mxu0
  %v3197 = vadd.f32 %v898, %v3196
  %3198 = vmatmul.bf16.gmra.mxu0 %v510
  %v3199 = vpop.f32.mrf.mxu0
  %v3200 = vadd.f32 %v898, %v3199
  %v3201 = vpop.f32.mrf.mxu0
  %v3202 = vadd.f32 %v898, %v3201
  %3203 = vmatmul.bf16.gmra.mxu0 %v517
  %v3204 = vpop.f32.mrf.mxu0
  %v3205 = vadd.f32 %v898, %v3204
  %v3206 = vpop.f32.mrf.mxu0
  %v3207 = vadd.f32 %v898, %v3206
  %3208 = vmatmul.bf16.gmra.mxu0 %v524
  %v3209 = vpop.f32.mrf.mxu0
  %v3210 = vadd.f32 %v898, %v3209
  %v3211 = vpop.f32.mrf.mxu0
  %v3212 = vadd.f32 %v898, %v3211
  %3213 = vmatmul.bf16.gmra.mxu0 %v531
  %v3214 = vpop.f32.mrf.mxu0
  %v3215 = vadd.f32 %v898, %v3214
  %v3216 = vpop.f32.mrf.mxu0
  %v3217 = vadd.f32 %v898, %v3216
  %3218 = vmatmul.bf16.gmra.mxu0 %v538
  %v3219 = vpop.f32.mrf.mxu0
  %v3220 = vadd.f32 %v898, %v3219
  %v3221 = vpop.f32.mrf.mxu0
  %v3222 = vadd.f32 %v898, %v3221
  %3223 = vmatmul.bf16.gmra.mxu0 %v545
  %v3224 = vpop.f32.mrf.mxu0
  %v3225 = vadd.f32 %v898, %v3224
  %v3226 = vpop.f32.mrf.mxu0
  %v3227 = vadd.f32 %v898, %v3226
  %3228 = vmatmul.bf16.gmra.mxu0 %v552
  %v3229 = vpop.f32.mrf.mxu0
  %v3230 = vadd.f32 %v898, %v3229
  %v3231 = vpop.f32.mrf.mxu0
  %v3232 = vadd.f32 %v898, %v3231
  %3233 = vmatmul.bf16.gmra.mxu0 %v559
  %v3234 = vpop.f32.mrf.mxu0
  %v3235 = vadd.f32 %v898, %v3234
  %v3236 = vpop.f32.mrf.mxu0
  %v3237 = vadd.f32 %v898, %v3236
  %3238 = vmatmul.bf16.gmra.mxu0 %v566
  %v3239 = vpop.f32.mrf.mxu0
  %v3240 = vadd.f32 %v898, %v3239
  %v3241 = vpop.f32.mrf.mxu0
  %v3242 = vadd.f32 %v898, %v3241
  %3243 = vmatmul.bf16.gmra.mxu0 %v573
  %v3244 = vpop.f32.mrf.mxu0
  %v3245 = vadd.f32 %v898, %v3244
  %v3246 = vpop.f32.mrf.mxu0
  %v3247 = vadd.f32 %v898, %v3246
  %3248 = vmatmul.bf16.gmra.mxu0 %v580
  %v3249 = vpop.f32.mrf.mxu0
  %v3250 = vadd.f32 %v898, %v3249
  %v3251 = vpop.f32.mrf.mxu0
  %v3252 = vadd.f32 %v898, %v3251
  %3253 = vmatmul.bf16.gmra.mxu0 %v587
  %v3254 = vpop.f32.mrf.mxu0
  %v3255 = vadd.f32 %v898, %v3254
  %v3256 = vpop.f32.mrf.mxu0
  %v3257 = vadd.f32 %v898, %v3256
  %3258 = vmatmul.bf16.gmra.mxu0 %v594
  %v3259 = vpop.f32.mrf.mxu0
  %v3260 = vadd.f32 %v898, %v3259
  %v3261 = vpop.f32.mrf.mxu0
  %v3262 = vadd.f32 %v898, %v3261
  %3263 = vmatmul.bf16.gmra.mxu0 %v601
  %v3264 = vpop.f32.mrf.mxu0
  %v3265 = vadd.f32 %v898, %v3264
  %v3266 = vpop.f32.mrf.mxu0
  %v3267 = vadd.f32 %v898, %v3266
  %3268 = vmatmul.bf16.gmra.mxu0 %v608
  %v3269 = vpop.f32.mrf.mxu0
  %v3270 = vadd.f32 %v898, %v3269
  %v3271 = vpop.f32.mrf.mxu0
  %v3272 = vadd.f32 %v898, %v3271
  %3273 = vmatmul.bf16.gmra.mxu0 %v615
  %v3274 = vpop.f32.mrf.mxu0
  %v3275 = vadd.f32 %v898, %v3274
  %v3276 = vpop.f32.mrf.mxu0
  %v3277 = vadd.f32 %v898, %v3276
  %3278 = vmatmul.bf16.gmra.mxu0 %v622
  %v3279 = vpop.f32.mrf.mxu0
  %v3280 = vadd.f32 %v898, %v3279
  %v3281 = vpop.f32.mrf.mxu0
  %v3282 = vadd.f32 %v898, %v3281
  %3283 = vmatmul.bf16.gmra.mxu0 %v629
  %v3284 = vpop.f32.mrf.mxu0
  %v3285 = vadd.f32 %v898, %v3284
  %v3286 = vpop.f32.mrf.mxu0
  %v3287 = vadd.f32 %v898, %v3286
  %3288 = vmatmul.bf16.gmra.mxu0 %v636
  %v3289 = vpop.f32.mrf.mxu0
  %v3290 = vadd.f32 %v898, %v3289
  %v3291 = vpop.f32.mrf.mxu0
  %v3292 = vadd.f32 %v898, %v3291
  %3293 = vmatmul.bf16.gmra.mxu0 %v643
  %v3294 = vpop.f32.mrf.mxu0
  %v3295 = vadd.f32 %v898, %v3294
  %v3296 = vpop.f32.mrf.mxu0
  %v3297 = vadd.f32 %v898, %v3296
  %3298 = vmatmul.bf16.gmra.mxu0 %v650
  %v3299 = vpop.f32.mrf.mxu0
  %v3300 = vadd.f32 %v898, %v3299
  %v3301 = vpop.f32.mrf.mxu0
  %v3302 = vadd.f32 %v898, %v3301
  %3303 = vmatmul.bf16.gmra.mxu0 %v657
  %v3304 = vpop.f32.mrf.mxu0
  %v3305 = vadd.f32 %v898, %v3304
  %v3306 = vpop.f32.mrf.mxu0
  %v3307 = vadd.f32 %v898, %v3306
  %3308 = vmatmul.bf16.gmra.mxu0 %v664
  %v3309 = vpop.f32.mrf.mxu0
  %v3310 = vadd.f32 %v898, %v3309
  %v3311 = vpop.f32.mrf.mxu0
  %v3312 = vadd.f32 %v898, %v3311
  %3313 = vmatmul.bf16.gmra.mxu0 %v671
  %v3314 = vpop.f32.mrf.mxu0
  %v3315 = vadd.f32 %v898, %v3314
  %v3316 = vpop.f32.mrf.mxu0
  %v3317 = vadd.f32 %v898, %v3316
  %3318 = vmatmul.bf16.gmra.mxu0 %v678
  %v3319 = vpop.f32.mrf.mxu0
  %v3320 = vadd.f32 %v898, %v3319
  %v3321 = vpop.f32.mrf.mxu0
  %v3322 = vadd.f32 %v898, %v3321
  %3323 = vmatmul.bf16.gmra.mxu0 %v685
  %v3324 = vpop.f32.mrf.mxu0
  %v3325 = vadd.f32 %v898, %v3324
  %v3326 = vpop.f32.mrf.mxu0
  %v3327 = vadd.f32 %v898, %v3326
  %3328 = vmatmul.bf16.gmra.mxu0 %v692
  %v3329 = vpop.f32.mrf.mxu0
  %v3330 = vadd.f32 %v898, %v3329
  %v3331 = vpop.f32.mrf.mxu0
  %v3332 = vadd.f32 %v898, %v3331
  %3333 = vdwg.mxu0
  %3334 = vmatpush.bf16.msra.mxu0 %v1554
  %3335 = vmatpush.bf16.msra.mxu0 %v1550
  %3336 = vmatpush.bf16.msra.mxu0 %v1546
  %3337 = vmatpush.bf16.msra.mxu0 %v1542
  %3338 = vmatpush.bf16.msra.mxu0 %v1538
  %3339 = vmatpush.bf16.msra.mxu0 %v1534
  %3340 = vmatpush.bf16.msra.mxu0 %v1530
  %3341 = vmatpush.bf16.msra.mxu0 %v1526
  %3342 = vmatmul.bf16.gmra.mxu0 %v476
  %v3343 = vpop.f32.mrf.mxu0
  %v3344 = vadd.f32 %v3175, %v3343
  %v3345 = vpop.f32.mrf.mxu0
  %v3346 = vadd.f32 %v3177, %v3345
  %3347 = vmatmul.bf16.gmra.mxu0 %v483
  %v3348 = vpop.f32.mrf.mxu0
  %v3349 = vadd.f32 %v3180, %v3348
  %v3350 = vpop.f32.mrf.mxu0
  %v3351 = vadd.f32 %v3182, %v3350
  %3352 = vmatmul.bf16.gmra.mxu0 %v490
  %v3353 = vpop.f32.mrf.mxu0
  %v3354 = vadd.f32 %v3185, %v3353
  %v3355 = vpop.f32.mrf.mxu0
  %v3356 = vadd.f32 %v3187, %v3355
  %3357 = vmatmul.bf16.gmra.mxu0 %v497
  %v3358 = vpop.f32.mrf.mxu0
  %v3359 = vadd.f32 %v3190, %v3358
  %v3360 = vpop.f32.mrf.mxu0
  %v3361 = vadd.f32 %v3192, %v3360
  %3362 = vmatmul.bf16.gmra.mxu0 %v504
  %v3363 = vpop.f32.mrf.mxu0
  %v3364 = vadd.f32 %v3195, %v3363
  %v3365 = vpop.f32.mrf.mxu0
  %v3366 = vadd.f32 %v3197, %v3365
  %3367 = vmatmul.bf16.gmra.mxu0 %v511
  %v3368 = vpop.f32.mrf.mxu0
  %v3369 = vadd.f32 %v3200, %v3368
  %v3370 = vpop.f32.mrf.mxu0
  %v3371 = vadd.f32 %v3202, %v3370
  %3372 = vmatmul.bf16.gmra.mxu0 %v518
  %v3373 = vpop.f32.mrf.mxu0
  %v3374 = vadd.f32 %v3205, %v3373
  %v3375 = vpop.f32.mrf.mxu0
  %v3376 = vadd.f32 %v3207, %v3375
  %3377 = vmatmul.bf16.gmra.mxu0 %v525
  %v3378 = vpop.f32.mrf.mxu0
  %v3379 = vadd.f32 %v3210, %v3378
  %v3380 = vpop.f32.mrf.mxu0
  %v3381 = vadd.f32 %v3212, %v3380
  %3382 = vmatmul.bf16.gmra.mxu0 %v532
  %v3383 = vpop.f32.mrf.mxu0
  %v3384 = vadd.f32 %v3215, %v3383
  %v3385 = vpop.f32.mrf.mxu0
  %v3386 = vadd.f32 %v3217, %v3385
  %3387 = vmatmul.bf16.gmra.mxu0 %v539
  %v3388 = vpop.f32.mrf.mxu0
  %v3389 = vadd.f32 %v3220, %v3388
  %v3390 = vpop.f32.mrf.mxu0
  %v3391 = vadd.f32 %v3222, %v3390
  %3392 = vmatmul.bf16.gmra.mxu0 %v546
  %v3393 = vpop.f32.mrf.mxu0
  %v3394 = vadd.f32 %v3225, %v3393
  %v3395 = vpop.f32.mrf.mxu0
  %v3396 = vadd.f32 %v3227, %v3395
  %3397 = vmatmul.bf16.gmra.mxu0 %v553
  %v3398 = vpop.f32.mrf.mxu0
  %v3399 = vadd.f32 %v3230, %v3398
  %v3400 = vpop.f32.mrf.mxu0
  %v3401 = vadd.f32 %v3232, %v3400
  %3402 = vmatmul.bf16.gmra.mxu0 %v560
  %v3403 = vpop.f32.mrf.mxu0
  %v3404 = vadd.f32 %v3235, %v3403
  %v3405 = vpop.f32.mrf.mxu0
  %v3406 = vadd.f32 %v3237, %v3405
  %3407 = vmatmul.bf16.gmra.mxu0 %v567
  %v3408 = vpop.f32.mrf.mxu0
  %v3409 = vadd.f32 %v3240, %v3408
  %v3410 = vpop.f32.mrf.mxu0
  %v3411 = vadd.f32 %v3242, %v3410
  %3412 = vmatmul.bf16.gmra.mxu0 %v574
  %v3413 = vpop.f32.mrf.mxu0
  %v3414 = vadd.f32 %v3245, %v3413
  %v3415 = vpop.f32.mrf.mxu0
  %v3416 = vadd.f32 %v3247, %v3415
  %3417 = vmatmul.bf16.gmra.mxu0 %v581
  %v3418 = vpop.f32.mrf.mxu0
  %v3419 = vadd.f32 %v3250, %v3418
  %v3420 = vpop.f32.mrf.mxu0
  %v3421 = vadd.f32 %v3252, %v3420
  %3422 = vmatmul.bf16.gmra.mxu0 %v588
  %v3423 = vpop.f32.mrf.mxu0
  %v3424 = vadd.f32 %v3255, %v3423
  %v3425 = vpop.f32.mrf.mxu0
  %v3426 = vadd.f32 %v3257, %v3425
  %3427 = vmatmul.bf16.gmra.mxu0 %v595
  %v3428 = vpop.f32.mrf.mxu0
  %v3429 = vadd.f32 %v3260, %v3428
  %v3430 = vpop.f32.mrf.mxu0
  %v3431 = vadd.f32 %v3262, %v3430
  %3432 = vmatmul.bf16.gmra.mxu0 %v602
  %v3433 = vpop.f32.mrf.mxu0
  %v3434 = vadd.f32 %v3265, %v3433
  %v3435 = vpop.f32.mrf.mxu0
  %v3436 = vadd.f32 %v3267, %v3435
  %3437 = vmatmul.bf16.gmra.mxu0 %v609
  %v3438 = vpop.f32.mrf.mxu0
  %v3439 = vadd.f32 %v3270, %v3438
  %v3440 = vpop.f32.mrf.mxu0
  %v3441 = vadd.f32 %v3272, %v3440
  %3442 = vmatmul.bf16.gmra.mxu0 %v616
  %v3443 = vpop.f32.mrf.mxu0
  %v3444 = vadd.f32 %v3275, %v3443
  %v3445 = vpop.f32.mrf.mxu0
  %v3446 = vadd.f32 %v3277, %v3445
  %3447 = vmatmul.bf16.gmra.mxu0 %v623
  %v3448 = vpop.f32.mrf.mxu0
  %v3449 = vadd.f32 %v3280, %v3448
  %v3450 = vpop.f32.mrf.mxu0
  %v3451 = vadd.f32 %v3282, %v3450
  %3452 = vmatmul.bf16.gmra.mxu0 %v630
  %v3453 = vpop.f32.mrf.mxu0
  %v3454 = vadd.f32 %v3285, %v3453
  %v3455 = vpop.f32.mrf.mxu0
  %v3456 = vadd.f32 %v3287, %v3455
  %3457 = vmatmul.bf16.gmra.mxu0 %v637
  %v3458 = vpop.f32.mrf.mxu0
  %v3459 = vadd.f32 %v3290, %v3458
  %v3460 = vpop.f32.mrf.mxu0
  %v3461 = vadd.f32 %v3292, %v3460
  %3462 = vmatmul.bf16.gmra.mxu0 %v644
  %v3463 = vpop.f32.mrf.mxu0
  %v3464 = vadd.f32 %v3295, %v3463
  %v3465 = vpop.f32.mrf.mxu0
  %v3466 = vadd.f32 %v3297, %v3465
  %3467 = vmatmul.bf16.gmra.mxu0 %v651
  %v3468 = vpop.f32.mrf.mxu0
  %v3469 = vadd.f32 %v3300, %v3468
  %v3470 = vpop.f32.mrf.mxu0
  %v3471 = vadd.f32 %v3302, %v3470
  %3472 = vmatmul.bf16.gmra.mxu0 %v658
  %v3473 = vpop.f32.mrf.mxu0
  %v3474 = vadd.f32 %v3305, %v3473
  %v3475 = vpop.f32.mrf.mxu0
  %v3476 = vadd.f32 %v3307, %v3475
  %3477 = vmatmul.bf16.gmra.mxu0 %v665
  %v3478 = vpop.f32.mrf.mxu0
  %v3479 = vadd.f32 %v3310, %v3478
  %v3480 = vpop.f32.mrf.mxu0
  %v3481 = vadd.f32 %v3312, %v3480
  %3482 = vmatmul.bf16.gmra.mxu0 %v672
  %v3483 = vpop.f32.mrf.mxu0
  %v3484 = vadd.f32 %v3315, %v3483
  %v3485 = vpop.f32.mrf.mxu0
  %v3486 = vadd.f32 %v3317, %v3485
  %3487 = vmatmul.bf16.gmra.mxu0 %v679
  %v3488 = vpop.f32.mrf.mxu0
  %v3489 = vadd.f32 %v3320, %v3488
  %v3490 = vpop.f32.mrf.mxu0
  %v3491 = vadd.f32 %v3322, %v3490
  %3492 = vmatmul.bf16.gmra.mxu0 %v686
  %v3493 = vpop.f32.mrf.mxu0
  %v3494 = vadd.f32 %v3325, %v3493
  %v3495 = vpop.f32.mrf.mxu0
  %v3496 = vadd.f32 %v3327, %v3495
  %3497 = vmatmul.bf16.gmra.mxu0 %v693
  %v3498 = vpop.f32.mrf.mxu0
  %v3499 = vadd.f32 %v3330, %v3498
  %v3500 = vpop.f32.mrf.mxu0
  %v3501 = vadd.f32 %v3332, %v3500
  %3502 = vdwg.mxu0
  %3503 = vmatpush.bf16.msra.mxu0 %v1586
  %3504 = vmatpush.bf16.msra.mxu0 %v1582
  %3505 = vmatpush.bf16.msra.mxu0 %v1578
  %3506 = vmatpush.bf16.msra.mxu0 %v1574
  %3507 = vmatpush.bf16.msra.mxu0 %v1570
  %3508 = vmatpush.bf16.msra.mxu0 %v1566
  %3509 = vmatpush.bf16.msra.mxu0 %v1562
  %3510 = vmatpush.bf16.msra.mxu0 %v1558
  %3511 = vmatmul.bf16.gmra.mxu0 %v477
  %v3512 = vpop.f32.mrf.mxu0
  %v3513 = vadd.f32 %v3344, %v3512
  %v3514 = vpop.f32.mrf.mxu0
  %v3515 = vadd.f32 %v3346, %v3514
  %3516 = vmatmul.bf16.gmra.mxu0 %v484
  %v3517 = vpop.f32.mrf.mxu0
  %v3518 = vadd.f32 %v3349, %v3517
  %v3519 = vpop.f32.mrf.mxu0
  %v3520 = vadd.f32 %v3351, %v3519
  %3521 = vmatmul.bf16.gmra.mxu0 %v491
  %v3522 = vpop.f32.mrf.mxu0
  %v3523 = vadd.f32 %v3354, %v3522
  %v3524 = vpop.f32.mrf.mxu0
  %v3525 = vadd.f32 %v3356, %v3524
  %3526 = vmatmul.bf16.gmra.mxu0 %v498
  %v3527 = vpop.f32.mrf.mxu0
  %v3528 = vadd.f32 %v3359, %v3527
  %v3529 = vpop.f32.mrf.mxu0
  %v3530 = vadd.f32 %v3361, %v3529
  %3531 = vmatmul.bf16.gmra.mxu0 %v505
  %v3532 = vpop.f32.mrf.mxu0
  %v3533 = vadd.f32 %v3364, %v3532
  %v3534 = vpop.f32.mrf.mxu0
  %v3535 = vadd.f32 %v3366, %v3534
  %3536 = vmatmul.bf16.gmra.mxu0 %v512
  %v3537 = vpop.f32.mrf.mxu0
  %v3538 = vadd.f32 %v3369, %v3537
  %v3539 = vpop.f32.mrf.mxu0
  %v3540 = vadd.f32 %v3371, %v3539
  %3541 = vmatmul.bf16.gmra.mxu0 %v519
  %v3542 = vpop.f32.mrf.mxu0
  %v3543 = vadd.f32 %v3374, %v3542
  %v3544 = vpop.f32.mrf.mxu0
  %v3545 = vadd.f32 %v3376, %v3544
  %3546 = vmatmul.bf16.gmra.mxu0 %v526
  %v3547 = vpop.f32.mrf.mxu0
  %v3548 = vadd.f32 %v3379, %v3547
  %v3549 = vpop.f32.mrf.mxu0
  %v3550 = vadd.f32 %v3381, %v3549
  %3551 = vmatmul.bf16.gmra.mxu0 %v533
  %v3552 = vpop.f32.mrf.mxu0
  %v3553 = vadd.f32 %v3384, %v3552
  %v3554 = vpop.f32.mrf.mxu0
  %v3555 = vadd.f32 %v3386, %v3554
  %3556 = vmatmul.bf16.gmra.mxu0 %v540
  %v3557 = vpop.f32.mrf.mxu0
  %v3558 = vadd.f32 %v3389, %v3557
  %v3559 = vpop.f32.mrf.mxu0
  %v3560 = vadd.f32 %v3391, %v3559
  %3561 = vmatmul.bf16.gmra.mxu0 %v547
  %v3562 = vpop.f32.mrf.mxu0
  %v3563 = vadd.f32 %v3394, %v3562
  %v3564 = vpop.f32.mrf.mxu0
  %v3565 = vadd.f32 %v3396, %v3564
  %3566 = vmatmul.bf16.gmra.mxu0 %v554
  %v3567 = vpop.f32.mrf.mxu0
  %v3568 = vadd.f32 %v3399, %v3567
  %v3569 = vpop.f32.mrf.mxu0
  %v3570 = vadd.f32 %v3401, %v3569
  %3571 = vmatmul.bf16.gmra.mxu0 %v561
  %v3572 = vpop.f32.mrf.mxu0
  %v3573 = vadd.f32 %v3404, %v3572
  %v3574 = vpop.f32.mrf.mxu0
  %v3575 = vadd.f32 %v3406, %v3574
  %3576 = vmatmul.bf16.gmra.mxu0 %v568
  %v3577 = vpop.f32.mrf.mxu0
  %v3578 = vadd.f32 %v3409, %v3577
  %v3579 = vpop.f32.mrf.mxu0
  %v3580 = vadd.f32 %v3411, %v3579
  %3581 = vmatmul.bf16.gmra.mxu0 %v575
  %v3582 = vpop.f32.mrf.mxu0
  %v3583 = vadd.f32 %v3414, %v3582
  %v3584 = vpop.f32.mrf.mxu0
  %v3585 = vadd.f32 %v3416, %v3584
  %3586 = vmatmul.bf16.gmra.mxu0 %v582
  %v3587 = vpop.f32.mrf.mxu0
  %v3588 = vadd.f32 %v3419, %v3587
  %v3589 = vpop.f32.mrf.mxu0
  %v3590 = vadd.f32 %v3421, %v3589
  %3591 = vmatmul.bf16.gmra.mxu0 %v589
  %v3592 = vpop.f32.mrf.mxu0
  %v3593 = vadd.f32 %v3424, %v3592
  %v3594 = vpop.f32.mrf.mxu0
  %v3595 = vadd.f32 %v3426, %v3594
  %3596 = vmatmul.bf16.gmra.mxu0 %v596
  %v3597 = vpop.f32.mrf.mxu0
  %v3598 = vadd.f32 %v3429, %v3597
  %v3599 = vpop.f32.mrf.mxu0
  %v3600 = vadd.f32 %v3431, %v3599
  %3601 = vmatmul.bf16.gmra.mxu0 %v603
  %v3602 = vpop.f32.mrf.mxu0
  %v3603 = vadd.f32 %v3434, %v3602
  %v3604 = vpop.f32.mrf.mxu0
  %v3605 = vadd.f32 %v3436, %v3604
  %3606 = vmatmul.bf16.gmra.mxu0 %v610
  %v3607 = vpop.f32.mrf.mxu0
  %v3608 = vadd.f32 %v3439, %v3607
  %v3609 = vpop.f32.mrf.mxu0
  %v3610 = vadd.f32 %v3441, %v3609
  %3611 = vmatmul.bf16.gmra.mxu0 %v617
  %v3612 = vpop.f32.mrf.mxu0
  %v3613 = vadd.f32 %v3444, %v3612
  %v3614 = vpop.f32.mrf.mxu0
  %v3615 = vadd.f32 %v3446, %v3614
  %3616 = vmatmul.bf16.gmra.mxu0 %v624
  %v3617 = vpop.f32.mrf.mxu0
  %v3618 = vadd.f32 %v3449, %v3617
  %v3619 = vpop.f32.mrf.mxu0
  %v3620 = vadd.f32 %v3451, %v3619
  %3621 = vmatmul.bf16.gmra.mxu0 %v631
  %v3622 = vpop.f32.mrf.mxu0
  %v3623 = vadd.f32 %v3454, %v3622
  %v3624 = vpop.f32.mrf.mxu0
  %v3625 = vadd.f32 %v3456, %v3624
  %3626 = vmatmul.bf16.gmra.mxu0 %v638
  %v3627 = vpop.f32.mrf.mxu0
  %v3628 = vadd.f32 %v3459, %v3627
  %v3629 = vpop.f32.mrf.mxu0
  %v3630 = vadd.f32 %v3461, %v3629
  %3631 = vmatmul.bf16.gmra.mxu0 %v645
  %v3632 = vpop.f32.mrf.mxu0
  %v3633 = vadd.f32 %v3464, %v3632
  %v3634 = vpop.f32.mrf.mxu0
  %v3635 = vadd.f32 %v3466, %v3634
  %3636 = vmatmul.bf16.gmra.mxu0 %v652
  %v3637 = vpop.f32.mrf.mxu0
  %v3638 = vadd.f32 %v3469, %v3637
  %v3639 = vpop.f32.mrf.mxu0
  %v3640 = vadd.f32 %v3471, %v3639
  %3641 = vmatmul.bf16.gmra.mxu0 %v659
  %v3642 = vpop.f32.mrf.mxu0
  %v3643 = vadd.f32 %v3474, %v3642
  %v3644 = vpop.f32.mrf.mxu0
  %v3645 = vadd.f32 %v3476, %v3644
  %3646 = vmatmul.bf16.gmra.mxu0 %v666
  %v3647 = vpop.f32.mrf.mxu0
  %v3648 = vadd.f32 %v3479, %v3647
  %v3649 = vpop.f32.mrf.mxu0
  %v3650 = vadd.f32 %v3481, %v3649
  %3651 = vmatmul.bf16.gmra.mxu0 %v673
  %v3652 = vpop.f32.mrf.mxu0
  %v3653 = vadd.f32 %v3484, %v3652
  %v3654 = vpop.f32.mrf.mxu0
  %v3655 = vadd.f32 %v3486, %v3654
  %3656 = vmatmul.bf16.gmra.mxu0 %v680
  %v3657 = vpop.f32.mrf.mxu0
  %v3658 = vadd.f32 %v3489, %v3657
  %v3659 = vpop.f32.mrf.mxu0
  %v3660 = vadd.f32 %v3491, %v3659
  %3661 = vmatmul.bf16.gmra.mxu0 %v687
  %v3662 = vpop.f32.mrf.mxu0
  %v3663 = vadd.f32 %v3494, %v3662
  %v3664 = vpop.f32.mrf.mxu0
  %v3665 = vadd.f32 %v3496, %v3664
  %3666 = vmatmul.bf16.gmra.mxu0 %v694
  %v3667 = vpop.f32.mrf.mxu0
  %v3668 = vadd.f32 %v3499, %v3667
  %v3669 = vpop.f32.mrf.mxu0
  %v3670 = vadd.f32 %v3501, %v3669
  %3671 = vdwg.mxu0
  %3672 = vmatpush.bf16.msra.mxu0 %v1618
  %3673 = vmatpush.bf16.msra.mxu0 %v1614
  %3674 = vmatpush.bf16.msra.mxu0 %v1610
  %3675 = vmatpush.bf16.msra.mxu0 %v1606
  %3676 = vmatpush.bf16.msra.mxu0 %v1602
  %3677 = vmatpush.bf16.msra.mxu0 %v1598
  %3678 = vmatpush.bf16.msra.mxu0 %v1594
  %3679 = vmatpush.bf16.msra.mxu0 %v1590
  %3680 = vmatmul.bf16.gmra.mxu0 %v478
  %v3681 = vpop.f32.mrf.mxu0
  %v3682 = vadd.f32 %v3513, %v3681
  %v3683 = vpop.f32.mrf.mxu0
  %v3684 = vadd.f32 %v3515, %v3683
  %3685 = vmatmul.bf16.gmra.mxu0 %v485
  %v3686 = vpop.f32.mrf.mxu0
  %v3687 = vadd.f32 %v3518, %v3686
  %v3688 = vpop.f32.mrf.mxu0
  %v3689 = vadd.f32 %v3520, %v3688
  %3690 = vmatmul.bf16.gmra.mxu0 %v492
  %v3691 = vpop.f32.mrf.mxu0
  %v3692 = vadd.f32 %v3523, %v3691
  %v3693 = vpop.f32.mrf.mxu0
  %v3694 = vadd.f32 %v3525, %v3693
  %3695 = vmatmul.bf16.gmra.mxu0 %v499
  %v3696 = vpop.f32.mrf.mxu0
  %v3697 = vadd.f32 %v3528, %v3696
  %v3698 = vpop.f32.mrf.mxu0
  %v3699 = vadd.f32 %v3530, %v3698
  %3700 = vmatmul.bf16.gmra.mxu0 %v506
  %v3701 = vpop.f32.mrf.mxu0
  %v3702 = vadd.f32 %v3533, %v3701
  %v3703 = vpop.f32.mrf.mxu0
  %v3704 = vadd.f32 %v3535, %v3703
  %3705 = vmatmul.bf16.gmra.mxu0 %v513
  %v3706 = vpop.f32.mrf.mxu0
  %v3707 = vadd.f32 %v3538, %v3706
  %v3708 = vpop.f32.mrf.mxu0
  %v3709 = vadd.f32 %v3540, %v3708
  %3710 = vmatmul.bf16.gmra.mxu0 %v520
  %v3711 = vpop.f32.mrf.mxu0
  %v3712 = vadd.f32 %v3543, %v3711
  %v3713 = vpop.f32.mrf.mxu0
  %v3714 = vadd.f32 %v3545, %v3713
  %3715 = vmatmul.bf16.gmra.mxu0 %v527
  %v3716 = vpop.f32.mrf.mxu0
  %v3717 = vadd.f32 %v3548, %v3716
  %v3718 = vpop.f32.mrf.mxu0
  %v3719 = vadd.f32 %v3550, %v3718
  %3720 = vmatmul.bf16.gmra.mxu0 %v534
  %v3721 = vpop.f32.mrf.mxu0
  %v3722 = vadd.f32 %v3553, %v3721
  %v3723 = vpop.f32.mrf.mxu0
  %v3724 = vadd.f32 %v3555, %v3723
  %3725 = vmatmul.bf16.gmra.mxu0 %v541
  %v3726 = vpop.f32.mrf.mxu0
  %v3727 = vadd.f32 %v3558, %v3726
  %v3728 = vpop.f32.mrf.mxu0
  %v3729 = vadd.f32 %v3560, %v3728
  %3730 = vmatmul.bf16.gmra.mxu0 %v548
  %v3731 = vpop.f32.mrf.mxu0
  %v3732 = vadd.f32 %v3563, %v3731
  %v3733 = vpop.f32.mrf.mxu0
  %v3734 = vadd.f32 %v3565, %v3733
  %3735 = vmatmul.bf16.gmra.mxu0 %v555
  %v3736 = vpop.f32.mrf.mxu0
  %v3737 = vadd.f32 %v3568, %v3736
  %v3738 = vpop.f32.mrf.mxu0
  %v3739 = vadd.f32 %v3570, %v3738
  %3740 = vmatmul.bf16.gmra.mxu0 %v562
  %v3741 = vpop.f32.mrf.mxu0
  %v3742 = vadd.f32 %v3573, %v3741
  %v3743 = vpop.f32.mrf.mxu0
  %v3744 = vadd.f32 %v3575, %v3743
  %3745 = vmatmul.bf16.gmra.mxu0 %v569
  %v3746 = vpop.f32.mrf.mxu0
  %v3747 = vadd.f32 %v3578, %v3746
  %v3748 = vpop.f32.mrf.mxu0
  %v3749 = vadd.f32 %v3580, %v3748
  %3750 = vmatmul.bf16.gmra.mxu0 %v576
  %v3751 = vpop.f32.mrf.mxu0
  %v3752 = vadd.f32 %v3583, %v3751
  %v3753 = vpop.f32.mrf.mxu0
  %v3754 = vadd.f32 %v3585, %v3753
  %3755 = vmatmul.bf16.gmra.mxu0 %v583
  %v3756 = vpop.f32.mrf.mxu0
  %v3757 = vadd.f32 %v3588, %v3756
  %v3758 = vpop.f32.mrf.mxu0
  %v3759 = vadd.f32 %v3590, %v3758
  %3760 = vmatmul.bf16.gmra.mxu0 %v590
  %v3761 = vpop.f32.mrf.mxu0
  %v3762 = vadd.f32 %v3593, %v3761
  %v3763 = vpop.f32.mrf.mxu0
  %v3764 = vadd.f32 %v3595, %v3763
  %3765 = vmatmul.bf16.gmra.mxu0 %v597
  %v3766 = vpop.f32.mrf.mxu0
  %v3767 = vadd.f32 %v3598, %v3766
  %v3768 = vpop.f32.mrf.mxu0
  %v3769 = vadd.f32 %v3600, %v3768
  %3770 = vmatmul.bf16.gmra.mxu0 %v604
  %v3771 = vpop.f32.mrf.mxu0
  %v3772 = vadd.f32 %v3603, %v3771
  %v3773 = vpop.f32.mrf.mxu0
  %v3774 = vadd.f32 %v3605, %v3773
  %3775 = vmatmul.bf16.gmra.mxu0 %v611
  %v3776 = vpop.f32.mrf.mxu0
  %v3777 = vadd.f32 %v3608, %v3776
  %v3778 = vpop.f32.mrf.mxu0
  %v3779 = vadd.f32 %v3610, %v3778
  %3780 = vmatmul.bf16.gmra.mxu0 %v618
  %v3781 = vpop.f32.mrf.mxu0
  %v3782 = vadd.f32 %v3613, %v3781
  %v3783 = vpop.f32.mrf.mxu0
  %v3784 = vadd.f32 %v3615, %v3783
  %3785 = vmatmul.bf16.gmra.mxu0 %v625
  %v3786 = vpop.f32.mrf.mxu0
  %v3787 = vadd.f32 %v3618, %v3786
  %v3788 = vpop.f32.mrf.mxu0
  %v3789 = vadd.f32 %v3620, %v3788
  %3790 = vmatmul.bf16.gmra.mxu0 %v632
  %v3791 = vpop.f32.mrf.mxu0
  %v3792 = vadd.f32 %v3623, %v3791
  %v3793 = vpop.f32.mrf.mxu0
  %v3794 = vadd.f32 %v3625, %v3793
  %3795 = vmatmul.bf16.gmra.mxu0 %v639
  %v3796 = vpop.f32.mrf.mxu0
  %v3797 = vadd.f32 %v3628, %v3796
  %v3798 = vpop.f32.mrf.mxu0
  %v3799 = vadd.f32 %v3630, %v3798
  %3800 = vmatmul.bf16.gmra.mxu0 %v646
  %v3801 = vpop.f32.mrf.mxu0
  %v3802 = vadd.f32 %v3633, %v3801
  %v3803 = vpop.f32.mrf.mxu0
  %v3804 = vadd.f32 %v3635, %v3803
  %3805 = vmatmul.bf16.gmra.mxu0 %v653
  %v3806 = vpop.f32.mrf.mxu0
  %v3807 = vadd.f32 %v3638, %v3806
  %v3808 = vpop.f32.mrf.mxu0
  %v3809 = vadd.f32 %v3640, %v3808
  %3810 = vmatmul.bf16.gmra.mxu0 %v660
  %v3811 = vpop.f32.mrf.mxu0
  %v3812 = vadd.f32 %v3643, %v3811
  %v3813 = vpop.f32.mrf.mxu0
  %v3814 = vadd.f32 %v3645, %v3813
  %3815 = vmatmul.bf16.gmra.mxu0 %v667
  %v3816 = vpop.f32.mrf.mxu0
  %v3817 = vadd.f32 %v3648, %v3816
  %v3818 = vpop.f32.mrf.mxu0
  %v3819 = vadd.f32 %v3650, %v3818
  %3820 = vmatmul.bf16.gmra.mxu0 %v674
  %v3821 = vpop.f32.mrf.mxu0
  %v3822 = vadd.f32 %v3653, %v3821
  %v3823 = vpop.f32.mrf.mxu0
  %v3824 = vadd.f32 %v3655, %v3823
  %3825 = vmatmul.bf16.gmra.mxu0 %v681
  %v3826 = vpop.f32.mrf.mxu0
  %v3827 = vadd.f32 %v3658, %v3826
  %v3828 = vpop.f32.mrf.mxu0
  %v3829 = vadd.f32 %v3660, %v3828
  %3830 = vmatmul.bf16.gmra.mxu0 %v688
  %v3831 = vpop.f32.mrf.mxu0
  %v3832 = vadd.f32 %v3663, %v3831
  %v3833 = vpop.f32.mrf.mxu0
  %v3834 = vadd.f32 %v3665, %v3833
  %3835 = vmatmul.bf16.gmra.mxu0 %v695
  %v3836 = vpop.f32.mrf.mxu0
  %v3837 = vadd.f32 %v3668, %v3836
  %v3838 = vpop.f32.mrf.mxu0
  %v3839 = vadd.f32 %v3670, %v3838
  %3840 = vdwg.mxu0
  %3841 = vmatpush.bf16.msra.mxu0 %v1650
  %3842 = vmatpush.bf16.msra.mxu0 %v1646
  %3843 = vmatpush.bf16.msra.mxu0 %v1642
  %3844 = vmatpush.bf16.msra.mxu0 %v1638
  %3845 = vmatpush.bf16.msra.mxu0 %v1634
  %3846 = vmatpush.bf16.msra.mxu0 %v1630
  %3847 = vmatpush.bf16.msra.mxu0 %v1626
  %3848 = vmatpush.bf16.msra.mxu0 %v1622
  %3849 = vmatmul.bf16.gmra.mxu0 %v479
  %v3850 = vpop.f32.mrf.mxu0
  %v3851 = vadd.f32 %v3682, %v3850
  %v3852 = vpop.f32.mrf.mxu0
  %v3853 = vadd.f32 %v3684, %v3852
  %3854 = vmatmul.bf16.gmra.mxu0 %v486
  %v3855 = vpop.f32.mrf.mxu0
  %v3856 = vadd.f32 %v3687, %v3855
  %v3857 = vpop.f32.mrf.mxu0
  %v3858 = vadd.f32 %v3689, %v3857
  %3859 = vmatmul.bf16.gmra.mxu0 %v493
  %v3860 = vpop.f32.mrf.mxu0
  %v3861 = vadd.f32 %v3692, %v3860
  %v3862 = vpop.f32.mrf.mxu0
  %v3863 = vadd.f32 %v3694, %v3862
  %3864 = vmatmul.bf16.gmra.mxu0 %v500
  %v3865 = vpop.f32.mrf.mxu0
  %v3866 = vadd.f32 %v3697, %v3865
  %v3867 = vpop.f32.mrf.mxu0
  %v3868 = vadd.f32 %v3699, %v3867
  %3869 = vmatmul.bf16.gmra.mxu0 %v507
  %v3870 = vpop.f32.mrf.mxu0
  %v3871 = vadd.f32 %v3702, %v3870
  %v3872 = vpop.f32.mrf.mxu0
  %v3873 = vadd.f32 %v3704, %v3872
  %3874 = vmatmul.bf16.gmra.mxu0 %v514
  %v3875 = vpop.f32.mrf.mxu0
  %v3876 = vadd.f32 %v3707, %v3875
  %v3877 = vpop.f32.mrf.mxu0
  %v3878 = vadd.f32 %v3709, %v3877
  %3879 = vmatmul.bf16.gmra.mxu0 %v521
  %v3880 = vpop.f32.mrf.mxu0
  %v3881 = vadd.f32 %v3712, %v3880
  %v3882 = vpop.f32.mrf.mxu0
  %v3883 = vadd.f32 %v3714, %v3882
  %3884 = vmatmul.bf16.gmra.mxu0 %v528
  %v3885 = vpop.f32.mrf.mxu0
  %v3886 = vadd.f32 %v3717, %v3885
  %v3887 = vpop.f32.mrf.mxu0
  %v3888 = vadd.f32 %v3719, %v3887
  %3889 = vmatmul.bf16.gmra.mxu0 %v535
  %v3890 = vpop.f32.mrf.mxu0
  %v3891 = vadd.f32 %v3722, %v3890
  %v3892 = vpop.f32.mrf.mxu0
  %v3893 = vadd.f32 %v3724, %v3892
  %3894 = vmatmul.bf16.gmra.mxu0 %v542
  %v3895 = vpop.f32.mrf.mxu0
  %v3896 = vadd.f32 %v3727, %v3895
  %v3897 = vpop.f32.mrf.mxu0
  %v3898 = vadd.f32 %v3729, %v3897
  %3899 = vmatmul.bf16.gmra.mxu0 %v549
  %v3900 = vpop.f32.mrf.mxu0
  %v3901 = vadd.f32 %v3732, %v3900
  %v3902 = vpop.f32.mrf.mxu0
  %v3903 = vadd.f32 %v3734, %v3902
  %3904 = vmatmul.bf16.gmra.mxu0 %v556
  %v3905 = vpop.f32.mrf.mxu0
  %v3906 = vadd.f32 %v3737, %v3905
  %v3907 = vpop.f32.mrf.mxu0
  %v3908 = vadd.f32 %v3739, %v3907
  %3909 = vmatmul.bf16.gmra.mxu0 %v563
  %v3910 = vpop.f32.mrf.mxu0
  %v3911 = vadd.f32 %v3742, %v3910
  %v3912 = vpop.f32.mrf.mxu0
  %v3913 = vadd.f32 %v3744, %v3912
  %3914 = vmatmul.bf16.gmra.mxu0 %v570
  %v3915 = vpop.f32.mrf.mxu0
  %v3916 = vadd.f32 %v3747, %v3915
  %v3917 = vpop.f32.mrf.mxu0
  %v3918 = vadd.f32 %v3749, %v3917
  %3919 = vmatmul.bf16.gmra.mxu0 %v577
  %v3920 = vpop.f32.mrf.mxu0
  %v3921 = vadd.f32 %v3752, %v3920
  %v3922 = vpop.f32.mrf.mxu0
  %v3923 = vadd.f32 %v3754, %v3922
  %3924 = vmatmul.bf16.gmra.mxu0 %v584
  %v3925 = vpop.f32.mrf.mxu0
  %v3926 = vadd.f32 %v3757, %v3925
  %v3927 = vpop.f32.mrf.mxu0
  %v3928 = vadd.f32 %v3759, %v3927
  %3929 = vmatmul.bf16.gmra.mxu0 %v591
  %v3930 = vpop.f32.mrf.mxu0
  %v3931 = vadd.f32 %v3762, %v3930
  %v3932 = vpop.f32.mrf.mxu0
  %v3933 = vadd.f32 %v3764, %v3932
  %3934 = vmatmul.bf16.gmra.mxu0 %v598
  %v3935 = vpop.f32.mrf.mxu0
  %v3936 = vadd.f32 %v3767, %v3935
  %v3937 = vpop.f32.mrf.mxu0
  %v3938 = vadd.f32 %v3769, %v3937
  %3939 = vmatmul.bf16.gmra.mxu0 %v605
  %v3940 = vpop.f32.mrf.mxu0
  %v3941 = vadd.f32 %v3772, %v3940
  %v3942 = vpop.f32.mrf.mxu0
  %v3943 = vadd.f32 %v3774, %v3942
  %3944 = vmatmul.bf16.gmra.mxu0 %v612
  %v3945 = vpop.f32.mrf.mxu0
  %v3946 = vadd.f32 %v3777, %v3945
  %v3947 = vpop.f32.mrf.mxu0
  %v3948 = vadd.f32 %v3779, %v3947
  %3949 = vmatmul.bf16.gmra.mxu0 %v619
  %v3950 = vpop.f32.mrf.mxu0
  %v3951 = vadd.f32 %v3782, %v3950
  %v3952 = vpop.f32.mrf.mxu0
  %v3953 = vadd.f32 %v3784, %v3952
  %3954 = vmatmul.bf16.gmra.mxu0 %v626
  %v3955 = vpop.f32.mrf.mxu0
  %v3956 = vadd.f32 %v3787, %v3955
  %v3957 = vpop.f32.mrf.mxu0
  %v3958 = vadd.f32 %v3789, %v3957
  %3959 = vmatmul.bf16.gmra.mxu0 %v633
  %v3960 = vpop.f32.mrf.mxu0
  %v3961 = vadd.f32 %v3792, %v3960
  %v3962 = vpop.f32.mrf.mxu0
  %v3963 = vadd.f32 %v3794, %v3962
  %3964 = vmatmul.bf16.gmra.mxu0 %v640
  %v3965 = vpop.f32.mrf.mxu0
  %v3966 = vadd.f32 %v3797, %v3965
  %v3967 = vpop.f32.mrf.mxu0
  %v3968 = vadd.f32 %v3799, %v3967
  %3969 = vmatmul.bf16.gmra.mxu0 %v647
  %v3970 = vpop.f32.mrf.mxu0
  %v3971 = vadd.f32 %v3802, %v3970
  %v3972 = vpop.f32.mrf.mxu0
  %v3973 = vadd.f32 %v3804, %v3972
  %3974 = vmatmul.bf16.gmra.mxu0 %v654
  %v3975 = vpop.f32.mrf.mxu0
  %v3976 = vadd.f32 %v3807, %v3975
  %v3977 = vpop.f32.mrf.mxu0
  %v3978 = vadd.f32 %v3809, %v3977
  %3979 = vmatmul.bf16.gmra.mxu0 %v661
  %v3980 = vpop.f32.mrf.mxu0
  %v3981 = vadd.f32 %v3812, %v3980
  %v3982 = vpop.f32.mrf.mxu0
  %v3983 = vadd.f32 %v3814, %v3982
  %3984 = vmatmul.bf16.gmra.mxu0 %v668
  %v3985 = vpop.f32.mrf.mxu0
  %v3986 = vadd.f32 %v3817, %v3985
  %v3987 = vpop.f32.mrf.mxu0
  %v3988 = vadd.f32 %v3819, %v3987
  %3989 = vmatmul.bf16.gmra.mxu0 %v675
  %v3990 = vpop.f32.mrf.mxu0
  %v3991 = vadd.f32 %v3822, %v3990
  %v3992 = vpop.f32.mrf.mxu0
  %v3993 = vadd.f32 %v3824, %v3992
  %3994 = vmatmul.bf16.gmra.mxu0 %v682
  %v3995 = vpop.f32.mrf.mxu0
  %v3996 = vadd.f32 %v3827, %v3995
  %v3997 = vpop.f32.mrf.mxu0
  %v3998 = vadd.f32 %v3829, %v3997
  %3999 = vmatmul.bf16.gmra.mxu0 %v689
  %v4000 = vpop.f32.mrf.mxu0
  %v4001 = vadd.f32 %v3832, %v4000
  %v4002 = vpop.f32.mrf.mxu0
  %v4003 = vadd.f32 %v3834, %v4002
  %4004 = vmatmul.bf16.gmra.mxu0 %v696
  %v4005 = vpop.f32.mrf.mxu0
  %v4006 = vadd.f32 %v3837, %v4005
  %v4007 = vpop.f32.mrf.mxu0
  %v4008 = vadd.f32 %v3839, %v4007
  %4009 = vdwg.mxu0
  %4010 = vmatpush.bf16.msra.mxu0 %v1682
  %4011 = vmatpush.bf16.msra.mxu0 %v1678
  %4012 = vmatpush.bf16.msra.mxu0 %v1674
  %4013 = vmatpush.bf16.msra.mxu0 %v1670
  %4014 = vmatpush.bf16.msra.mxu0 %v1666
  %4015 = vmatpush.bf16.msra.mxu0 %v1662
  %4016 = vmatpush.bf16.msra.mxu0 %v1658
  %4017 = vmatpush.bf16.msra.mxu0 %v1654
  %4018 = vmatmul.bf16.gmra.mxu0 %v480
  %v4019 = vpop.f32.mrf.mxu0
  %v4020 = vadd.f32 %v3851, %v4019
  %v4021 = vpop.f32.mrf.mxu0
  %v4022 = vadd.f32 %v3853, %v4021
  %4023 = vmatmul.bf16.gmra.mxu0 %v487
  %v4024 = vpop.f32.mrf.mxu0
  %v4025 = vadd.f32 %v3856, %v4024
  %v4026 = vpop.f32.mrf.mxu0
  %v4027 = vadd.f32 %v3858, %v4026
  %4028 = vmatmul.bf16.gmra.mxu0 %v494
  %v4029 = vpop.f32.mrf.mxu0
  %v4030 = vadd.f32 %v3861, %v4029
  %v4031 = vpop.f32.mrf.mxu0
  %v4032 = vadd.f32 %v3863, %v4031
  %4033 = vmatmul.bf16.gmra.mxu0 %v501
  %v4034 = vpop.f32.mrf.mxu0
  %v4035 = vadd.f32 %v3866, %v4034
  %v4036 = vpop.f32.mrf.mxu0
  %v4037 = vadd.f32 %v3868, %v4036
  %4038 = vmatmul.bf16.gmra.mxu0 %v508
  %v4039 = vpop.f32.mrf.mxu0
  %v4040 = vadd.f32 %v3871, %v4039
  %v4041 = vpop.f32.mrf.mxu0
  %v4042 = vadd.f32 %v3873, %v4041
  %4043 = vmatmul.bf16.gmra.mxu0 %v515
  %v4044 = vpop.f32.mrf.mxu0
  %v4045 = vadd.f32 %v3876, %v4044
  %v4046 = vpop.f32.mrf.mxu0
  %v4047 = vadd.f32 %v3878, %v4046
  %4048 = vmatmul.bf16.gmra.mxu0 %v522
  %v4049 = vpop.f32.mrf.mxu0
  %v4050 = vadd.f32 %v3881, %v4049
  %v4051 = vpop.f32.mrf.mxu0
  %v4052 = vadd.f32 %v3883, %v4051
  %4053 = vmatmul.bf16.gmra.mxu0 %v529
  %v4054 = vpop.f32.mrf.mxu0
  %v4055 = vadd.f32 %v3886, %v4054
  %v4056 = vpop.f32.mrf.mxu0
  %v4057 = vadd.f32 %v3888, %v4056
  %4058 = vmatmul.bf16.gmra.mxu0 %v536
  %v4059 = vpop.f32.mrf.mxu0
  %v4060 = vadd.f32 %v3891, %v4059
  %v4061 = vpop.f32.mrf.mxu0
  %v4062 = vadd.f32 %v3893, %v4061
  %4063 = vmatmul.bf16.gmra.mxu0 %v543
  %v4064 = vpop.f32.mrf.mxu0
  %v4065 = vadd.f32 %v3896, %v4064
  %v4066 = vpop.f32.mrf.mxu0
  %v4067 = vadd.f32 %v3898, %v4066
  %4068 = vmatmul.bf16.gmra.mxu0 %v550
  %v4069 = vpop.f32.mrf.mxu0
  %v4070 = vadd.f32 %v3901, %v4069
  %v4071 = vpop.f32.mrf.mxu0
  %v4072 = vadd.f32 %v3903, %v4071
  %4073 = vmatmul.bf16.gmra.mxu0 %v557
  %v4074 = vpop.f32.mrf.mxu0
  %v4075 = vadd.f32 %v3906, %v4074
  %v4076 = vpop.f32.mrf.mxu0
  %v4077 = vadd.f32 %v3908, %v4076
  %4078 = vmatmul.bf16.gmra.mxu0 %v564
  %v4079 = vpop.f32.mrf.mxu0
  %v4080 = vadd.f32 %v3911, %v4079
  %v4081 = vpop.f32.mrf.mxu0
  %v4082 = vadd.f32 %v3913, %v4081
  %4083 = vmatmul.bf16.gmra.mxu0 %v571
  %v4084 = vpop.f32.mrf.mxu0
  %v4085 = vadd.f32 %v3916, %v4084
  %v4086 = vpop.f32.mrf.mxu0
  %v4087 = vadd.f32 %v3918, %v4086
  %4088 = vmatmul.bf16.gmra.mxu0 %v578
  %v4089 = vpop.f32.mrf.mxu0
  %v4090 = vadd.f32 %v3921, %v4089
  %v4091 = vpop.f32.mrf.mxu0
  %v4092 = vadd.f32 %v3923, %v4091
  %4093 = vmatmul.bf16.gmra.mxu0 %v585
  %v4094 = vpop.f32.mrf.mxu0
  %v4095 = vadd.f32 %v3926, %v4094
  %v4096 = vpop.f32.mrf.mxu0
  %v4097 = vadd.f32 %v3928, %v4096
  %4098 = vmatmul.bf16.gmra.mxu0 %v592
  %v4099 = vpop.f32.mrf.mxu0
  %v4100 = vadd.f32 %v3931, %v4099
  %v4101 = vpop.f32.mrf.mxu0
  %v4102 = vadd.f32 %v3933, %v4101
  %4103 = vmatmul.bf16.gmra.mxu0 %v599
  %v4104 = vpop.f32.mrf.mxu0
  %v4105 = vadd.f32 %v3936, %v4104
  %v4106 = vpop.f32.mrf.mxu0
  %v4107 = vadd.f32 %v3938, %v4106
  %4108 = vmatmul.bf16.gmra.mxu0 %v606
  %v4109 = vpop.f32.mrf.mxu0
  %v4110 = vadd.f32 %v3941, %v4109
  %v4111 = vpop.f32.mrf.mxu0
  %v4112 = vadd.f32 %v3943, %v4111
  %4113 = vmatmul.bf16.gmra.mxu0 %v613
  %v4114 = vpop.f32.mrf.mxu0
  %v4115 = vadd.f32 %v3946, %v4114
  %v4116 = vpop.f32.mrf.mxu0
  %v4117 = vadd.f32 %v3948, %v4116
  %4118 = vmatmul.bf16.gmra.mxu0 %v620
  %v4119 = vpop.f32.mrf.mxu0
  %v4120 = vadd.f32 %v3951, %v4119
  %v4121 = vpop.f32.mrf.mxu0
  %v4122 = vadd.f32 %v3953, %v4121
  %4123 = vmatmul.bf16.gmra.mxu0 %v627
  %v4124 = vpop.f32.mrf.mxu0
  %v4125 = vadd.f32 %v3956, %v4124
  %v4126 = vpop.f32.mrf.mxu0
  %v4127 = vadd.f32 %v3958, %v4126
  %4128 = vmatmul.bf16.gmra.mxu0 %v634
  %v4129 = vpop.f32.mrf.mxu0
  %v4130 = vadd.f32 %v3961, %v4129
  %v4131 = vpop.f32.mrf.mxu0
  %v4132 = vadd.f32 %v3963, %v4131
  %4133 = vmatmul.bf16.gmra.mxu0 %v641
  %v4134 = vpop.f32.mrf.mxu0
  %v4135 = vadd.f32 %v3966, %v4134
  %v4136 = vpop.f32.mrf.mxu0
  %v4137 = vadd.f32 %v3968, %v4136
  %4138 = vmatmul.bf16.gmra.mxu0 %v648
  %v4139 = vpop.f32.mrf.mxu0
  %v4140 = vadd.f32 %v3971, %v4139
  %v4141 = vpop.f32.mrf.mxu0
  %v4142 = vadd.f32 %v3973, %v4141
  %4143 = vmatmul.bf16.gmra.mxu0 %v655
  %v4144 = vpop.f32.mrf.mxu0
  %v4145 = vadd.f32 %v3976, %v4144
  %v4146 = vpop.f32.mrf.mxu0
  %v4147 = vadd.f32 %v3978, %v4146
  %4148 = vmatmul.bf16.gmra.mxu0 %v662
  %v4149 = vpop.f32.mrf.mxu0
  %v4150 = vadd.f32 %v3981, %v4149
  %v4151 = vpop.f32.mrf.mxu0
  %v4152 = vadd.f32 %v3983, %v4151
  %4153 = vmatmul.bf16.gmra.mxu0 %v669
  %v4154 = vpop.f32.mrf.mxu0
  %v4155 = vadd.f32 %v3986, %v4154
  %v4156 = vpop.f32.mrf.mxu0
  %v4157 = vadd.f32 %v3988, %v4156
  %4158 = vmatmul.bf16.gmra.mxu0 %v676
  %v4159 = vpop.f32.mrf.mxu0
  %v4160 = vadd.f32 %v3991, %v4159
  %v4161 = vpop.f32.mrf.mxu0
  %v4162 = vadd.f32 %v3993, %v4161
  %4163 = vmatmul.bf16.gmra.mxu0 %v683
  %v4164 = vpop.f32.mrf.mxu0
  %v4165 = vadd.f32 %v3996, %v4164
  %v4166 = vpop.f32.mrf.mxu0
  %v4167 = vadd.f32 %v3998, %v4166
  %4168 = vmatmul.bf16.gmra.mxu0 %v690
  %v4169 = vpop.f32.mrf.mxu0
  %v4170 = vadd.f32 %v4001, %v4169
  %v4171 = vpop.f32.mrf.mxu0
  %v4172 = vadd.f32 %v4003, %v4171
  %4173 = vmatmul.bf16.gmra.mxu0 %v697
  %v4174 = vpop.f32.mrf.mxu0
  %v4175 = vadd.f32 %v4006, %v4174
  %v4176 = vpop.f32.mrf.mxu0
  %v4177 = vadd.f32 %v4008, %v4176
  %4178 = vdwg.mxu0
  %4179 = vmatpush.bf16.msra.mxu0 0
  %4180 = vmatpush.bf16.msra.mxu0 0
  %4181 = vmatpush.bf16.msra.mxu0 0
  %4182 = vmatpush.bf16.msra.mxu0 0
  %4183 = vmatpush.bf16.msra.mxu0 0
  %4184 = vmatpush.bf16.msra.mxu0 0
  %4185 = vmatpush.bf16.msra.mxu0 0
  %4186 = vmatpush.bf16.msra.mxu0 %v1686
  %4187 = vmatmul.bf16.gmra.mxu0 %v1887
  %v4188 = vpop.f32.mrf.mxu0
  %v4189 = vadd.f32 %v4020, %v4188
  %v4190 = vpop.f32.mrf.mxu0
  %v4191 = vadd.f32 %v4022, %v4190
  %4192 = vmatmul.bf16.gmra.mxu0 %v1890
  %v4193 = vpop.f32.mrf.mxu0
  %v4194 = vadd.f32 %v4025, %v4193
  %v4195 = vpop.f32.mrf.mxu0
  %v4196 = vadd.f32 %v4027, %v4195
  %4197 = vmatmul.bf16.gmra.mxu0 %v1893
  %v4198 = vpop.f32.mrf.mxu0
  %v4199 = vadd.f32 %v4030, %v4198
  %v4200 = vpop.f32.mrf.mxu0
  %v4201 = vadd.f32 %v4032, %v4200
  %4202 = vmatmul.bf16.gmra.mxu0 %v1896
  %v4203 = vpop.f32.mrf.mxu0
  %v4204 = vadd.f32 %v4035, %v4203
  %v4205 = vpop.f32.mrf.mxu0
  %v4206 = vadd.f32 %v4037, %v4205
  %4207 = vmatmul.bf16.gmra.mxu0 %v1899
  %v4208 = vpop.f32.mrf.mxu0
  %v4209 = vadd.f32 %v4040, %v4208
  %v4210 = vpop.f32.mrf.mxu0
  %v4211 = vadd.f32 %v4042, %v4210
  %4212 = vmatmul.bf16.gmra.mxu0 %v1902
  %v4213 = vpop.f32.mrf.mxu0
  %v4214 = vadd.f32 %v4045, %v4213
  %v4215 = vpop.f32.mrf.mxu0
  %v4216 = vadd.f32 %v4047, %v4215
  %4217 = vmatmul.bf16.gmra.mxu0 %v1905
  %v4218 = vpop.f32.mrf.mxu0
  %v4219 = vadd.f32 %v4050, %v4218
  %v4220 = vpop.f32.mrf.mxu0
  %v4221 = vadd.f32 %v4052, %v4220
  %4222 = vmatmul.bf16.gmra.mxu0 %v1908
  %v4223 = vpop.f32.mrf.mxu0
  %v4224 = vadd.f32 %v4055, %v4223
  %v4225 = vpop.f32.mrf.mxu0
  %v4226 = vadd.f32 %v4057, %v4225
  %4227 = vmatmul.bf16.gmra.mxu0 %v1911
  %v4228 = vpop.f32.mrf.mxu0
  %v4229 = vadd.f32 %v4060, %v4228
  %v4230 = vpop.f32.mrf.mxu0
  %v4231 = vadd.f32 %v4062, %v4230
  %4232 = vmatmul.bf16.gmra.mxu0 %v1914
  %v4233 = vpop.f32.mrf.mxu0
  %v4234 = vadd.f32 %v4065, %v4233
  %v4235 = vpop.f32.mrf.mxu0
  %v4236 = vadd.f32 %v4067, %v4235
  %4237 = vmatmul.bf16.gmra.mxu0 %v1917
  %v4238 = vpop.f32.mrf.mxu0
  %v4239 = vadd.f32 %v4070, %v4238
  %v4240 = vpop.f32.mrf.mxu0
  %v4241 = vadd.f32 %v4072, %v4240
  %4242 = vmatmul.bf16.gmra.mxu0 %v1920
  %v4243 = vpop.f32.mrf.mxu0
  %v4244 = vadd.f32 %v4075, %v4243
  %v4245 = vpop.f32.mrf.mxu0
  %v4246 = vadd.f32 %v4077, %v4245
  %4247 = vmatmul.bf16.gmra.mxu0 %v1923
  %v4248 = vpop.f32.mrf.mxu0
  %v4249 = vadd.f32 %v4080, %v4248
  %v4250 = vpop.f32.mrf.mxu0
  %v4251 = vadd.f32 %v4082, %v4250
  %4252 = vmatmul.bf16.gmra.mxu0 %v1926
  %v4253 = vpop.f32.mrf.mxu0
  %v4254 = vadd.f32 %v4085, %v4253
  %v4255 = vpop.f32.mrf.mxu0
  %v4256 = vadd.f32 %v4087, %v4255
  %4257 = vmatmul.bf16.gmra.mxu0 %v1929
  %v4258 = vpop.f32.mrf.mxu0
  %v4259 = vadd.f32 %v4090, %v4258
  %v4260 = vpop.f32.mrf.mxu0
  %v4261 = vadd.f32 %v4092, %v4260
  %4262 = vmatmul.bf16.gmra.mxu0 %v1932
  %v4263 = vpop.f32.mrf.mxu0
  %v4264 = vadd.f32 %v4095, %v4263
  %v4265 = vpop.f32.mrf.mxu0
  %v4266 = vadd.f32 %v4097, %v4265
  %4267 = vmatmul.bf16.gmra.mxu0 %v1935
  %v4268 = vpop.f32.mrf.mxu0
  %v4269 = vadd.f32 %v4100, %v4268
  %v4270 = vpop.f32.mrf.mxu0
  %v4271 = vadd.f32 %v4102, %v4270
  %4272 = vmatmul.bf16.gmra.mxu0 %v1938
  %v4273 = vpop.f32.mrf.mxu0
  %v4274 = vadd.f32 %v4105, %v4273
  %v4275 = vpop.f32.mrf.mxu0
  %v4276 = vadd.f32 %v4107, %v4275
  %4277 = vmatmul.bf16.gmra.mxu0 %v1941
  %v4278 = vpop.f32.mrf.mxu0
  %v4279 = vadd.f32 %v4110, %v4278
  %v4280 = vpop.f32.mrf.mxu0
  %v4281 = vadd.f32 %v4112, %v4280
  %4282 = vmatmul.bf16.gmra.mxu0 %v1944
  %v4283 = vpop.f32.mrf.mxu0
  %v4284 = vadd.f32 %v4115, %v4283
  %v4285 = vpop.f32.mrf.mxu0
  %v4286 = vadd.f32 %v4117, %v4285
  %4287 = vmatmul.bf16.gmra.mxu0 %v1947
  %v4288 = vpop.f32.mrf.mxu0
  %v4289 = vadd.f32 %v4120, %v4288
  %v4290 = vpop.f32.mrf.mxu0
  %v4291 = vadd.f32 %v4122, %v4290
  %4292 = vmatmul.bf16.gmra.mxu0 %v1950
  %v4293 = vpop.f32.mrf.mxu0
  %v4294 = vadd.f32 %v4125, %v4293
  %v4295 = vpop.f32.mrf.mxu0
  %v4296 = vadd.f32 %v4127, %v4295
  %4297 = vmatmul.bf16.gmra.mxu0 %v1953
  %v4298 = vpop.f32.mrf.mxu0
  %v4299 = vadd.f32 %v4130, %v4298
  %v4300 = vpop.f32.mrf.mxu0
  %v4301 = vadd.f32 %v4132, %v4300
  %4302 = vmatmul.bf16.gmra.mxu0 %v1956
  %v4303 = vpop.f32.mrf.mxu0
  %v4304 = vadd.f32 %v4135, %v4303
  %v4305 = vpop.f32.mrf.mxu0
  %v4306 = vadd.f32 %v4137, %v4305
  %4307 = vmatmul.bf16.gmra.mxu0 %v1959
  %v4308 = vpop.f32.mrf.mxu0
  %v4309 = vadd.f32 %v4140, %v4308
  %v4310 = vpop.f32.mrf.mxu0
  %v4311 = vadd.f32 %v4142, %v4310
  %4312 = vmatmul.bf16.gmra.mxu0 %v1962
  %v4313 = vpop.f32.mrf.mxu0
  %v4314 = vadd.f32 %v4145, %v4313
  %v4315 = vpop.f32.mrf.mxu0
  %v4316 = vadd.f32 %v4147, %v4315
  %4317 = vmatmul.bf16.gmra.mxu0 %v1965
  %v4318 = vpop.f32.mrf.mxu0
  %v4319 = vadd.f32 %v4150, %v4318
  %v4320 = vpop.f32.mrf.mxu0
  %v4321 = vadd.f32 %v4152, %v4320
  %4322 = vmatmul.bf16.gmra.mxu0 %v1968
  %v4323 = vpop.f32.mrf.mxu0
  %v4324 = vadd.f32 %v4155, %v4323
  %v4325 = vpop.f32.mrf.mxu0
  %v4326 = vadd.f32 %v4157, %v4325
  %4327 = vmatmul.bf16.gmra.mxu0 %v1971
  %v4328 = vpop.f32.mrf.mxu0
  %v4329 = vadd.f32 %v4160, %v4328
  %v4330 = vpop.f32.mrf.mxu0
  %v4331 = vadd.f32 %v4162, %v4330
  %4332 = vmatmul.bf16.gmra.mxu0 %v1974
  %v4333 = vpop.f32.mrf.mxu0
  %v4334 = vadd.f32 %v4165, %v4333
  %v4335 = vpop.f32.mrf.mxu0
  %v4336 = vadd.f32 %v4167, %v4335
  %4337 = vmatmul.bf16.gmra.mxu0 %v1977
  %v4338 = vpop.f32.mrf.mxu0
  %v4339 = vadd.f32 %v4170, %v4338
  %v4340 = vpop.f32.mrf.mxu0
  %v4341 = vadd.f32 %v4172, %v4340
  %4342 = vmatmul.bf16.gmra.mxu0 %v1980
  %v4343 = vpop.f32.mrf.mxu0
  %v4344 = vadd.f32 %v4175, %v4343
  %v4345 = vpop.f32.mrf.mxu0
  %v4346 = vadd.f32 %v4177, %v4345
  %4347 = vdwg.mxu0
  %4348 = vmatpush.bf16.msra.mxu0 %v1523
  %4349 = vmatpush.bf16.msra.mxu0 %v1519
  %4350 = vmatpush.bf16.msra.mxu0 %v1515
  %4351 = vmatpush.bf16.msra.mxu0 %v1511
  %4352 = vmatpush.bf16.msra.mxu0 %v1507
  %4353 = vmatpush.bf16.msra.mxu0 %v1503
  %4354 = vmatpush.bf16.msra.mxu0 %v1499
  %4355 = vmatpush.bf16.msra.mxu0 %v1495
  %4356 = vmatmul.bf16.gmra.mxu0 %v475
  %v4357 = vpop.f32.mrf.mxu0
  %v4358 = vadd.f32 %v899, %v4357
  %v4359 = vpop.f32.mrf.mxu0
  %v4360 = vadd.f32 %v899, %v4359
  %4361 = vmatmul.bf16.gmra.mxu0 %v482
  %v4362 = vpop.f32.mrf.mxu0
  %v4363 = vadd.f32 %v899, %v4362
  %v4364 = vpop.f32.mrf.mxu0
  %v4365 = vadd.f32 %v899, %v4364
  %4366 = vmatmul.bf16.gmra.mxu0 %v489
  %v4367 = vpop.f32.mrf.mxu0
  %v4368 = vadd.f32 %v899, %v4367
  %v4369 = vpop.f32.mrf.mxu0
  %v4370 = vadd.f32 %v899, %v4369
  %4371 = vmatmul.bf16.gmra.mxu0 %v496
  %v4372 = vpop.f32.mrf.mxu0
  %v4373 = vadd.f32 %v899, %v4372
  %v4374 = vpop.f32.mrf.mxu0
  %v4375 = vadd.f32 %v899, %v4374
  %4376 = vmatmul.bf16.gmra.mxu0 %v503
  %v4377 = vpop.f32.mrf.mxu0
  %v4378 = vadd.f32 %v899, %v4377
  %v4379 = vpop.f32.mrf.mxu0
  %v4380 = vadd.f32 %v899, %v4379
  %4381 = vmatmul.bf16.gmra.mxu0 %v510
  %v4382 = vpop.f32.mrf.mxu0
  %v4383 = vadd.f32 %v899, %v4382
  %v4384 = vpop.f32.mrf.mxu0
  %v4385 = vadd.f32 %v899, %v4384
  %4386 = vmatmul.bf16.gmra.mxu0 %v517
  %v4387 = vpop.f32.mrf.mxu0
  %v4388 = vadd.f32 %v899, %v4387
  %v4389 = vpop.f32.mrf.mxu0
  %v4390 = vadd.f32 %v899, %v4389
  %4391 = vmatmul.bf16.gmra.mxu0 %v524
  %v4392 = vpop.f32.mrf.mxu0
  %v4393 = vadd.f32 %v899, %v4392
  %v4394 = vpop.f32.mrf.mxu0
  %v4395 = vadd.f32 %v899, %v4394
  %4396 = vmatmul.bf16.gmra.mxu0 %v531
  %v4397 = vpop.f32.mrf.mxu0
  %v4398 = vadd.f32 %v899, %v4397
  %v4399 = vpop.f32.mrf.mxu0
  %v4400 = vadd.f32 %v899, %v4399
  %4401 = vmatmul.bf16.gmra.mxu0 %v538
  %v4402 = vpop.f32.mrf.mxu0
  %v4403 = vadd.f32 %v899, %v4402
  %v4404 = vpop.f32.mrf.mxu0
  %v4405 = vadd.f32 %v899, %v4404
  %4406 = vmatmul.bf16.gmra.mxu0 %v545
  %v4407 = vpop.f32.mrf.mxu0
  %v4408 = vadd.f32 %v899, %v4407
  %v4409 = vpop.f32.mrf.mxu0
  %v4410 = vadd.f32 %v899, %v4409
  %4411 = vmatmul.bf16.gmra.mxu0 %v552
  %v4412 = vpop.f32.mrf.mxu0
  %v4413 = vadd.f32 %v899, %v4412
  %v4414 = vpop.f32.mrf.mxu0
  %v4415 = vadd.f32 %v899, %v4414
  %4416 = vmatmul.bf16.gmra.mxu0 %v559
  %v4417 = vpop.f32.mrf.mxu0
  %v4418 = vadd.f32 %v899, %v4417
  %v4419 = vpop.f32.mrf.mxu0
  %v4420 = vadd.f32 %v899, %v4419
  %4421 = vmatmul.bf16.gmra.mxu0 %v566
  %v4422 = vpop.f32.mrf.mxu0
  %v4423 = vadd.f32 %v899, %v4422
  %v4424 = vpop.f32.mrf.mxu0
  %v4425 = vadd.f32 %v899, %v4424
  %4426 = vmatmul.bf16.gmra.mxu0 %v573
  %v4427 = vpop.f32.mrf.mxu0
  %v4428 = vadd.f32 %v899, %v4427
  %v4429 = vpop.f32.mrf.mxu0
  %v4430 = vadd.f32 %v899, %v4429
  %4431 = vmatmul.bf16.gmra.mxu0 %v580
  %v4432 = vpop.f32.mrf.mxu0
  %v4433 = vadd.f32 %v899, %v4432
  %v4434 = vpop.f32.mrf.mxu0
  %v4435 = vadd.f32 %v899, %v4434
  %4436 = vmatmul.bf16.gmra.mxu0 %v587
  %v4437 = vpop.f32.mrf.mxu0
  %v4438 = vadd.f32 %v899, %v4437
  %v4439 = vpop.f32.mrf.mxu0
  %v4440 = vadd.f32 %v899, %v4439
  %4441 = vmatmul.bf16.gmra.mxu0 %v594
  %v4442 = vpop.f32.mrf.mxu0
  %v4443 = vadd.f32 %v899, %v4442
  %v4444 = vpop.f32.mrf.mxu0
  %v4445 = vadd.f32 %v899, %v4444
  %4446 = vmatmul.bf16.gmra.mxu0 %v601
  %v4447 = vpop.f32.mrf.mxu0
  %v4448 = vadd.f32 %v899, %v4447
  %v4449 = vpop.f32.mrf.mxu0
  %v4450 = vadd.f32 %v899, %v4449
  %4451 = vmatmul.bf16.gmra.mxu0 %v608
  %v4452 = vpop.f32.mrf.mxu0
  %v4453 = vadd.f32 %v899, %v4452
  %v4454 = vpop.f32.mrf.mxu0
  %v4455 = vadd.f32 %v899, %v4454
  %4456 = vmatmul.bf16.gmra.mxu0 %v615
  %v4457 = vpop.f32.mrf.mxu0
  %v4458 = vadd.f32 %v899, %v4457
  %v4459 = vpop.f32.mrf.mxu0
  %v4460 = vadd.f32 %v899, %v4459
  %4461 = vmatmul.bf16.gmra.mxu0 %v622
  %v4462 = vpop.f32.mrf.mxu0
  %v4463 = vadd.f32 %v899, %v4462
  %v4464 = vpop.f32.mrf.mxu0
  %v4465 = vadd.f32 %v899, %v4464
  %4466 = vmatmul.bf16.gmra.mxu0 %v629
  %v4467 = vpop.f32.mrf.mxu0
  %v4468 = vadd.f32 %v899, %v4467
  %v4469 = vpop.f32.mrf.mxu0
  %v4470 = vadd.f32 %v899, %v4469
  %4471 = vmatmul.bf16.gmra.mxu0 %v636
  %v4472 = vpop.f32.mrf.mxu0
  %v4473 = vadd.f32 %v899, %v4472
  %v4474 = vpop.f32.mrf.mxu0
  %v4475 = vadd.f32 %v899, %v4474
  %4476 = vmatmul.bf16.gmra.mxu0 %v643
  %v4477 = vpop.f32.mrf.mxu0
  %v4478 = vadd.f32 %v899, %v4477
  %v4479 = vpop.f32.mrf.mxu0
  %v4480 = vadd.f32 %v899, %v4479
  %4481 = vmatmul.bf16.gmra.mxu0 %v650
  %v4482 = vpop.f32.mrf.mxu0
  %v4483 = vadd.f32 %v899, %v4482
  %v4484 = vpop.f32.mrf.mxu0
  %v4485 = vadd.f32 %v899, %v4484
  %4486 = vmatmul.bf16.gmra.mxu0 %v657
  %v4487 = vpop.f32.mrf.mxu0
  %v4488 = vadd.f32 %v899, %v4487
  %v4489 = vpop.f32.mrf.mxu0
  %v4490 = vadd.f32 %v899, %v4489
  %4491 = vmatmul.bf16.gmra.mxu0 %v664
  %v4492 = vpop.f32.mrf.mxu0
  %v4493 = vadd.f32 %v899, %v4492
  %v4494 = vpop.f32.mrf.mxu0
  %v4495 = vadd.f32 %v899, %v4494
  %4496 = vmatmul.bf16.gmra.mxu0 %v671
  %v4497 = vpop.f32.mrf.mxu0
  %v4498 = vadd.f32 %v899, %v4497
  %v4499 = vpop.f32.mrf.mxu0
  %v4500 = vadd.f32 %v899, %v4499
  %4501 = vmatmul.bf16.gmra.mxu0 %v678
  %v4502 = vpop.f32.mrf.mxu0
  %v4503 = vadd.f32 %v899, %v4502
  %v4504 = vpop.f32.mrf.mxu0
  %v4505 = vadd.f32 %v899, %v4504
  %4506 = vmatmul.bf16.gmra.mxu0 %v685
  %v4507 = vpop.f32.mrf.mxu0
  %v4508 = vadd.f32 %v899, %v4507
  %v4509 = vpop.f32.mrf.mxu0
  %v4510 = vadd.f32 %v899, %v4509
  %4511 = vmatmul.bf16.gmra.mxu0 %v692
  %v4512 = vpop.f32.mrf.mxu0
  %v4513 = vadd.f32 %v899, %v4512
  %v4514 = vpop.f32.mrf.mxu0
  %v4515 = vadd.f32 %v899, %v4514
  %4516 = vdwg.mxu0
  %4517 = vmatpush.bf16.msra.mxu0 %v1555
  %4518 = vmatpush.bf16.msra.mxu0 %v1551
  %4519 = vmatpush.bf16.msra.mxu0 %v1547
  %4520 = vmatpush.bf16.msra.mxu0 %v1543
  %4521 = vmatpush.bf16.msra.mxu0 %v1539
  %4522 = vmatpush.bf16.msra.mxu0 %v1535
  %4523 = vmatpush.bf16.msra.mxu0 %v1531
  %4524 = vmatpush.bf16.msra.mxu0 %v1527
  %4525 = vmatmul.bf16.gmra.mxu0 %v476
  %v4526 = vpop.f32.mrf.mxu0
  %v4527 = vadd.f32 %v4358, %v4526
  %v4528 = vpop.f32.mrf.mxu0
  %v4529 = vadd.f32 %v4360, %v4528
  %4530 = vmatmul.bf16.gmra.mxu0 %v483
  %v4531 = vpop.f32.mrf.mxu0
  %v4532 = vadd.f32 %v4363, %v4531
  %v4533 = vpop.f32.mrf.mxu0
  %v4534 = vadd.f32 %v4365, %v4533
  %4535 = vmatmul.bf16.gmra.mxu0 %v490
  %v4536 = vpop.f32.mrf.mxu0
  %v4537 = vadd.f32 %v4368, %v4536
  %v4538 = vpop.f32.mrf.mxu0
  %v4539 = vadd.f32 %v4370, %v4538
  %4540 = vmatmul.bf16.gmra.mxu0 %v497
  %v4541 = vpop.f32.mrf.mxu0
  %v4542 = vadd.f32 %v4373, %v4541
  %v4543 = vpop.f32.mrf.mxu0
  %v4544 = vadd.f32 %v4375, %v4543
  %4545 = vmatmul.bf16.gmra.mxu0 %v504
  %v4546 = vpop.f32.mrf.mxu0
  %v4547 = vadd.f32 %v4378, %v4546
  %v4548 = vpop.f32.mrf.mxu0
  %v4549 = vadd.f32 %v4380, %v4548
  %4550 = vmatmul.bf16.gmra.mxu0 %v511
  %v4551 = vpop.f32.mrf.mxu0
  %v4552 = vadd.f32 %v4383, %v4551
  %v4553 = vpop.f32.mrf.mxu0
  %v4554 = vadd.f32 %v4385, %v4553
  %4555 = vmatmul.bf16.gmra.mxu0 %v518
  %v4556 = vpop.f32.mrf.mxu0
  %v4557 = vadd.f32 %v4388, %v4556
  %v4558 = vpop.f32.mrf.mxu0
  %v4559 = vadd.f32 %v4390, %v4558
  %4560 = vmatmul.bf16.gmra.mxu0 %v525
  %v4561 = vpop.f32.mrf.mxu0
  %v4562 = vadd.f32 %v4393, %v4561
  %v4563 = vpop.f32.mrf.mxu0
  %v4564 = vadd.f32 %v4395, %v4563
  %4565 = vmatmul.bf16.gmra.mxu0 %v532
  %v4566 = vpop.f32.mrf.mxu0
  %v4567 = vadd.f32 %v4398, %v4566
  %v4568 = vpop.f32.mrf.mxu0
  %v4569 = vadd.f32 %v4400, %v4568
  %4570 = vmatmul.bf16.gmra.mxu0 %v539
  %v4571 = vpop.f32.mrf.mxu0
  %v4572 = vadd.f32 %v4403, %v4571
  %v4573 = vpop.f32.mrf.mxu0
  %v4574 = vadd.f32 %v4405, %v4573
  %4575 = vmatmul.bf16.gmra.mxu0 %v546
  %v4576 = vpop.f32.mrf.mxu0
  %v4577 = vadd.f32 %v4408, %v4576
  %v4578 = vpop.f32.mrf.mxu0
  %v4579 = vadd.f32 %v4410, %v4578
  %4580 = vmatmul.bf16.gmra.mxu0 %v553
  %v4581 = vpop.f32.mrf.mxu0
  %v4582 = vadd.f32 %v4413, %v4581
  %v4583 = vpop.f32.mrf.mxu0
  %v4584 = vadd.f32 %v4415, %v4583
  %4585 = vmatmul.bf16.gmra.mxu0 %v560
  %v4586 = vpop.f32.mrf.mxu0
  %v4587 = vadd.f32 %v4418, %v4586
  %v4588 = vpop.f32.mrf.mxu0
  %v4589 = vadd.f32 %v4420, %v4588
  %4590 = vmatmul.bf16.gmra.mxu0 %v567
  %v4591 = vpop.f32.mrf.mxu0
  %v4592 = vadd.f32 %v4423, %v4591
  %v4593 = vpop.f32.mrf.mxu0
  %v4594 = vadd.f32 %v4425, %v4593
  %4595 = vmatmul.bf16.gmra.mxu0 %v574
  %v4596 = vpop.f32.mrf.mxu0
  %v4597 = vadd.f32 %v4428, %v4596
  %v4598 = vpop.f32.mrf.mxu0
  %v4599 = vadd.f32 %v4430, %v4598
  %4600 = vmatmul.bf16.gmra.mxu0 %v581
  %v4601 = vpop.f32.mrf.mxu0
  %v4602 = vadd.f32 %v4433, %v4601
  %v4603 = vpop.f32.mrf.mxu0
  %v4604 = vadd.f32 %v4435, %v4603
  %4605 = vmatmul.bf16.gmra.mxu0 %v588
  %v4606 = vpop.f32.mrf.mxu0
  %v4607 = vadd.f32 %v4438, %v4606
  %v4608 = vpop.f32.mrf.mxu0
  %v4609 = vadd.f32 %v4440, %v4608
  %4610 = vmatmul.bf16.gmra.mxu0 %v595
  %v4611 = vpop.f32.mrf.mxu0
  %v4612 = vadd.f32 %v4443, %v4611
  %v4613 = vpop.f32.mrf.mxu0
  %v4614 = vadd.f32 %v4445, %v4613
  %4615 = vmatmul.bf16.gmra.mxu0 %v602
  %v4616 = vpop.f32.mrf.mxu0
  %v4617 = vadd.f32 %v4448, %v4616
  %v4618 = vpop.f32.mrf.mxu0
  %v4619 = vadd.f32 %v4450, %v4618
  %4620 = vmatmul.bf16.gmra.mxu0 %v609
  %v4621 = vpop.f32.mrf.mxu0
  %v4622 = vadd.f32 %v4453, %v4621
  %v4623 = vpop.f32.mrf.mxu0
  %v4624 = vadd.f32 %v4455, %v4623
  %4625 = vmatmul.bf16.gmra.mxu0 %v616
  %v4626 = vpop.f32.mrf.mxu0
  %v4627 = vadd.f32 %v4458, %v4626
  %v4628 = vpop.f32.mrf.mxu0
  %v4629 = vadd.f32 %v4460, %v4628
  %4630 = vmatmul.bf16.gmra.mxu0 %v623
  %v4631 = vpop.f32.mrf.mxu0
  %v4632 = vadd.f32 %v4463, %v4631
  %v4633 = vpop.f32.mrf.mxu0
  %v4634 = vadd.f32 %v4465, %v4633
  %4635 = vmatmul.bf16.gmra.mxu0 %v630
  %v4636 = vpop.f32.mrf.mxu0
  %v4637 = vadd.f32 %v4468, %v4636
  %v4638 = vpop.f32.mrf.mxu0
  %v4639 = vadd.f32 %v4470, %v4638
  %4640 = vmatmul.bf16.gmra.mxu0 %v637
  %v4641 = vpop.f32.mrf.mxu0
  %v4642 = vadd.f32 %v4473, %v4641
  %v4643 = vpop.f32.mrf.mxu0
  %v4644 = vadd.f32 %v4475, %v4643
  %4645 = vmatmul.bf16.gmra.mxu0 %v644
  %v4646 = vpop.f32.mrf.mxu0
  %v4647 = vadd.f32 %v4478, %v4646
  %v4648 = vpop.f32.mrf.mxu0
  %v4649 = vadd.f32 %v4480, %v4648
  %4650 = vmatmul.bf16.gmra.mxu0 %v651
  %v4651 = vpop.f32.mrf.mxu0
  %v4652 = vadd.f32 %v4483, %v4651
  %v4653 = vpop.f32.mrf.mxu0
  %v4654 = vadd.f32 %v4485, %v4653
  %4655 = vmatmul.bf16.gmra.mxu0 %v658
  %v4656 = vpop.f32.mrf.mxu0
  %v4657 = vadd.f32 %v4488, %v4656
  %v4658 = vpop.f32.mrf.mxu0
  %v4659 = vadd.f32 %v4490, %v4658
  %4660 = vmatmul.bf16.gmra.mxu0 %v665
  %v4661 = vpop.f32.mrf.mxu0
  %v4662 = vadd.f32 %v4493, %v4661
  %v4663 = vpop.f32.mrf.mxu0
  %v4664 = vadd.f32 %v4495, %v4663
  %4665 = vmatmul.bf16.gmra.mxu0 %v672
  %v4666 = vpop.f32.mrf.mxu0
  %v4667 = vadd.f32 %v4498, %v4666
  %v4668 = vpop.f32.mrf.mxu0
  %v4669 = vadd.f32 %v4500, %v4668
  %4670 = vmatmul.bf16.gmra.mxu0 %v679
  %v4671 = vpop.f32.mrf.mxu0
  %v4672 = vadd.f32 %v4503, %v4671
  %v4673 = vpop.f32.mrf.mxu0
  %v4674 = vadd.f32 %v4505, %v4673
  %4675 = vmatmul.bf16.gmra.mxu0 %v686
  %v4676 = vpop.f32.mrf.mxu0
  %v4677 = vadd.f32 %v4508, %v4676
  %v4678 = vpop.f32.mrf.mxu0
  %v4679 = vadd.f32 %v4510, %v4678
  %4680 = vmatmul.bf16.gmra.mxu0 %v693
  %v4681 = vpop.f32.mrf.mxu0
  %v4682 = vadd.f32 %v4513, %v4681
  %v4683 = vpop.f32.mrf.mxu0
  %v4684 = vadd.f32 %v4515, %v4683
  %4685 = vdwg.mxu0
  %4686 = vmatpush.bf16.msra.mxu0 %v1587
  %4687 = vmatpush.bf16.msra.mxu0 %v1583
  %4688 = vmatpush.bf16.msra.mxu0 %v1579
  %4689 = vmatpush.bf16.msra.mxu0 %v1575
  %4690 = vmatpush.bf16.msra.mxu0 %v1571
  %4691 = vmatpush.bf16.msra.mxu0 %v1567
  %4692 = vmatpush.bf16.msra.mxu0 %v1563
  %4693 = vmatpush.bf16.msra.mxu0 %v1559
  %4694 = vmatmul.bf16.gmra.mxu0 %v477
  %v4695 = vpop.f32.mrf.mxu0
  %v4696 = vadd.f32 %v4527, %v4695
  %v4697 = vpop.f32.mrf.mxu0
  %v4698 = vadd.f32 %v4529, %v4697
  %4699 = vmatmul.bf16.gmra.mxu0 %v484
  %v4700 = vpop.f32.mrf.mxu0
  %v4701 = vadd.f32 %v4532, %v4700
  %v4702 = vpop.f32.mrf.mxu0
  %v4703 = vadd.f32 %v4534, %v4702
  %4704 = vmatmul.bf16.gmra.mxu0 %v491
  %v4705 = vpop.f32.mrf.mxu0
  %v4706 = vadd.f32 %v4537, %v4705
  %v4707 = vpop.f32.mrf.mxu0
  %v4708 = vadd.f32 %v4539, %v4707
  %4709 = vmatmul.bf16.gmra.mxu0 %v498
  %v4710 = vpop.f32.mrf.mxu0
  %v4711 = vadd.f32 %v4542, %v4710
  %v4712 = vpop.f32.mrf.mxu0
  %v4713 = vadd.f32 %v4544, %v4712
  %4714 = vmatmul.bf16.gmra.mxu0 %v505
  %v4715 = vpop.f32.mrf.mxu0
  %v4716 = vadd.f32 %v4547, %v4715
  %v4717 = vpop.f32.mrf.mxu0
  %v4718 = vadd.f32 %v4549, %v4717
  %4719 = vmatmul.bf16.gmra.mxu0 %v512
  %v4720 = vpop.f32.mrf.mxu0
  %v4721 = vadd.f32 %v4552, %v4720
  %v4722 = vpop.f32.mrf.mxu0
  %v4723 = vadd.f32 %v4554, %v4722
  %4724 = vmatmul.bf16.gmra.mxu0 %v519
  %v4725 = vpop.f32.mrf.mxu0
  %v4726 = vadd.f32 %v4557, %v4725
  %v4727 = vpop.f32.mrf.mxu0
  %v4728 = vadd.f32 %v4559, %v4727
  %4729 = vmatmul.bf16.gmra.mxu0 %v526
  %v4730 = vpop.f32.mrf.mxu0
  %v4731 = vadd.f32 %v4562, %v4730
  %v4732 = vpop.f32.mrf.mxu0
  %v4733 = vadd.f32 %v4564, %v4732
  %4734 = vmatmul.bf16.gmra.mxu0 %v533
  %v4735 = vpop.f32.mrf.mxu0
  %v4736 = vadd.f32 %v4567, %v4735
  %v4737 = vpop.f32.mrf.mxu0
  %v4738 = vadd.f32 %v4569, %v4737
  %4739 = vmatmul.bf16.gmra.mxu0 %v540
  %v4740 = vpop.f32.mrf.mxu0
  %v4741 = vadd.f32 %v4572, %v4740
  %v4742 = vpop.f32.mrf.mxu0
  %v4743 = vadd.f32 %v4574, %v4742
  %4744 = vmatmul.bf16.gmra.mxu0 %v547
  %v4745 = vpop.f32.mrf.mxu0
  %v4746 = vadd.f32 %v4577, %v4745
  %v4747 = vpop.f32.mrf.mxu0
  %v4748 = vadd.f32 %v4579, %v4747
  %4749 = vmatmul.bf16.gmra.mxu0 %v554
  %v4750 = vpop.f32.mrf.mxu0
  %v4751 = vadd.f32 %v4582, %v4750
  %v4752 = vpop.f32.mrf.mxu0
  %v4753 = vadd.f32 %v4584, %v4752
  %4754 = vmatmul.bf16.gmra.mxu0 %v561
  %v4755 = vpop.f32.mrf.mxu0
  %v4756 = vadd.f32 %v4587, %v4755
  %v4757 = vpop.f32.mrf.mxu0
  %v4758 = vadd.f32 %v4589, %v4757
  %4759 = vmatmul.bf16.gmra.mxu0 %v568
  %v4760 = vpop.f32.mrf.mxu0
  %v4761 = vadd.f32 %v4592, %v4760
  %v4762 = vpop.f32.mrf.mxu0
  %v4763 = vadd.f32 %v4594, %v4762
  %4764 = vmatmul.bf16.gmra.mxu0 %v575
  %v4765 = vpop.f32.mrf.mxu0
  %v4766 = vadd.f32 %v4597, %v4765
  %v4767 = vpop.f32.mrf.mxu0
  %v4768 = vadd.f32 %v4599, %v4767
  %4769 = vmatmul.bf16.gmra.mxu0 %v582
  %v4770 = vpop.f32.mrf.mxu0
  %v4771 = vadd.f32 %v4602, %v4770
  %v4772 = vpop.f32.mrf.mxu0
  %v4773 = vadd.f32 %v4604, %v4772
  %4774 = vmatmul.bf16.gmra.mxu0 %v589
  %v4775 = vpop.f32.mrf.mxu0
  %v4776 = vadd.f32 %v4607, %v4775
  %v4777 = vpop.f32.mrf.mxu0
  %v4778 = vadd.f32 %v4609, %v4777
  %4779 = vmatmul.bf16.gmra.mxu0 %v596
  %v4780 = vpop.f32.mrf.mxu0
  %v4781 = vadd.f32 %v4612, %v4780
  %v4782 = vpop.f32.mrf.mxu0
  %v4783 = vadd.f32 %v4614, %v4782
  %4784 = vmatmul.bf16.gmra.mxu0 %v603
  %v4785 = vpop.f32.mrf.mxu0
  %v4786 = vadd.f32 %v4617, %v4785
  %v4787 = vpop.f32.mrf.mxu0
  %v4788 = vadd.f32 %v4619, %v4787
  %4789 = vmatmul.bf16.gmra.mxu0 %v610
  %v4790 = vpop.f32.mrf.mxu0
  %v4791 = vadd.f32 %v4622, %v4790
  %v4792 = vpop.f32.mrf.mxu0
  %v4793 = vadd.f32 %v4624, %v4792
  %4794 = vmatmul.bf16.gmra.mxu0 %v617
  %v4795 = vpop.f32.mrf.mxu0
  %v4796 = vadd.f32 %v4627, %v4795
  %v4797 = vpop.f32.mrf.mxu0
  %v4798 = vadd.f32 %v4629, %v4797
  %4799 = vmatmul.bf16.gmra.mxu0 %v624
  %v4800 = vpop.f32.mrf.mxu0
  %v4801 = vadd.f32 %v4632, %v4800
  %v4802 = vpop.f32.mrf.mxu0
  %v4803 = vadd.f32 %v4634, %v4802
  %4804 = vmatmul.bf16.gmra.mxu0 %v631
  %v4805 = vpop.f32.mrf.mxu0
  %v4806 = vadd.f32 %v4637, %v4805
  %v4807 = vpop.f32.mrf.mxu0
  %v4808 = vadd.f32 %v4639, %v4807
  %4809 = vmatmul.bf16.gmra.mxu0 %v638
  %v4810 = vpop.f32.mrf.mxu0
  %v4811 = vadd.f32 %v4642, %v4810
  %v4812 = vpop.f32.mrf.mxu0
  %v4813 = vadd.f32 %v4644, %v4812
  %4814 = vmatmul.bf16.gmra.mxu0 %v645
  %v4815 = vpop.f32.mrf.mxu0
  %v4816 = vadd.f32 %v4647, %v4815
  %v4817 = vpop.f32.mrf.mxu0
  %v4818 = vadd.f32 %v4649, %v4817
  %4819 = vmatmul.bf16.gmra.mxu0 %v652
  %v4820 = vpop.f32.mrf.mxu0
  %v4821 = vadd.f32 %v4652, %v4820
  %v4822 = vpop.f32.mrf.mxu0
  %v4823 = vadd.f32 %v4654, %v4822
  %4824 = vmatmul.bf16.gmra.mxu0 %v659
  %v4825 = vpop.f32.mrf.mxu0
  %v4826 = vadd.f32 %v4657, %v4825
  %v4827 = vpop.f32.mrf.mxu0
  %v4828 = vadd.f32 %v4659, %v4827
  %4829 = vmatmul.bf16.gmra.mxu0 %v666
  %v4830 = vpop.f32.mrf.mxu0
  %v4831 = vadd.f32 %v4662, %v4830
  %v4832 = vpop.f32.mrf.mxu0
  %v4833 = vadd.f32 %v4664, %v4832
  %4834 = vmatmul.bf16.gmra.mxu0 %v673
  %v4835 = vpop.f32.mrf.mxu0
  %v4836 = vadd.f32 %v4667, %v4835
  %v4837 = vpop.f32.mrf.mxu0
  %v4838 = vadd.f32 %v4669, %v4837
  %4839 = vmatmul.bf16.gmra.mxu0 %v680
  %v4840 = vpop.f32.mrf.mxu0
  %v4841 = vadd.f32 %v4672, %v4840
  %v4842 = vpop.f32.mrf.mxu0
  %v4843 = vadd.f32 %v4674, %v4842
  %4844 = vmatmul.bf16.gmra.mxu0 %v687
  %v4845 = vpop.f32.mrf.mxu0
  %v4846 = vadd.f32 %v4677, %v4845
  %v4847 = vpop.f32.mrf.mxu0
  %v4848 = vadd.f32 %v4679, %v4847
  %4849 = vmatmul.bf16.gmra.mxu0 %v694
  %v4850 = vpop.f32.mrf.mxu0
  %v4851 = vadd.f32 %v4682, %v4850
  %v4852 = vpop.f32.mrf.mxu0
  %v4853 = vadd.f32 %v4684, %v4852
  %4854 = vdwg.mxu0
  %4855 = vmatpush.bf16.msra.mxu0 %v1619
  %4856 = vmatpush.bf16.msra.mxu0 %v1615
  %4857 = vmatpush.bf16.msra.mxu0 %v1611
  %4858 = vmatpush.bf16.msra.mxu0 %v1607
  %4859 = vmatpush.bf16.msra.mxu0 %v1603
  %4860 = vmatpush.bf16.msra.mxu0 %v1599
  %4861 = vmatpush.bf16.msra.mxu0 %v1595
  %4862 = vmatpush.bf16.msra.mxu0 %v1591
  %4863 = vmatmul.bf16.gmra.mxu0 %v478
  %v4864 = vpop.f32.mrf.mxu0
  %v4865 = vadd.f32 %v4696, %v4864
  %v4866 = vpop.f32.mrf.mxu0
  %v4867 = vadd.f32 %v4698, %v4866
  %4868 = vmatmul.bf16.gmra.mxu0 %v485
  %v4869 = vpop.f32.mrf.mxu0
  %v4870 = vadd.f32 %v4701, %v4869
  %v4871 = vpop.f32.mrf.mxu0
  %v4872 = vadd.f32 %v4703, %v4871
  %4873 = vmatmul.bf16.gmra.mxu0 %v492
  %v4874 = vpop.f32.mrf.mxu0
  %v4875 = vadd.f32 %v4706, %v4874
  %v4876 = vpop.f32.mrf.mxu0
  %v4877 = vadd.f32 %v4708, %v4876
  %4878 = vmatmul.bf16.gmra.mxu0 %v499
  %v4879 = vpop.f32.mrf.mxu0
  %v4880 = vadd.f32 %v4711, %v4879
  %v4881 = vpop.f32.mrf.mxu0
  %v4882 = vadd.f32 %v4713, %v4881
  %4883 = vmatmul.bf16.gmra.mxu0 %v506
  %v4884 = vpop.f32.mrf.mxu0
  %v4885 = vadd.f32 %v4716, %v4884
  %v4886 = vpop.f32.mrf.mxu0
  %v4887 = vadd.f32 %v4718, %v4886
  %4888 = vmatmul.bf16.gmra.mxu0 %v513
  %v4889 = vpop.f32.mrf.mxu0
  %v4890 = vadd.f32 %v4721, %v4889
  %v4891 = vpop.f32.mrf.mxu0
  %v4892 = vadd.f32 %v4723, %v4891
  %4893 = vmatmul.bf16.gmra.mxu0 %v520
  %v4894 = vpop.f32.mrf.mxu0
  %v4895 = vadd.f32 %v4726, %v4894
  %v4896 = vpop.f32.mrf.mxu0
  %v4897 = vadd.f32 %v4728, %v4896
  %4898 = vmatmul.bf16.gmra.mxu0 %v527
  %v4899 = vpop.f32.mrf.mxu0
  %v4900 = vadd.f32 %v4731, %v4899
  %v4901 = vpop.f32.mrf.mxu0
  %v4902 = vadd.f32 %v4733, %v4901
  %4903 = vmatmul.bf16.gmra.mxu0 %v534
  %v4904 = vpop.f32.mrf.mxu0
  %v4905 = vadd.f32 %v4736, %v4904
  %v4906 = vpop.f32.mrf.mxu0
  %v4907 = vadd.f32 %v4738, %v4906
  %4908 = vmatmul.bf16.gmra.mxu0 %v541
  %v4909 = vpop.f32.mrf.mxu0
  %v4910 = vadd.f32 %v4741, %v4909
  %v4911 = vpop.f32.mrf.mxu0
  %v4912 = vadd.f32 %v4743, %v4911
  %4913 = vmatmul.bf16.gmra.mxu0 %v548
  %v4914 = vpop.f32.mrf.mxu0
  %v4915 = vadd.f32 %v4746, %v4914
  %v4916 = vpop.f32.mrf.mxu0
  %v4917 = vadd.f32 %v4748, %v4916
  %4918 = vmatmul.bf16.gmra.mxu0 %v555
  %v4919 = vpop.f32.mrf.mxu0
  %v4920 = vadd.f32 %v4751, %v4919
  %v4921 = vpop.f32.mrf.mxu0
  %v4922 = vadd.f32 %v4753, %v4921
  %4923 = vmatmul.bf16.gmra.mxu0 %v562
  %v4924 = vpop.f32.mrf.mxu0
  %v4925 = vadd.f32 %v4756, %v4924
  %v4926 = vpop.f32.mrf.mxu0
  %v4927 = vadd.f32 %v4758, %v4926
  %4928 = vmatmul.bf16.gmra.mxu0 %v569
  %v4929 = vpop.f32.mrf.mxu0
  %v4930 = vadd.f32 %v4761, %v4929
  %v4931 = vpop.f32.mrf.mxu0
  %v4932 = vadd.f32 %v4763, %v4931
  %4933 = vmatmul.bf16.gmra.mxu0 %v576
  %v4934 = vpop.f32.mrf.mxu0
  %v4935 = vadd.f32 %v4766, %v4934
  %v4936 = vpop.f32.mrf.mxu0
  %v4937 = vadd.f32 %v4768, %v4936
  %4938 = vmatmul.bf16.gmra.mxu0 %v583
  %v4939 = vpop.f32.mrf.mxu0
  %v4940 = vadd.f32 %v4771, %v4939
  %v4941 = vpop.f32.mrf.mxu0
  %v4942 = vadd.f32 %v4773, %v4941
  %4943 = vmatmul.bf16.gmra.mxu0 %v590
  %v4944 = vpop.f32.mrf.mxu0
  %v4945 = vadd.f32 %v4776, %v4944
  %v4946 = vpop.f32.mrf.mxu0
  %v4947 = vadd.f32 %v4778, %v4946
  %4948 = vmatmul.bf16.gmra.mxu0 %v597
  %v4949 = vpop.f32.mrf.mxu0
  %v4950 = vadd.f32 %v4781, %v4949
  %v4951 = vpop.f32.mrf.mxu0
  %v4952 = vadd.f32 %v4783, %v4951
  %4953 = vmatmul.bf16.gmra.mxu0 %v604
  %v4954 = vpop.f32.mrf.mxu0
  %v4955 = vadd.f32 %v4786, %v4954
  %v4956 = vpop.f32.mrf.mxu0
  %v4957 = vadd.f32 %v4788, %v4956
  %4958 = vmatmul.bf16.gmra.mxu0 %v611
  %v4959 = vpop.f32.mrf.mxu0
  %v4960 = vadd.f32 %v4791, %v4959
  %v4961 = vpop.f32.mrf.mxu0
  %v4962 = vadd.f32 %v4793, %v4961
  %4963 = vmatmul.bf16.gmra.mxu0 %v618
  %v4964 = vpop.f32.mrf.mxu0
  %v4965 = vadd.f32 %v4796, %v4964
  %v4966 = vpop.f32.mrf.mxu0
  %v4967 = vadd.f32 %v4798, %v4966
  %4968 = vmatmul.bf16.gmra.mxu0 %v625
  %v4969 = vpop.f32.mrf.mxu0
  %v4970 = vadd.f32 %v4801, %v4969
  %v4971 = vpop.f32.mrf.mxu0
  %v4972 = vadd.f32 %v4803, %v4971
  %4973 = vmatmul.bf16.gmra.mxu0 %v632
  %v4974 = vpop.f32.mrf.mxu0
  %v4975 = vadd.f32 %v4806, %v4974
  %v4976 = vpop.f32.mrf.mxu0
  %v4977 = vadd.f32 %v4808, %v4976
  %4978 = vmatmul.bf16.gmra.mxu0 %v639
  %v4979 = vpop.f32.mrf.mxu0
  %v4980 = vadd.f32 %v4811, %v4979
  %v4981 = vpop.f32.mrf.mxu0
  %v4982 = vadd.f32 %v4813, %v4981
  %4983 = vmatmul.bf16.gmra.mxu0 %v646
  %v4984 = vpop.f32.mrf.mxu0
  %v4985 = vadd.f32 %v4816, %v4984
  %v4986 = vpop.f32.mrf.mxu0
  %v4987 = vadd.f32 %v4818, %v4986
  %4988 = vmatmul.bf16.gmra.mxu0 %v653
  %v4989 = vpop.f32.mrf.mxu0
  %v4990 = vadd.f32 %v4821, %v4989
  %v4991 = vpop.f32.mrf.mxu0
  %v4992 = vadd.f32 %v4823, %v4991
  %4993 = vmatmul.bf16.gmra.mxu0 %v660
  %v4994 = vpop.f32.mrf.mxu0
  %v4995 = vadd.f32 %v4826, %v4994
  %v4996 = vpop.f32.mrf.mxu0
  %v4997 = vadd.f32 %v4828, %v4996
  %4998 = vmatmul.bf16.gmra.mxu0 %v667
  %v4999 = vpop.f32.mrf.mxu0
  %v5000 = vadd.f32 %v4831, %v4999
  %v5001 = vpop.f32.mrf.mxu0
  %v5002 = vadd.f32 %v4833, %v5001
  %5003 = vmatmul.bf16.gmra.mxu0 %v674
  %v5004 = vpop.f32.mrf.mxu0
  %v5005 = vadd.f32 %v4836, %v5004
  %v5006 = vpop.f32.mrf.mxu0
  %v5007 = vadd.f32 %v4838, %v5006
  %5008 = vmatmul.bf16.gmra.mxu0 %v681
  %v5009 = vpop.f32.mrf.mxu0
  %v5010 = vadd.f32 %v4841, %v5009
  %v5011 = vpop.f32.mrf.mxu0
  %v5012 = vadd.f32 %v4843, %v5011
  %5013 = vmatmul.bf16.gmra.mxu0 %v688
  %v5014 = vpop.f32.mrf.mxu0
  %v5015 = vadd.f32 %v4846, %v5014
  %v5016 = vpop.f32.mrf.mxu0
  %v5017 = vadd.f32 %v4848, %v5016
  %5018 = vmatmul.bf16.gmra.mxu0 %v695
  %v5019 = vpop.f32.mrf.mxu0
  %v5020 = vadd.f32 %v4851, %v5019
  %v5021 = vpop.f32.mrf.mxu0
  %v5022 = vadd.f32 %v4853, %v5021
  %5023 = vdwg.mxu0
  %5024 = vmatpush.bf16.msra.mxu0 %v1651
  %5025 = vmatpush.bf16.msra.mxu0 %v1647
  %5026 = vmatpush.bf16.msra.mxu0 %v1643
  %5027 = vmatpush.bf16.msra.mxu0 %v1639
  %5028 = vmatpush.bf16.msra.mxu0 %v1635
  %5029 = vmatpush.bf16.msra.mxu0 %v1631
  %5030 = vmatpush.bf16.msra.mxu0 %v1627
  %5031 = vmatpush.bf16.msra.mxu0 %v1623
  %5032 = vmatmul.bf16.gmra.mxu0 %v479
  %v5033 = vpop.f32.mrf.mxu0
  %v5034 = vadd.f32 %v4865, %v5033
  %v5035 = vpop.f32.mrf.mxu0
  %v5036 = vadd.f32 %v4867, %v5035
  %5037 = vmatmul.bf16.gmra.mxu0 %v486
  %v5038 = vpop.f32.mrf.mxu0
  %v5039 = vadd.f32 %v4870, %v5038
  %v5040 = vpop.f32.mrf.mxu0
  %v5041 = vadd.f32 %v4872, %v5040
  %5042 = vmatmul.bf16.gmra.mxu0 %v493
  %v5043 = vpop.f32.mrf.mxu0
  %v5044 = vadd.f32 %v4875, %v5043
  %v5045 = vpop.f32.mrf.mxu0
  %v5046 = vadd.f32 %v4877, %v5045
  %5047 = vmatmul.bf16.gmra.mxu0 %v500
  %v5048 = vpop.f32.mrf.mxu0
  %v5049 = vadd.f32 %v4880, %v5048
  %v5050 = vpop.f32.mrf.mxu0
  %v5051 = vadd.f32 %v4882, %v5050
  %5052 = vmatmul.bf16.gmra.mxu0 %v507
  %v5053 = vpop.f32.mrf.mxu0
  %v5054 = vadd.f32 %v4885, %v5053
  %v5055 = vpop.f32.mrf.mxu0
  %v5056 = vadd.f32 %v4887, %v5055
  %5057 = vmatmul.bf16.gmra.mxu0 %v514
  %v5058 = vpop.f32.mrf.mxu0
  %v5059 = vadd.f32 %v4890, %v5058
  %v5060 = vpop.f32.mrf.mxu0
  %v5061 = vadd.f32 %v4892, %v5060
  %5062 = vmatmul.bf16.gmra.mxu0 %v521
  %v5063 = vpop.f32.mrf.mxu0
  %v5064 = vadd.f32 %v4895, %v5063
  %v5065 = vpop.f32.mrf.mxu0
  %v5066 = vadd.f32 %v4897, %v5065
  %5067 = vmatmul.bf16.gmra.mxu0 %v528
  %v5068 = vpop.f32.mrf.mxu0
  %v5069 = vadd.f32 %v4900, %v5068
  %v5070 = vpop.f32.mrf.mxu0
  %v5071 = vadd.f32 %v4902, %v5070
  %5072 = vmatmul.bf16.gmra.mxu0 %v535
  %v5073 = vpop.f32.mrf.mxu0
  %v5074 = vadd.f32 %v4905, %v5073
  %v5075 = vpop.f32.mrf.mxu0
  %v5076 = vadd.f32 %v4907, %v5075
  %5077 = vmatmul.bf16.gmra.mxu0 %v542
  %v5078 = vpop.f32.mrf.mxu0
  %v5079 = vadd.f32 %v4910, %v5078
  %v5080 = vpop.f32.mrf.mxu0
  %v5081 = vadd.f32 %v4912, %v5080
  %5082 = vmatmul.bf16.gmra.mxu0 %v549
  %v5083 = vpop.f32.mrf.mxu0
  %v5084 = vadd.f32 %v4915, %v5083
  %v5085 = vpop.f32.mrf.mxu0
  %v5086 = vadd.f32 %v4917, %v5085
  %5087 = vmatmul.bf16.gmra.mxu0 %v556
  %v5088 = vpop.f32.mrf.mxu0
  %v5089 = vadd.f32 %v4920, %v5088
  %v5090 = vpop.f32.mrf.mxu0
  %v5091 = vadd.f32 %v4922, %v5090
  %5092 = vmatmul.bf16.gmra.mxu0 %v563
  %v5093 = vpop.f32.mrf.mxu0
  %v5094 = vadd.f32 %v4925, %v5093
  %v5095 = vpop.f32.mrf.mxu0
  %v5096 = vadd.f32 %v4927, %v5095
  %5097 = vmatmul.bf16.gmra.mxu0 %v570
  %v5098 = vpop.f32.mrf.mxu0
  %v5099 = vadd.f32 %v4930, %v5098
  %v5100 = vpop.f32.mrf.mxu0
  %v5101 = vadd.f32 %v4932, %v5100
  %5102 = vmatmul.bf16.gmra.mxu0 %v577
  %v5103 = vpop.f32.mrf.mxu0
  %v5104 = vadd.f32 %v4935, %v5103
  %v5105 = vpop.f32.mrf.mxu0
  %v5106 = vadd.f32 %v4937, %v5105
  %5107 = vmatmul.bf16.gmra.mxu0 %v584
  %v5108 = vpop.f32.mrf.mxu0
  %v5109 = vadd.f32 %v4940, %v5108
  %v5110 = vpop.f32.mrf.mxu0
  %v5111 = vadd.f32 %v4942, %v5110
  %5112 = vmatmul.bf16.gmra.mxu0 %v591
  %v5113 = vpop.f32.mrf.mxu0
  %v5114 = vadd.f32 %v4945, %v5113
  %v5115 = vpop.f32.mrf.mxu0
  %v5116 = vadd.f32 %v4947, %v5115
  %5117 = vmatmul.bf16.gmra.mxu0 %v598
  %v5118 = vpop.f32.mrf.mxu0
  %v5119 = vadd.f32 %v4950, %v5118
  %v5120 = vpop.f32.mrf.mxu0
  %v5121 = vadd.f32 %v4952, %v5120
  %5122 = vmatmul.bf16.gmra.mxu0 %v605
  %v5123 = vpop.f32.mrf.mxu0
  %v5124 = vadd.f32 %v4955, %v5123
  %v5125 = vpop.f32.mrf.mxu0
  %v5126 = vadd.f32 %v4957, %v5125
  %5127 = vmatmul.bf16.gmra.mxu0 %v612
  %v5128 = vpop.f32.mrf.mxu0
  %v5129 = vadd.f32 %v4960, %v5128
  %v5130 = vpop.f32.mrf.mxu0
  %v5131 = vadd.f32 %v4962, %v5130
  %5132 = vmatmul.bf16.gmra.mxu0 %v619
  %v5133 = vpop.f32.mrf.mxu0
  %v5134 = vadd.f32 %v4965, %v5133
  %v5135 = vpop.f32.mrf.mxu0
  %v5136 = vadd.f32 %v4967, %v5135
  %5137 = vmatmul.bf16.gmra.mxu0 %v626
  %v5138 = vpop.f32.mrf.mxu0
  %v5139 = vadd.f32 %v4970, %v5138
  %v5140 = vpop.f32.mrf.mxu0
  %v5141 = vadd.f32 %v4972, %v5140
  %5142 = vmatmul.bf16.gmra.mxu0 %v633
  %v5143 = vpop.f32.mrf.mxu0
  %v5144 = vadd.f32 %v4975, %v5143
  %v5145 = vpop.f32.mrf.mxu0
  %v5146 = vadd.f32 %v4977, %v5145
  %5147 = vmatmul.bf16.gmra.mxu0 %v640
  %v5148 = vpop.f32.mrf.mxu0
  %v5149 = vadd.f32 %v4980, %v5148
  %v5150 = vpop.f32.mrf.mxu0
  %v5151 = vadd.f32 %v4982, %v5150
  %5152 = vmatmul.bf16.gmra.mxu0 %v647
  %v5153 = vpop.f32.mrf.mxu0
  %v5154 = vadd.f32 %v4985, %v5153
  %v5155 = vpop.f32.mrf.mxu0
  %v5156 = vadd.f32 %v4987, %v5155
  %5157 = vmatmul.bf16.gmra.mxu0 %v654
  %v5158 = vpop.f32.mrf.mxu0
  %v5159 = vadd.f32 %v4990, %v5158
  %v5160 = vpop.f32.mrf.mxu0
  %v5161 = vadd.f32 %v4992, %v5160
  %5162 = vmatmul.bf16.gmra.mxu0 %v661
  %v5163 = vpop.f32.mrf.mxu0
  %v5164 = vadd.f32 %v4995, %v5163
  %v5165 = vpop.f32.mrf.mxu0
  %v5166 = vadd.f32 %v4997, %v5165
  %5167 = vmatmul.bf16.gmra.mxu0 %v668
  %v5168 = vpop.f32.mrf.mxu0
  %v5169 = vadd.f32 %v5000, %v5168
  %v5170 = vpop.f32.mrf.mxu0
  %v5171 = vadd.f32 %v5002, %v5170
  %5172 = vmatmul.bf16.gmra.mxu0 %v675
  %v5173 = vpop.f32.mrf.mxu0
  %v5174 = vadd.f32 %v5005, %v5173
  %v5175 = vpop.f32.mrf.mxu0
  %v5176 = vadd.f32 %v5007, %v5175
  %5177 = vmatmul.bf16.gmra.mxu0 %v682
  %v5178 = vpop.f32.mrf.mxu0
  %v5179 = vadd.f32 %v5010, %v5178
  %v5180 = vpop.f32.mrf.mxu0
  %v5181 = vadd.f32 %v5012, %v5180
  %5182 = vmatmul.bf16.gmra.mxu0 %v689
  %v5183 = vpop.f32.mrf.mxu0
  %v5184 = vadd.f32 %v5015, %v5183
  %v5185 = vpop.f32.mrf.mxu0
  %v5186 = vadd.f32 %v5017, %v5185
  %5187 = vmatmul.bf16.gmra.mxu0 %v696
  %v5188 = vpop.f32.mrf.mxu0
  %v5189 = vadd.f32 %v5020, %v5188
  %v5190 = vpop.f32.mrf.mxu0
  %v5191 = vadd.f32 %v5022, %v5190
  %5192 = vdwg.mxu0
  %5193 = vmatpush.bf16.msra.mxu0 %v1683
  %5194 = vmatpush.bf16.msra.mxu0 %v1679
  %5195 = vmatpush.bf16.msra.mxu0 %v1675
  %5196 = vmatpush.bf16.msra.mxu0 %v1671
  %5197 = vmatpush.bf16.msra.mxu0 %v1667
  %5198 = vmatpush.bf16.msra.mxu0 %v1663
  %5199 = vmatpush.bf16.msra.mxu0 %v1659
  %5200 = vmatpush.bf16.msra.mxu0 %v1655
  %5201 = vmatmul.bf16.gmra.mxu0 %v480
  %v5202 = vpop.f32.mrf.mxu0
  %v5203 = vadd.f32 %v5034, %v5202
  %v5204 = vpop.f32.mrf.mxu0
  %v5205 = vadd.f32 %v5036, %v5204
  %5206 = vmatmul.bf16.gmra.mxu0 %v487
  %v5207 = vpop.f32.mrf.mxu0
  %v5208 = vadd.f32 %v5039, %v5207
  %v5209 = vpop.f32.mrf.mxu0
  %v5210 = vadd.f32 %v5041, %v5209
  %5211 = vmatmul.bf16.gmra.mxu0 %v494
  %v5212 = vpop.f32.mrf.mxu0
  %v5213 = vadd.f32 %v5044, %v5212
  %v5214 = vpop.f32.mrf.mxu0
  %v5215 = vadd.f32 %v5046, %v5214
  %5216 = vmatmul.bf16.gmra.mxu0 %v501
  %v5217 = vpop.f32.mrf.mxu0
  %v5218 = vadd.f32 %v5049, %v5217
  %v5219 = vpop.f32.mrf.mxu0
  %v5220 = vadd.f32 %v5051, %v5219
  %5221 = vmatmul.bf16.gmra.mxu0 %v508
  %v5222 = vpop.f32.mrf.mxu0
  %v5223 = vadd.f32 %v5054, %v5222
  %v5224 = vpop.f32.mrf.mxu0
  %v5225 = vadd.f32 %v5056, %v5224
  %5226 = vmatmul.bf16.gmra.mxu0 %v515
  %v5227 = vpop.f32.mrf.mxu0
  %v5228 = vadd.f32 %v5059, %v5227
  %v5229 = vpop.f32.mrf.mxu0
  %v5230 = vadd.f32 %v5061, %v5229
  %5231 = vmatmul.bf16.gmra.mxu0 %v522
  %v5232 = vpop.f32.mrf.mxu0
  %v5233 = vadd.f32 %v5064, %v5232
  %v5234 = vpop.f32.mrf.mxu0
  %v5235 = vadd.f32 %v5066, %v5234
  %5236 = vmatmul.bf16.gmra.mxu0 %v529
  %v5237 = vpop.f32.mrf.mxu0
  %v5238 = vadd.f32 %v5069, %v5237
  %v5239 = vpop.f32.mrf.mxu0
  %v5240 = vadd.f32 %v5071, %v5239
  %5241 = vmatmul.bf16.gmra.mxu0 %v536
  %v5242 = vpop.f32.mrf.mxu0
  %v5243 = vadd.f32 %v5074, %v5242
  %v5244 = vpop.f32.mrf.mxu0
  %v5245 = vadd.f32 %v5076, %v5244
  %5246 = vmatmul.bf16.gmra.mxu0 %v543
  %v5247 = vpop.f32.mrf.mxu0
  %v5248 = vadd.f32 %v5079, %v5247
  %v5249 = vpop.f32.mrf.mxu0
  %v5250 = vadd.f32 %v5081, %v5249
  %5251 = vmatmul.bf16.gmra.mxu0 %v550
  %v5252 = vpop.f32.mrf.mxu0
  %v5253 = vadd.f32 %v5084, %v5252
  %v5254 = vpop.f32.mrf.mxu0
  %v5255 = vadd.f32 %v5086, %v5254
  %5256 = vmatmul.bf16.gmra.mxu0 %v557
  %v5257 = vpop.f32.mrf.mxu0
  %v5258 = vadd.f32 %v5089, %v5257
  %v5259 = vpop.f32.mrf.mxu0
  %v5260 = vadd.f32 %v5091, %v5259
  %5261 = vmatmul.bf16.gmra.mxu0 %v564
  %v5262 = vpop.f32.mrf.mxu0
  %v5263 = vadd.f32 %v5094, %v5262
  %v5264 = vpop.f32.mrf.mxu0
  %v5265 = vadd.f32 %v5096, %v5264
  %5266 = vmatmul.bf16.gmra.mxu0 %v571
  %v5267 = vpop.f32.mrf.mxu0
  %v5268 = vadd.f32 %v5099, %v5267
  %v5269 = vpop.f32.mrf.mxu0
  %v5270 = vadd.f32 %v5101, %v5269
  %5271 = vmatmul.bf16.gmra.mxu0 %v578
  %v5272 = vpop.f32.mrf.mxu0
  %v5273 = vadd.f32 %v5104, %v5272
  %v5274 = vpop.f32.mrf.mxu0
  %v5275 = vadd.f32 %v5106, %v5274
  %5276 = vmatmul.bf16.gmra.mxu0 %v585
  %v5277 = vpop.f32.mrf.mxu0
  %v5278 = vadd.f32 %v5109, %v5277
  %v5279 = vpop.f32.mrf.mxu0
  %v5280 = vadd.f32 %v5111, %v5279
  %5281 = vmatmul.bf16.gmra.mxu0 %v592
  %v5282 = vpop.f32.mrf.mxu0
  %v5283 = vadd.f32 %v5114, %v5282
  %v5284 = vpop.f32.mrf.mxu0
  %v5285 = vadd.f32 %v5116, %v5284
  %5286 = vmatmul.bf16.gmra.mxu0 %v599
  %v5287 = vpop.f32.mrf.mxu0
  %v5288 = vadd.f32 %v5119, %v5287
  %v5289 = vpop.f32.mrf.mxu0
  %v5290 = vadd.f32 %v5121, %v5289
  %5291 = vmatmul.bf16.gmra.mxu0 %v606
  %v5292 = vpop.f32.mrf.mxu0
  %v5293 = vadd.f32 %v5124, %v5292
  %v5294 = vpop.f32.mrf.mxu0
  %v5295 = vadd.f32 %v5126, %v5294
  %5296 = vmatmul.bf16.gmra.mxu0 %v613
  %v5297 = vpop.f32.mrf.mxu0
  %v5298 = vadd.f32 %v5129, %v5297
  %v5299 = vpop.f32.mrf.mxu0
  %v5300 = vadd.f32 %v5131, %v5299
  %5301 = vmatmul.bf16.gmra.mxu0 %v620
  %v5302 = vpop.f32.mrf.mxu0
  %v5303 = vadd.f32 %v5134, %v5302
  %v5304 = vpop.f32.mrf.mxu0
  %v5305 = vadd.f32 %v5136, %v5304
  %5306 = vmatmul.bf16.gmra.mxu0 %v627
  %v5307 = vpop.f32.mrf.mxu0
  %v5308 = vadd.f32 %v5139, %v5307
  %v5309 = vpop.f32.mrf.mxu0
  %v5310 = vadd.f32 %v5141, %v5309
  %5311 = vmatmul.bf16.gmra.mxu0 %v634
  %v5312 = vpop.f32.mrf.mxu0
  %v5313 = vadd.f32 %v5144, %v5312
  %v5314 = vpop.f32.mrf.mxu0
  %v5315 = vadd.f32 %v5146, %v5314
  %5316 = vmatmul.bf16.gmra.mxu0 %v641
  %v5317 = vpop.f32.mrf.mxu0
  %v5318 = vadd.f32 %v5149, %v5317
  %v5319 = vpop.f32.mrf.mxu0
  %v5320 = vadd.f32 %v5151, %v5319
  %5321 = vmatmul.bf16.gmra.mxu0 %v648
  %v5322 = vpop.f32.mrf.mxu0
  %v5323 = vadd.f32 %v5154, %v5322
  %v5324 = vpop.f32.mrf.mxu0
  %v5325 = vadd.f32 %v5156, %v5324
  %5326 = vmatmul.bf16.gmra.mxu0 %v655
  %v5327 = vpop.f32.mrf.mxu0
  %v5328 = vadd.f32 %v5159, %v5327
  %v5329 = vpop.f32.mrf.mxu0
  %v5330 = vadd.f32 %v5161, %v5329
  %5331 = vmatmul.bf16.gmra.mxu0 %v662
  %v5332 = vpop.f32.mrf.mxu0
  %v5333 = vadd.f32 %v5164, %v5332
  %v5334 = vpop.f32.mrf.mxu0
  %v5335 = vadd.f32 %v5166, %v5334
  %5336 = vmatmul.bf16.gmra.mxu0 %v669
  %v5337 = vpop.f32.mrf.mxu0
  %v5338 = vadd.f32 %v5169, %v5337
  %v5339 = vpop.f32.mrf.mxu0
  %v5340 = vadd.f32 %v5171, %v5339
  %5341 = vmatmul.bf16.gmra.mxu0 %v676
  %v5342 = vpop.f32.mrf.mxu0
  %v5343 = vadd.f32 %v5174, %v5342
  %v5344 = vpop.f32.mrf.mxu0
  %v5345 = vadd.f32 %v5176, %v5344
  %5346 = vmatmul.bf16.gmra.mxu0 %v683
  %v5347 = vpop.f32.mrf.mxu0
  %v5348 = vadd.f32 %v5179, %v5347
  %v5349 = vpop.f32.mrf.mxu0
  %v5350 = vadd.f32 %v5181, %v5349
  %5351 = vmatmul.bf16.gmra.mxu0 %v690
  %v5352 = vpop.f32.mrf.mxu0
  %v5353 = vadd.f32 %v5184, %v5352
  %v5354 = vpop.f32.mrf.mxu0
  %v5355 = vadd.f32 %v5186, %v5354
  %5356 = vmatmul.bf16.gmra.mxu0 %v697
  %v5357 = vpop.f32.mrf.mxu0
  %v5358 = vadd.f32 %v5189, %v5357
  %v5359 = vpop.f32.mrf.mxu0
  %v5360 = vadd.f32 %v5191, %v5359
  %5361 = vdwg.mxu0
  %5362 = vmatpush.bf16.msra.mxu0 0
  %5363 = vmatpush.bf16.msra.mxu0 0
  %5364 = vmatpush.bf16.msra.mxu0 0
  %5365 = vmatpush.bf16.msra.mxu0 0
  %5366 = vmatpush.bf16.msra.mxu0 0
  %5367 = vmatpush.bf16.msra.mxu0 0
  %5368 = vmatpush.bf16.msra.mxu0 0
  %5369 = vmatpush.bf16.msra.mxu0 %v1687
  %5370 = vmatmul.bf16.gmra.mxu0 %v1887
  %v5371 = vpop.f32.mrf.mxu0
  %v5372 = vadd.f32 %v5203, %v5371
  %v5373 = vpop.f32.mrf.mxu0
  %v5374 = vadd.f32 %v5205, %v5373
  %5375 = vmatmul.bf16.gmra.mxu0 %v1890
  %v5376 = vpop.f32.mrf.mxu0
  %v5377 = vadd.f32 %v5208, %v5376
  %v5378 = vpop.f32.mrf.mxu0
  %v5379 = vadd.f32 %v5210, %v5378
  %5380 = vmatmul.bf16.gmra.mxu0 %v1893
  %v5381 = vpop.f32.mrf.mxu0
  %v5382 = vadd.f32 %v5213, %v5381
  %v5383 = vpop.f32.mrf.mxu0
  %v5384 = vadd.f32 %v5215, %v5383
  %5385 = vmatmul.bf16.gmra.mxu0 %v1896
  %v5386 = vpop.f32.mrf.mxu0
  %v5387 = vadd.f32 %v5218, %v5386
  %v5388 = vpop.f32.mrf.mxu0
  %v5389 = vadd.f32 %v5220, %v5388
  %5390 = vmatmul.bf16.gmra.mxu0 %v1899
  %v5391 = vpop.f32.mrf.mxu0
  %v5392 = vadd.f32 %v5223, %v5391
  %v5393 = vpop.f32.mrf.mxu0
  %v5394 = vadd.f32 %v5225, %v5393
  %5395 = vmatmul.bf16.gmra.mxu0 %v1902
  %v5396 = vpop.f32.mrf.mxu0
  %v5397 = vadd.f32 %v5228, %v5396
  %v5398 = vpop.f32.mrf.mxu0
  %v5399 = vadd.f32 %v5230, %v5398
  %5400 = vmatmul.bf16.gmra.mxu0 %v1905
  %v5401 = vpop.f32.mrf.mxu0
  %v5402 = vadd.f32 %v5233, %v5401
  %v5403 = vpop.f32.mrf.mxu0
  %v5404 = vadd.f32 %v5235, %v5403
  %5405 = vmatmul.bf16.gmra.mxu0 %v1908
  %v5406 = vpop.f32.mrf.mxu0
  %v5407 = vadd.f32 %v5238, %v5406
  %v5408 = vpop.f32.mrf.mxu0
  %v5409 = vadd.f32 %v5240, %v5408
  %5410 = vmatmul.bf16.gmra.mxu0 %v1911
  %v5411 = vpop.f32.mrf.mxu0
  %v5412 = vadd.f32 %v5243, %v5411
  %v5413 = vpop.f32.mrf.mxu0
  %v5414 = vadd.f32 %v5245, %v5413
  %5415 = vmatmul.bf16.gmra.mxu0 %v1914
  %v5416 = vpop.f32.mrf.mxu0
  %v5417 = vadd.f32 %v5248, %v5416
  %v5418 = vpop.f32.mrf.mxu0
  %v5419 = vadd.f32 %v5250, %v5418
  %5420 = vmatmul.bf16.gmra.mxu0 %v1917
  %v5421 = vpop.f32.mrf.mxu0
  %v5422 = vadd.f32 %v5253, %v5421
  %v5423 = vpop.f32.mrf.mxu0
  %v5424 = vadd.f32 %v5255, %v5423
  %5425 = vmatmul.bf16.gmra.mxu0 %v1920
  %v5426 = vpop.f32.mrf.mxu0
  %v5427 = vadd.f32 %v5258, %v5426
  %v5428 = vpop.f32.mrf.mxu0
  %v5429 = vadd.f32 %v5260, %v5428
  %5430 = vmatmul.bf16.gmra.mxu0 %v1923
  %v5431 = vpop.f32.mrf.mxu0
  %v5432 = vadd.f32 %v5263, %v5431
  %v5433 = vpop.f32.mrf.mxu0
  %v5434 = vadd.f32 %v5265, %v5433
  %5435 = vmatmul.bf16.gmra.mxu0 %v1926
  %v5436 = vpop.f32.mrf.mxu0
  %v5437 = vadd.f32 %v5268, %v5436
  %v5438 = vpop.f32.mrf.mxu0
  %v5439 = vadd.f32 %v5270, %v5438
  %5440 = vmatmul.bf16.gmra.mxu0 %v1929
  %v5441 = vpop.f32.mrf.mxu0
  %v5442 = vadd.f32 %v5273, %v5441
  %v5443 = vpop.f32.mrf.mxu0
  %v5444 = vadd.f32 %v5275, %v5443
  %5445 = vmatmul.bf16.gmra.mxu0 %v1932
  %v5446 = vpop.f32.mrf.mxu0
  %v5447 = vadd.f32 %v5278, %v5446
  %v5448 = vpop.f32.mrf.mxu0
  %v5449 = vadd.f32 %v5280, %v5448
  %5450 = vmatmul.bf16.gmra.mxu0 %v1935
  %v5451 = vpop.f32.mrf.mxu0
  %v5452 = vadd.f32 %v5283, %v5451
  %v5453 = vpop.f32.mrf.mxu0
  %v5454 = vadd.f32 %v5285, %v5453
  %5455 = vmatmul.bf16.gmra.mxu0 %v1938
  %v5456 = vpop.f32.mrf.mxu0
  %v5457 = vadd.f32 %v5288, %v5456
  %v5458 = vpop.f32.mrf.mxu0
  %v5459 = vadd.f32 %v5290, %v5458
  %5460 = vmatmul.bf16.gmra.mxu0 %v1941
  %v5461 = vpop.f32.mrf.mxu0
  %v5462 = vadd.f32 %v5293, %v5461
  %v5463 = vpop.f32.mrf.mxu0
  %v5464 = vadd.f32 %v5295, %v5463
  %5465 = vmatmul.bf16.gmra.mxu0 %v1944
  %v5466 = vpop.f32.mrf.mxu0
  %v5467 = vadd.f32 %v5298, %v5466
  %v5468 = vpop.f32.mrf.mxu0
  %v5469 = vadd.f32 %v5300, %v5468
  %5470 = vmatmul.bf16.gmra.mxu0 %v1947
  %v5471 = vpop.f32.mrf.mxu0
  %v5472 = vadd.f32 %v5303, %v5471
  %v5473 = vpop.f32.mrf.mxu0
  %v5474 = vadd.f32 %v5305, %v5473
  %5475 = vmatmul.bf16.gmra.mxu0 %v1950
  %v5476 = vpop.f32.mrf.mxu0
  %v5477 = vadd.f32 %v5308, %v5476
  %v5478 = vpop.f32.mrf.mxu0
  %v5479 = vadd.f32 %v5310, %v5478
  %5480 = vmatmul.bf16.gmra.mxu0 %v1953
  %v5481 = vpop.f32.mrf.mxu0
  %v5482 = vadd.f32 %v5313, %v5481
  %v5483 = vpop.f32.mrf.mxu0
  %v5484 = vadd.f32 %v5315, %v5483
  %5485 = vmatmul.bf16.gmra.mxu0 %v1956
  %v5486 = vpop.f32.mrf.mxu0
  %v5487 = vadd.f32 %v5318, %v5486
  %v5488 = vpop.f32.mrf.mxu0
  %v5489 = vadd.f32 %v5320, %v5488
  %5490 = vmatmul.bf16.gmra.mxu0 %v1959
  %v5491 = vpop.f32.mrf.mxu0
  %v5492 = vadd.f32 %v5323, %v5491
  %v5493 = vpop.f32.mrf.mxu0
  %v5494 = vadd.f32 %v5325, %v5493
  %5495 = vmatmul.bf16.gmra.mxu0 %v1962
  %v5496 = vpop.f32.mrf.mxu0
  %v5497 = vadd.f32 %v5328, %v5496
  %v5498 = vpop.f32.mrf.mxu0
  %v5499 = vadd.f32 %v5330, %v5498
  %5500 = vmatmul.bf16.gmra.mxu0 %v1965
  %v5501 = vpop.f32.mrf.mxu0
  %v5502 = vadd.f32 %v5333, %v5501
  %v5503 = vpop.f32.mrf.mxu0
  %v5504 = vadd.f32 %v5335, %v5503
  %5505 = vmatmul.bf16.gmra.mxu0 %v1968
  %v5506 = vpop.f32.mrf.mxu0
  %v5507 = vadd.f32 %v5338, %v5506
  %v5508 = vpop.f32.mrf.mxu0
  %v5509 = vadd.f32 %v5340, %v5508
  %5510 = vmatmul.bf16.gmra.mxu0 %v1971
  %v5511 = vpop.f32.mrf.mxu0
  %v5512 = vadd.f32 %v5343, %v5511
  %v5513 = vpop.f32.mrf.mxu0
  %v5514 = vadd.f32 %v5345, %v5513
  %5515 = vmatmul.bf16.gmra.mxu0 %v1974
  %v5516 = vpop.f32.mrf.mxu0
  %v5517 = vadd.f32 %v5348, %v5516
  %v5518 = vpop.f32.mrf.mxu0
  %v5519 = vadd.f32 %v5350, %v5518
  %5520 = vmatmul.bf16.gmra.mxu0 %v1977
  %v5521 = vpop.f32.mrf.mxu0
  %v5522 = vadd.f32 %v5353, %v5521
  %v5523 = vpop.f32.mrf.mxu0
  %v5524 = vadd.f32 %v5355, %v5523
  %5525 = vmatmul.bf16.gmra.mxu0 %v1980
  %v5526 = vpop.f32.mrf.mxu0
  %v5527 = vadd.f32 %v5358, %v5526
  %v5528 = vpop.f32.mrf.mxu0
  %v5529 = vadd.f32 %v5360, %v5528
  %5530 = vdwg.mxu0
  %5531 = vmatpush.bf16.msra.mxu0 %v1524
  %5532 = vmatpush.bf16.msra.mxu0 %v1520
  %5533 = vmatpush.bf16.msra.mxu0 %v1516
  %5534 = vmatpush.bf16.msra.mxu0 %v1512
  %5535 = vmatpush.bf16.msra.mxu0 %v1508
  %5536 = vmatpush.bf16.msra.mxu0 %v1504
  %5537 = vmatpush.bf16.msra.mxu0 %v1500
  %5538 = vmatpush.bf16.msra.mxu0 %v1496
  %5539 = vmatmul.bf16.gmra.mxu0 %v475
  %v5540 = vpop.f32.mrf.mxu0
  %v5541 = vadd.f32 %v900, %v5540
  %v5542 = vpop.f32.mrf.mxu0
  %v5543 = vadd.f32 %v900, %v5542
  %5544 = vmatmul.bf16.gmra.mxu0 %v482
  %v5545 = vpop.f32.mrf.mxu0
  %v5546 = vadd.f32 %v900, %v5545
  %v5547 = vpop.f32.mrf.mxu0
  %v5548 = vadd.f32 %v900, %v5547
  %5549 = vmatmul.bf16.gmra.mxu0 %v489
  %v5550 = vpop.f32.mrf.mxu0
  %v5551 = vadd.f32 %v900, %v5550
  %v5552 = vpop.f32.mrf.mxu0
  %v5553 = vadd.f32 %v900, %v5552
  %5554 = vmatmul.bf16.gmra.mxu0 %v496
  %v5555 = vpop.f32.mrf.mxu0
  %v5556 = vadd.f32 %v900, %v5555
  %v5557 = vpop.f32.mrf.mxu0
  %v5558 = vadd.f32 %v900, %v5557
  %5559 = vmatmul.bf16.gmra.mxu0 %v503
  %v5560 = vpop.f32.mrf.mxu0
  %v5561 = vadd.f32 %v900, %v5560
  %v5562 = vpop.f32.mrf.mxu0
  %v5563 = vadd.f32 %v900, %v5562
  %5564 = vmatmul.bf16.gmra.mxu0 %v510
  %v5565 = vpop.f32.mrf.mxu0
  %v5566 = vadd.f32 %v900, %v5565
  %v5567 = vpop.f32.mrf.mxu0
  %v5568 = vadd.f32 %v900, %v5567
  %5569 = vmatmul.bf16.gmra.mxu0 %v517
  %v5570 = vpop.f32.mrf.mxu0
  %v5571 = vadd.f32 %v900, %v5570
  %v5572 = vpop.f32.mrf.mxu0
  %v5573 = vadd.f32 %v900, %v5572
  %5574 = vmatmul.bf16.gmra.mxu0 %v524
  %v5575 = vpop.f32.mrf.mxu0
  %v5576 = vadd.f32 %v900, %v5575
  %v5577 = vpop.f32.mrf.mxu0
  %v5578 = vadd.f32 %v900, %v5577
  %5579 = vmatmul.bf16.gmra.mxu0 %v531
  %v5580 = vpop.f32.mrf.mxu0
  %v5581 = vadd.f32 %v900, %v5580
  %v5582 = vpop.f32.mrf.mxu0
  %v5583 = vadd.f32 %v900, %v5582
  %5584 = vmatmul.bf16.gmra.mxu0 %v538
  %v5585 = vpop.f32.mrf.mxu0
  %v5586 = vadd.f32 %v900, %v5585
  %v5587 = vpop.f32.mrf.mxu0
  %v5588 = vadd.f32 %v900, %v5587
  %5589 = vmatmul.bf16.gmra.mxu0 %v545
  %v5590 = vpop.f32.mrf.mxu0
  %v5591 = vadd.f32 %v900, %v5590
  %v5592 = vpop.f32.mrf.mxu0
  %v5593 = vadd.f32 %v900, %v5592
  %5594 = vmatmul.bf16.gmra.mxu0 %v552
  %v5595 = vpop.f32.mrf.mxu0
  %v5596 = vadd.f32 %v900, %v5595
  %v5597 = vpop.f32.mrf.mxu0
  %v5598 = vadd.f32 %v900, %v5597
  %5599 = vmatmul.bf16.gmra.mxu0 %v559
  %v5600 = vpop.f32.mrf.mxu0
  %v5601 = vadd.f32 %v900, %v5600
  %v5602 = vpop.f32.mrf.mxu0
  %v5603 = vadd.f32 %v900, %v5602
  %5604 = vmatmul.bf16.gmra.mxu0 %v566
  %v5605 = vpop.f32.mrf.mxu0
  %v5606 = vadd.f32 %v900, %v5605
  %v5607 = vpop.f32.mrf.mxu0
  %v5608 = vadd.f32 %v900, %v5607
  %5609 = vmatmul.bf16.gmra.mxu0 %v573
  %v5610 = vpop.f32.mrf.mxu0
  %v5611 = vadd.f32 %v900, %v5610
  %v5612 = vpop.f32.mrf.mxu0
  %v5613 = vadd.f32 %v900, %v5612
  %5614 = vmatmul.bf16.gmra.mxu0 %v580
  %v5615 = vpop.f32.mrf.mxu0
  %v5616 = vadd.f32 %v900, %v5615
  %v5617 = vpop.f32.mrf.mxu0
  %v5618 = vadd.f32 %v900, %v5617
  %5619 = vmatmul.bf16.gmra.mxu0 %v587
  %v5620 = vpop.f32.mrf.mxu0
  %v5621 = vadd.f32 %v900, %v5620
  %v5622 = vpop.f32.mrf.mxu0
  %v5623 = vadd.f32 %v900, %v5622
  %5624 = vmatmul.bf16.gmra.mxu0 %v594
  %v5625 = vpop.f32.mrf.mxu0
  %v5626 = vadd.f32 %v900, %v5625
  %v5627 = vpop.f32.mrf.mxu0
  %v5628 = vadd.f32 %v900, %v5627
  %5629 = vmatmul.bf16.gmra.mxu0 %v601
  %v5630 = vpop.f32.mrf.mxu0
  %v5631 = vadd.f32 %v900, %v5630
  %v5632 = vpop.f32.mrf.mxu0
  %v5633 = vadd.f32 %v900, %v5632
  %5634 = vmatmul.bf16.gmra.mxu0 %v608
  %v5635 = vpop.f32.mrf.mxu0
  %v5636 = vadd.f32 %v900, %v5635
  %v5637 = vpop.f32.mrf.mxu0
  %v5638 = vadd.f32 %v900, %v5637
  %5639 = vmatmul.bf16.gmra.mxu0 %v615
  %v5640 = vpop.f32.mrf.mxu0
  %v5641 = vadd.f32 %v900, %v5640
  %v5642 = vpop.f32.mrf.mxu0
  %v5643 = vadd.f32 %v900, %v5642
  %5644 = vmatmul.bf16.gmra.mxu0 %v622
  %v5645 = vpop.f32.mrf.mxu0
  %v5646 = vadd.f32 %v900, %v5645
  %v5647 = vpop.f32.mrf.mxu0
  %v5648 = vadd.f32 %v900, %v5647
  %5649 = vmatmul.bf16.gmra.mxu0 %v629
  %v5650 = vpop.f32.mrf.mxu0
  %v5651 = vadd.f32 %v900, %v5650
  %v5652 = vpop.f32.mrf.mxu0
  %v5653 = vadd.f32 %v900, %v5652
  %5654 = vmatmul.bf16.gmra.mxu0 %v636
  %v5655 = vpop.f32.mrf.mxu0
  %v5656 = vadd.f32 %v900, %v5655
  %v5657 = vpop.f32.mrf.mxu0
  %v5658 = vadd.f32 %v900, %v5657
  %5659 = vmatmul.bf16.gmra.mxu0 %v643
  %v5660 = vpop.f32.mrf.mxu0
  %v5661 = vadd.f32 %v900, %v5660
  %v5662 = vpop.f32.mrf.mxu0
  %v5663 = vadd.f32 %v900, %v5662
  %5664 = vmatmul.bf16.gmra.mxu0 %v650
  %v5665 = vpop.f32.mrf.mxu0
  %v5666 = vadd.f32 %v900, %v5665
  %v5667 = vpop.f32.mrf.mxu0
  %v5668 = vadd.f32 %v900, %v5667
  %5669 = vmatmul.bf16.gmra.mxu0 %v657
  %v5670 = vpop.f32.mrf.mxu0
  %v5671 = vadd.f32 %v900, %v5670
  %v5672 = vpop.f32.mrf.mxu0
  %v5673 = vadd.f32 %v900, %v5672
  %5674 = vmatmul.bf16.gmra.mxu0 %v664
  %v5675 = vpop.f32.mrf.mxu0
  %v5676 = vadd.f32 %v900, %v5675
  %v5677 = vpop.f32.mrf.mxu0
  %v5678 = vadd.f32 %v900, %v5677
  %5679 = vmatmul.bf16.gmra.mxu0 %v671
  %v5680 = vpop.f32.mrf.mxu0
  %v5681 = vadd.f32 %v900, %v5680
  %v5682 = vpop.f32.mrf.mxu0
  %v5683 = vadd.f32 %v900, %v5682
  %5684 = vmatmul.bf16.gmra.mxu0 %v678
  %v5685 = vpop.f32.mrf.mxu0
  %v5686 = vadd.f32 %v900, %v5685
  %v5687 = vpop.f32.mrf.mxu0
  %v5688 = vadd.f32 %v900, %v5687
  %5689 = vmatmul.bf16.gmra.mxu0 %v685
  %v5690 = vpop.f32.mrf.mxu0
  %v5691 = vadd.f32 %v900, %v5690
  %v5692 = vpop.f32.mrf.mxu0
  %v5693 = vadd.f32 %v900, %v5692
  %5694 = vmatmul.bf16.gmra.mxu0 %v692
  %v5695 = vpop.f32.mrf.mxu0
  %v5696 = vadd.f32 %v900, %v5695
  %v5697 = vpop.f32.mrf.mxu0
  %v5698 = vadd.f32 %v900, %v5697
  %5699 = vdwg.mxu0
  %5700 = vmatpush.bf16.msra.mxu0 %v1556
  %5701 = vmatpush.bf16.msra.mxu0 %v1552
  %5702 = vmatpush.bf16.msra.mxu0 %v1548
  %5703 = vmatpush.bf16.msra.mxu0 %v1544
  %5704 = vmatpush.bf16.msra.mxu0 %v1540
  %5705 = vmatpush.bf16.msra.mxu0 %v1536
  %5706 = vmatpush.bf16.msra.mxu0 %v1532
  %5707 = vmatpush.bf16.msra.mxu0 %v1528
  %5708 = vmatmul.bf16.gmra.mxu0 %v476
  %v5709 = vpop.f32.mrf.mxu0
  %v5710 = vadd.f32 %v5541, %v5709
  %v5711 = vpop.f32.mrf.mxu0
  %v5712 = vadd.f32 %v5543, %v5711
  %5713 = vmatmul.bf16.gmra.mxu0 %v483
  %v5714 = vpop.f32.mrf.mxu0
  %v5715 = vadd.f32 %v5546, %v5714
  %v5716 = vpop.f32.mrf.mxu0
  %v5717 = vadd.f32 %v5548, %v5716
  %5718 = vmatmul.bf16.gmra.mxu0 %v490
  %v5719 = vpop.f32.mrf.mxu0
  %v5720 = vadd.f32 %v5551, %v5719
  %v5721 = vpop.f32.mrf.mxu0
  %v5722 = vadd.f32 %v5553, %v5721
  %5723 = vmatmul.bf16.gmra.mxu0 %v497
  %v5724 = vpop.f32.mrf.mxu0
  %v5725 = vadd.f32 %v5556, %v5724
  %v5726 = vpop.f32.mrf.mxu0
  %v5727 = vadd.f32 %v5558, %v5726
  %5728 = vmatmul.bf16.gmra.mxu0 %v504
  %v5729 = vpop.f32.mrf.mxu0
  %v5730 = vadd.f32 %v5561, %v5729
  %v5731 = vpop.f32.mrf.mxu0
  %v5732 = vadd.f32 %v5563, %v5731
  %5733 = vmatmul.bf16.gmra.mxu0 %v511
  %v5734 = vpop.f32.mrf.mxu0
  %v5735 = vadd.f32 %v5566, %v5734
  %v5736 = vpop.f32.mrf.mxu0
  %v5737 = vadd.f32 %v5568, %v5736
  %5738 = vmatmul.bf16.gmra.mxu0 %v518
  %v5739 = vpop.f32.mrf.mxu0
  %v5740 = vadd.f32 %v5571, %v5739
  %v5741 = vpop.f32.mrf.mxu0
  %v5742 = vadd.f32 %v5573, %v5741
  %5743 = vmatmul.bf16.gmra.mxu0 %v525
  %v5744 = vpop.f32.mrf.mxu0
  %v5745 = vadd.f32 %v5576, %v5744
  %v5746 = vpop.f32.mrf.mxu0
  %v5747 = vadd.f32 %v5578, %v5746
  %5748 = vmatmul.bf16.gmra.mxu0 %v532
  %v5749 = vpop.f32.mrf.mxu0
  %v5750 = vadd.f32 %v5581, %v5749
  %v5751 = vpop.f32.mrf.mxu0
  %v5752 = vadd.f32 %v5583, %v5751
  %5753 = vmatmul.bf16.gmra.mxu0 %v539
  %v5754 = vpop.f32.mrf.mxu0
  %v5755 = vadd.f32 %v5586, %v5754
  %v5756 = vpop.f32.mrf.mxu0
  %v5757 = vadd.f32 %v5588, %v5756
  %5758 = vmatmul.bf16.gmra.mxu0 %v546
  %v5759 = vpop.f32.mrf.mxu0
  %v5760 = vadd.f32 %v5591, %v5759
  %v5761 = vpop.f32.mrf.mxu0
  %v5762 = vadd.f32 %v5593, %v5761
  %5763 = vmatmul.bf16.gmra.mxu0 %v553
  %v5764 = vpop.f32.mrf.mxu0
  %v5765 = vadd.f32 %v5596, %v5764
  %v5766 = vpop.f32.mrf.mxu0
  %v5767 = vadd.f32 %v5598, %v5766
  %5768 = vmatmul.bf16.gmra.mxu0 %v560
  %v5769 = vpop.f32.mrf.mxu0
  %v5770 = vadd.f32 %v5601, %v5769
  %v5771 = vpop.f32.mrf.mxu0
  %v5772 = vadd.f32 %v5603, %v5771
  %5773 = vmatmul.bf16.gmra.mxu0 %v567
  %v5774 = vpop.f32.mrf.mxu0
  %v5775 = vadd.f32 %v5606, %v5774
  %v5776 = vpop.f32.mrf.mxu0
  %v5777 = vadd.f32 %v5608, %v5776
  %5778 = vmatmul.bf16.gmra.mxu0 %v574
  %v5779 = vpop.f32.mrf.mxu0
  %v5780 = vadd.f32 %v5611, %v5779
  %v5781 = vpop.f32.mrf.mxu0
  %v5782 = vadd.f32 %v5613, %v5781
  %5783 = vmatmul.bf16.gmra.mxu0 %v581
  %v5784 = vpop.f32.mrf.mxu0
  %v5785 = vadd.f32 %v5616, %v5784
  %v5786 = vpop.f32.mrf.mxu0
  %v5787 = vadd.f32 %v5618, %v5786
  %5788 = vmatmul.bf16.gmra.mxu0 %v588
  %v5789 = vpop.f32.mrf.mxu0
  %v5790 = vadd.f32 %v5621, %v5789
  %v5791 = vpop.f32.mrf.mxu0
  %v5792 = vadd.f32 %v5623, %v5791
  %5793 = vmatmul.bf16.gmra.mxu0 %v595
  %v5794 = vpop.f32.mrf.mxu0
  %v5795 = vadd.f32 %v5626, %v5794
  %v5796 = vpop.f32.mrf.mxu0
  %v5797 = vadd.f32 %v5628, %v5796
  %5798 = vmatmul.bf16.gmra.mxu0 %v602
  %v5799 = vpop.f32.mrf.mxu0
  %v5800 = vadd.f32 %v5631, %v5799
  %v5801 = vpop.f32.mrf.mxu0
  %v5802 = vadd.f32 %v5633, %v5801
  %5803 = vmatmul.bf16.gmra.mxu0 %v609
  %v5804 = vpop.f32.mrf.mxu0
  %v5805 = vadd.f32 %v5636, %v5804
  %v5806 = vpop.f32.mrf.mxu0
  %v5807 = vadd.f32 %v5638, %v5806
  %5808 = vmatmul.bf16.gmra.mxu0 %v616
  %v5809 = vpop.f32.mrf.mxu0
  %v5810 = vadd.f32 %v5641, %v5809
  %v5811 = vpop.f32.mrf.mxu0
  %v5812 = vadd.f32 %v5643, %v5811
  %5813 = vmatmul.bf16.gmra.mxu0 %v623
  %v5814 = vpop.f32.mrf.mxu0
  %v5815 = vadd.f32 %v5646, %v5814
  %v5816 = vpop.f32.mrf.mxu0
  %v5817 = vadd.f32 %v5648, %v5816
  %5818 = vmatmul.bf16.gmra.mxu0 %v630
  %v5819 = vpop.f32.mrf.mxu0
  %v5820 = vadd.f32 %v5651, %v5819
  %v5821 = vpop.f32.mrf.mxu0
  %v5822 = vadd.f32 %v5653, %v5821
  %5823 = vmatmul.bf16.gmra.mxu0 %v637
  %v5824 = vpop.f32.mrf.mxu0
  %v5825 = vadd.f32 %v5656, %v5824
  %v5826 = vpop.f32.mrf.mxu0
  %v5827 = vadd.f32 %v5658, %v5826
  %5828 = vmatmul.bf16.gmra.mxu0 %v644
  %v5829 = vpop.f32.mrf.mxu0
  %v5830 = vadd.f32 %v5661, %v5829
  %v5831 = vpop.f32.mrf.mxu0
  %v5832 = vadd.f32 %v5663, %v5831
  %5833 = vmatmul.bf16.gmra.mxu0 %v651
  %v5834 = vpop.f32.mrf.mxu0
  %v5835 = vadd.f32 %v5666, %v5834
  %v5836 = vpop.f32.mrf.mxu0
  %v5837 = vadd.f32 %v5668, %v5836
  %5838 = vmatmul.bf16.gmra.mxu0 %v658
  %v5839 = vpop.f32.mrf.mxu0
  %v5840 = vadd.f32 %v5671, %v5839
  %v5841 = vpop.f32.mrf.mxu0
  %v5842 = vadd.f32 %v5673, %v5841
  %5843 = vmatmul.bf16.gmra.mxu0 %v665
  %v5844 = vpop.f32.mrf.mxu0
  %v5845 = vadd.f32 %v5676, %v5844
  %v5846 = vpop.f32.mrf.mxu0
  %v5847 = vadd.f32 %v5678, %v5846
  %5848 = vmatmul.bf16.gmra.mxu0 %v672
  %v5849 = vpop.f32.mrf.mxu0
  %v5850 = vadd.f32 %v5681, %v5849
  %v5851 = vpop.f32.mrf.mxu0
  %v5852 = vadd.f32 %v5683, %v5851
  %5853 = vmatmul.bf16.gmra.mxu0 %v679
  %v5854 = vpop.f32.mrf.mxu0
  %v5855 = vadd.f32 %v5686, %v5854
  %v5856 = vpop.f32.mrf.mxu0
  %v5857 = vadd.f32 %v5688, %v5856
  %5858 = vmatmul.bf16.gmra.mxu0 %v686
  %v5859 = vpop.f32.mrf.mxu0
  %v5860 = vadd.f32 %v5691, %v5859
  %v5861 = vpop.f32.mrf.mxu0
  %v5862 = vadd.f32 %v5693, %v5861
  %5863 = vmatmul.bf16.gmra.mxu0 %v693
  %v5864 = vpop.f32.mrf.mxu0
  %v5865 = vadd.f32 %v5696, %v5864
  %v5866 = vpop.f32.mrf.mxu0
  %v5867 = vadd.f32 %v5698, %v5866
  %5868 = vdwg.mxu0
  %5869 = vmatpush.bf16.msra.mxu0 %v1588
  %5870 = vmatpush.bf16.msra.mxu0 %v1584
  %5871 = vmatpush.bf16.msra.mxu0 %v1580
  %5872 = vmatpush.bf16.msra.mxu0 %v1576
  %5873 = vmatpush.bf16.msra.mxu0 %v1572
  %5874 = vmatpush.bf16.msra.mxu0 %v1568
  %5875 = vmatpush.bf16.msra.mxu0 %v1564
  %5876 = vmatpush.bf16.msra.mxu0 %v1560
  %5877 = vmatmul.bf16.gmra.mxu0 %v477
  %v5878 = vpop.f32.mrf.mxu0
  %v5879 = vadd.f32 %v5710, %v5878
  %v5880 = vpop.f32.mrf.mxu0
  %v5881 = vadd.f32 %v5712, %v5880
  %5882 = vmatmul.bf16.gmra.mxu0 %v484
  %v5883 = vpop.f32.mrf.mxu0
  %v5884 = vadd.f32 %v5715, %v5883
  %v5885 = vpop.f32.mrf.mxu0
  %v5886 = vadd.f32 %v5717, %v5885
  %5887 = vmatmul.bf16.gmra.mxu0 %v491
  %v5888 = vpop.f32.mrf.mxu0
  %v5889 = vadd.f32 %v5720, %v5888
  %v5890 = vpop.f32.mrf.mxu0
  %v5891 = vadd.f32 %v5722, %v5890
  %5892 = vmatmul.bf16.gmra.mxu0 %v498
  %v5893 = vpop.f32.mrf.mxu0
  %v5894 = vadd.f32 %v5725, %v5893
  %v5895 = vpop.f32.mrf.mxu0
  %v5896 = vadd.f32 %v5727, %v5895
  %5897 = vmatmul.bf16.gmra.mxu0 %v505
  %v5898 = vpop.f32.mrf.mxu0
  %v5899 = vadd.f32 %v5730, %v5898
  %v5900 = vpop.f32.mrf.mxu0
  %v5901 = vadd.f32 %v5732, %v5900
  %5902 = vmatmul.bf16.gmra.mxu0 %v512
  %v5903 = vpop.f32.mrf.mxu0
  %v5904 = vadd.f32 %v5735, %v5903
  %v5905 = vpop.f32.mrf.mxu0
  %v5906 = vadd.f32 %v5737, %v5905
  %5907 = vmatmul.bf16.gmra.mxu0 %v519
  %v5908 = vpop.f32.mrf.mxu0
  %v5909 = vadd.f32 %v5740, %v5908
  %v5910 = vpop.f32.mrf.mxu0
  %v5911 = vadd.f32 %v5742, %v5910
  %5912 = vmatmul.bf16.gmra.mxu0 %v526
  %v5913 = vpop.f32.mrf.mxu0
  %v5914 = vadd.f32 %v5745, %v5913
  %v5915 = vpop.f32.mrf.mxu0
  %v5916 = vadd.f32 %v5747, %v5915
  %5917 = vmatmul.bf16.gmra.mxu0 %v533
  %v5918 = vpop.f32.mrf.mxu0
  %v5919 = vadd.f32 %v5750, %v5918
  %v5920 = vpop.f32.mrf.mxu0
  %v5921 = vadd.f32 %v5752, %v5920
  %5922 = vmatmul.bf16.gmra.mxu0 %v540
  %v5923 = vpop.f32.mrf.mxu0
  %v5924 = vadd.f32 %v5755, %v5923
  %v5925 = vpop.f32.mrf.mxu0
  %v5926 = vadd.f32 %v5757, %v5925
  %5927 = vmatmul.bf16.gmra.mxu0 %v547
  %v5928 = vpop.f32.mrf.mxu0
  %v5929 = vadd.f32 %v5760, %v5928
  %v5930 = vpop.f32.mrf.mxu0
  %v5931 = vadd.f32 %v5762, %v5930
  %5932 = vmatmul.bf16.gmra.mxu0 %v554
  %v5933 = vpop.f32.mrf.mxu0
  %v5934 = vadd.f32 %v5765, %v5933
  %v5935 = vpop.f32.mrf.mxu0
  %v5936 = vadd.f32 %v5767, %v5935
  %5937 = vmatmul.bf16.gmra.mxu0 %v561
  %v5938 = vpop.f32.mrf.mxu0
  %v5939 = vadd.f32 %v5770, %v5938
  %v5940 = vpop.f32.mrf.mxu0
  %v5941 = vadd.f32 %v5772, %v5940
  %5942 = vmatmul.bf16.gmra.mxu0 %v568
  %v5943 = vpop.f32.mrf.mxu0
  %v5944 = vadd.f32 %v5775, %v5943
  %v5945 = vpop.f32.mrf.mxu0
  %v5946 = vadd.f32 %v5777, %v5945
  %5947 = vmatmul.bf16.gmra.mxu0 %v575
  %v5948 = vpop.f32.mrf.mxu0
  %v5949 = vadd.f32 %v5780, %v5948
  %v5950 = vpop.f32.mrf.mxu0
  %v5951 = vadd.f32 %v5782, %v5950
  %5952 = vmatmul.bf16.gmra.mxu0 %v582
  %v5953 = vpop.f32.mrf.mxu0
  %v5954 = vadd.f32 %v5785, %v5953
  %v5955 = vpop.f32.mrf.mxu0
  %v5956 = vadd.f32 %v5787, %v5955
  %5957 = vmatmul.bf16.gmra.mxu0 %v589
  %v5958 = vpop.f32.mrf.mxu0
  %v5959 = vadd.f32 %v5790, %v5958
  %v5960 = vpop.f32.mrf.mxu0
  %v5961 = vadd.f32 %v5792, %v5960
  %5962 = vmatmul.bf16.gmra.mxu0 %v596
  %v5963 = vpop.f32.mrf.mxu0
  %v5964 = vadd.f32 %v5795, %v5963
  %v5965 = vpop.f32.mrf.mxu0
  %v5966 = vadd.f32 %v5797, %v5965
  %5967 = vmatmul.bf16.gmra.mxu0 %v603
  %v5968 = vpop.f32.mrf.mxu0
  %v5969 = vadd.f32 %v5800, %v5968
  %v5970 = vpop.f32.mrf.mxu0
  %v5971 = vadd.f32 %v5802, %v5970
  %5972 = vmatmul.bf16.gmra.mxu0 %v610
  %v5973 = vpop.f32.mrf.mxu0
  %v5974 = vadd.f32 %v5805, %v5973
  %v5975 = vpop.f32.mrf.mxu0
  %v5976 = vadd.f32 %v5807, %v5975
  %5977 = vmatmul.bf16.gmra.mxu0 %v617
  %v5978 = vpop.f32.mrf.mxu0
  %v5979 = vadd.f32 %v5810, %v5978
  %v5980 = vpop.f32.mrf.mxu0
  %v5981 = vadd.f32 %v5812, %v5980
  %5982 = vmatmul.bf16.gmra.mxu0 %v624
  %v5983 = vpop.f32.mrf.mxu0
  %v5984 = vadd.f32 %v5815, %v5983
  %v5985 = vpop.f32.mrf.mxu0
  %v5986 = vadd.f32 %v5817, %v5985
  %5987 = vmatmul.bf16.gmra.mxu0 %v631
  %v5988 = vpop.f32.mrf.mxu0
  %v5989 = vadd.f32 %v5820, %v5988
  %v5990 = vpop.f32.mrf.mxu0
  %v5991 = vadd.f32 %v5822, %v5990
  %5992 = vmatmul.bf16.gmra.mxu0 %v638
  %v5993 = vpop.f32.mrf.mxu0
  %v5994 = vadd.f32 %v5825, %v5993
  %v5995 = vpop.f32.mrf.mxu0
  %v5996 = vadd.f32 %v5827, %v5995
  %5997 = vmatmul.bf16.gmra.mxu0 %v645
  %v5998 = vpop.f32.mrf.mxu0
  %v5999 = vadd.f32 %v5830, %v5998
  %v6000 = vpop.f32.mrf.mxu0
  %v6001 = vadd.f32 %v5832, %v6000
  %6002 = vmatmul.bf16.gmra.mxu0 %v652
  %v6003 = vpop.f32.mrf.mxu0
  %v6004 = vadd.f32 %v5835, %v6003
  %v6005 = vpop.f32.mrf.mxu0
  %v6006 = vadd.f32 %v5837, %v6005
  %6007 = vmatmul.bf16.gmra.mxu0 %v659
  %v6008 = vpop.f32.mrf.mxu0
  %v6009 = vadd.f32 %v5840, %v6008
  %v6010 = vpop.f32.mrf.mxu0
  %v6011 = vadd.f32 %v5842, %v6010
  %6012 = vmatmul.bf16.gmra.mxu0 %v666
  %v6013 = vpop.f32.mrf.mxu0
  %v6014 = vadd.f32 %v5845, %v6013
  %v6015 = vpop.f32.mrf.mxu0
  %v6016 = vadd.f32 %v5847, %v6015
  %6017 = vmatmul.bf16.gmra.mxu0 %v673
  %v6018 = vpop.f32.mrf.mxu0
  %v6019 = vadd.f32 %v5850, %v6018
  %v6020 = vpop.f32.mrf.mxu0
  %v6021 = vadd.f32 %v5852, %v6020
  %6022 = vmatmul.bf16.gmra.mxu0 %v680
  %v6023 = vpop.f32.mrf.mxu0
  %v6024 = vadd.f32 %v5855, %v6023
  %v6025 = vpop.f32.mrf.mxu0
  %v6026 = vadd.f32 %v5857, %v6025
  %6027 = vmatmul.bf16.gmra.mxu0 %v687
  %v6028 = vpop.f32.mrf.mxu0
  %v6029 = vadd.f32 %v5860, %v6028
  %v6030 = vpop.f32.mrf.mxu0
  %v6031 = vadd.f32 %v5862, %v6030
  %6032 = vmatmul.bf16.gmra.mxu0 %v694
  %v6033 = vpop.f32.mrf.mxu0
  %v6034 = vadd.f32 %v5865, %v6033
  %v6035 = vpop.f32.mrf.mxu0
  %v6036 = vadd.f32 %v5867, %v6035
  %6037 = vdwg.mxu0
  %6038 = vmatpush.bf16.msra.mxu0 %v1620
  %6039 = vmatpush.bf16.msra.mxu0 %v1616
  %6040 = vmatpush.bf16.msra.mxu0 %v1612
  %6041 = vmatpush.bf16.msra.mxu0 %v1608
  %6042 = vmatpush.bf16.msra.mxu0 %v1604
  %6043 = vmatpush.bf16.msra.mxu0 %v1600
  %6044 = vmatpush.bf16.msra.mxu0 %v1596
  %6045 = vmatpush.bf16.msra.mxu0 %v1592
  %6046 = vmatmul.bf16.gmra.mxu0 %v478
  %v6047 = vpop.f32.mrf.mxu0
  %v6048 = vadd.f32 %v5879, %v6047
  %v6049 = vpop.f32.mrf.mxu0
  %v6050 = vadd.f32 %v5881, %v6049
  %6051 = vmatmul.bf16.gmra.mxu0 %v485
  %v6052 = vpop.f32.mrf.mxu0
  %v6053 = vadd.f32 %v5884, %v6052
  %v6054 = vpop.f32.mrf.mxu0
  %v6055 = vadd.f32 %v5886, %v6054
  %6056 = vmatmul.bf16.gmra.mxu0 %v492
  %v6057 = vpop.f32.mrf.mxu0
  %v6058 = vadd.f32 %v5889, %v6057
  %v6059 = vpop.f32.mrf.mxu0
  %v6060 = vadd.f32 %v5891, %v6059
  %6061 = vmatmul.bf16.gmra.mxu0 %v499
  %v6062 = vpop.f32.mrf.mxu0
  %v6063 = vadd.f32 %v5894, %v6062
  %v6064 = vpop.f32.mrf.mxu0
  %v6065 = vadd.f32 %v5896, %v6064
  %6066 = vmatmul.bf16.gmra.mxu0 %v506
  %v6067 = vpop.f32.mrf.mxu0
  %v6068 = vadd.f32 %v5899, %v6067
  %v6069 = vpop.f32.mrf.mxu0
  %v6070 = vadd.f32 %v5901, %v6069
  %6071 = vmatmul.bf16.gmra.mxu0 %v513
  %v6072 = vpop.f32.mrf.mxu0
  %v6073 = vadd.f32 %v5904, %v6072
  %v6074 = vpop.f32.mrf.mxu0
  %v6075 = vadd.f32 %v5906, %v6074
  %6076 = vmatmul.bf16.gmra.mxu0 %v520
  %v6077 = vpop.f32.mrf.mxu0
  %v6078 = vadd.f32 %v5909, %v6077
  %v6079 = vpop.f32.mrf.mxu0
  %v6080 = vadd.f32 %v5911, %v6079
  %6081 = vmatmul.bf16.gmra.mxu0 %v527
  %v6082 = vpop.f32.mrf.mxu0
  %v6083 = vadd.f32 %v5914, %v6082
  %v6084 = vpop.f32.mrf.mxu0
  %v6085 = vadd.f32 %v5916, %v6084
  %6086 = vmatmul.bf16.gmra.mxu0 %v534
  %v6087 = vpop.f32.mrf.mxu0
  %v6088 = vadd.f32 %v5919, %v6087
  %v6089 = vpop.f32.mrf.mxu0
  %v6090 = vadd.f32 %v5921, %v6089
  %6091 = vmatmul.bf16.gmra.mxu0 %v541
  %v6092 = vpop.f32.mrf.mxu0
  %v6093 = vadd.f32 %v5924, %v6092
  %v6094 = vpop.f32.mrf.mxu0
  %v6095 = vadd.f32 %v5926, %v6094
  %6096 = vmatmul.bf16.gmra.mxu0 %v548
  %v6097 = vpop.f32.mrf.mxu0
  %v6098 = vadd.f32 %v5929, %v6097
  %v6099 = vpop.f32.mrf.mxu0
  %v6100 = vadd.f32 %v5931, %v6099
  %6101 = vmatmul.bf16.gmra.mxu0 %v555
  %v6102 = vpop.f32.mrf.mxu0
  %v6103 = vadd.f32 %v5934, %v6102
  %v6104 = vpop.f32.mrf.mxu0
  %v6105 = vadd.f32 %v5936, %v6104
  %6106 = vmatmul.bf16.gmra.mxu0 %v562
  %v6107 = vpop.f32.mrf.mxu0
  %v6108 = vadd.f32 %v5939, %v6107
  %v6109 = vpop.f32.mrf.mxu0
  %v6110 = vadd.f32 %v5941, %v6109
  %6111 = vmatmul.bf16.gmra.mxu0 %v569
  %v6112 = vpop.f32.mrf.mxu0
  %v6113 = vadd.f32 %v5944, %v6112
  %v6114 = vpop.f32.mrf.mxu0
  %v6115 = vadd.f32 %v5946, %v6114
  %6116 = vmatmul.bf16.gmra.mxu0 %v576
  %v6117 = vpop.f32.mrf.mxu0
  %v6118 = vadd.f32 %v5949, %v6117
  %v6119 = vpop.f32.mrf.mxu0
  %v6120 = vadd.f32 %v5951, %v6119
  %6121 = vmatmul.bf16.gmra.mxu0 %v583
  %v6122 = vpop.f32.mrf.mxu0
  %v6123 = vadd.f32 %v5954, %v6122
  %v6124 = vpop.f32.mrf.mxu0
  %v6125 = vadd.f32 %v5956, %v6124
  %6126 = vmatmul.bf16.gmra.mxu0 %v590
  %v6127 = vpop.f32.mrf.mxu0
  %v6128 = vadd.f32 %v5959, %v6127
  %v6129 = vpop.f32.mrf.mxu0
  %v6130 = vadd.f32 %v5961, %v6129
  %6131 = vmatmul.bf16.gmra.mxu0 %v597
  %v6132 = vpop.f32.mrf.mxu0
  %v6133 = vadd.f32 %v5964, %v6132
  %v6134 = vpop.f32.mrf.mxu0
  %v6135 = vadd.f32 %v5966, %v6134
  %6136 = vmatmul.bf16.gmra.mxu0 %v604
  %v6137 = vpop.f32.mrf.mxu0
  %v6138 = vadd.f32 %v5969, %v6137
  %v6139 = vpop.f32.mrf.mxu0
  %v6140 = vadd.f32 %v5971, %v6139
  %6141 = vmatmul.bf16.gmra.mxu0 %v611
  %v6142 = vpop.f32.mrf.mxu0
  %v6143 = vadd.f32 %v5974, %v6142
  %v6144 = vpop.f32.mrf.mxu0
  %v6145 = vadd.f32 %v5976, %v6144
  %6146 = vmatmul.bf16.gmra.mxu0 %v618
  %v6147 = vpop.f32.mrf.mxu0
  %v6148 = vadd.f32 %v5979, %v6147
  %v6149 = vpop.f32.mrf.mxu0
  %v6150 = vadd.f32 %v5981, %v6149
  %6151 = vmatmul.bf16.gmra.mxu0 %v625
  %v6152 = vpop.f32.mrf.mxu0
  %v6153 = vadd.f32 %v5984, %v6152
  %v6154 = vpop.f32.mrf.mxu0
  %v6155 = vadd.f32 %v5986, %v6154
  %6156 = vmatmul.bf16.gmra.mxu0 %v632
  %v6157 = vpop.f32.mrf.mxu0
  %v6158 = vadd.f32 %v5989, %v6157
  %v6159 = vpop.f32.mrf.mxu0
  %v6160 = vadd.f32 %v5991, %v6159
  %6161 = vmatmul.bf16.gmra.mxu0 %v639
  %v6162 = vpop.f32.mrf.mxu0
  %v6163 = vadd.f32 %v5994, %v6162
  %v6164 = vpop.f32.mrf.mxu0
  %v6165 = vadd.f32 %v5996, %v6164
  %6166 = vmatmul.bf16.gmra.mxu0 %v646
  %v6167 = vpop.f32.mrf.mxu0
  %v6168 = vadd.f32 %v5999, %v6167
  %v6169 = vpop.f32.mrf.mxu0
  %v6170 = vadd.f32 %v6001, %v6169
  %6171 = vmatmul.bf16.gmra.mxu0 %v653
  %v6172 = vpop.f32.mrf.mxu0
  %v6173 = vadd.f32 %v6004, %v6172
  %v6174 = vpop.f32.mrf.mxu0
  %v6175 = vadd.f32 %v6006, %v6174
  %6176 = vmatmul.bf16.gmra.mxu0 %v660
  %v6177 = vpop.f32.mrf.mxu0
  %v6178 = vadd.f32 %v6009, %v6177
  %v6179 = vpop.f32.mrf.mxu0
  %v6180 = vadd.f32 %v6011, %v6179
  %6181 = vmatmul.bf16.gmra.mxu0 %v667
  %v6182 = vpop.f32.mrf.mxu0
  %v6183 = vadd.f32 %v6014, %v6182
  %v6184 = vpop.f32.mrf.mxu0
  %v6185 = vadd.f32 %v6016, %v6184
  %6186 = vmatmul.bf16.gmra.mxu0 %v674
  %v6187 = vpop.f32.mrf.mxu0
  %v6188 = vadd.f32 %v6019, %v6187
  %v6189 = vpop.f32.mrf.mxu0
  %v6190 = vadd.f32 %v6021, %v6189
  %6191 = vmatmul.bf16.gmra.mxu0 %v681
  %v6192 = vpop.f32.mrf.mxu0
  %v6193 = vadd.f32 %v6024, %v6192
  %v6194 = vpop.f32.mrf.mxu0
  %v6195 = vadd.f32 %v6026, %v6194
  %6196 = vmatmul.bf16.gmra.mxu0 %v688
  %v6197 = vpop.f32.mrf.mxu0
  %v6198 = vadd.f32 %v6029, %v6197
  %v6199 = vpop.f32.mrf.mxu0
  %v6200 = vadd.f32 %v6031, %v6199
  %6201 = vmatmul.bf16.gmra.mxu0 %v695
  %v6202 = vpop.f32.mrf.mxu0
  %v6203 = vadd.f32 %v6034, %v6202
  %v6204 = vpop.f32.mrf.mxu0
  %v6205 = vadd.f32 %v6036, %v6204
  %6206 = vdwg.mxu0
  %6207 = vmatpush.bf16.msra.mxu0 %v1652
  %6208 = vmatpush.bf16.msra.mxu0 %v1648
  %6209 = vmatpush.bf16.msra.mxu0 %v1644
  %6210 = vmatpush.bf16.msra.mxu0 %v1640
  %6211 = vmatpush.bf16.msra.mxu0 %v1636
  %6212 = vmatpush.bf16.msra.mxu0 %v1632
  %6213 = vmatpush.bf16.msra.mxu0 %v1628
  %6214 = vmatpush.bf16.msra.mxu0 %v1624
  %6215 = vmatmul.bf16.gmra.mxu0 %v479
  %v6216 = vpop.f32.mrf.mxu0
  %v6217 = vadd.f32 %v6048, %v6216
  %v6218 = vpop.f32.mrf.mxu0
  %v6219 = vadd.f32 %v6050, %v6218
  %6220 = vmatmul.bf16.gmra.mxu0 %v486
  %v6221 = vpop.f32.mrf.mxu0
  %v6222 = vadd.f32 %v6053, %v6221
  %v6223 = vpop.f32.mrf.mxu0
  %v6224 = vadd.f32 %v6055, %v6223
  %6225 = vmatmul.bf16.gmra.mxu0 %v493
  %v6226 = vpop.f32.mrf.mxu0
  %v6227 = vadd.f32 %v6058, %v6226
  %v6228 = vpop.f32.mrf.mxu0
  %v6229 = vadd.f32 %v6060, %v6228
  %6230 = vmatmul.bf16.gmra.mxu0 %v500
  %v6231 = vpop.f32.mrf.mxu0
  %v6232 = vadd.f32 %v6063, %v6231
  %v6233 = vpop.f32.mrf.mxu0
  %v6234 = vadd.f32 %v6065, %v6233
  %6235 = vmatmul.bf16.gmra.mxu0 %v507
  %v6236 = vpop.f32.mrf.mxu0
  %v6237 = vadd.f32 %v6068, %v6236
  %v6238 = vpop.f32.mrf.mxu0
  %v6239 = vadd.f32 %v6070, %v6238
  %6240 = vmatmul.bf16.gmra.mxu0 %v514
  %v6241 = vpop.f32.mrf.mxu0
  %v6242 = vadd.f32 %v6073, %v6241
  %v6243 = vpop.f32.mrf.mxu0
  %v6244 = vadd.f32 %v6075, %v6243
  %6245 = vmatmul.bf16.gmra.mxu0 %v521
  %v6246 = vpop.f32.mrf.mxu0
  %v6247 = vadd.f32 %v6078, %v6246
  %v6248 = vpop.f32.mrf.mxu0
  %v6249 = vadd.f32 %v6080, %v6248
  %6250 = vmatmul.bf16.gmra.mxu0 %v528
  %v6251 = vpop.f32.mrf.mxu0
  %v6252 = vadd.f32 %v6083, %v6251
  %v6253 = vpop.f32.mrf.mxu0
  %v6254 = vadd.f32 %v6085, %v6253
  %6255 = vmatmul.bf16.gmra.mxu0 %v535
  %v6256 = vpop.f32.mrf.mxu0
  %v6257 = vadd.f32 %v6088, %v6256
  %v6258 = vpop.f32.mrf.mxu0
  %v6259 = vadd.f32 %v6090, %v6258
  %6260 = vmatmul.bf16.gmra.mxu0 %v542
  %v6261 = vpop.f32.mrf.mxu0
  %v6262 = vadd.f32 %v6093, %v6261
  %v6263 = vpop.f32.mrf.mxu0
  %v6264 = vadd.f32 %v6095, %v6263
  %6265 = vmatmul.bf16.gmra.mxu0 %v549
  %v6266 = vpop.f32.mrf.mxu0
  %v6267 = vadd.f32 %v6098, %v6266
  %v6268 = vpop.f32.mrf.mxu0
  %v6269 = vadd.f32 %v6100, %v6268
  %6270 = vmatmul.bf16.gmra.mxu0 %v556
  %v6271 = vpop.f32.mrf.mxu0
  %v6272 = vadd.f32 %v6103, %v6271
  %v6273 = vpop.f32.mrf.mxu0
  %v6274 = vadd.f32 %v6105, %v6273
  %6275 = vmatmul.bf16.gmra.mxu0 %v563
  %v6276 = vpop.f32.mrf.mxu0
  %v6277 = vadd.f32 %v6108, %v6276
  %v6278 = vpop.f32.mrf.mxu0
  %v6279 = vadd.f32 %v6110, %v6278
  %6280 = vmatmul.bf16.gmra.mxu0 %v570
  %v6281 = vpop.f32.mrf.mxu0
  %v6282 = vadd.f32 %v6113, %v6281
  %v6283 = vpop.f32.mrf.mxu0
  %v6284 = vadd.f32 %v6115, %v6283
  %6285 = vmatmul.bf16.gmra.mxu0 %v577
  %v6286 = vpop.f32.mrf.mxu0
  %v6287 = vadd.f32 %v6118, %v6286
  %v6288 = vpop.f32.mrf.mxu0
  %v6289 = vadd.f32 %v6120, %v6288
  %6290 = vmatmul.bf16.gmra.mxu0 %v584
  %v6291 = vpop.f32.mrf.mxu0
  %v6292 = vadd.f32 %v6123, %v6291
  %v6293 = vpop.f32.mrf.mxu0
  %v6294 = vadd.f32 %v6125, %v6293
  %6295 = vmatmul.bf16.gmra.mxu0 %v591
  %v6296 = vpop.f32.mrf.mxu0
  %v6297 = vadd.f32 %v6128, %v6296
  %v6298 = vpop.f32.mrf.mxu0
  %v6299 = vadd.f32 %v6130, %v6298
  %6300 = vmatmul.bf16.gmra.mxu0 %v598
  %v6301 = vpop.f32.mrf.mxu0
  %v6302 = vadd.f32 %v6133, %v6301
  %v6303 = vpop.f32.mrf.mxu0
  %v6304 = vadd.f32 %v6135, %v6303
  %6305 = vmatmul.bf16.gmra.mxu0 %v605
  %v6306 = vpop.f32.mrf.mxu0
  %v6307 = vadd.f32 %v6138, %v6306
  %v6308 = vpop.f32.mrf.mxu0
  %v6309 = vadd.f32 %v6140, %v6308
  %6310 = vmatmul.bf16.gmra.mxu0 %v612
  %v6311 = vpop.f32.mrf.mxu0
  %v6312 = vadd.f32 %v6143, %v6311
  %v6313 = vpop.f32.mrf.mxu0
  %v6314 = vadd.f32 %v6145, %v6313
  %6315 = vmatmul.bf16.gmra.mxu0 %v619
  %v6316 = vpop.f32.mrf.mxu0
  %v6317 = vadd.f32 %v6148, %v6316
  %v6318 = vpop.f32.mrf.mxu0
  %v6319 = vadd.f32 %v6150, %v6318
  %6320 = vmatmul.bf16.gmra.mxu0 %v626
  %v6321 = vpop.f32.mrf.mxu0
  %v6322 = vadd.f32 %v6153, %v6321
  %v6323 = vpop.f32.mrf.mxu0
  %v6324 = vadd.f32 %v6155, %v6323
  %6325 = vmatmul.bf16.gmra.mxu0 %v633
  %v6326 = vpop.f32.mrf.mxu0
  %v6327 = vadd.f32 %v6158, %v6326
  %v6328 = vpop.f32.mrf.mxu0
  %v6329 = vadd.f32 %v6160, %v6328
  %6330 = vmatmul.bf16.gmra.mxu0 %v640
  %v6331 = vpop.f32.mrf.mxu0
  %v6332 = vadd.f32 %v6163, %v6331
  %v6333 = vpop.f32.mrf.mxu0
  %v6334 = vadd.f32 %v6165, %v6333
  %6335 = vmatmul.bf16.gmra.mxu0 %v647
  %v6336 = vpop.f32.mrf.mxu0
  %v6337 = vadd.f32 %v6168, %v6336
  %v6338 = vpop.f32.mrf.mxu0
  %v6339 = vadd.f32 %v6170, %v6338
  %6340 = vmatmul.bf16.gmra.mxu0 %v654
  %v6341 = vpop.f32.mrf.mxu0
  %v6342 = vadd.f32 %v6173, %v6341
  %v6343 = vpop.f32.mrf.mxu0
  %v6344 = vadd.f32 %v6175, %v6343
  %6345 = vmatmul.bf16.gmra.mxu0 %v661
  %v6346 = vpop.f32.mrf.mxu0
  %v6347 = vadd.f32 %v6178, %v6346
  %v6348 = vpop.f32.mrf.mxu0
  %v6349 = vadd.f32 %v6180, %v6348
  %6350 = vmatmul.bf16.gmra.mxu0 %v668
  %v6351 = vpop.f32.mrf.mxu0
  %v6352 = vadd.f32 %v6183, %v6351
  %v6353 = vpop.f32.mrf.mxu0
  %v6354 = vadd.f32 %v6185, %v6353
  %6355 = vmatmul.bf16.gmra.mxu0 %v675
  %v6356 = vpop.f32.mrf.mxu0
  %v6357 = vadd.f32 %v6188, %v6356
  %v6358 = vpop.f32.mrf.mxu0
  %v6359 = vadd.f32 %v6190, %v6358
  %6360 = vmatmul.bf16.gmra.mxu0 %v682
  %v6361 = vpop.f32.mrf.mxu0
  %v6362 = vadd.f32 %v6193, %v6361
  %v6363 = vpop.f32.mrf.mxu0
  %v6364 = vadd.f32 %v6195, %v6363
  %6365 = vmatmul.bf16.gmra.mxu0 %v689
  %v6366 = vpop.f32.mrf.mxu0
  %v6367 = vadd.f32 %v6198, %v6366
  %v6368 = vpop.f32.mrf.mxu0
  %v6369 = vadd.f32 %v6200, %v6368
  %6370 = vmatmul.bf16.gmra.mxu0 %v696
  %v6371 = vpop.f32.mrf.mxu0
  %v6372 = vadd.f32 %v6203, %v6371
  %v6373 = vpop.f32.mrf.mxu0
  %v6374 = vadd.f32 %v6205, %v6373
  %6375 = vdwg.mxu0
  %6376 = vmatpush.bf16.msra.mxu0 %v1684
  %6377 = vmatpush.bf16.msra.mxu0 %v1680
  %6378 = vmatpush.bf16.msra.mxu0 %v1676
  %6379 = vmatpush.bf16.msra.mxu0 %v1672
  %6380 = vmatpush.bf16.msra.mxu0 %v1668
  %6381 = vmatpush.bf16.msra.mxu0 %v1664
  %6382 = vmatpush.bf16.msra.mxu0 %v1660
  %6383 = vmatpush.bf16.msra.mxu0 %v1656
  %6384 = vmatmul.bf16.gmra.mxu0 %v480
  %v6385 = vpop.f32.mrf.mxu0
  %v6386 = vadd.f32 %v6217, %v6385
  %v6387 = vpop.f32.mrf.mxu0
  %v6388 = vadd.f32 %v6219, %v6387
  %6389 = vmatmul.bf16.gmra.mxu0 %v487
  %v6390 = vpop.f32.mrf.mxu0
  %v6391 = vadd.f32 %v6222, %v6390
  %v6392 = vpop.f32.mrf.mxu0
  %v6393 = vadd.f32 %v6224, %v6392
  %6394 = vmatmul.bf16.gmra.mxu0 %v494
  %v6395 = vpop.f32.mrf.mxu0
  %v6396 = vadd.f32 %v6227, %v6395
  %v6397 = vpop.f32.mrf.mxu0
  %v6398 = vadd.f32 %v6229, %v6397
  %6399 = vmatmul.bf16.gmra.mxu0 %v501
  %v6400 = vpop.f32.mrf.mxu0
  %v6401 = vadd.f32 %v6232, %v6400
  %v6402 = vpop.f32.mrf.mxu0
  %v6403 = vadd.f32 %v6234, %v6402
  %6404 = vmatmul.bf16.gmra.mxu0 %v508
  %v6405 = vpop.f32.mrf.mxu0
  %v6406 = vadd.f32 %v6237, %v6405
  %v6407 = vpop.f32.mrf.mxu0
  %v6408 = vadd.f32 %v6239, %v6407
  %6409 = vmatmul.bf16.gmra.mxu0 %v515
  %v6410 = vpop.f32.mrf.mxu0
  %v6411 = vadd.f32 %v6242, %v6410
  %v6412 = vpop.f32.mrf.mxu0
  %v6413 = vadd.f32 %v6244, %v6412
  %6414 = vmatmul.bf16.gmra.mxu0 %v522
  %v6415 = vpop.f32.mrf.mxu0
  %v6416 = vadd.f32 %v6247, %v6415
  %v6417 = vpop.f32.mrf.mxu0
  %v6418 = vadd.f32 %v6249, %v6417
  %6419 = vmatmul.bf16.gmra.mxu0 %v529
  %v6420 = vpop.f32.mrf.mxu0
  %v6421 = vadd.f32 %v6252, %v6420
  %v6422 = vpop.f32.mrf.mxu0
  %v6423 = vadd.f32 %v6254, %v6422
  %6424 = vmatmul.bf16.gmra.mxu0 %v536
  %v6425 = vpop.f32.mrf.mxu0
  %v6426 = vadd.f32 %v6257, %v6425
  %v6427 = vpop.f32.mrf.mxu0
  %v6428 = vadd.f32 %v6259, %v6427
  %6429 = vmatmul.bf16.gmra.mxu0 %v543
  %v6430 = vpop.f32.mrf.mxu0
  %v6431 = vadd.f32 %v6262, %v6430
  %v6432 = vpop.f32.mrf.mxu0
  %v6433 = vadd.f32 %v6264, %v6432
  %6434 = vmatmul.bf16.gmra.mxu0 %v550
  %v6435 = vpop.f32.mrf.mxu0
  %v6436 = vadd.f32 %v6267, %v6435
  %v6437 = vpop.f32.mrf.mxu0
  %v6438 = vadd.f32 %v6269, %v6437
  %6439 = vmatmul.bf16.gmra.mxu0 %v557
  %v6440 = vpop.f32.mrf.mxu0
  %v6441 = vadd.f32 %v6272, %v6440
  %v6442 = vpop.f32.mrf.mxu0
  %v6443 = vadd.f32 %v6274, %v6442
  %6444 = vmatmul.bf16.gmra.mxu0 %v564
  %v6445 = vpop.f32.mrf.mxu0
  %v6446 = vadd.f32 %v6277, %v6445
  %v6447 = vpop.f32.mrf.mxu0
  %v6448 = vadd.f32 %v6279, %v6447
  %6449 = vmatmul.bf16.gmra.mxu0 %v571
  %v6450 = vpop.f32.mrf.mxu0
  %v6451 = vadd.f32 %v6282, %v6450
  %v6452 = vpop.f32.mrf.mxu0
  %v6453 = vadd.f32 %v6284, %v6452
  %6454 = vmatmul.bf16.gmra.mxu0 %v578
  %v6455 = vpop.f32.mrf.mxu0
  %v6456 = vadd.f32 %v6287, %v6455
  %v6457 = vpop.f32.mrf.mxu0
  %v6458 = vadd.f32 %v6289, %v6457
  %6459 = vmatmul.bf16.gmra.mxu0 %v585
  %v6460 = vpop.f32.mrf.mxu0
  %v6461 = vadd.f32 %v6292, %v6460
  %v6462 = vpop.f32.mrf.mxu0
  %v6463 = vadd.f32 %v6294, %v6462
  %6464 = vmatmul.bf16.gmra.mxu0 %v592
  %v6465 = vpop.f32.mrf.mxu0
  %v6466 = vadd.f32 %v6297, %v6465
  %v6467 = vpop.f32.mrf.mxu0
  %v6468 = vadd.f32 %v6299, %v6467
  %6469 = vmatmul.bf16.gmra.mxu0 %v599
  %v6470 = vpop.f32.mrf.mxu0
  %v6471 = vadd.f32 %v6302, %v6470
  %v6472 = vpop.f32.mrf.mxu0
  %v6473 = vadd.f32 %v6304, %v6472
  %6474 = vmatmul.bf16.gmra.mxu0 %v606
  %v6475 = vpop.f32.mrf.mxu0
  %v6476 = vadd.f32 %v6307, %v6475
  %v6477 = vpop.f32.mrf.mxu0
  %v6478 = vadd.f32 %v6309, %v6477
  %6479 = vmatmul.bf16.gmra.mxu0 %v613
  %v6480 = vpop.f32.mrf.mxu0
  %v6481 = vadd.f32 %v6312, %v6480
  %v6482 = vpop.f32.mrf.mxu0
  %v6483 = vadd.f32 %v6314, %v6482
  %6484 = vmatmul.bf16.gmra.mxu0 %v620
  %v6485 = vpop.f32.mrf.mxu0
  %v6486 = vadd.f32 %v6317, %v6485
  %v6487 = vpop.f32.mrf.mxu0
  %v6488 = vadd.f32 %v6319, %v6487
  %6489 = vmatmul.bf16.gmra.mxu0 %v627
  %v6490 = vpop.f32.mrf.mxu0
  %v6491 = vadd.f32 %v6322, %v6490
  %v6492 = vpop.f32.mrf.mxu0
  %v6493 = vadd.f32 %v6324, %v6492
  %6494 = vmatmul.bf16.gmra.mxu0 %v634
  %v6495 = vpop.f32.mrf.mxu0
  %v6496 = vadd.f32 %v6327, %v6495
  %v6497 = vpop.f32.mrf.mxu0
  %v6498 = vadd.f32 %v6329, %v6497
  %6499 = vmatmul.bf16.gmra.mxu0 %v641
  %v6500 = vpop.f32.mrf.mxu0
  %v6501 = vadd.f32 %v6332, %v6500
  %v6502 = vpop.f32.mrf.mxu0
  %v6503 = vadd.f32 %v6334, %v6502
  %6504 = vmatmul.bf16.gmra.mxu0 %v648
  %v6505 = vpop.f32.mrf.mxu0
  %v6506 = vadd.f32 %v6337, %v6505
  %v6507 = vpop.f32.mrf.mxu0
  %v6508 = vadd.f32 %v6339, %v6507
  %6509 = vmatmul.bf16.gmra.mxu0 %v655
  %v6510 = vpop.f32.mrf.mxu0
  %v6511 = vadd.f32 %v6342, %v6510
  %v6512 = vpop.f32.mrf.mxu0
  %v6513 = vadd.f32 %v6344, %v6512
  %6514 = vmatmul.bf16.gmra.mxu0 %v662
  %v6515 = vpop.f32.mrf.mxu0
  %v6516 = vadd.f32 %v6347, %v6515
  %v6517 = vpop.f32.mrf.mxu0
  %v6518 = vadd.f32 %v6349, %v6517
  %6519 = vmatmul.bf16.gmra.mxu0 %v669
  %v6520 = vpop.f32.mrf.mxu0
  %v6521 = vadd.f32 %v6352, %v6520
  %v6522 = vpop.f32.mrf.mxu0
  %v6523 = vadd.f32 %v6354, %v6522
  %6524 = vmatmul.bf16.gmra.mxu0 %v676
  %v6525 = vpop.f32.mrf.mxu0
  %v6526 = vadd.f32 %v6357, %v6525
  %v6527 = vpop.f32.mrf.mxu0
  %v6528 = vadd.f32 %v6359, %v6527
  %6529 = vmatmul.bf16.gmra.mxu0 %v683
  %v6530 = vpop.f32.mrf.mxu0
  %v6531 = vadd.f32 %v6362, %v6530
  %v6532 = vpop.f32.mrf.mxu0
  %v6533 = vadd.f32 %v6364, %v6532
  %6534 = vmatmul.bf16.gmra.mxu0 %v690
  %v6535 = vpop.f32.mrf.mxu0
  %v6536 = vadd.f32 %v6367, %v6535
  %v6537 = vpop.f32.mrf.mxu0
  %v6538 = vadd.f32 %v6369, %v6537
  %6539 = vmatmul.bf16.gmra.mxu0 %v697
  %v6540 = vpop.f32.mrf.mxu0
  %v6541 = vadd.f32 %v6372, %v6540
  %v6542 = vpop.f32.mrf.mxu0
  %v6543 = vadd.f32 %v6374, %v6542
  %6544 = vdwg.mxu0
  %6545 = vmatpush.bf16.msra.mxu0 0
  %6546 = vmatpush.bf16.msra.mxu0 0
  %6547 = vmatpush.bf16.msra.mxu0 0
  %6548 = vmatpush.bf16.msra.mxu0 0
  %6549 = vmatpush.bf16.msra.mxu0 0
  %6550 = vmatpush.bf16.msra.mxu0 0
  %6551 = vmatpush.bf16.msra.mxu0 0
  %6552 = vmatpush.bf16.msra.mxu0 %v1688
  %6553 = vmatmul.bf16.gmra.mxu0 %v1887
  %v6554 = vpop.f32.mrf.mxu0
  %v6555 = vadd.f32 %v6386, %v6554
  %v6556 = vpop.f32.mrf.mxu0
  %v6557 = vadd.f32 %v6388, %v6556
  %6558 = vmatmul.bf16.gmra.mxu0 %v1890
  %v6559 = vpop.f32.mrf.mxu0
  %v6560 = vadd.f32 %v6391, %v6559
  %v6561 = vpop.f32.mrf.mxu0
  %v6562 = vadd.f32 %v6393, %v6561
  %6563 = vmatmul.bf16.gmra.mxu0 %v1893
  %v6564 = vpop.f32.mrf.mxu0
  %v6565 = vadd.f32 %v6396, %v6564
  %v6566 = vpop.f32.mrf.mxu0
  %v6567 = vadd.f32 %v6398, %v6566
  %6568 = vmatmul.bf16.gmra.mxu0 %v1896
  %v6569 = vpop.f32.mrf.mxu0
  %v6570 = vadd.f32 %v6401, %v6569
  %v6571 = vpop.f32.mrf.mxu0
  %v6572 = vadd.f32 %v6403, %v6571
  %6573 = vmatmul.bf16.gmra.mxu0 %v1899
  %v6574 = vpop.f32.mrf.mxu0
  %v6575 = vadd.f32 %v6406, %v6574
  %v6576 = vpop.f32.mrf.mxu0
  %v6577 = vadd.f32 %v6408, %v6576
  %6578 = vmatmul.bf16.gmra.mxu0 %v1902
  %v6579 = vpop.f32.mrf.mxu0
  %v6580 = vadd.f32 %v6411, %v6579
  %v6581 = vpop.f32.mrf.mxu0
  %v6582 = vadd.f32 %v6413, %v6581
  %6583 = vmatmul.bf16.gmra.mxu0 %v1905
  %v6584 = vpop.f32.mrf.mxu0
  %v6585 = vadd.f32 %v6416, %v6584
  %v6586 = vpop.f32.mrf.mxu0
  %v6587 = vadd.f32 %v6418, %v6586
  %6588 = vmatmul.bf16.gmra.mxu0 %v1908
  %v6589 = vpop.f32.mrf.mxu0
  %v6590 = vadd.f32 %v6421, %v6589
  %v6591 = vpop.f32.mrf.mxu0
  %v6592 = vadd.f32 %v6423, %v6591
  %6593 = vmatmul.bf16.gmra.mxu0 %v1911
  %v6594 = vpop.f32.mrf.mxu0
  %v6595 = vadd.f32 %v6426, %v6594
  %v6596 = vpop.f32.mrf.mxu0
  %v6597 = vadd.f32 %v6428, %v6596
  %6598 = vmatmul.bf16.gmra.mxu0 %v1914
  %v6599 = vpop.f32.mrf.mxu0
  %v6600 = vadd.f32 %v6431, %v6599
  %v6601 = vpop.f32.mrf.mxu0
  %v6602 = vadd.f32 %v6433, %v6601
  %6603 = vmatmul.bf16.gmra.mxu0 %v1917
  %v6604 = vpop.f32.mrf.mxu0
  %v6605 = vadd.f32 %v6436, %v6604
  %v6606 = vpop.f32.mrf.mxu0
  %v6607 = vadd.f32 %v6438, %v6606
  %6608 = vmatmul.bf16.gmra.mxu0 %v1920
  %v6609 = vpop.f32.mrf.mxu0
  %v6610 = vadd.f32 %v6441, %v6609
  %v6611 = vpop.f32.mrf.mxu0
  %v6612 = vadd.f32 %v6443, %v6611
  %6613 = vmatmul.bf16.gmra.mxu0 %v1923
  %v6614 = vpop.f32.mrf.mxu0
  %v6615 = vadd.f32 %v6446, %v6614
  %v6616 = vpop.f32.mrf.mxu0
  %v6617 = vadd.f32 %v6448, %v6616
  %6618 = vmatmul.bf16.gmra.mxu0 %v1926
  %v6619 = vpop.f32.mrf.mxu0
  %v6620 = vadd.f32 %v6451, %v6619
  %v6621 = vpop.f32.mrf.mxu0
  %v6622 = vadd.f32 %v6453, %v6621
  %6623 = vmatmul.bf16.gmra.mxu0 %v1929
  %v6624 = vpop.f32.mrf.mxu0
  %v6625 = vadd.f32 %v6456, %v6624
  %v6626 = vpop.f32.mrf.mxu0
  %v6627 = vadd.f32 %v6458, %v6626
  %6628 = vmatmul.bf16.gmra.mxu0 %v1932
  %v6629 = vpop.f32.mrf.mxu0
  %v6630 = vadd.f32 %v6461, %v6629
  %v6631 = vpop.f32.mrf.mxu0
  %v6632 = vadd.f32 %v6463, %v6631
  %6633 = vmatmul.bf16.gmra.mxu0 %v1935
  %v6634 = vpop.f32.mrf.mxu0
  %v6635 = vadd.f32 %v6466, %v6634
  %v6636 = vpop.f32.mrf.mxu0
  %v6637 = vadd.f32 %v6468, %v6636
  %6638 = vmatmul.bf16.gmra.mxu0 %v1938
  %v6639 = vpop.f32.mrf.mxu0
  %v6640 = vadd.f32 %v6471, %v6639
  %v6641 = vpop.f32.mrf.mxu0
  %v6642 = vadd.f32 %v6473, %v6641
  %6643 = vmatmul.bf16.gmra.mxu0 %v1941
  %v6644 = vpop.f32.mrf.mxu0
  %v6645 = vadd.f32 %v6476, %v6644
  %v6646 = vpop.f32.mrf.mxu0
  %v6647 = vadd.f32 %v6478, %v6646
  %6648 = vmatmul.bf16.gmra.mxu0 %v1944
  %v6649 = vpop.f32.mrf.mxu0
  %v6650 = vadd.f32 %v6481, %v6649
  %v6651 = vpop.f32.mrf.mxu0
  %v6652 = vadd.f32 %v6483, %v6651
  %6653 = vmatmul.bf16.gmra.mxu0 %v1947
  %v6654 = vpop.f32.mrf.mxu0
  %v6655 = vadd.f32 %v6486, %v6654
  %v6656 = vpop.f32.mrf.mxu0
  %v6657 = vadd.f32 %v6488, %v6656
  %6658 = vmatmul.bf16.gmra.mxu0 %v1950
  %v6659 = vpop.f32.mrf.mxu0
  %v6660 = vadd.f32 %v6491, %v6659
  %v6661 = vpop.f32.mrf.mxu0
  %v6662 = vadd.f32 %v6493, %v6661
  %6663 = vmatmul.bf16.gmra.mxu0 %v1953
  %v6664 = vpop.f32.mrf.mxu0
  %v6665 = vadd.f32 %v6496, %v6664
  %v6666 = vpop.f32.mrf.mxu0
  %v6667 = vadd.f32 %v6498, %v6666
  %6668 = vmatmul.bf16.gmra.mxu0 %v1956
  %v6669 = vpop.f32.mrf.mxu0
  %v6670 = vadd.f32 %v6501, %v6669
  %v6671 = vpop.f32.mrf.mxu0
  %v6672 = vadd.f32 %v6503, %v6671
  %6673 = vmatmul.bf16.gmra.mxu0 %v1959
  %v6674 = vpop.f32.mrf.mxu0
  %v6675 = vadd.f32 %v6506, %v6674
  %v6676 = vpop.f32.mrf.mxu0
  %v6677 = vadd.f32 %v6508, %v6676
  %6678 = vmatmul.bf16.gmra.mxu0 %v1962
  %v6679 = vpop.f32.mrf.mxu0
  %v6680 = vadd.f32 %v6511, %v6679
  %v6681 = vpop.f32.mrf.mxu0
  %v6682 = vadd.f32 %v6513, %v6681
  %6683 = vmatmul.bf16.gmra.mxu0 %v1965
  %v6684 = vpop.f32.mrf.mxu0
  %v6685 = vadd.f32 %v6516, %v6684
  %v6686 = vpop.f32.mrf.mxu0
  %v6687 = vadd.f32 %v6518, %v6686
  %6688 = vmatmul.bf16.gmra.mxu0 %v1968
  %v6689 = vpop.f32.mrf.mxu0
  %v6690 = vadd.f32 %v6521, %v6689
  %v6691 = vpop.f32.mrf.mxu0
  %v6692 = vadd.f32 %v6523, %v6691
  %6693 = vmatmul.bf16.gmra.mxu0 %v1971
  %v6694 = vpop.f32.mrf.mxu0
  %v6695 = vadd.f32 %v6526, %v6694
  %v6696 = vpop.f32.mrf.mxu0
  %v6697 = vadd.f32 %v6528, %v6696
  %6698 = vmatmul.bf16.gmra.mxu0 %v1974
  %v6699 = vpop.f32.mrf.mxu0
  %v6700 = vadd.f32 %v6531, %v6699
  %v6701 = vpop.f32.mrf.mxu0
  %v6702 = vadd.f32 %v6533, %v6701
  %6703 = vmatmul.bf16.gmra.mxu0 %v1977
  %v6704 = vpop.f32.mrf.mxu0
  %v6705 = vadd.f32 %v6536, %v6704
  %v6706 = vpop.f32.mrf.mxu0
  %v6707 = vadd.f32 %v6538, %v6706
  %6708 = vmatmul.bf16.gmra.mxu0 %v1980
  %v6709 = vpop.f32.mrf.mxu0
  %v6710 = vadd.f32 %v6541, %v6709
  %v6711 = vpop.f32.mrf.mxu0
  %v6712 = vadd.f32 %v6543, %v6711
  %6713 = vdwg.mxu0
  %v6714 = vmax.f32 %v3006, 0.0
  %v6715 = vmax.f32 %v4189, 0.0
  %v6716 = vmax.f32 %v5372, 0.0
  %v6717 = vmax.f32 %v6555, 0.0
  %v6718 = vmax.f32 %v3008, 0.0
  %v6719 = vmax.f32 %v4191, 0.0
  %v6720 = vmax.f32 %v5374, 0.0
  %v6721 = vmax.f32 %v6557, 0.0
  %v6722 = vmax.f32 %v3011, 0.0
  %v6723 = vmax.f32 %v4194, 0.0
  %v6724 = vmax.f32 %v5377, 0.0
  %v6725 = vmax.f32 %v6560, 0.0
  %v6726 = vmax.f32 %v3013, 0.0
  %v6727 = vmax.f32 %v4196, 0.0
  %v6728 = vmax.f32 %v5379, 0.0
  %v6729 = vmax.f32 %v6562, 0.0
  %v6730 = vmax.f32 %v3016, 0.0
  %v6731 = vmax.f32 %v4199, 0.0
  %v6732 = vmax.f32 %v5382, 0.0
  %v6733 = vmax.f32 %v6565, 0.0
  %v6734 = vmax.f32 %v3018, 0.0
  %v6735 = vmax.f32 %v4201, 0.0
  %v6736 = vmax.f32 %v5384, 0.0
  %v6737 = vmax.f32 %v6567, 0.0
  %v6738 = vmax.f32 %v3021, 0.0
  %v6739 = vmax.f32 %v4204, 0.0
  %v6740 = vmax.f32 %v5387, 0.0
  %v6741 = vmax.f32 %v6570, 0.0
  %v6742 = vmax.f32 %v3023, 0.0
  %v6743 = vmax.f32 %v4206, 0.0
  %v6744 = vmax.f32 %v5389, 0.0
  %v6745 = vmax.f32 %v6572, 0.0
  %v6746 = vmax.f32 %v3026, 0.0
  %v6747 = vmax.f32 %v4209, 0.0
  %v6748 = vmax.f32 %v5392, 0.0
  %v6749 = vmax.f32 %v6575, 0.0
  %v6750 = vmax.f32 %v3028, 0.0
  %v6751 = vmax.f32 %v4211, 0.0
  %v6752 = vmax.f32 %v5394, 0.0
  %v6753 = vmax.f32 %v6577, 0.0
  %v6754 = vmax.f32 %v3031, 0.0
  %v6755 = vmax.f32 %v4214, 0.0
  %v6756 = vmax.f32 %v5397, 0.0
  %v6757 = vmax.f32 %v6580, 0.0
  %v6758 = vmax.f32 %v3033, 0.0
  %v6759 = vmax.f32 %v4216, 0.0
  %v6760 = vmax.f32 %v5399, 0.0
  %v6761 = vmax.f32 %v6582, 0.0
  %v6762 = vmax.f32 %v3036, 0.0
  %v6763 = vmax.f32 %v4219, 0.0
  %v6764 = vmax.f32 %v5402, 0.0
  %v6765 = vmax.f32 %v6585, 0.0
  %v6766 = vmax.f32 %v3038, 0.0
  %v6767 = vmax.f32 %v4221, 0.0
  %v6768 = vmax.f32 %v5404, 0.0
  %v6769 = vmax.f32 %v6587, 0.0
  %v6770 = vmax.f32 %v3041, 0.0
  %v6771 = vmax.f32 %v4224, 0.0
  %v6772 = vmax.f32 %v5407, 0.0
  %v6773 = vmax.f32 %v6590, 0.0
  %v6774 = vmax.f32 %v3043, 0.0
  %v6775 = vmax.f32 %v4226, 0.0
  %v6776 = vmax.f32 %v5409, 0.0
  %v6777 = vmax.f32 %v6592, 0.0
  %v6778 = vmax.f32 %v3046, 0.0
  %v6779 = vmax.f32 %v4229, 0.0
  %v6780 = vmax.f32 %v5412, 0.0
  %v6781 = vmax.f32 %v6595, 0.0
  %v6782 = vmax.f32 %v3048, 0.0
  %v6783 = vmax.f32 %v4231, 0.0
  %v6784 = vmax.f32 %v5414, 0.0
  %v6785 = vmax.f32 %v6597, 0.0
  %v6786 = vmax.f32 %v3051, 0.0
  %v6787 = vmax.f32 %v4234, 0.0
  %v6788 = vmax.f32 %v5417, 0.0
  %v6789 = vmax.f32 %v6600, 0.0
  %v6790 = vmax.f32 %v3053, 0.0
  %v6791 = vmax.f32 %v4236, 0.0
  %v6792 = vmax.f32 %v5419, 0.0
  %v6793 = vmax.f32 %v6602, 0.0
  %v6794 = vmax.f32 %v3056, 0.0
  %v6795 = vmax.f32 %v4239, 0.0
  %v6796 = vmax.f32 %v5422, 0.0
  %v6797 = vmax.f32 %v6605, 0.0
  %v6798 = vmax.f32 %v3058, 0.0
  %v6799 = vmax.f32 %v4241, 0.0
  %v6800 = vmax.f32 %v5424, 0.0
  %v6801 = vmax.f32 %v6607, 0.0
  %v6802 = vmax.f32 %v3061, 0.0
  %v6803 = vmax.f32 %v4244, 0.0
  %v6804 = vmax.f32 %v5427, 0.0
  %v6805 = vmax.f32 %v6610, 0.0
  %v6806 = vmax.f32 %v3063, 0.0
  %v6807 = vmax.f32 %v4246, 0.0
  %v6808 = vmax.f32 %v5429, 0.0
  %v6809 = vmax.f32 %v6612, 0.0
  %v6810 = vmax.f32 %v3066, 0.0
  %v6811 = vmax.f32 %v4249, 0.0
  %v6812 = vmax.f32 %v5432, 0.0
  %v6813 = vmax.f32 %v6615, 0.0
  %v6814 = vmax.f32 %v3068, 0.0
  %v6815 = vmax.f32 %v4251, 0.0
  %v6816 = vmax.f32 %v5434, 0.0
  %v6817 = vmax.f32 %v6617, 0.0
  %v6818 = vmax.f32 %v3071, 0.0
  %v6819 = vmax.f32 %v4254, 0.0
  %v6820 = vmax.f32 %v5437, 0.0
  %v6821 = vmax.f32 %v6620, 0.0
  %v6822 = vmax.f32 %v3073, 0.0
  %v6823 = vmax.f32 %v4256, 0.0
  %v6824 = vmax.f32 %v5439, 0.0
  %v6825 = vmax.f32 %v6622, 0.0
  %v6826 = vmax.f32 %v3076, 0.0
  %v6827 = vmax.f32 %v4259, 0.0
  %v6828 = vmax.f32 %v5442, 0.0
  %v6829 = vmax.f32 %v6625, 0.0
  %v6830 = vmax.f32 %v3078, 0.0
  %v6831 = vmax.f32 %v4261, 0.0
  %v6832 = vmax.f32 %v5444, 0.0
  %v6833 = vmax.f32 %v6627, 0.0
  %v6834 = vmax.f32 %v3081, 0.0
  %v6835 = vmax.f32 %v4264, 0.0
  %v6836 = vmax.f32 %v5447, 0.0
  %v6837 = vmax.f32 %v6630, 0.0
  %v6838 = vmax.f32 %v3083, 0.0
  %v6839 = vmax.f32 %v4266, 0.0
  %v6840 = vmax.f32 %v5449, 0.0
  %v6841 = vmax.f32 %v6632, 0.0
  %v6842 = vmax.f32 %v3086, 0.0
  %v6843 = vmax.f32 %v4269, 0.0
  %v6844 = vmax.f32 %v5452, 0.0
  %v6845 = vmax.f32 %v6635, 0.0
  %v6846 = vmax.f32 %v3088, 0.0
  %v6847 = vmax.f32 %v4271, 0.0
  %v6848 = vmax.f32 %v5454, 0.0
  %v6849 = vmax.f32 %v6637, 0.0
  %v6850 = vmax.f32 %v3091, 0.0
  %v6851 = vmax.f32 %v4274, 0.0
  %v6852 = vmax.f32 %v5457, 0.0
  %v6853 = vmax.f32 %v6640, 0.0
  %v6854 = vmax.f32 %v3093, 0.0
  %v6855 = vmax.f32 %v4276, 0.0
  %v6856 = vmax.f32 %v5459, 0.0
  %v6857 = vmax.f32 %v6642, 0.0
  %v6858 = vmax.f32 %v3096, 0.0
  %v6859 = vmax.f32 %v4279, 0.0
  %v6860 = vmax.f32 %v5462, 0.0
  %v6861 = vmax.f32 %v6645, 0.0
  %v6862 = vmax.f32 %v3098, 0.0
  %v6863 = vmax.f32 %v4281, 0.0
  %v6864 = vmax.f32 %v5464, 0.0
  %v6865 = vmax.f32 %v6647, 0.0
  %v6866 = vmax.f32 %v3101, 0.0
  %v6867 = vmax.f32 %v4284, 0.0
  %v6868 = vmax.f32 %v5467, 0.0
  %v6869 = vmax.f32 %v6650, 0.0
  %v6870 = vmax.f32 %v3103, 0.0
  %v6871 = vmax.f32 %v4286, 0.0
  %v6872 = vmax.f32 %v5469, 0.0
  %v6873 = vmax.f32 %v6652, 0.0
  %v6874 = vmax.f32 %v3106, 0.0
  %v6875 = vmax.f32 %v4289, 0.0
  %v6876 = vmax.f32 %v5472, 0.0
  %v6877 = vmax.f32 %v6655, 0.0
  %v6878 = vmax.f32 %v3108, 0.0
  %v6879 = vmax.f32 %v4291, 0.0
  %v6880 = vmax.f32 %v5474, 0.0
  %v6881 = vmax.f32 %v6657, 0.0
  %v6882 = vmax.f32 %v3111, 0.0
  %v6883 = vmax.f32 %v4294, 0.0
  %v6884 = vmax.f32 %v5477, 0.0
  %v6885 = vmax.f32 %v6660, 0.0
  %v6886 = vmax.f32 %v3113, 0.0
  %v6887 = vmax.f32 %v4296, 0.0
  %v6888 = vmax.f32 %v5479, 0.0
  %v6889 = vmax.f32 %v6662, 0.0
  %v6890 = vmax.f32 %v3116, 0.0
  %v6891 = vmax.f32 %v4299, 0.0
  %v6892 = vmax.f32 %v5482, 0.0
  %v6893 = vmax.f32 %v6665, 0.0
  %v6894 = vmax.f32 %v3118, 0.0
  %v6895 = vmax.f32 %v4301, 0.0
  %v6896 = vmax.f32 %v5484, 0.0
  %v6897 = vmax.f32 %v6667, 0.0
  %v6898 = vmax.f32 %v3121, 0.0
  %v6899 = vmax.f32 %v4304, 0.0
  %v6900 = vmax.f32 %v5487, 0.0
  %v6901 = vmax.f32 %v6670, 0.0
  %v6902 = vmax.f32 %v3123, 0.0
  %v6903 = vmax.f32 %v4306, 0.0
  %v6904 = vmax.f32 %v5489, 0.0
  %v6905 = vmax.f32 %v6672, 0.0
  %v6906 = vmax.f32 %v3126, 0.0
  %v6907 = vmax.f32 %v4309, 0.0
  %v6908 = vmax.f32 %v5492, 0.0
  %v6909 = vmax.f32 %v6675, 0.0
  %v6910 = vmax.f32 %v3128, 0.0
  %v6911 = vmax.f32 %v4311, 0.0
  %v6912 = vmax.f32 %v5494, 0.0
  %v6913 = vmax.f32 %v6677, 0.0
  %v6914 = vmax.f32 %v3131, 0.0
  %v6915 = vmax.f32 %v4314, 0.0
  %v6916 = vmax.f32 %v5497, 0.0
  %v6917 = vmax.f32 %v6680, 0.0
  %v6918 = vmax.f32 %v3133, 0.0
  %v6919 = vmax.f32 %v4316, 0.0
  %v6920 = vmax.f32 %v5499, 0.0
  %v6921 = vmax.f32 %v6682, 0.0
  %v6922 = vmax.f32 %v3136, 0.0
  %v6923 = vmax.f32 %v4319, 0.0
  %v6924 = vmax.f32 %v5502, 0.0
  %v6925 = vmax.f32 %v6685, 0.0
  %v6926 = vmax.f32 %v3138, 0.0
  %v6927 = vmax.f32 %v4321, 0.0
  %v6928 = vmax.f32 %v5504, 0.0
  %v6929 = vmax.f32 %v6687, 0.0
  %v6930 = vmax.f32 %v3141, 0.0
  %v6931 = vmax.f32 %v4324, 0.0
  %v6932 = vmax.f32 %v5507, 0.0
  %v6933 = vmax.f32 %v6690, 0.0
  %v6934 = vmax.f32 %v3143, 0.0
  %v6935 = vmax.f32 %v4326, 0.0
  %v6936 = vmax.f32 %v5509, 0.0
  %v6937 = vmax.f32 %v6692, 0.0
  %v6938 = vmax.f32 %v3146, 0.0
  %v6939 = vmax.f32 %v4329, 0.0
  %v6940 = vmax.f32 %v5512, 0.0
  %v6941 = vmax.f32 %v6695, 0.0
  %v6942 = vmax.f32 %v3148, 0.0
  %v6943 = vmax.f32 %v4331, 0.0
  %v6944 = vmax.f32 %v5514, 0.0
  %v6945 = vmax.f32 %v6697, 0.0
  %v6946 = vmax.f32 %v3151, 0.0
  %v6947 = vmax.f32 %v4334, 0.0
  %v6948 = vmax.f32 %v5517, 0.0
  %v6949 = vmax.f32 %v6700, 0.0
  %v6950 = vmax.f32 %v3153, 0.0
  %v6951 = vmax.f32 %v4336, 0.0
  %v6952 = vmax.f32 %v5519, 0.0
  %v6953 = vmax.f32 %v6702, 0.0
  %v6954 = vmax.f32 %v3156, 0.0
  %v6955 = vmax.f32 %v4339, 0.0
  %v6956 = vmax.f32 %v5522, 0.0
  %v6957 = vmax.f32 %v6705, 0.0
  %v6958 = vmax.f32 %v3158, 0.0
  %v6959 = vmax.f32 %v4341, 0.0
  %v6960 = vmax.f32 %v5524, 0.0
  %v6961 = vmax.f32 %v6707, 0.0
  %v6962 = vmax.f32 %v3161, 0.0
  %v6963 = vmax.f32 %v4344, 0.0
  %v6964 = vmax.f32 %v5527, 0.0
  %v6965 = vmax.f32 %v6710, 0.0
  %v6966 = vmax.f32 %v3163, 0.0
  %v6967 = vmax.f32 %v4346, 0.0
  %v6968 = vmax.f32 %v5529, 0.0
  %v6969 = vmax.f32 %v6712, 0.0
  %v6970 = vpack.c.bf16 %v6718, %v6714
  %v6971 = vpack.c.bf16 %v6719, %v6715
  %v6972 = vpack.c.bf16 %v6720, %v6716
  %v6973 = vpack.c.bf16 %v6721, %v6717
  %v6974 = vpack.c.bf16 %v6726, %v6722
  %v6975 = vpack.c.bf16 %v6727, %v6723
  %v6976 = vpack.c.bf16 %v6728, %v6724
  %v6977 = vpack.c.bf16 %v6729, %v6725
  %v6978 = vpack.c.bf16 %v6734, %v6730
  %v6979 = vpack.c.bf16 %v6735, %v6731
  %v6980 = vpack.c.bf16 %v6736, %v6732
  %v6981 = vpack.c.bf16 %v6737, %v6733
  %v6982 = vpack.c.bf16 %v6742, %v6738
  %v6983 = vpack.c.bf16 %v6743, %v6739
  %v6984 = vpack.c.bf16 %v6744, %v6740
  %v6985 = vpack.c.bf16 %v6745, %v6741
  %v6986 = vpack.c.bf16 %v6750, %v6746
  %v6987 = vpack.c.bf16 %v6751, %v6747
  %v6988 = vpack.c.bf16 %v6752, %v6748
  %v6989 = vpack.c.bf16 %v6753, %v6749
  %v6990 = vpack.c.bf16 %v6758, %v6754
  %v6991 = vpack.c.bf16 %v6759, %v6755
  %v6992 = vpack.c.bf16 %v6760, %v6756
  %v6993 = vpack.c.bf16 %v6761, %v6757
  %v6994 = vpack.c.bf16 %v6766, %v6762
  %v6995 = vpack.c.bf16 %v6767, %v6763
  %v6996 = vpack.c.bf16 %v6768, %v6764
  %v6997 = vpack.c.bf16 %v6769, %v6765
  %v6998 = vpack.c.bf16 %v6774, %v6770
  %v6999 = vpack.c.bf16 %v6775, %v6771
  %v7000 = vpack.c.bf16 %v6776, %v6772
  %v7001 = vpack.c.bf16 %v6777, %v6773
  %v7002 = vpack.c.bf16 %v6782, %v6778
  %v7003 = vpack.c.bf16 %v6783, %v6779
  %v7004 = vpack.c.bf16 %v6784, %v6780
  %v7005 = vpack.c.bf16 %v6785, %v6781
  %v7006 = vpack.c.bf16 %v6790, %v6786
  %v7007 = vpack.c.bf16 %v6791, %v6787
  %v7008 = vpack.c.bf16 %v6792, %v6788
  %v7009 = vpack.c.bf16 %v6793, %v6789
  %v7010 = vpack.c.bf16 %v6798, %v6794
  %v7011 = vpack.c.bf16 %v6799, %v6795
  %v7012 = vpack.c.bf16 %v6800, %v6796
  %v7013 = vpack.c.bf16 %v6801, %v6797
  %v7014 = vpack.c.bf16 %v6806, %v6802
  %v7015 = vpack.c.bf16 %v6807, %v6803
  %v7016 = vpack.c.bf16 %v6808, %v6804
  %v7017 = vpack.c.bf16 %v6809, %v6805
  %v7018 = vpack.c.bf16 %v6814, %v6810
  %v7019 = vpack.c.bf16 %v6815, %v6811
  %v7020 = vpack.c.bf16 %v6816, %v6812
  %v7021 = vpack.c.bf16 %v6817, %v6813
  %v7022 = vpack.c.bf16 %v6822, %v6818
  %v7023 = vpack.c.bf16 %v6823, %v6819
  %v7024 = vpack.c.bf16 %v6824, %v6820
  %v7025 = vpack.c.bf16 %v6825, %v6821
  %v7026 = vpack.c.bf16 %v6830, %v6826
  %v7027 = vpack.c.bf16 %v6831, %v6827
  %v7028 = vpack.c.bf16 %v6832, %v6828
  %v7029 = vpack.c.bf16 %v6833, %v6829
  %v7030 = vpack.c.bf16 %v6838, %v6834
  %v7031 = vpack.c.bf16 %v6839, %v6835
  %v7032 = vpack.c.bf16 %v6840, %v6836
  %v7033 = vpack.c.bf16 %v6841, %v6837
  %v7034 = vpack.c.bf16 %v6846, %v6842
  %v7035 = vpack.c.bf16 %v6847, %v6843
  %v7036 = vpack.c.bf16 %v6848, %v6844
  %v7037 = vpack.c.bf16 %v6849, %v6845
  %v7038 = vpack.c.bf16 %v6854, %v6850
  %v7039 = vpack.c.bf16 %v6855, %v6851
  %v7040 = vpack.c.bf16 %v6856, %v6852
  %v7041 = vpack.c.bf16 %v6857, %v6853
  %v7042 = vpack.c.bf16 %v6862, %v6858
  %v7043 = vpack.c.bf16 %v6863, %v6859
  %v7044 = vpack.c.bf16 %v6864, %v6860
  %v7045 = vpack.c.bf16 %v6865, %v6861
  %v7046 = vpack.c.bf16 %v6870, %v6866
  %v7047 = vpack.c.bf16 %v6871, %v6867
  %v7048 = vpack.c.bf16 %v6872, %v6868
  %v7049 = vpack.c.bf16 %v6873, %v6869
  %v7050 = vpack.c.bf16 %v6878, %v6874
  %v7051 = vpack.c.bf16 %v6879, %v6875
  %v7052 = vpack.c.bf16 %v6880, %v6876
  %v7053 = vpack.c.bf16 %v6881, %v6877
  %v7054 = vpack.c.bf16 %v6886, %v6882
  %v7055 = vpack.c.bf16 %v6887, %v6883
  %v7056 = vpack.c.bf16 %v6888, %v6884
  %v7057 = vpack.c.bf16 %v6889, %v6885
  %v7058 = vpack.c.bf16 %v6894, %v6890
  %v7059 = vpack.c.bf16 %v6895, %v6891
  %v7060 = vpack.c.bf16 %v6896, %v6892
  %v7061 = vpack.c.bf16 %v6897, %v6893
  %v7062 = vpack.c.bf16 %v6902, %v6898
  %v7063 = vpack.c.bf16 %v6903, %v6899
  %v7064 = vpack.c.bf16 %v6904, %v6900
  %v7065 = vpack.c.bf16 %v6905, %v6901
  %v7066 = vpack.c.bf16 %v6910, %v6906
  %v7067 = vpack.c.bf16 %v6911, %v6907
  %v7068 = vpack.c.bf16 %v6912, %v6908
  %v7069 = vpack.c.bf16 %v6913, %v6909
  %v7070 = vpack.c.bf16 %v6918, %v6914
  %v7071 = vpack.c.bf16 %v6919, %v6915
  %v7072 = vpack.c.bf16 %v6920, %v6916
  %v7073 = vpack.c.bf16 %v6921, %v6917
  %v7074 = vpack.c.bf16 %v6926, %v6922
  %v7075 = vpack.c.bf16 %v6927, %v6923
  %v7076 = vpack.c.bf16 %v6928, %v6924
  %v7077 = vpack.c.bf16 %v6929, %v6925
  %v7078 = vpack.c.bf16 %v6934, %v6930
  %v7079 = vpack.c.bf16 %v6935, %v6931
  %v7080 = vpack.c.bf16 %v6936, %v6932
  %v7081 = vpack.c.bf16 %v6937, %v6933
  %v7082 = vpack.c.bf16 %v6942, %v6938
  %v7083 = vpack.c.bf16 %v6943, %v6939
  %v7084 = vpack.c.bf16 %v6944, %v6940
  %v7085 = vpack.c.bf16 %v6945, %v6941
  %v7086 = vpack.c.bf16 %v6950, %v6946
  %v7087 = vpack.c.bf16 %v6951, %v6947
  %v7088 = vpack.c.bf16 %v6952, %v6948
  %v7089 = vpack.c.bf16 %v6953, %v6949
  %v7090 = vpack.c.bf16 %v6958, %v6954
  %v7091 = vpack.c.bf16 %v6959, %v6955
  %v7092 = vpack.c.bf16 %v6960, %v6956
  %v7093 = vpack.c.bf16 %v6961, %v6957
  %v7094 = vpack.c.bf16 %v6966, %v6962
  %v7095 = vpack.c.bf16 %v6967, %v6963
  %v7096 = vpack.c.bf16 %v6968, %v6964
  %v7097 = vpack.c.bf16 %v6969, %v6965
  %v7098 = vld [vmem:[%s3] sm:$0xff]
  %v7099 = vld [vmem:[%s3 + $0x8] sm:$0xff]
  %v7100 = vld [vmem:[%s3 + $0x10] sm:$0xff]
  %v7101 = vld [vmem:[%s3 + $0x18] sm:$0xff]
  %v7102 = vld [vmem:[%s3 + $0x20] sm:$0xff]
  %v7103 = vld [vmem:[%s3 + $0x28] sm:$0xff]
  %v7104 = vld [vmem:[%s3 + $0x30] sm:$0xff]
  %v7105 = vld [vmem:[%s3 + $0x38] sm:$0xff]
  %v7106 = vld [vmem:[%s3 + $0x40] sm:$0xff]
  %v7107 = vld [vmem:[%s3 + $0x48] sm:$0xff]
  %v7108 = vld [vmem:[%s3 + $0x50] sm:$0xff]
  %v7109 = vld [vmem:[%s3 + $0x58] sm:$0xff]
  %v7110 = vld [vmem:[%s3 + $0x60] sm:$0xff]
  %v7111 = vld [vmem:[%s3 + $0x68] sm:$0xff]
  %v7112 = vld [vmem:[%s3 + $0x70] sm:$0xff]
  %v7113 = vld [vmem:[%s3 + $0x78] sm:$0xff]
  %v7114 = vld [vmem:[%s3 + $0x80] sm:$0xff]
  %v7115 = vld [vmem:[%s3 + $0x88] sm:$0xff]
  %v7116 = vld [vmem:[%s3 + $0x90] sm:$0xff]
  %v7117 = vld [vmem:[%s3 + $0x98] sm:$0xff]
  %v7118 = vld [vmem:[%s3 + $0xa0] sm:$0xff]
  %v7119 = vld [vmem:[%s3 + $0xa8] sm:$0xff]
  %v7120 = vld [vmem:[%s3 + $0xb0] sm:$0xff]
  %v7121 = vld [vmem:[%s3 + $0xb8] sm:$0xff]
  %v7122 = vld [vmem:[%s3 + $0xc0] sm:$0xff]
  %v7123 = vld [vmem:[%s3 + $0xc8] sm:$0xff]
  %v7124 = vld [vmem:[%s3 + $0xd0] sm:$0xff]
  %v7125 = vld [vmem:[%s3 + $0xd8] sm:$0xff]
  %v7126 = vld [vmem:[%s3 + $0xe0] sm:$0xff]
  %v7127 = vld [vmem:[%s3 + $0xe8] sm:$0xff]
  %v7128 = vld [vmem:[%s3 + $0xf0] sm:$0xff]
  %v7129 = vld [vmem:[%s3 + $0xf8] sm:$0xff]
  %v7130 = vld [vmem:[%s3 + $0x100] sm:$0xff]
  %v7131 = vld [vmem:[%s3 + $0x108] sm:$0xff]
  %v7132 = vld [vmem:[%s3 + $0x110] sm:$0xff]
  %v7133 = vld [vmem:[%s3 + $0x118] sm:$0xff]
  %v7134 = vld [vmem:[%s3 + $0x120] sm:$0xff]
  %v7135 = vld [vmem:[%s3 + $0x128] sm:$0xff]
  %v7136 = vld [vmem:[%s3 + $0x130] sm:$0xff]
  %v7137 = vld [vmem:[%s3 + $0x138] sm:$0xff]
  %v7138 = vld [vmem:[%s3 + $0x140] sm:$0xff]
  %v7139 = vld [vmem:[%s3 + $0x148] sm:$0xff]
  %v7140 = vld [vmem:[%s3 + $0x150] sm:$0xff]
  %v7141 = vld [vmem:[%s3 + $0x158] sm:$0xff]
  %v7142 = vld [vmem:[%s3 + $0x160] sm:$0xff]
  %v7143 = vld [vmem:[%s3 + $0x168] sm:$0xff]
  %v7144 = vld [vmem:[%s3 + $0x170] sm:$0xff]
  %v7145 = vld [vmem:[%s3 + $0x178] sm:$0xff]
  %v7146 = vld [vmem:[%s3 + $0x180] sm:$0xff]
  %v7147 = vld [vmem:[%s3 + $0x188] sm:$0xff]
  %v7148 = vld [vmem:[%s3 + $0x190] sm:$0xff]
  %v7149 = vld [vmem:[%s3 + $0x198] sm:$0xff]
  %v7150 = vld [vmem:[%s3 + $0x1a0] sm:$0xff]
  %v7151 = vld [vmem:[%s3 + $0x1a8] sm:$0xff]
  %v7152 = vld [vmem:[%s3 + $0x1b0] sm:$0xff]
  %v7153 = vld [vmem:[%s3 + $0x1b8] sm:$0xff]
  %v7154 = vld [vmem:[%s3 + $0x1c0] sm:$0xff]
  %v7155 = vld [vmem:[%s3 + $0x1c8] sm:$0xff]
  %v7156 = vld [vmem:[%s3 + $0x1d0] sm:$0xff]
  %v7157 = vld [vmem:[%s3 + $0x1d8] sm:$0xff]
  %v7158 = vld [vmem:[%s3 + $0x1e0] sm:$0xff]
  %v7159 = vld [vmem:[%s3 + $0x1e8] sm:$0xff]
  %v7160 = vld [vmem:[%s3 + $0x1f0] sm:$0xff]
  %v7161 = vld [vmem:[%s3 + $0x1f8] sm:$0xff]
  %v7162 = vld [vmem:[%s3 + $0x200] sm:$0xff]
  %v7163 = vld [vmem:[%s3 + $0x208] sm:$0xff]
  %v7164 = vld [vmem:[%s3 + $0x210] sm:$0xff]
  %v7165 = vld [vmem:[%s3 + $0x218] sm:$0xff]
  %v7166 = vld [vmem:[%s3 + $0x220] sm:$0xff]
  %v7167 = vld [vmem:[%s3 + $0x228] sm:$0xff]
  %v7168 = vld [vmem:[%s3 + $0x230] sm:$0xff]
  %v7169 = vld [vmem:[%s3 + $0x238] sm:$0xff]
  %v7170 = vld [vmem:[%s3 + $0x240] sm:$0xff]
  %v7171 = vld [vmem:[%s3 + $0x248] sm:$0xff]
  %v7172 = vld [vmem:[%s3 + $0x250] sm:$0xff]
  %v7173 = vld [vmem:[%s3 + $0x258] sm:$0xff]
  %v7174 = vld [vmem:[%s3 + $0x260] sm:$0xff]
  %v7175 = vld [vmem:[%s3 + $0x268] sm:$0xff]
  %v7176 = vld [vmem:[%s3 + $0x270] sm:$0xff]
  %v7177 = vld [vmem:[%s3 + $0x278] sm:$0xff]
  %v7178 = vld [vmem:[%s3 + $0x280] sm:$0xff]
  %v7179 = vld [vmem:[%s3 + $0x288] sm:$0xff]
  %v7180 = vld [vmem:[%s3 + $0x290] sm:$0xff]
  %v7181 = vld [vmem:[%s3 + $0x298] sm:$0xff]
  %v7182 = vld [vmem:[%s3 + $0x2a0] sm:$0xff]
  %v7183 = vld [vmem:[%s3 + $0x2a8] sm:$0xff]
  %v7184 = vld [vmem:[%s3 + $0x2b0] sm:$0xff]
  %v7185 = vld [vmem:[%s3 + $0x2b8] sm:$0xff]
  %v7186 = vld [vmem:[%s3 + $0x2c0] sm:$0xff]
  %v7187 = vld [vmem:[%s3 + $0x2c8] sm:$0xff]
  %v7188 = vld [vmem:[%s3 + $0x2d0] sm:$0xff]
  %v7189 = vld [vmem:[%s3 + $0x2d8] sm:$0xff]
  %v7190 = vld [vmem:[%s3 + $0x2e0] sm:$0xff]
  %v7191 = vld [vmem:[%s3 + $0x2e8] sm:$0xff]
  %v7192 = vld [vmem:[%s3 + $0x2f0] sm:$0xff]
  %v7193 = vld [vmem:[%s3 + $0x2f8] sm:$0xff]
  %v7194 = vld [vmem:[%s3 + $0x300] sm:$0xff]
  %v7195 = vld [vmem:[%s3 + $0x308] sm:$0xff]
  %v7196 = vld [vmem:[%s3 + $0x310] sm:$0xff]
  %v7197 = vld [vmem:[%s3 + $0x318] sm:$0xff]
  %v7198 = vld [vmem:[%s3 + $0x320] sm:$0xff]
  %v7199 = vld [vmem:[%s3 + $0x328] sm:$0xff]
  %v7200 = vld [vmem:[%s3 + $0x330] sm:$0xff]
  %v7201 = vld [vmem:[%s3 + $0x338] sm:$0xff]
  %v7202 = vld [vmem:[%s3 + $0x340] sm:$0xff]
  %v7203 = vld [vmem:[%s3 + $0x348] sm:$0xff]
  %v7204 = vld [vmem:[%s3 + $0x350] sm:$0xff]
  %v7205 = vld [vmem:[%s3 + $0x358] sm:$0xff]
  %v7206 = vld [vmem:[%s3 + $0x360] sm:$0xff]
  %v7207 = vld [vmem:[%s3 + $0x368] sm:$0xff]
  %v7208 = vld [vmem:[%s3 + $0x370] sm:$0xff]
  %v7209 = vld [vmem:[%s3 + $0x378] sm:$0xff]
  %v7210 = vld [vmem:[%s3 + $0x380] sm:$0xff]
  %v7211 = vld [vmem:[%s3 + $0x388] sm:$0xff]
  %v7212 = vld [vmem:[%s3 + $0x390] sm:$0xff]
  %v7213 = vld [vmem:[%s3 + $0x398] sm:$0xff]
  %v7214 = vld [vmem:[%s3 + $0x3a0] sm:$0xff]
  %v7215 = vld [vmem:[%s3 + $0x3a8] sm:$0xff]
  %v7216 = vld [vmem:[%s3 + $0x3b0] sm:$0xff]
  %v7217 = vld [vmem:[%s3 + $0x3b8] sm:$0xff]
  %v7218 = vld [vmem:[%s3 + $0x3c0] sm:$0xff]
  %v7219 = vld [vmem:[%s3 + $0x3c8] sm:$0xff]
  %v7220 = vld [vmem:[%s3 + $0x3d0] sm:$0xff]
  %v7221 = vld [vmem:[%s3 + $0x3d8] sm:$0xff]
  %v7222 = vld [vmem:[%s3 + $0x3e0] sm:$0xff]
  %v7223 = vld [vmem:[%s3 + $0x3e8] sm:$0xff]
  %v7224 = vld [vmem:[%s3 + $0x3f0] sm:$0xff]
  %v7225 = vld [vmem:[%s3 + $0x3f8] sm:$0xff]
  %v7226 = vld [vmem:[%s4] sm:$0xf]
  %v7228 = vperm.slane %v7226, 0
  %v7229 = vperm.slane %v7226, 1
  %v7230 = vperm.slane %v7226, 2
  %v7231 = vperm.slane %v7226, 3
  %v7364 = vunpack.c.l.b16 %v7098
  %v7365 = vunpack.c.h.b16 %v7098
  %v7366 = vunpack.c.l.b16 %v7099
  %v7367 = vunpack.c.h.b16 %v7099
  %v7368 = vunpack.c.l.b16 %v7100
  %v7369 = vunpack.c.h.b16 %v7100
  %v7370 = vunpack.c.l.b16 %v7101
  %v7371 = vunpack.c.h.b16 %v7101
  %v7372 = vunpack.c.l.b16 %v7102
  %v7373 = vunpack.c.h.b16 %v7102
  %v7374 = vunpack.c.l.b16 %v7103
  %v7375 = vunpack.c.h.b16 %v7103
  %v7376 = vunpack.c.l.b16 %v7104
  %v7377 = vunpack.c.h.b16 %v7104
  %v7378 = vunpack.c.l.b16 %v7105
  %v7379 = vunpack.c.h.b16 %v7105
  %v7380 = vunpack.c.l.b16 %v7106
  %v7381 = vunpack.c.h.b16 %v7106
  %v7382 = vunpack.c.l.b16 %v7107
  %v7383 = vunpack.c.h.b16 %v7107
  %v7384 = vunpack.c.l.b16 %v7108
  %v7385 = vunpack.c.h.b16 %v7108
  %v7386 = vunpack.c.l.b16 %v7109
  %v7387 = vunpack.c.h.b16 %v7109
  %v7388 = vunpack.c.l.b16 %v7110
  %v7389 = vunpack.c.h.b16 %v7110
  %v7390 = vunpack.c.l.b16 %v7111
  %v7391 = vunpack.c.h.b16 %v7111
  %v7392 = vunpack.c.l.b16 %v7112
  %v7393 = vunpack.c.h.b16 %v7112
  %v7394 = vunpack.c.l.b16 %v7113
  %v7395 = vunpack.c.h.b16 %v7113
  %v7396 = vunpack.c.l.b16 %v7114
  %v7397 = vunpack.c.h.b16 %v7114
  %v7398 = vunpack.c.l.b16 %v7115
  %v7399 = vunpack.c.h.b16 %v7115
  %v7400 = vunpack.c.l.b16 %v7116
  %v7401 = vunpack.c.h.b16 %v7116
  %v7402 = vunpack.c.l.b16 %v7117
  %v7403 = vunpack.c.h.b16 %v7117
  %v7404 = vunpack.c.l.b16 %v7118
  %v7405 = vunpack.c.h.b16 %v7118
  %v7406 = vunpack.c.l.b16 %v7119
  %v7407 = vunpack.c.h.b16 %v7119
  %v7408 = vunpack.c.l.b16 %v7120
  %v7409 = vunpack.c.h.b16 %v7120
  %v7410 = vunpack.c.l.b16 %v7121
  %v7411 = vunpack.c.h.b16 %v7121
  %v7412 = vunpack.c.l.b16 %v7122
  %v7413 = vunpack.c.h.b16 %v7122
  %v7414 = vunpack.c.l.b16 %v7123
  %v7415 = vunpack.c.h.b16 %v7123
  %v7416 = vunpack.c.l.b16 %v7124
  %v7417 = vunpack.c.h.b16 %v7124
  %v7418 = vunpack.c.l.b16 %v7125
  %v7419 = vunpack.c.h.b16 %v7125
  %v7420 = vunpack.c.l.b16 %v7126
  %v7421 = vunpack.c.h.b16 %v7126
  %v7422 = vunpack.c.l.b16 %v7127
  %v7423 = vunpack.c.h.b16 %v7127
  %v7424 = vunpack.c.l.b16 %v7128
  %v7425 = vunpack.c.h.b16 %v7128
  %v7426 = vunpack.c.l.b16 %v7129
  %v7427 = vunpack.c.h.b16 %v7129
  %v7428 = vunpack.c.l.b16 %v7130
  %v7429 = vunpack.c.h.b16 %v7130
  %v7430 = vunpack.c.l.b16 %v7131
  %v7431 = vunpack.c.h.b16 %v7131
  %v7432 = vunpack.c.l.b16 %v7132
  %v7433 = vunpack.c.h.b16 %v7132
  %v7434 = vunpack.c.l.b16 %v7133
  %v7435 = vunpack.c.h.b16 %v7133
  %v7436 = vunpack.c.l.b16 %v7134
  %v7437 = vunpack.c.h.b16 %v7134
  %v7438 = vunpack.c.l.b16 %v7135
  %v7439 = vunpack.c.h.b16 %v7135
  %v7440 = vunpack.c.l.b16 %v7136
  %v7441 = vunpack.c.h.b16 %v7136
  %v7442 = vunpack.c.l.b16 %v7137
  %v7443 = vunpack.c.h.b16 %v7137
  %v7444 = vunpack.c.l.b16 %v7138
  %v7445 = vunpack.c.h.b16 %v7138
  %v7446 = vunpack.c.l.b16 %v7139
  %v7447 = vunpack.c.h.b16 %v7139
  %v7448 = vunpack.c.l.b16 %v7140
  %v7449 = vunpack.c.h.b16 %v7140
  %v7450 = vunpack.c.l.b16 %v7141
  %v7451 = vunpack.c.h.b16 %v7141
  %v7452 = vunpack.c.l.b16 %v7142
  %v7453 = vunpack.c.h.b16 %v7142
  %v7454 = vunpack.c.l.b16 %v7143
  %v7455 = vunpack.c.h.b16 %v7143
  %v7456 = vunpack.c.l.b16 %v7144
  %v7457 = vunpack.c.h.b16 %v7144
  %v7458 = vunpack.c.l.b16 %v7145
  %v7459 = vunpack.c.h.b16 %v7145
  %v7460 = vunpack.c.l.b16 %v7146
  %v7461 = vunpack.c.h.b16 %v7146
  %v7462 = vunpack.c.l.b16 %v7147
  %v7463 = vunpack.c.h.b16 %v7147
  %v7464 = vunpack.c.l.b16 %v7148
  %v7465 = vunpack.c.h.b16 %v7148
  %v7466 = vunpack.c.l.b16 %v7149
  %v7467 = vunpack.c.h.b16 %v7149
  %v7468 = vunpack.c.l.b16 %v7150
  %v7469 = vunpack.c.h.b16 %v7150
  %v7470 = vunpack.c.l.b16 %v7151
  %v7471 = vunpack.c.h.b16 %v7151
  %v7472 = vunpack.c.l.b16 %v7152
  %v7473 = vunpack.c.h.b16 %v7152
  %v7474 = vunpack.c.l.b16 %v7153
  %v7475 = vunpack.c.h.b16 %v7153
  %v7476 = vunpack.c.l.b16 %v7154
  %v7477 = vunpack.c.h.b16 %v7154
  %v7478 = vunpack.c.l.b16 %v7155
  %v7479 = vunpack.c.h.b16 %v7155
  %v7480 = vunpack.c.l.b16 %v7156
  %v7481 = vunpack.c.h.b16 %v7156
  %v7482 = vunpack.c.l.b16 %v7157
  %v7483 = vunpack.c.h.b16 %v7157
  %v7484 = vunpack.c.l.b16 %v7158
  %v7485 = vunpack.c.h.b16 %v7158
  %v7486 = vunpack.c.l.b16 %v7159
  %v7487 = vunpack.c.h.b16 %v7159
  %v7488 = vunpack.c.l.b16 %v7160
  %v7489 = vunpack.c.h.b16 %v7160
  %v7490 = vunpack.c.l.b16 %v7161
  %v7491 = vunpack.c.h.b16 %v7161
  %v7492 = vunpack.c.l.b16 %v7162
  %v7493 = vunpack.c.h.b16 %v7162
  %v7494 = vunpack.c.l.b16 %v7163
  %v7495 = vunpack.c.h.b16 %v7163
  %v7496 = vunpack.c.l.b16 %v7164
  %v7497 = vunpack.c.h.b16 %v7164
  %v7498 = vunpack.c.l.b16 %v7165
  %v7499 = vunpack.c.h.b16 %v7165
  %v7500 = vunpack.c.l.b16 %v7166
  %v7501 = vunpack.c.h.b16 %v7166
  %v7502 = vunpack.c.l.b16 %v7167
  %v7503 = vunpack.c.h.b16 %v7167
  %v7504 = vunpack.c.l.b16 %v7168
  %v7505 = vunpack.c.h.b16 %v7168
  %v7506 = vunpack.c.l.b16 %v7169
  %v7507 = vunpack.c.h.b16 %v7169
  %v7508 = vunpack.c.l.b16 %v7170
  %v7509 = vunpack.c.h.b16 %v7170
  %v7510 = vunpack.c.l.b16 %v7171
  %v7511 = vunpack.c.h.b16 %v7171
  %v7512 = vunpack.c.l.b16 %v7172
  %v7513 = vunpack.c.h.b16 %v7172
  %v7514 = vunpack.c.l.b16 %v7173
  %v7515 = vunpack.c.h.b16 %v7173
  %v7516 = vunpack.c.l.b16 %v7174
  %v7517 = vunpack.c.h.b16 %v7174
  %v7518 = vunpack.c.l.b16 %v7175
  %v7519 = vunpack.c.h.b16 %v7175
  %v7520 = vunpack.c.l.b16 %v7176
  %v7521 = vunpack.c.h.b16 %v7176
  %v7522 = vunpack.c.l.b16 %v7177
  %v7523 = vunpack.c.h.b16 %v7177
  %v7524 = vunpack.c.l.b16 %v7178
  %v7525 = vunpack.c.h.b16 %v7178
  %v7526 = vunpack.c.l.b16 %v7179
  %v7527 = vunpack.c.h.b16 %v7179
  %v7528 = vunpack.c.l.b16 %v7180
  %v7529 = vunpack.c.h.b16 %v7180
  %v7530 = vunpack.c.l.b16 %v7181
  %v7531 = vunpack.c.h.b16 %v7181
  %v7532 = vunpack.c.l.b16 %v7182
  %v7533 = vunpack.c.h.b16 %v7182
  %v7534 = vunpack.c.l.b16 %v7183
  %v7535 = vunpack.c.h.b16 %v7183
  %v7536 = vunpack.c.l.b16 %v7184
  %v7537 = vunpack.c.h.b16 %v7184
  %v7538 = vunpack.c.l.b16 %v7185
  %v7539 = vunpack.c.h.b16 %v7185
  %v7540 = vunpack.c.l.b16 %v7186
  %v7541 = vunpack.c.h.b16 %v7186
  %v7542 = vunpack.c.l.b16 %v7187
  %v7543 = vunpack.c.h.b16 %v7187
  %v7544 = vunpack.c.l.b16 %v7188
  %v7545 = vunpack.c.h.b16 %v7188
  %v7546 = vunpack.c.l.b16 %v7189
  %v7547 = vunpack.c.h.b16 %v7189
  %v7548 = vunpack.c.l.b16 %v7190
  %v7549 = vunpack.c.h.b16 %v7190
  %v7550 = vunpack.c.l.b16 %v7191
  %v7551 = vunpack.c.h.b16 %v7191
  %v7552 = vunpack.c.l.b16 %v7192
  %v7553 = vunpack.c.h.b16 %v7192
  %v7554 = vunpack.c.l.b16 %v7193
  %v7555 = vunpack.c.h.b16 %v7193
  %v7556 = vunpack.c.l.b16 %v7194
  %v7557 = vunpack.c.h.b16 %v7194
  %v7558 = vunpack.c.l.b16 %v7195
  %v7559 = vunpack.c.h.b16 %v7195
  %v7560 = vunpack.c.l.b16 %v7196
  %v7561 = vunpack.c.h.b16 %v7196
  %v7562 = vunpack.c.l.b16 %v7197
  %v7563 = vunpack.c.h.b16 %v7197
  %v7564 = vunpack.c.l.b16 %v7198
  %v7565 = vunpack.c.h.b16 %v7198
  %v7566 = vunpack.c.l.b16 %v7199
  %v7567 = vunpack.c.h.b16 %v7199
  %v7568 = vunpack.c.l.b16 %v7200
  %v7569 = vunpack.c.h.b16 %v7200
  %v7570 = vunpack.c.l.b16 %v7201
  %v7571 = vunpack.c.h.b16 %v7201
  %v7572 = vunpack.c.l.b16 %v7202
  %v7573 = vunpack.c.h.b16 %v7202
  %v7574 = vunpack.c.l.b16 %v7203
  %v7575 = vunpack.c.h.b16 %v7203
  %v7576 = vunpack.c.l.b16 %v7204
  %v7577 = vunpack.c.h.b16 %v7204
  %v7578 = vunpack.c.l.b16 %v7205
  %v7579 = vunpack.c.h.b16 %v7205
  %v7580 = vunpack.c.l.b16 %v7206
  %v7581 = vunpack.c.h.b16 %v7206
  %v7582 = vunpack.c.l.b16 %v7207
  %v7583 = vunpack.c.h.b16 %v7207
  %v7584 = vunpack.c.l.b16 %v7208
  %v7585 = vunpack.c.h.b16 %v7208
  %v7586 = vunpack.c.l.b16 %v7209
  %v7587 = vunpack.c.h.b16 %v7209
  %v7588 = vunpack.c.l.b16 %v7210
  %v7589 = vunpack.c.h.b16 %v7210
  %v7590 = vunpack.c.l.b16 %v7211
  %v7591 = vunpack.c.h.b16 %v7211
  %v7592 = vunpack.c.l.b16 %v7212
  %v7593 = vunpack.c.h.b16 %v7212
  %v7594 = vunpack.c.l.b16 %v7213
  %v7595 = vunpack.c.h.b16 %v7213
  %v7596 = vunpack.c.l.b16 %v7214
  %v7597 = vunpack.c.h.b16 %v7214
  %v7598 = vunpack.c.l.b16 %v7215
  %v7599 = vunpack.c.h.b16 %v7215
  %v7600 = vunpack.c.l.b16 %v7216
  %v7601 = vunpack.c.h.b16 %v7216
  %v7602 = vunpack.c.l.b16 %v7217
  %v7603 = vunpack.c.h.b16 %v7217
  %v7604 = vunpack.c.l.b16 %v7218
  %v7605 = vunpack.c.h.b16 %v7218
  %v7606 = vunpack.c.l.b16 %v7219
  %v7607 = vunpack.c.h.b16 %v7219
  %v7608 = vunpack.c.l.b16 %v7220
  %v7609 = vunpack.c.h.b16 %v7220
  %v7610 = vunpack.c.l.b16 %v7221
  %v7611 = vunpack.c.h.b16 %v7221
  %v7612 = vunpack.c.l.b16 %v7222
  %v7613 = vunpack.c.h.b16 %v7222
  %v7614 = vunpack.c.l.b16 %v7223
  %v7615 = vunpack.c.h.b16 %v7223
  %v7616 = vunpack.c.l.b16 %v7224
  %v7617 = vunpack.c.h.b16 %v7224
  %v7618 = vunpack.c.l.b16 %v7225
  %v7619 = vunpack.c.h.b16 %v7225
  %v7620 = vpack.c.b16 %v7368, %v7364
  %v7621 = vpack.c.b16 %v7369, %v7365
  %v7622 = vpack.c.b16 %v7370, %v7366
  %v7623 = vpack.c.b16 %v7371, %v7367
  %v7624 = vpack.c.b16 %v7376, %v7372
  %v7625 = vpack.c.b16 %v7377, %v7373
  %v7626 = vpack.c.b16 %v7378, %v7374
  %v7627 = vpack.c.b16 %v7379, %v7375
  %v7628 = vpack.c.b16 %v7384, %v7380
  %v7629 = vpack.c.b16 %v7385, %v7381
  %v7630 = vpack.c.b16 %v7386, %v7382
  %v7631 = vpack.c.b16 %v7387, %v7383
  %v7632 = vpack.c.b16 %v7392, %v7388
  %v7633 = vpack.c.b16 %v7393, %v7389
  %v7634 = vpack.c.b16 %v7394, %v7390
  %v7635 = vpack.c.b16 %v7395, %v7391
  %v7636 = vpack.c.b16 %v7400, %v7396
  %v7637 = vpack.c.b16 %v7401, %v7397
  %v7638 = vpack.c.b16 %v7402, %v7398
  %v7639 = vpack.c.b16 %v7403, %v7399
  %v7640 = vpack.c.b16 %v7408, %v7404
  %v7641 = vpack.c.b16 %v7409, %v7405
  %v7642 = vpack.c.b16 %v7410, %v7406
  %v7643 = vpack.c.b16 %v7411, %v7407
  %v7644 = vpack.c.b16 %v7416, %v7412
  %v7645 = vpack.c.b16 %v7417, %v7413
  %v7646 = vpack.c.b16 %v7418, %v7414
  %v7647 = vpack.c.b16 %v7419, %v7415
  %v7648 = vpack.c.b16 %v7424, %v7420
  %v7649 = vpack.c.b16 %v7425, %v7421
  %v7650 = vpack.c.b16 %v7426, %v7422
  %v7651 = vpack.c.b16 %v7427, %v7423
  %v7652 = vpack.c.b16 %v7432, %v7428
  %v7653 = vpack.c.b16 %v7433, %v7429
  %v7654 = vpack.c.b16 %v7434, %v7430
  %v7655 = vpack.c.b16 %v7435, %v7431
  %v7656 = vpack.c.b16 %v7440, %v7436
  %v7657 = vpack.c.b16 %v7441, %v7437
  %v7658 = vpack.c.b16 %v7442, %v7438
  %v7659 = vpack.c.b16 %v7443, %v7439
  %v7660 = vpack.c.b16 %v7448, %v7444
  %v7661 = vpack.c.b16 %v7449, %v7445
  %v7662 = vpack.c.b16 %v7450, %v7446
  %v7663 = vpack.c.b16 %v7451, %v7447
  %v7664 = vpack.c.b16 %v7456, %v7452
  %v7665 = vpack.c.b16 %v7457, %v7453
  %v7666 = vpack.c.b16 %v7458, %v7454
  %v7667 = vpack.c.b16 %v7459, %v7455
  %v7668 = vpack.c.b16 %v7464, %v7460
  %v7669 = vpack.c.b16 %v7465, %v7461
  %v7670 = vpack.c.b16 %v7466, %v7462
  %v7671 = vpack.c.b16 %v7467, %v7463
  %v7672 = vpack.c.b16 %v7472, %v7468
  %v7673 = vpack.c.b16 %v7473, %v7469
  %v7674 = vpack.c.b16 %v7474, %v7470
  %v7675 = vpack.c.b16 %v7475, %v7471
  %v7676 = vpack.c.b16 %v7480, %v7476
  %v7677 = vpack.c.b16 %v7481, %v7477
  %v7678 = vpack.c.b16 %v7482, %v7478
  %v7679 = vpack.c.b16 %v7483, %v7479
  %v7680 = vpack.c.b16 %v7488, %v7484
  %v7681 = vpack.c.b16 %v7489, %v7485
  %v7682 = vpack.c.b16 %v7490, %v7486
  %v7683 = vpack.c.b16 %v7491, %v7487
  %v7684 = vpack.c.b16 %v7496, %v7492
  %v7685 = vpack.c.b16 %v7497, %v7493
  %v7686 = vpack.c.b16 %v7498, %v7494
  %v7687 = vpack.c.b16 %v7499, %v7495
  %v7688 = vpack.c.b16 %v7504, %v7500
  %v7689 = vpack.c.b16 %v7505, %v7501
  %v7690 = vpack.c.b16 %v7506, %v7502
  %v7691 = vpack.c.b16 %v7507, %v7503
  %v7692 = vpack.c.b16 %v7512, %v7508
  %v7693 = vpack.c.b16 %v7513, %v7509
  %v7694 = vpack.c.b16 %v7514, %v7510
  %v7695 = vpack.c.b16 %v7515, %v7511
  %v7696 = vpack.c.b16 %v7520, %v7516
  %v7697 = vpack.c.b16 %v7521, %v7517
  %v7698 = vpack.c.b16 %v7522, %v7518
  %v7699 = vpack.c.b16 %v7523, %v7519
  %v7700 = vpack.c.b16 %v7528, %v7524
  %v7701 = vpack.c.b16 %v7529, %v7525
  %v7702 = vpack.c.b16 %v7530, %v7526
  %v7703 = vpack.c.b16 %v7531, %v7527
  %v7704 = vpack.c.b16 %v7536, %v7532
  %v7705 = vpack.c.b16 %v7537, %v7533
  %v7706 = vpack.c.b16 %v7538, %v7534
  %v7707 = vpack.c.b16 %v7539, %v7535
  %v7708 = vpack.c.b16 %v7544, %v7540
  %v7709 = vpack.c.b16 %v7545, %v7541
  %v7710 = vpack.c.b16 %v7546, %v7542
  %v7711 = vpack.c.b16 %v7547, %v7543
  %v7712 = vpack.c.b16 %v7552, %v7548
  %v7713 = vpack.c.b16 %v7553, %v7549
  %v7714 = vpack.c.b16 %v7554, %v7550
  %v7715 = vpack.c.b16 %v7555, %v7551
  %v7716 = vpack.c.b16 %v7560, %v7556
  %v7717 = vpack.c.b16 %v7561, %v7557
  %v7718 = vpack.c.b16 %v7562, %v7558
  %v7719 = vpack.c.b16 %v7563, %v7559
  %v7720 = vpack.c.b16 %v7568, %v7564
  %v7721 = vpack.c.b16 %v7569, %v7565
  %v7722 = vpack.c.b16 %v7570, %v7566
  %v7723 = vpack.c.b16 %v7571, %v7567
  %v7724 = vpack.c.b16 %v7576, %v7572
  %v7725 = vpack.c.b16 %v7577, %v7573
  %v7726 = vpack.c.b16 %v7578, %v7574
  %v7727 = vpack.c.b16 %v7579, %v7575
  %v7728 = vpack.c.b16 %v7584, %v7580
  %v7729 = vpack.c.b16 %v7585, %v7581
  %v7730 = vpack.c.b16 %v7586, %v7582
  %v7731 = vpack.c.b16 %v7587, %v7583
  %v7732 = vpack.c.b16 %v7592, %v7588
  %v7733 = vpack.c.b16 %v7593, %v7589
  %v7734 = vpack.c.b16 %v7594, %v7590
  %v7735 = vpack.c.b16 %v7595, %v7591
  %v7736 = vpack.c.b16 %v7600, %v7596
  %v7737 = vpack.c.b16 %v7601, %v7597
  %v7738 = vpack.c.b16 %v7602, %v7598
  %v7739 = vpack.c.b16 %v7603, %v7599
  %v7740 = vpack.c.b16 %v7608, %v7604
  %v7741 = vpack.c.b16 %v7609, %v7605
  %v7742 = vpack.c.b16 %v7610, %v7606
  %v7743 = vpack.c.b16 %v7611, %v7607
  %v7744 = vpack.c.b16 %v7616, %v7612
  %v7745 = vpack.c.b16 %v7617, %v7613
  %v7746 = vpack.c.b16 %v7618, %v7614
  %v7747 = vpack.c.b16 %v7619, %v7615
  %7876 = vmatpush.bf16.msra.mxu0 %v7648
  %7877 = vmatpush.bf16.msra.mxu0 %v7644
  %7878 = vmatpush.bf16.msra.mxu0 %v7640
  %7879 = vmatpush.bf16.msra.mxu0 %v7636
  %7880 = vmatpush.bf16.msra.mxu0 %v7632
  %7881 = vmatpush.bf16.msra.mxu0 %v7628
  %7882 = vmatpush.bf16.msra.mxu0 %v7624
  %7883 = vmatpush.bf16.msra.mxu0 %v7620
  %7884 = vmatmul.bf16.gmra.mxu0 %v6970
  %v7885 = vpop.f32.mrf.mxu0
  %v7886 = vadd.f32 %v7228, %v7885
  %v7887 = vpop.f32.mrf.mxu0
  %v7888 = vadd.f32 %v7228, %v7887
  %7889 = vmatmul.bf16.gmra.mxu0 %v6974
  %v7890 = vpop.f32.mrf.mxu0
  %v7891 = vadd.f32 %v7228, %v7890
  %v7892 = vpop.f32.mrf.mxu0
  %v7893 = vadd.f32 %v7228, %v7892
  %7894 = vmatmul.bf16.gmra.mxu0 %v6978
  %v7895 = vpop.f32.mrf.mxu0
  %v7896 = vadd.f32 %v7228, %v7895
  %v7897 = vpop.f32.mrf.mxu0
  %v7898 = vadd.f32 %v7228, %v7897
  %7899 = vmatmul.bf16.gmra.mxu0 %v6982
  %v7900 = vpop.f32.mrf.mxu0
  %v7901 = vadd.f32 %v7228, %v7900
  %v7902 = vpop.f32.mrf.mxu0
  %v7903 = vadd.f32 %v7228, %v7902
  %7904 = vmatmul.bf16.gmra.mxu0 %v6986
  %v7905 = vpop.f32.mrf.mxu0
  %v7906 = vadd.f32 %v7228, %v7905
  %v7907 = vpop.f32.mrf.mxu0
  %v7908 = vadd.f32 %v7228, %v7907
  %7909 = vmatmul.bf16.gmra.mxu0 %v6990
  %v7910 = vpop.f32.mrf.mxu0
  %v7911 = vadd.f32 %v7228, %v7910
  %v7912 = vpop.f32.mrf.mxu0
  %v7913 = vadd.f32 %v7228, %v7912
  %7914 = vmatmul.bf16.gmra.mxu0 %v6994
  %v7915 = vpop.f32.mrf.mxu0
  %v7916 = vadd.f32 %v7228, %v7915
  %v7917 = vpop.f32.mrf.mxu0
  %v7918 = vadd.f32 %v7228, %v7917
  %7919 = vmatmul.bf16.gmra.mxu0 %v6998
  %v7920 = vpop.f32.mrf.mxu0
  %v7921 = vadd.f32 %v7228, %v7920
  %v7922 = vpop.f32.mrf.mxu0
  %v7923 = vadd.f32 %v7228, %v7922
  %7924 = vmatmul.bf16.gmra.mxu0 %v7002
  %v7925 = vpop.f32.mrf.mxu0
  %v7926 = vadd.f32 %v7228, %v7925
  %v7927 = vpop.f32.mrf.mxu0
  %v7928 = vadd.f32 %v7228, %v7927
  %7929 = vmatmul.bf16.gmra.mxu0 %v7006
  %v7930 = vpop.f32.mrf.mxu0
  %v7931 = vadd.f32 %v7228, %v7930
  %v7932 = vpop.f32.mrf.mxu0
  %v7933 = vadd.f32 %v7228, %v7932
  %7934 = vmatmul.bf16.gmra.mxu0 %v7010
  %v7935 = vpop.f32.mrf.mxu0
  %v7936 = vadd.f32 %v7228, %v7935
  %v7937 = vpop.f32.mrf.mxu0
  %v7938 = vadd.f32 %v7228, %v7937
  %7939 = vmatmul.bf16.gmra.mxu0 %v7014
  %v7940 = vpop.f32.mrf.mxu0
  %v7941 = vadd.f32 %v7228, %v7940
  %v7942 = vpop.f32.mrf.mxu0
  %v7943 = vadd.f32 %v7228, %v7942
  %7944 = vmatmul.bf16.gmra.mxu0 %v7018
  %v7945 = vpop.f32.mrf.mxu0
  %v7946 = vadd.f32 %v7228, %v7945
  %v7947 = vpop.f32.mrf.mxu0
  %v7948 = vadd.f32 %v7228, %v7947
  %7949 = vmatmul.bf16.gmra.mxu0 %v7022
  %v7950 = vpop.f32.mrf.mxu0
  %v7951 = vadd.f32 %v7228, %v7950
  %v7952 = vpop.f32.mrf.mxu0
  %v7953 = vadd.f32 %v7228, %v7952
  %7954 = vmatmul.bf16.gmra.mxu0 %v7026
  %v7955 = vpop.f32.mrf.mxu0
  %v7956 = vadd.f32 %v7228, %v7955
  %v7957 = vpop.f32.mrf.mxu0
  %v7958 = vadd.f32 %v7228, %v7957
  %7959 = vmatmul.bf16.gmra.mxu0 %v7030
  %v7960 = vpop.f32.mrf.mxu0
  %v7961 = vadd.f32 %v7228, %v7960
  %v7962 = vpop.f32.mrf.mxu0
  %v7963 = vadd.f32 %v7228, %v7962
  %7964 = vmatmul.bf16.gmra.mxu0 %v7034
  %v7965 = vpop.f32.mrf.mxu0
  %v7966 = vadd.f32 %v7228, %v7965
  %v7967 = vpop.f32.mrf.mxu0
  %v7968 = vadd.f32 %v7228, %v7967
  %7969 = vmatmul.bf16.gmra.mxu0 %v7038
  %v7970 = vpop.f32.mrf.mxu0
  %v7971 = vadd.f32 %v7228, %v7970
  %v7972 = vpop.f32.mrf.mxu0
  %v7973 = vadd.f32 %v7228, %v7972
  %7974 = vmatmul.bf16.gmra.mxu0 %v7042
  %v7975 = vpop.f32.mrf.mxu0
  %v7976 = vadd.f32 %v7228, %v7975
  %v7977 = vpop.f32.mrf.mxu0
  %v7978 = vadd.f32 %v7228, %v7977
  %7979 = vmatmul.bf16.gmra.mxu0 %v7046
  %v7980 = vpop.f32.mrf.mxu0
  %v7981 = vadd.f32 %v7228, %v7980
  %v7982 = vpop.f32.mrf.mxu0
  %v7983 = vadd.f32 %v7228, %v7982
  %7984 = vmatmul.bf16.gmra.mxu0 %v7050
  %v7985 = vpop.f32.mrf.mxu0
  %v7986 = vadd.f32 %v7228, %v7985
  %v7987 = vpop.f32.mrf.mxu0
  %v7988 = vadd.f32 %v7228, %v7987
  %7989 = vmatmul.bf16.gmra.mxu0 %v7054
  %v7990 = vpop.f32.mrf.mxu0
  %v7991 = vadd.f32 %v7228, %v7990
  %v7992 = vpop.f32.mrf.mxu0
  %v7993 = vadd.f32 %v7228, %v7992
  %7994 = vmatmul.bf16.gmra.mxu0 %v7058
  %v7995 = vpop.f32.mrf.mxu0
  %v7996 = vadd.f32 %v7228, %v7995
  %v7997 = vpop.f32.mrf.mxu0
  %v7998 = vadd.f32 %v7228, %v7997
  %7999 = vmatmul.bf16.gmra.mxu0 %v7062
  %v8000 = vpop.f32.mrf.mxu0
  %v8001 = vadd.f32 %v7228, %v8000
  %v8002 = vpop.f32.mrf.mxu0
  %v8003 = vadd.f32 %v7228, %v8002
  %8004 = vmatmul.bf16.gmra.mxu0 %v7066
  %v8005 = vpop.f32.mrf.mxu0
  %v8006 = vadd.f32 %v7228, %v8005
  %v8007 = vpop.f32.mrf.mxu0
  %v8008 = vadd.f32 %v7228, %v8007
  %8009 = vmatmul.bf16.gmra.mxu0 %v7070
  %v8010 = vpop.f32.mrf.mxu0
  %v8011 = vadd.f32 %v7228, %v8010
  %v8012 = vpop.f32.mrf.mxu0
  %v8013 = vadd.f32 %v7228, %v8012
  %8014 = vmatmul.bf16.gmra.mxu0 %v7074
  %v8015 = vpop.f32.mrf.mxu0
  %v8016 = vadd.f32 %v7228, %v8015
  %v8017 = vpop.f32.mrf.mxu0
  %v8018 = vadd.f32 %v7228, %v8017
  %8019 = vmatmul.bf16.gmra.mxu0 %v7078
  %v8020 = vpop.f32.mrf.mxu0
  %v8021 = vadd.f32 %v7228, %v8020
  %v8022 = vpop.f32.mrf.mxu0
  %v8023 = vadd.f32 %v7228, %v8022
  %8024 = vmatmul.bf16.gmra.mxu0 %v7082
  %v8025 = vpop.f32.mrf.mxu0
  %v8026 = vadd.f32 %v7228, %v8025
  %v8027 = vpop.f32.mrf.mxu0
  %v8028 = vadd.f32 %v7228, %v8027
  %8029 = vmatmul.bf16.gmra.mxu0 %v7086
  %v8030 = vpop.f32.mrf.mxu0
  %v8031 = vadd.f32 %v7228, %v8030
  %v8032 = vpop.f32.mrf.mxu0
  %v8033 = vadd.f32 %v7228, %v8032
  %8034 = vmatmul.bf16.gmra.mxu0 %v7090
  %v8035 = vpop.f32.mrf.mxu0
  %v8036 = vadd.f32 %v7228, %v8035
  %v8037 = vpop.f32.mrf.mxu0
  %v8038 = vadd.f32 %v7228, %v8037
  %8039 = vmatmul.bf16.gmra.mxu0 %v7094
  %v8040 = vpop.f32.mrf.mxu0
  %v8041 = vadd.f32 %v7228, %v8040
  %v8042 = vpop.f32.mrf.mxu0
  %v8043 = vadd.f32 %v7228, %v8042
  %8044 = vdwg.mxu0
  %8045 = vmatpush.bf16.msra.mxu0 %v7680
  %8046 = vmatpush.bf16.msra.mxu0 %v7676
  %8047 = vmatpush.bf16.msra.mxu0 %v7672
  %8048 = vmatpush.bf16.msra.mxu0 %v7668
  %8049 = vmatpush.bf16.msra.mxu0 %v7664
  %8050 = vmatpush.bf16.msra.mxu0 %v7660
  %8051 = vmatpush.bf16.msra.mxu0 %v7656
  %8052 = vmatpush.bf16.msra.mxu0 %v7652
  %8053 = vmatmul.bf16.gmra.mxu0 %v6971
  %v8054 = vpop.f32.mrf.mxu0
  %v8055 = vadd.f32 %v7886, %v8054
  %v8056 = vpop.f32.mrf.mxu0
  %v8057 = vadd.f32 %v7888, %v8056
  %8058 = vmatmul.bf16.gmra.mxu0 %v6975
  %v8059 = vpop.f32.mrf.mxu0
  %v8060 = vadd.f32 %v7891, %v8059
  %v8061 = vpop.f32.mrf.mxu0
  %v8062 = vadd.f32 %v7893, %v8061
  %8063 = vmatmul.bf16.gmra.mxu0 %v6979
  %v8064 = vpop.f32.mrf.mxu0
  %v8065 = vadd.f32 %v7896, %v8064
  %v8066 = vpop.f32.mrf.mxu0
  %v8067 = vadd.f32 %v7898, %v8066
  %8068 = vmatmul.bf16.gmra.mxu0 %v6983
  %v8069 = vpop.f32.mrf.mxu0
  %v8070 = vadd.f32 %v7901, %v8069
  %v8071 = vpop.f32.mrf.mxu0
  %v8072 = vadd.f32 %v7903, %v8071
  %8073 = vmatmul.bf16.gmra.mxu0 %v6987
  %v8074 = vpop.f32.mrf.mxu0
  %v8075 = vadd.f32 %v7906, %v8074
  %v8076 = vpop.f32.mrf.mxu0
  %v8077 = vadd.f32 %v7908, %v8076
  %8078 = vmatmul.bf16.gmra.mxu0 %v6991
  %v8079 = vpop.f32.mrf.mxu0
  %v8080 = vadd.f32 %v7911, %v8079
  %v8081 = vpop.f32.mrf.mxu0
  %v8082 = vadd.f32 %v7913, %v8081
  %8083 = vmatmul.bf16.gmra.mxu0 %v6995
  %v8084 = vpop.f32.mrf.mxu0
  %v8085 = vadd.f32 %v7916, %v8084
  %v8086 = vpop.f32.mrf.mxu0
  %v8087 = vadd.f32 %v7918, %v8086
  %8088 = vmatmul.bf16.gmra.mxu0 %v6999
  %v8089 = vpop.f32.mrf.mxu0
  %v8090 = vadd.f32 %v7921, %v8089
  %v8091 = vpop.f32.mrf.mxu0
  %v8092 = vadd.f32 %v7923, %v8091
  %8093 = vmatmul.bf16.gmra.mxu0 %v7003
  %v8094 = vpop.f32.mrf.mxu0
  %v8095 = vadd.f32 %v7926, %v8094
  %v8096 = vpop.f32.mrf.mxu0
  %v8097 = vadd.f32 %v7928, %v8096
  %8098 = vmatmul.bf16.gmra.mxu0 %v7007
  %v8099 = vpop.f32.mrf.mxu0
  %v8100 = vadd.f32 %v7931, %v8099
  %v8101 = vpop.f32.mrf.mxu0
  %v8102 = vadd.f32 %v7933, %v8101
  %8103 = vmatmul.bf16.gmra.mxu0 %v7011
  %v8104 = vpop.f32.mrf.mxu0
  %v8105 = vadd.f32 %v7936, %v8104
  %v8106 = vpop.f32.mrf.mxu0
  %v8107 = vadd.f32 %v7938, %v8106
  %8108 = vmatmul.bf16.gmra.mxu0 %v7015
  %v8109 = vpop.f32.mrf.mxu0
  %v8110 = vadd.f32 %v7941, %v8109
  %v8111 = vpop.f32.mrf.mxu0
  %v8112 = vadd.f32 %v7943, %v8111
  %8113 = vmatmul.bf16.gmra.mxu0 %v7019
  %v8114 = vpop.f32.mrf.mxu0
  %v8115 = vadd.f32 %v7946, %v8114
  %v8116 = vpop.f32.mrf.mxu0
  %v8117 = vadd.f32 %v7948, %v8116
  %8118 = vmatmul.bf16.gmra.mxu0 %v7023
  %v8119 = vpop.f32.mrf.mxu0
  %v8120 = vadd.f32 %v7951, %v8119
  %v8121 = vpop.f32.mrf.mxu0
  %v8122 = vadd.f32 %v7953, %v8121
  %8123 = vmatmul.bf16.gmra.mxu0 %v7027
  %v8124 = vpop.f32.mrf.mxu0
  %v8125 = vadd.f32 %v7956, %v8124
  %v8126 = vpop.f32.mrf.mxu0
  %v8127 = vadd.f32 %v7958, %v8126
  %8128 = vmatmul.bf16.gmra.mxu0 %v7031
  %v8129 = vpop.f32.mrf.mxu0
  %v8130 = vadd.f32 %v7961, %v8129
  %v8131 = vpop.f32.mrf.mxu0
  %v8132 = vadd.f32 %v7963, %v8131
  %8133 = vmatmul.bf16.gmra.mxu0 %v7035
  %v8134 = vpop.f32.mrf.mxu0
  %v8135 = vadd.f32 %v7966, %v8134
  %v8136 = vpop.f32.mrf.mxu0
  %v8137 = vadd.f32 %v7968, %v8136
  %8138 = vmatmul.bf16.gmra.mxu0 %v7039
  %v8139 = vpop.f32.mrf.mxu0
  %v8140 = vadd.f32 %v7971, %v8139
  %v8141 = vpop.f32.mrf.mxu0
  %v8142 = vadd.f32 %v7973, %v8141
  %8143 = vmatmul.bf16.gmra.mxu0 %v7043
  %v8144 = vpop.f32.mrf.mxu0
  %v8145 = vadd.f32 %v7976, %v8144
  %v8146 = vpop.f32.mrf.mxu0
  %v8147 = vadd.f32 %v7978, %v8146
  %8148 = vmatmul.bf16.gmra.mxu0 %v7047
  %v8149 = vpop.f32.mrf.mxu0
  %v8150 = vadd.f32 %v7981, %v8149
  %v8151 = vpop.f32.mrf.mxu0
  %v8152 = vadd.f32 %v7983, %v8151
  %8153 = vmatmul.bf16.gmra.mxu0 %v7051
  %v8154 = vpop.f32.mrf.mxu0
  %v8155 = vadd.f32 %v7986, %v8154
  %v8156 = vpop.f32.mrf.mxu0
  %v8157 = vadd.f32 %v7988, %v8156
  %8158 = vmatmul.bf16.gmra.mxu0 %v7055
  %v8159 = vpop.f32.mrf.mxu0
  %v8160 = vadd.f32 %v7991, %v8159
  %v8161 = vpop.f32.mrf.mxu0
  %v8162 = vadd.f32 %v7993, %v8161
  %8163 = vmatmul.bf16.gmra.mxu0 %v7059
  %v8164 = vpop.f32.mrf.mxu0
  %v8165 = vadd.f32 %v7996, %v8164
  %v8166 = vpop.f32.mrf.mxu0
  %v8167 = vadd.f32 %v7998, %v8166
  %8168 = vmatmul.bf16.gmra.mxu0 %v7063
  %v8169 = vpop.f32.mrf.mxu0
  %v8170 = vadd.f32 %v8001, %v8169
  %v8171 = vpop.f32.mrf.mxu0
  %v8172 = vadd.f32 %v8003, %v8171
  %8173 = vmatmul.bf16.gmra.mxu0 %v7067
  %v8174 = vpop.f32.mrf.mxu0
  %v8175 = vadd.f32 %v8006, %v8174
  %v8176 = vpop.f32.mrf.mxu0
  %v8177 = vadd.f32 %v8008, %v8176
  %8178 = vmatmul.bf16.gmra.mxu0 %v7071
  %v8179 = vpop.f32.mrf.mxu0
  %v8180 = vadd.f32 %v8011, %v8179
  %v8181 = vpop.f32.mrf.mxu0
  %v8182 = vadd.f32 %v8013, %v8181
  %8183 = vmatmul.bf16.gmra.mxu0 %v7075
  %v8184 = vpop.f32.mrf.mxu0
  %v8185 = vadd.f32 %v8016, %v8184
  %v8186 = vpop.f32.mrf.mxu0
  %v8187 = vadd.f32 %v8018, %v8186
  %8188 = vmatmul.bf16.gmra.mxu0 %v7079
  %v8189 = vpop.f32.mrf.mxu0
  %v8190 = vadd.f32 %v8021, %v8189
  %v8191 = vpop.f32.mrf.mxu0
  %v8192 = vadd.f32 %v8023, %v8191
  %8193 = vmatmul.bf16.gmra.mxu0 %v7083
  %v8194 = vpop.f32.mrf.mxu0
  %v8195 = vadd.f32 %v8026, %v8194
  %v8196 = vpop.f32.mrf.mxu0
  %v8197 = vadd.f32 %v8028, %v8196
  %8198 = vmatmul.bf16.gmra.mxu0 %v7087
  %v8199 = vpop.f32.mrf.mxu0
  %v8200 = vadd.f32 %v8031, %v8199
  %v8201 = vpop.f32.mrf.mxu0
  %v8202 = vadd.f32 %v8033, %v8201
  %8203 = vmatmul.bf16.gmra.mxu0 %v7091
  %v8204 = vpop.f32.mrf.mxu0
  %v8205 = vadd.f32 %v8036, %v8204
  %v8206 = vpop.f32.mrf.mxu0
  %v8207 = vadd.f32 %v8038, %v8206
  %8208 = vmatmul.bf16.gmra.mxu0 %v7095
  %v8209 = vpop.f32.mrf.mxu0
  %v8210 = vadd.f32 %v8041, %v8209
  %v8211 = vpop.f32.mrf.mxu0
  %v8212 = vadd.f32 %v8043, %v8211
  %8213 = vdwg.mxu0
  %8214 = vmatpush.bf16.msra.mxu0 %v7712
  %8215 = vmatpush.bf16.msra.mxu0 %v7708
  %8216 = vmatpush.bf16.msra.mxu0 %v7704
  %8217 = vmatpush.bf16.msra.mxu0 %v7700
  %8218 = vmatpush.bf16.msra.mxu0 %v7696
  %8219 = vmatpush.bf16.msra.mxu0 %v7692
  %8220 = vmatpush.bf16.msra.mxu0 %v7688
  %8221 = vmatpush.bf16.msra.mxu0 %v7684
  %8222 = vmatmul.bf16.gmra.mxu0 %v6972
  %v8223 = vpop.f32.mrf.mxu0
  %v8224 = vadd.f32 %v8055, %v8223
  %v8225 = vpop.f32.mrf.mxu0
  %v8226 = vadd.f32 %v8057, %v8225
  %8227 = vmatmul.bf16.gmra.mxu0 %v6976
  %v8228 = vpop.f32.mrf.mxu0
  %v8229 = vadd.f32 %v8060, %v8228
  %v8230 = vpop.f32.mrf.mxu0
  %v8231 = vadd.f32 %v8062, %v8230
  %8232 = vmatmul.bf16.gmra.mxu0 %v6980
  %v8233 = vpop.f32.mrf.mxu0
  %v8234 = vadd.f32 %v8065, %v8233
  %v8235 = vpop.f32.mrf.mxu0
  %v8236 = vadd.f32 %v8067, %v8235
  %8237 = vmatmul.bf16.gmra.mxu0 %v6984
  %v8238 = vpop.f32.mrf.mxu0
  %v8239 = vadd.f32 %v8070, %v8238
  %v8240 = vpop.f32.mrf.mxu0
  %v8241 = vadd.f32 %v8072, %v8240
  %8242 = vmatmul.bf16.gmra.mxu0 %v6988
  %v8243 = vpop.f32.mrf.mxu0
  %v8244 = vadd.f32 %v8075, %v8243
  %v8245 = vpop.f32.mrf.mxu0
  %v8246 = vadd.f32 %v8077, %v8245
  %8247 = vmatmul.bf16.gmra.mxu0 %v6992
  %v8248 = vpop.f32.mrf.mxu0
  %v8249 = vadd.f32 %v8080, %v8248
  %v8250 = vpop.f32.mrf.mxu0
  %v8251 = vadd.f32 %v8082, %v8250
  %8252 = vmatmul.bf16.gmra.mxu0 %v6996
  %v8253 = vpop.f32.mrf.mxu0
  %v8254 = vadd.f32 %v8085, %v8253
  %v8255 = vpop.f32.mrf.mxu0
  %v8256 = vadd.f32 %v8087, %v8255
  %8257 = vmatmul.bf16.gmra.mxu0 %v7000
  %v8258 = vpop.f32.mrf.mxu0
  %v8259 = vadd.f32 %v8090, %v8258
  %v8260 = vpop.f32.mrf.mxu0
  %v8261 = vadd.f32 %v8092, %v8260
  %8262 = vmatmul.bf16.gmra.mxu0 %v7004
  %v8263 = vpop.f32.mrf.mxu0
  %v8264 = vadd.f32 %v8095, %v8263
  %v8265 = vpop.f32.mrf.mxu0
  %v8266 = vadd.f32 %v8097, %v8265
  %8267 = vmatmul.bf16.gmra.mxu0 %v7008
  %v8268 = vpop.f32.mrf.mxu0
  %v8269 = vadd.f32 %v8100, %v8268
  %v8270 = vpop.f32.mrf.mxu0
  %v8271 = vadd.f32 %v8102, %v8270
  %8272 = vmatmul.bf16.gmra.mxu0 %v7012
  %v8273 = vpop.f32.mrf.mxu0
  %v8274 = vadd.f32 %v8105, %v8273
  %v8275 = vpop.f32.mrf.mxu0
  %v8276 = vadd.f32 %v8107, %v8275
  %8277 = vmatmul.bf16.gmra.mxu0 %v7016
  %v8278 = vpop.f32.mrf.mxu0
  %v8279 = vadd.f32 %v8110, %v8278
  %v8280 = vpop.f32.mrf.mxu0
  %v8281 = vadd.f32 %v8112, %v8280
  %8282 = vmatmul.bf16.gmra.mxu0 %v7020
  %v8283 = vpop.f32.mrf.mxu0
  %v8284 = vadd.f32 %v8115, %v8283
  %v8285 = vpop.f32.mrf.mxu0
  %v8286 = vadd.f32 %v8117, %v8285
  %8287 = vmatmul.bf16.gmra.mxu0 %v7024
  %v8288 = vpop.f32.mrf.mxu0
  %v8289 = vadd.f32 %v8120, %v8288
  %v8290 = vpop.f32.mrf.mxu0
  %v8291 = vadd.f32 %v8122, %v8290
  %8292 = vmatmul.bf16.gmra.mxu0 %v7028
  %v8293 = vpop.f32.mrf.mxu0
  %v8294 = vadd.f32 %v8125, %v8293
  %v8295 = vpop.f32.mrf.mxu0
  %v8296 = vadd.f32 %v8127, %v8295
  %8297 = vmatmul.bf16.gmra.mxu0 %v7032
  %v8298 = vpop.f32.mrf.mxu0
  %v8299 = vadd.f32 %v8130, %v8298
  %v8300 = vpop.f32.mrf.mxu0
  %v8301 = vadd.f32 %v8132, %v8300
  %8302 = vmatmul.bf16.gmra.mxu0 %v7036
  %v8303 = vpop.f32.mrf.mxu0
  %v8304 = vadd.f32 %v8135, %v8303
  %v8305 = vpop.f32.mrf.mxu0
  %v8306 = vadd.f32 %v8137, %v8305
  %8307 = vmatmul.bf16.gmra.mxu0 %v7040
  %v8308 = vpop.f32.mrf.mxu0
  %v8309 = vadd.f32 %v8140, %v8308
  %v8310 = vpop.f32.mrf.mxu0
  %v8311 = vadd.f32 %v8142, %v8310
  %8312 = vmatmul.bf16.gmra.mxu0 %v7044
  %v8313 = vpop.f32.mrf.mxu0
  %v8314 = vadd.f32 %v8145, %v8313
  %v8315 = vpop.f32.mrf.mxu0
  %v8316 = vadd.f32 %v8147, %v8315
  %8317 = vmatmul.bf16.gmra.mxu0 %v7048
  %v8318 = vpop.f32.mrf.mxu0
  %v8319 = vadd.f32 %v8150, %v8318
  %v8320 = vpop.f32.mrf.mxu0
  %v8321 = vadd.f32 %v8152, %v8320
  %8322 = vmatmul.bf16.gmra.mxu0 %v7052
  %v8323 = vpop.f32.mrf.mxu0
  %v8324 = vadd.f32 %v8155, %v8323
  %v8325 = vpop.f32.mrf.mxu0
  %v8326 = vadd.f32 %v8157, %v8325
  %8327 = vmatmul.bf16.gmra.mxu0 %v7056
  %v8328 = vpop.f32.mrf.mxu0
  %v8329 = vadd.f32 %v8160, %v8328
  %v8330 = vpop.f32.mrf.mxu0
  %v8331 = vadd.f32 %v8162, %v8330
  %8332 = vmatmul.bf16.gmra.mxu0 %v7060
  %v8333 = vpop.f32.mrf.mxu0
  %v8334 = vadd.f32 %v8165, %v8333
  %v8335 = vpop.f32.mrf.mxu0
  %v8336 = vadd.f32 %v8167, %v8335
  %8337 = vmatmul.bf16.gmra.mxu0 %v7064
  %v8338 = vpop.f32.mrf.mxu0
  %v8339 = vadd.f32 %v8170, %v8338
  %v8340 = vpop.f32.mrf.mxu0
  %v8341 = vadd.f32 %v8172, %v8340
  %8342 = vmatmul.bf16.gmra.mxu0 %v7068
  %v8343 = vpop.f32.mrf.mxu0
  %v8344 = vadd.f32 %v8175, %v8343
  %v8345 = vpop.f32.mrf.mxu0
  %v8346 = vadd.f32 %v8177, %v8345
  %8347 = vmatmul.bf16.gmra.mxu0 %v7072
  %v8348 = vpop.f32.mrf.mxu0
  %v8349 = vadd.f32 %v8180, %v8348
  %v8350 = vpop.f32.mrf.mxu0
  %v8351 = vadd.f32 %v8182, %v8350
  %8352 = vmatmul.bf16.gmra.mxu0 %v7076
  %v8353 = vpop.f32.mrf.mxu0
  %v8354 = vadd.f32 %v8185, %v8353
  %v8355 = vpop.f32.mrf.mxu0
  %v8356 = vadd.f32 %v8187, %v8355
  %8357 = vmatmul.bf16.gmra.mxu0 %v7080
  %v8358 = vpop.f32.mrf.mxu0
  %v8359 = vadd.f32 %v8190, %v8358
  %v8360 = vpop.f32.mrf.mxu0
  %v8361 = vadd.f32 %v8192, %v8360
  %8362 = vmatmul.bf16.gmra.mxu0 %v7084
  %v8363 = vpop.f32.mrf.mxu0
  %v8364 = vadd.f32 %v8195, %v8363
  %v8365 = vpop.f32.mrf.mxu0
  %v8366 = vadd.f32 %v8197, %v8365
  %8367 = vmatmul.bf16.gmra.mxu0 %v7088
  %v8368 = vpop.f32.mrf.mxu0
  %v8369 = vadd.f32 %v8200, %v8368
  %v8370 = vpop.f32.mrf.mxu0
  %v8371 = vadd.f32 %v8202, %v8370
  %8372 = vmatmul.bf16.gmra.mxu0 %v7092
  %v8373 = vpop.f32.mrf.mxu0
  %v8374 = vadd.f32 %v8205, %v8373
  %v8375 = vpop.f32.mrf.mxu0
  %v8376 = vadd.f32 %v8207, %v8375
  %8377 = vmatmul.bf16.gmra.mxu0 %v7096
  %v8378 = vpop.f32.mrf.mxu0
  %v8379 = vadd.f32 %v8210, %v8378
  %v8380 = vpop.f32.mrf.mxu0
  %v8381 = vadd.f32 %v8212, %v8380
  %8382 = vdwg.mxu0
  %8383 = vmatpush.bf16.msra.mxu0 %v7744
  %8384 = vmatpush.bf16.msra.mxu0 %v7740
  %8385 = vmatpush.bf16.msra.mxu0 %v7736
  %8386 = vmatpush.bf16.msra.mxu0 %v7732
  %8387 = vmatpush.bf16.msra.mxu0 %v7728
  %8388 = vmatpush.bf16.msra.mxu0 %v7724
  %8389 = vmatpush.bf16.msra.mxu0 %v7720
  %8390 = vmatpush.bf16.msra.mxu0 %v7716
  %8391 = vmatmul.bf16.gmra.mxu0 %v6973
  %v8392 = vpop.f32.mrf.mxu0
  %v8393 = vadd.f32 %v8224, %v8392
  %v8394 = vpop.f32.mrf.mxu0
  %v8395 = vadd.f32 %v8226, %v8394
  %8396 = vmatmul.bf16.gmra.mxu0 %v6977
  %v8397 = vpop.f32.mrf.mxu0
  %v8398 = vadd.f32 %v8229, %v8397
  %v8399 = vpop.f32.mrf.mxu0
  %v8400 = vadd.f32 %v8231, %v8399
  %8401 = vmatmul.bf16.gmra.mxu0 %v6981
  %v8402 = vpop.f32.mrf.mxu0
  %v8403 = vadd.f32 %v8234, %v8402
  %v8404 = vpop.f32.mrf.mxu0
  %v8405 = vadd.f32 %v8236, %v8404
  %8406 = vmatmul.bf16.gmra.mxu0 %v6985
  %v8407 = vpop.f32.mrf.mxu0
  %v8408 = vadd.f32 %v8239, %v8407
  %v8409 = vpop.f32.mrf.mxu0
  %v8410 = vadd.f32 %v8241, %v8409
  %8411 = vmatmul.bf16.gmra.mxu0 %v6989
  %v8412 = vpop.f32.mrf.mxu0
  %v8413 = vadd.f32 %v8244, %v8412
  %v8414 = vpop.f32.mrf.mxu0
  %v8415 = vadd.f32 %v8246, %v8414
  %8416 = vmatmul.bf16.gmra.mxu0 %v6993
  %v8417 = vpop.f32.mrf.mxu0
  %v8418 = vadd.f32 %v8249, %v8417
  %v8419 = vpop.f32.mrf.mxu0
  %v8420 = vadd.f32 %v8251, %v8419
  %8421 = vmatmul.bf16.gmra.mxu0 %v6997
  %v8422 = vpop.f32.mrf.mxu0
  %v8423 = vadd.f32 %v8254, %v8422
  %v8424 = vpop.f32.mrf.mxu0
  %v8425 = vadd.f32 %v8256, %v8424
  %8426 = vmatmul.bf16.gmra.mxu0 %v7001
  %v8427 = vpop.f32.mrf.mxu0
  %v8428 = vadd.f32 %v8259, %v8427
  %v8429 = vpop.f32.mrf.mxu0
  %v8430 = vadd.f32 %v8261, %v8429
  %8431 = vmatmul.bf16.gmra.mxu0 %v7005
  %v8432 = vpop.f32.mrf.mxu0
  %v8433 = vadd.f32 %v8264, %v8432
  %v8434 = vpop.f32.mrf.mxu0
  %v8435 = vadd.f32 %v8266, %v8434
  %8436 = vmatmul.bf16.gmra.mxu0 %v7009
  %v8437 = vpop.f32.mrf.mxu0
  %v8438 = vadd.f32 %v8269, %v8437
  %v8439 = vpop.f32.mrf.mxu0
  %v8440 = vadd.f32 %v8271, %v8439
  %8441 = vmatmul.bf16.gmra.mxu0 %v7013
  %v8442 = vpop.f32.mrf.mxu0
  %v8443 = vadd.f32 %v8274, %v8442
  %v8444 = vpop.f32.mrf.mxu0
  %v8445 = vadd.f32 %v8276, %v8444
  %8446 = vmatmul.bf16.gmra.mxu0 %v7017
  %v8447 = vpop.f32.mrf.mxu0
  %v8448 = vadd.f32 %v8279, %v8447
  %v8449 = vpop.f32.mrf.mxu0
  %v8450 = vadd.f32 %v8281, %v8449
  %8451 = vmatmul.bf16.gmra.mxu0 %v7021
  %v8452 = vpop.f32.mrf.mxu0
  %v8453 = vadd.f32 %v8284, %v8452
  %v8454 = vpop.f32.mrf.mxu0
  %v8455 = vadd.f32 %v8286, %v8454
  %8456 = vmatmul.bf16.gmra.mxu0 %v7025
  %v8457 = vpop.f32.mrf.mxu0
  %v8458 = vadd.f32 %v8289, %v8457
  %v8459 = vpop.f32.mrf.mxu0
  %v8460 = vadd.f32 %v8291, %v8459
  %8461 = vmatmul.bf16.gmra.mxu0 %v7029
  %v8462 = vpop.f32.mrf.mxu0
  %v8463 = vadd.f32 %v8294, %v8462
  %v8464 = vpop.f32.mrf.mxu0
  %v8465 = vadd.f32 %v8296, %v8464
  %8466 = vmatmul.bf16.gmra.mxu0 %v7033
  %v8467 = vpop.f32.mrf.mxu0
  %v8468 = vadd.f32 %v8299, %v8467
  %v8469 = vpop.f32.mrf.mxu0
  %v8470 = vadd.f32 %v8301, %v8469
  %8471 = vmatmul.bf16.gmra.mxu0 %v7037
  %v8472 = vpop.f32.mrf.mxu0
  %v8473 = vadd.f32 %v8304, %v8472
  %v8474 = vpop.f32.mrf.mxu0
  %v8475 = vadd.f32 %v8306, %v8474
  %8476 = vmatmul.bf16.gmra.mxu0 %v7041
  %v8477 = vpop.f32.mrf.mxu0
  %v8478 = vadd.f32 %v8309, %v8477
  %v8479 = vpop.f32.mrf.mxu0
  %v8480 = vadd.f32 %v8311, %v8479
  %8481 = vmatmul.bf16.gmra.mxu0 %v7045
  %v8482 = vpop.f32.mrf.mxu0
  %v8483 = vadd.f32 %v8314, %v8482
  %v8484 = vpop.f32.mrf.mxu0
  %v8485 = vadd.f32 %v8316, %v8484
  %8486 = vmatmul.bf16.gmra.mxu0 %v7049
  %v8487 = vpop.f32.mrf.mxu0
  %v8488 = vadd.f32 %v8319, %v8487
  %v8489 = vpop.f32.mrf.mxu0
  %v8490 = vadd.f32 %v8321, %v8489
  %8491 = vmatmul.bf16.gmra.mxu0 %v7053
  %v8492 = vpop.f32.mrf.mxu0
  %v8493 = vadd.f32 %v8324, %v8492
  %v8494 = vpop.f32.mrf.mxu0
  %v8495 = vadd.f32 %v8326, %v8494
  %8496 = vmatmul.bf16.gmra.mxu0 %v7057
  %v8497 = vpop.f32.mrf.mxu0
  %v8498 = vadd.f32 %v8329, %v8497
  %v8499 = vpop.f32.mrf.mxu0
  %v8500 = vadd.f32 %v8331, %v8499
  %8501 = vmatmul.bf16.gmra.mxu0 %v7061
  %v8502 = vpop.f32.mrf.mxu0
  %v8503 = vadd.f32 %v8334, %v8502
  %v8504 = vpop.f32.mrf.mxu0
  %v8505 = vadd.f32 %v8336, %v8504
  %8506 = vmatmul.bf16.gmra.mxu0 %v7065
  %v8507 = vpop.f32.mrf.mxu0
  %v8508 = vadd.f32 %v8339, %v8507
  %v8509 = vpop.f32.mrf.mxu0
  %v8510 = vadd.f32 %v8341, %v8509
  %8511 = vmatmul.bf16.gmra.mxu0 %v7069
  %v8512 = vpop.f32.mrf.mxu0
  %v8513 = vadd.f32 %v8344, %v8512
  %v8514 = vpop.f32.mrf.mxu0
  %v8515 = vadd.f32 %v8346, %v8514
  %8516 = vmatmul.bf16.gmra.mxu0 %v7073
  %v8517 = vpop.f32.mrf.mxu0
  %v8518 = vadd.f32 %v8349, %v8517
  %v8519 = vpop.f32.mrf.mxu0
  %v8520 = vadd.f32 %v8351, %v8519
  %8521 = vmatmul.bf16.gmra.mxu0 %v7077
  %v8522 = vpop.f32.mrf.mxu0
  %v8523 = vadd.f32 %v8354, %v8522
  %v8524 = vpop.f32.mrf.mxu0
  %v8525 = vadd.f32 %v8356, %v8524
  %8526 = vmatmul.bf16.gmra.mxu0 %v7081
  %v8527 = vpop.f32.mrf.mxu0
  %v8528 = vadd.f32 %v8359, %v8527
  %v8529 = vpop.f32.mrf.mxu0
  %v8530 = vadd.f32 %v8361, %v8529
  %8531 = vmatmul.bf16.gmra.mxu0 %v7085
  %v8532 = vpop.f32.mrf.mxu0
  %v8533 = vadd.f32 %v8364, %v8532
  %v8534 = vpop.f32.mrf.mxu0
  %v8535 = vadd.f32 %v8366, %v8534
  %8536 = vmatmul.bf16.gmra.mxu0 %v7089
  %v8537 = vpop.f32.mrf.mxu0
  %v8538 = vadd.f32 %v8369, %v8537
  %v8539 = vpop.f32.mrf.mxu0
  %v8540 = vadd.f32 %v8371, %v8539
  %8541 = vmatmul.bf16.gmra.mxu0 %v7093
  %v8542 = vpop.f32.mrf.mxu0
  %v8543 = vadd.f32 %v8374, %v8542
  %v8544 = vpop.f32.mrf.mxu0
  %v8545 = vadd.f32 %v8376, %v8544
  %8546 = vmatmul.bf16.gmra.mxu0 %v7097
  %v8547 = vpop.f32.mrf.mxu0
  %v8548 = vadd.f32 %v8379, %v8547
  %v8549 = vpop.f32.mrf.mxu0
  %v8550 = vadd.f32 %v8381, %v8549
  %8551 = vdwg.mxu0
  %8552 = vmatpush.bf16.msra.mxu0 %v7649
  %8553 = vmatpush.bf16.msra.mxu0 %v7645
  %8554 = vmatpush.bf16.msra.mxu0 %v7641
  %8555 = vmatpush.bf16.msra.mxu0 %v7637
  %8556 = vmatpush.bf16.msra.mxu0 %v7633
  %8557 = vmatpush.bf16.msra.mxu0 %v7629
  %8558 = vmatpush.bf16.msra.mxu0 %v7625
  %8559 = vmatpush.bf16.msra.mxu0 %v7621
  %8560 = vmatmul.bf16.gmra.mxu0 %v6970
  %v8561 = vpop.f32.mrf.mxu0
  %v8562 = vadd.f32 %v7229, %v8561
  %v8563 = vpop.f32.mrf.mxu0
  %v8564 = vadd.f32 %v7229, %v8563
  %8565 = vmatmul.bf16.gmra.mxu0 %v6974
  %v8566 = vpop.f32.mrf.mxu0
  %v8567 = vadd.f32 %v7229, %v8566
  %v8568 = vpop.f32.mrf.mxu0
  %v8569 = vadd.f32 %v7229, %v8568
  %8570 = vmatmul.bf16.gmra.mxu0 %v6978
  %v8571 = vpop.f32.mrf.mxu0
  %v8572 = vadd.f32 %v7229, %v8571
  %v8573 = vpop.f32.mrf.mxu0
  %v8574 = vadd.f32 %v7229, %v8573
  %8575 = vmatmul.bf16.gmra.mxu0 %v6982
  %v8576 = vpop.f32.mrf.mxu0
  %v8577 = vadd.f32 %v7229, %v8576
  %v8578 = vpop.f32.mrf.mxu0
  %v8579 = vadd.f32 %v7229, %v8578
  %8580 = vmatmul.bf16.gmra.mxu0 %v6986
  %v8581 = vpop.f32.mrf.mxu0
  %v8582 = vadd.f32 %v7229, %v8581
  %v8583 = vpop.f32.mrf.mxu0
  %v8584 = vadd.f32 %v7229, %v8583
  %8585 = vmatmul.bf16.gmra.mxu0 %v6990
  %v8586 = vpop.f32.mrf.mxu0
  %v8587 = vadd.f32 %v7229, %v8586
  %v8588 = vpop.f32.mrf.mxu0
  %v8589 = vadd.f32 %v7229, %v8588
  %8590 = vmatmul.bf16.gmra.mxu0 %v6994
  %v8591 = vpop.f32.mrf.mxu0
  %v8592 = vadd.f32 %v7229, %v8591
  %v8593 = vpop.f32.mrf.mxu0
  %v8594 = vadd.f32 %v7229, %v8593
  %8595 = vmatmul.bf16.gmra.mxu0 %v6998
  %v8596 = vpop.f32.mrf.mxu0
  %v8597 = vadd.f32 %v7229, %v8596
  %v8598 = vpop.f32.mrf.mxu0
  %v8599 = vadd.f32 %v7229, %v8598
  %8600 = vmatmul.bf16.gmra.mxu0 %v7002
  %v8601 = vpop.f32.mrf.mxu0
  %v8602 = vadd.f32 %v7229, %v8601
  %v8603 = vpop.f32.mrf.mxu0
  %v8604 = vadd.f32 %v7229, %v8603
  %8605 = vmatmul.bf16.gmra.mxu0 %v7006
  %v8606 = vpop.f32.mrf.mxu0
  %v8607 = vadd.f32 %v7229, %v8606
  %v8608 = vpop.f32.mrf.mxu0
  %v8609 = vadd.f32 %v7229, %v8608
  %8610 = vmatmul.bf16.gmra.mxu0 %v7010
  %v8611 = vpop.f32.mrf.mxu0
  %v8612 = vadd.f32 %v7229, %v8611
  %v8613 = vpop.f32.mrf.mxu0
  %v8614 = vadd.f32 %v7229, %v8613
  %8615 = vmatmul.bf16.gmra.mxu0 %v7014
  %v8616 = vpop.f32.mrf.mxu0
  %v8617 = vadd.f32 %v7229, %v8616
  %v8618 = vpop.f32.mrf.mxu0
  %v8619 = vadd.f32 %v7229, %v8618
  %8620 = vmatmul.bf16.gmra.mxu0 %v7018
  %v8621 = vpop.f32.mrf.mxu0
  %v8622 = vadd.f32 %v7229, %v8621
  %v8623 = vpop.f32.mrf.mxu0
  %v8624 = vadd.f32 %v7229, %v8623
  %8625 = vmatmul.bf16.gmra.mxu0 %v7022
  %v8626 = vpop.f32.mrf.mxu0
  %v8627 = vadd.f32 %v7229, %v8626
  %v8628 = vpop.f32.mrf.mxu0
  %v8629 = vadd.f32 %v7229, %v8628
  %8630 = vmatmul.bf16.gmra.mxu0 %v7026
  %v8631 = vpop.f32.mrf.mxu0
  %v8632 = vadd.f32 %v7229, %v8631
  %v8633 = vpop.f32.mrf.mxu0
  %v8634 = vadd.f32 %v7229, %v8633
  %8635 = vmatmul.bf16.gmra.mxu0 %v7030
  %v8636 = vpop.f32.mrf.mxu0
  %v8637 = vadd.f32 %v7229, %v8636
  %v8638 = vpop.f32.mrf.mxu0
  %v8639 = vadd.f32 %v7229, %v8638
  %8640 = vmatmul.bf16.gmra.mxu0 %v7034
  %v8641 = vpop.f32.mrf.mxu0
  %v8642 = vadd.f32 %v7229, %v8641
  %v8643 = vpop.f32.mrf.mxu0
  %v8644 = vadd.f32 %v7229, %v8643
  %8645 = vmatmul.bf16.gmra.mxu0 %v7038
  %v8646 = vpop.f32.mrf.mxu0
  %v8647 = vadd.f32 %v7229, %v8646
  %v8648 = vpop.f32.mrf.mxu0
  %v8649 = vadd.f32 %v7229, %v8648
  %8650 = vmatmul.bf16.gmra.mxu0 %v7042
  %v8651 = vpop.f32.mrf.mxu0
  %v8652 = vadd.f32 %v7229, %v8651
  %v8653 = vpop.f32.mrf.mxu0
  %v8654 = vadd.f32 %v7229, %v8653
  %8655 = vmatmul.bf16.gmra.mxu0 %v7046
  %v8656 = vpop.f32.mrf.mxu0
  %v8657 = vadd.f32 %v7229, %v8656
  %v8658 = vpop.f32.mrf.mxu0
  %v8659 = vadd.f32 %v7229, %v8658
  %8660 = vmatmul.bf16.gmra.mxu0 %v7050
  %v8661 = vpop.f32.mrf.mxu0
  %v8662 = vadd.f32 %v7229, %v8661
  %v8663 = vpop.f32.mrf.mxu0
  %v8664 = vadd.f32 %v7229, %v8663
  %8665 = vmatmul.bf16.gmra.mxu0 %v7054
  %v8666 = vpop.f32.mrf.mxu0
  %v8667 = vadd.f32 %v7229, %v8666
  %v8668 = vpop.f32.mrf.mxu0
  %v8669 = vadd.f32 %v7229, %v8668
  %8670 = vmatmul.bf16.gmra.mxu0 %v7058
  %v8671 = vpop.f32.mrf.mxu0
  %v8672 = vadd.f32 %v7229, %v8671
  %v8673 = vpop.f32.mrf.mxu0
  %v8674 = vadd.f32 %v7229, %v8673
  %8675 = vmatmul.bf16.gmra.mxu0 %v7062
  %v8676 = vpop.f32.mrf.mxu0
  %v8677 = vadd.f32 %v7229, %v8676
  %v8678 = vpop.f32.mrf.mxu0
  %v8679 = vadd.f32 %v7229, %v8678
  %8680 = vmatmul.bf16.gmra.mxu0 %v7066
  %v8681 = vpop.f32.mrf.mxu0
  %v8682 = vadd.f32 %v7229, %v8681
  %v8683 = vpop.f32.mrf.mxu0
  %v8684 = vadd.f32 %v7229, %v8683
  %8685 = vmatmul.bf16.gmra.mxu0 %v7070
  %v8686 = vpop.f32.mrf.mxu0
  %v8687 = vadd.f32 %v7229, %v8686
  %v8688 = vpop.f32.mrf.mxu0
  %v8689 = vadd.f32 %v7229, %v8688
  %8690 = vmatmul.bf16.gmra.mxu0 %v7074
  %v8691 = vpop.f32.mrf.mxu0
  %v8692 = vadd.f32 %v7229, %v8691
  %v8693 = vpop.f32.mrf.mxu0
  %v8694 = vadd.f32 %v7229, %v8693
  %8695 = vmatmul.bf16.gmra.mxu0 %v7078
  %v8696 = vpop.f32.mrf.mxu0
  %v8697 = vadd.f32 %v7229, %v8696
  %v8698 = vpop.f32.mrf.mxu0
  %v8699 = vadd.f32 %v7229, %v8698
  %8700 = vmatmul.bf16.gmra.mxu0 %v7082
  %v8701 = vpop.f32.mrf.mxu0
  %v8702 = vadd.f32 %v7229, %v8701
  %v8703 = vpop.f32.mrf.mxu0
  %v8704 = vadd.f32 %v7229, %v8703
  %8705 = vmatmul.bf16.gmra.mxu0 %v7086
  %v8706 = vpop.f32.mrf.mxu0
  %v8707 = vadd.f32 %v7229, %v8706
  %v8708 = vpop.f32.mrf.mxu0
  %v8709 = vadd.f32 %v7229, %v8708
  %8710 = vmatmul.bf16.gmra.mxu0 %v7090
  %v8711 = vpop.f32.mrf.mxu0
  %v8712 = vadd.f32 %v7229, %v8711
  %v8713 = vpop.f32.mrf.mxu0
  %v8714 = vadd.f32 %v7229, %v8713
  %8715 = vmatmul.bf16.gmra.mxu0 %v7094
  %v8716 = vpop.f32.mrf.mxu0
  %v8717 = vadd.f32 %v7229, %v8716
  %v8718 = vpop.f32.mrf.mxu0
  %v8719 = vadd.f32 %v7229, %v8718
  %8720 = vdwg.mxu0
  %8721 = vmatpush.bf16.msra.mxu0 %v7681
  %8722 = vmatpush.bf16.msra.mxu0 %v7677
  %8723 = vmatpush.bf16.msra.mxu0 %v7673
  %8724 = vmatpush.bf16.msra.mxu0 %v7669
  %8725 = vmatpush.bf16.msra.mxu0 %v7665
  %8726 = vmatpush.bf16.msra.mxu0 %v7661
  %8727 = vmatpush.bf16.msra.mxu0 %v7657
  %8728 = vmatpush.bf16.msra.mxu0 %v7653
  %8729 = vmatmul.bf16.gmra.mxu0 %v6971
  %v8730 = vpop.f32.mrf.mxu0
  %v8731 = vadd.f32 %v8562, %v8730
  %v8732 = vpop.f32.mrf.mxu0
  %v8733 = vadd.f32 %v8564, %v8732
  %8734 = vmatmul.bf16.gmra.mxu0 %v6975
  %v8735 = vpop.f32.mrf.mxu0
  %v8736 = vadd.f32 %v8567, %v8735
  %v8737 = vpop.f32.mrf.mxu0
  %v8738 = vadd.f32 %v8569, %v8737
  %8739 = vmatmul.bf16.gmra.mxu0 %v6979
  %v8740 = vpop.f32.mrf.mxu0
  %v8741 = vadd.f32 %v8572, %v8740
  %v8742 = vpop.f32.mrf.mxu0
  %v8743 = vadd.f32 %v8574, %v8742
  %8744 = vmatmul.bf16.gmra.mxu0 %v6983
  %v8745 = vpop.f32.mrf.mxu0
  %v8746 = vadd.f32 %v8577, %v8745
  %v8747 = vpop.f32.mrf.mxu0
  %v8748 = vadd.f32 %v8579, %v8747
  %8749 = vmatmul.bf16.gmra.mxu0 %v6987
  %v8750 = vpop.f32.mrf.mxu0
  %v8751 = vadd.f32 %v8582, %v8750
  %v8752 = vpop.f32.mrf.mxu0
  %v8753 = vadd.f32 %v8584, %v8752
  %8754 = vmatmul.bf16.gmra.mxu0 %v6991
  %v8755 = vpop.f32.mrf.mxu0
  %v8756 = vadd.f32 %v8587, %v8755
  %v8757 = vpop.f32.mrf.mxu0
  %v8758 = vadd.f32 %v8589, %v8757
  %8759 = vmatmul.bf16.gmra.mxu0 %v6995
  %v8760 = vpop.f32.mrf.mxu0
  %v8761 = vadd.f32 %v8592, %v8760
  %v8762 = vpop.f32.mrf.mxu0
  %v8763 = vadd.f32 %v8594, %v8762
  %8764 = vmatmul.bf16.gmra.mxu0 %v6999
  %v8765 = vpop.f32.mrf.mxu0
  %v8766 = vadd.f32 %v8597, %v8765
  %v8767 = vpop.f32.mrf.mxu0
  %v8768 = vadd.f32 %v8599, %v8767
  %8769 = vmatmul.bf16.gmra.mxu0 %v7003
  %v8770 = vpop.f32.mrf.mxu0
  %v8771 = vadd.f32 %v8602, %v8770
  %v8772 = vpop.f32.mrf.mxu0
  %v8773 = vadd.f32 %v8604, %v8772
  %8774 = vmatmul.bf16.gmra.mxu0 %v7007
  %v8775 = vpop.f32.mrf.mxu0
  %v8776 = vadd.f32 %v8607, %v8775
  %v8777 = vpop.f32.mrf.mxu0
  %v8778 = vadd.f32 %v8609, %v8777
  %8779 = vmatmul.bf16.gmra.mxu0 %v7011
  %v8780 = vpop.f32.mrf.mxu0
  %v8781 = vadd.f32 %v8612, %v8780
  %v8782 = vpop.f32.mrf.mxu0
  %v8783 = vadd.f32 %v8614, %v8782
  %8784 = vmatmul.bf16.gmra.mxu0 %v7015
  %v8785 = vpop.f32.mrf.mxu0
  %v8786 = vadd.f32 %v8617, %v8785
  %v8787 = vpop.f32.mrf.mxu0
  %v8788 = vadd.f32 %v8619, %v8787
  %8789 = vmatmul.bf16.gmra.mxu0 %v7019
  %v8790 = vpop.f32.mrf.mxu0
  %v8791 = vadd.f32 %v8622, %v8790
  %v8792 = vpop.f32.mrf.mxu0
  %v8793 = vadd.f32 %v8624, %v8792
  %8794 = vmatmul.bf16.gmra.mxu0 %v7023
  %v8795 = vpop.f32.mrf.mxu0
  %v8796 = vadd.f32 %v8627, %v8795
  %v8797 = vpop.f32.mrf.mxu0
  %v8798 = vadd.f32 %v8629, %v8797
  %8799 = vmatmul.bf16.gmra.mxu0 %v7027
  %v8800 = vpop.f32.mrf.mxu0
  %v8801 = vadd.f32 %v8632, %v8800
  %v8802 = vpop.f32.mrf.mxu0
  %v8803 = vadd.f32 %v8634, %v8802
  %8804 = vmatmul.bf16.gmra.mxu0 %v7031
  %v8805 = vpop.f32.mrf.mxu0
  %v8806 = vadd.f32 %v8637, %v8805
  %v8807 = vpop.f32.mrf.mxu0
  %v8808 = vadd.f32 %v8639, %v8807
  %8809 = vmatmul.bf16.gmra.mxu0 %v7035
  %v8810 = vpop.f32.mrf.mxu0
  %v8811 = vadd.f32 %v8642, %v8810
  %v8812 = vpop.f32.mrf.mxu0
  %v8813 = vadd.f32 %v8644, %v8812
  %8814 = vmatmul.bf16.gmra.mxu0 %v7039
  %v8815 = vpop.f32.mrf.mxu0
  %v8816 = vadd.f32 %v8647, %v8815
  %v8817 = vpop.f32.mrf.mxu0
  %v8818 = vadd.f32 %v8649, %v8817
  %8819 = vmatmul.bf16.gmra.mxu0 %v7043
  %v8820 = vpop.f32.mrf.mxu0
  %v8821 = vadd.f32 %v8652, %v8820
  %v8822 = vpop.f32.mrf.mxu0
  %v8823 = vadd.f32 %v8654, %v8822
  %8824 = vmatmul.bf16.gmra.mxu0 %v7047
  %v8825 = vpop.f32.mrf.mxu0
  %v8826 = vadd.f32 %v8657, %v8825
  %v8827 = vpop.f32.mrf.mxu0
  %v8828 = vadd.f32 %v8659, %v8827
  %8829 = vmatmul.bf16.gmra.mxu0 %v7051
  %v8830 = vpop.f32.mrf.mxu0
  %v8831 = vadd.f32 %v8662, %v8830
  %v8832 = vpop.f32.mrf.mxu0
  %v8833 = vadd.f32 %v8664, %v8832
  %8834 = vmatmul.bf16.gmra.mxu0 %v7055
  %v8835 = vpop.f32.mrf.mxu0
  %v8836 = vadd.f32 %v8667, %v8835
  %v8837 = vpop.f32.mrf.mxu0
  %v8838 = vadd.f32 %v8669, %v8837
  %8839 = vmatmul.bf16.gmra.mxu0 %v7059
  %v8840 = vpop.f32.mrf.mxu0
  %v8841 = vadd.f32 %v8672, %v8840
  %v8842 = vpop.f32.mrf.mxu0
  %v8843 = vadd.f32 %v8674, %v8842
  %8844 = vmatmul.bf16.gmra.mxu0 %v7063
  %v8845 = vpop.f32.mrf.mxu0
  %v8846 = vadd.f32 %v8677, %v8845
  %v8847 = vpop.f32.mrf.mxu0
  %v8848 = vadd.f32 %v8679, %v8847
  %8849 = vmatmul.bf16.gmra.mxu0 %v7067
  %v8850 = vpop.f32.mrf.mxu0
  %v8851 = vadd.f32 %v8682, %v8850
  %v8852 = vpop.f32.mrf.mxu0
  %v8853 = vadd.f32 %v8684, %v8852
  %8854 = vmatmul.bf16.gmra.mxu0 %v7071
  %v8855 = vpop.f32.mrf.mxu0
  %v8856 = vadd.f32 %v8687, %v8855
  %v8857 = vpop.f32.mrf.mxu0
  %v8858 = vadd.f32 %v8689, %v8857
  %8859 = vmatmul.bf16.gmra.mxu0 %v7075
  %v8860 = vpop.f32.mrf.mxu0
  %v8861 = vadd.f32 %v8692, %v8860
  %v8862 = vpop.f32.mrf.mxu0
  %v8863 = vadd.f32 %v8694, %v8862
  %8864 = vmatmul.bf16.gmra.mxu0 %v7079
  %v8865 = vpop.f32.mrf.mxu0
  %v8866 = vadd.f32 %v8697, %v8865
  %v8867 = vpop.f32.mrf.mxu0
  %v8868 = vadd.f32 %v8699, %v8867
  %8869 = vmatmul.bf16.gmra.mxu0 %v7083
  %v8870 = vpop.f32.mrf.mxu0
  %v8871 = vadd.f32 %v8702, %v8870
  %v8872 = vpop.f32.mrf.mxu0
  %v8873 = vadd.f32 %v8704, %v8872
  %8874 = vmatmul.bf16.gmra.mxu0 %v7087
  %v8875 = vpop.f32.mrf.mxu0
  %v8876 = vadd.f32 %v8707, %v8875
  %v8877 = vpop.f32.mrf.mxu0
  %v8878 = vadd.f32 %v8709, %v8877
  %8879 = vmatmul.bf16.gmra.mxu0 %v7091
  %v8880 = vpop.f32.mrf.mxu0
  %v8881 = vadd.f32 %v8712, %v8880
  %v8882 = vpop.f32.mrf.mxu0
  %v8883 = vadd.f32 %v8714, %v8882
  %8884 = vmatmul.bf16.gmra.mxu0 %v7095
  %v8885 = vpop.f32.mrf.mxu0
  %v8886 = vadd.f32 %v8717, %v8885
  %v8887 = vpop.f32.mrf.mxu0
  %v8888 = vadd.f32 %v8719, %v8887
  %8889 = vdwg.mxu0
  %8890 = vmatpush.bf16.msra.mxu0 %v7713
  %8891 = vmatpush.bf16.msra.mxu0 %v7709
  %8892 = vmatpush.bf16.msra.mxu0 %v7705
  %8893 = vmatpush.bf16.msra.mxu0 %v7701
  %8894 = vmatpush.bf16.msra.mxu0 %v7697
  %8895 = vmatpush.bf16.msra.mxu0 %v7693
  %8896 = vmatpush.bf16.msra.mxu0 %v7689
  %8897 = vmatpush.bf16.msra.mxu0 %v7685
  %8898 = vmatmul.bf16.gmra.mxu0 %v6972
  %v8899 = vpop.f32.mrf.mxu0
  %v8900 = vadd.f32 %v8731, %v8899
  %v8901 = vpop.f32.mrf.mxu0
  %v8902 = vadd.f32 %v8733, %v8901
  %8903 = vmatmul.bf16.gmra.mxu0 %v6976
  %v8904 = vpop.f32.mrf.mxu0
  %v8905 = vadd.f32 %v8736, %v8904
  %v8906 = vpop.f32.mrf.mxu0
  %v8907 = vadd.f32 %v8738, %v8906
  %8908 = vmatmul.bf16.gmra.mxu0 %v6980
  %v8909 = vpop.f32.mrf.mxu0
  %v8910 = vadd.f32 %v8741, %v8909
  %v8911 = vpop.f32.mrf.mxu0
  %v8912 = vadd.f32 %v8743, %v8911
  %8913 = vmatmul.bf16.gmra.mxu0 %v6984
  %v8914 = vpop.f32.mrf.mxu0
  %v8915 = vadd.f32 %v8746, %v8914
  %v8916 = vpop.f32.mrf.mxu0
  %v8917 = vadd.f32 %v8748, %v8916
  %8918 = vmatmul.bf16.gmra.mxu0 %v6988
  %v8919 = vpop.f32.mrf.mxu0
  %v8920 = vadd.f32 %v8751, %v8919
  %v8921 = vpop.f32.mrf.mxu0
  %v8922 = vadd.f32 %v8753, %v8921
  %8923 = vmatmul.bf16.gmra.mxu0 %v6992
  %v8924 = vpop.f32.mrf.mxu0
  %v8925 = vadd.f32 %v8756, %v8924
  %v8926 = vpop.f32.mrf.mxu0
  %v8927 = vadd.f32 %v8758, %v8926
  %8928 = vmatmul.bf16.gmra.mxu0 %v6996
  %v8929 = vpop.f32.mrf.mxu0
  %v8930 = vadd.f32 %v8761, %v8929
  %v8931 = vpop.f32.mrf.mxu0
  %v8932 = vadd.f32 %v8763, %v8931
  %8933 = vmatmul.bf16.gmra.mxu0 %v7000
  %v8934 = vpop.f32.mrf.mxu0
  %v8935 = vadd.f32 %v8766, %v8934
  %v8936 = vpop.f32.mrf.mxu0
  %v8937 = vadd.f32 %v8768, %v8936
  %8938 = vmatmul.bf16.gmra.mxu0 %v7004
  %v8939 = vpop.f32.mrf.mxu0
  %v8940 = vadd.f32 %v8771, %v8939
  %v8941 = vpop.f32.mrf.mxu0
  %v8942 = vadd.f32 %v8773, %v8941
  %8943 = vmatmul.bf16.gmra.mxu0 %v7008
  %v8944 = vpop.f32.mrf.mxu0
  %v8945 = vadd.f32 %v8776, %v8944
  %v8946 = vpop.f32.mrf.mxu0
  %v8947 = vadd.f32 %v8778, %v8946
  %8948 = vmatmul.bf16.gmra.mxu0 %v7012
  %v8949 = vpop.f32.mrf.mxu0
  %v8950 = vadd.f32 %v8781, %v8949
  %v8951 = vpop.f32.mrf.mxu0
  %v8952 = vadd.f32 %v8783, %v8951
  %8953 = vmatmul.bf16.gmra.mxu0 %v7016
  %v8954 = vpop.f32.mrf.mxu0
  %v8955 = vadd.f32 %v8786, %v8954
  %v8956 = vpop.f32.mrf.mxu0
  %v8957 = vadd.f32 %v8788, %v8956
  %8958 = vmatmul.bf16.gmra.mxu0 %v7020
  %v8959 = vpop.f32.mrf.mxu0
  %v8960 = vadd.f32 %v8791, %v8959
  %v8961 = vpop.f32.mrf.mxu0
  %v8962 = vadd.f32 %v8793, %v8961
  %8963 = vmatmul.bf16.gmra.mxu0 %v7024
  %v8964 = vpop.f32.mrf.mxu0
  %v8965 = vadd.f32 %v8796, %v8964
  %v8966 = vpop.f32.mrf.mxu0
  %v8967 = vadd.f32 %v8798, %v8966
  %8968 = vmatmul.bf16.gmra.mxu0 %v7028
  %v8969 = vpop.f32.mrf.mxu0
  %v8970 = vadd.f32 %v8801, %v8969
  %v8971 = vpop.f32.mrf.mxu0
  %v8972 = vadd.f32 %v8803, %v8971
  %8973 = vmatmul.bf16.gmra.mxu0 %v7032
  %v8974 = vpop.f32.mrf.mxu0
  %v8975 = vadd.f32 %v8806, %v8974
  %v8976 = vpop.f32.mrf.mxu0
  %v8977 = vadd.f32 %v8808, %v8976
  %8978 = vmatmul.bf16.gmra.mxu0 %v7036
  %v8979 = vpop.f32.mrf.mxu0
  %v8980 = vadd.f32 %v8811, %v8979
  %v8981 = vpop.f32.mrf.mxu0
  %v8982 = vadd.f32 %v8813, %v8981
  %8983 = vmatmul.bf16.gmra.mxu0 %v7040
  %v8984 = vpop.f32.mrf.mxu0
  %v8985 = vadd.f32 %v8816, %v8984
  %v8986 = vpop.f32.mrf.mxu0
  %v8987 = vadd.f32 %v8818, %v8986
  %8988 = vmatmul.bf16.gmra.mxu0 %v7044
  %v8989 = vpop.f32.mrf.mxu0
  %v8990 = vadd.f32 %v8821, %v8989
  %v8991 = vpop.f32.mrf.mxu0
  %v8992 = vadd.f32 %v8823, %v8991
  %8993 = vmatmul.bf16.gmra.mxu0 %v7048
  %v8994 = vpop.f32.mrf.mxu0
  %v8995 = vadd.f32 %v8826, %v8994
  %v8996 = vpop.f32.mrf.mxu0
  %v8997 = vadd.f32 %v8828, %v8996
  %8998 = vmatmul.bf16.gmra.mxu0 %v7052
  %v8999 = vpop.f32.mrf.mxu0
  %v9000 = vadd.f32 %v8831, %v8999
  %v9001 = vpop.f32.mrf.mxu0
  %v9002 = vadd.f32 %v8833, %v9001
  %9003 = vmatmul.bf16.gmra.mxu0 %v7056
  %v9004 = vpop.f32.mrf.mxu0
  %v9005 = vadd.f32 %v8836, %v9004
  %v9006 = vpop.f32.mrf.mxu0
  %v9007 = vadd.f32 %v8838, %v9006
  %9008 = vmatmul.bf16.gmra.mxu0 %v7060
  %v9009 = vpop.f32.mrf.mxu0
  %v9010 = vadd.f32 %v8841, %v9009
  %v9011 = vpop.f32.mrf.mxu0
  %v9012 = vadd.f32 %v8843, %v9011
  %9013 = vmatmul.bf16.gmra.mxu0 %v7064
  %v9014 = vpop.f32.mrf.mxu0
  %v9015 = vadd.f32 %v8846, %v9014
  %v9016 = vpop.f32.mrf.mxu0
  %v9017 = vadd.f32 %v8848, %v9016
  %9018 = vmatmul.bf16.gmra.mxu0 %v7068
  %v9019 = vpop.f32.mrf.mxu0
  %v9020 = vadd.f32 %v8851, %v9019
  %v9021 = vpop.f32.mrf.mxu0
  %v9022 = vadd.f32 %v8853, %v9021
  %9023 = vmatmul.bf16.gmra.mxu0 %v7072
  %v9024 = vpop.f32.mrf.mxu0
  %v9025 = vadd.f32 %v8856, %v9024
  %v9026 = vpop.f32.mrf.mxu0
  %v9027 = vadd.f32 %v8858, %v9026
  %9028 = vmatmul.bf16.gmra.mxu0 %v7076
  %v9029 = vpop.f32.mrf.mxu0
  %v9030 = vadd.f32 %v8861, %v9029
  %v9031 = vpop.f32.mrf.mxu0
  %v9032 = vadd.f32 %v8863, %v9031
  %9033 = vmatmul.bf16.gmra.mxu0 %v7080
  %v9034 = vpop.f32.mrf.mxu0
  %v9035 = vadd.f32 %v8866, %v9034
  %v9036 = vpop.f32.mrf.mxu0
  %v9037 = vadd.f32 %v8868, %v9036
  %9038 = vmatmul.bf16.gmra.mxu0 %v7084
  %v9039 = vpop.f32.mrf.mxu0
  %v9040 = vadd.f32 %v8871, %v9039
  %v9041 = vpop.f32.mrf.mxu0
  %v9042 = vadd.f32 %v8873, %v9041
  %9043 = vmatmul.bf16.gmra.mxu0 %v7088
  %v9044 = vpop.f32.mrf.mxu0
  %v9045 = vadd.f32 %v8876, %v9044
  %v9046 = vpop.f32.mrf.mxu0
  %v9047 = vadd.f32 %v8878, %v9046
  %9048 = vmatmul.bf16.gmra.mxu0 %v7092
  %v9049 = vpop.f32.mrf.mxu0
  %v9050 = vadd.f32 %v8881, %v9049
  %v9051 = vpop.f32.mrf.mxu0
  %v9052 = vadd.f32 %v8883, %v9051
  %9053 = vmatmul.bf16.gmra.mxu0 %v7096
  %v9054 = vpop.f32.mrf.mxu0
  %v9055 = vadd.f32 %v8886, %v9054
  %v9056 = vpop.f32.mrf.mxu0
  %v9057 = vadd.f32 %v8888, %v9056
  %9058 = vdwg.mxu0
  %9059 = vmatpush.bf16.msra.mxu0 %v7745
  %9060 = vmatpush.bf16.msra.mxu0 %v7741
  %9061 = vmatpush.bf16.msra.mxu0 %v7737
  %9062 = vmatpush.bf16.msra.mxu0 %v7733
  %9063 = vmatpush.bf16.msra.mxu0 %v7729
  %9064 = vmatpush.bf16.msra.mxu0 %v7725
  %9065 = vmatpush.bf16.msra.mxu0 %v7721
  %9066 = vmatpush.bf16.msra.mxu0 %v7717
  %9067 = vmatmul.bf16.gmra.mxu0 %v6973
  %v9068 = vpop.f32.mrf.mxu0
  %v9069 = vadd.f32 %v8900, %v9068
  %v9070 = vpop.f32.mrf.mxu0
  %v9071 = vadd.f32 %v8902, %v9070
  %9072 = vmatmul.bf16.gmra.mxu0 %v6977
  %v9073 = vpop.f32.mrf.mxu0
  %v9074 = vadd.f32 %v8905, %v9073
  %v9075 = vpop.f32.mrf.mxu0
  %v9076 = vadd.f32 %v8907, %v9075
  %9077 = vmatmul.bf16.gmra.mxu0 %v6981
  %v9078 = vpop.f32.mrf.mxu0
  %v9079 = vadd.f32 %v8910, %v9078
  %v9080 = vpop.f32.mrf.mxu0
  %v9081 = vadd.f32 %v8912, %v9080
  %9082 = vmatmul.bf16.gmra.mxu0 %v6985
  %v9083 = vpop.f32.mrf.mxu0
  %v9084 = vadd.f32 %v8915, %v9083
  %v9085 = vpop.f32.mrf.mxu0
  %v9086 = vadd.f32 %v8917, %v9085
  %9087 = vmatmul.bf16.gmra.mxu0 %v6989
  %v9088 = vpop.f32.mrf.mxu0
  %v9089 = vadd.f32 %v8920, %v9088
  %v9090 = vpop.f32.mrf.mxu0
  %v9091 = vadd.f32 %v8922, %v9090
  %9092 = vmatmul.bf16.gmra.mxu0 %v6993
  %v9093 = vpop.f32.mrf.mxu0
  %v9094 = vadd.f32 %v8925, %v9093
  %v9095 = vpop.f32.mrf.mxu0
  %v9096 = vadd.f32 %v8927, %v9095
  %9097 = vmatmul.bf16.gmra.mxu0 %v6997
  %v9098 = vpop.f32.mrf.mxu0
  %v9099 = vadd.f32 %v8930, %v9098
  %v9100 = vpop.f32.mrf.mxu0
  %v9101 = vadd.f32 %v8932, %v9100
  %9102 = vmatmul.bf16.gmra.mxu0 %v7001
  %v9103 = vpop.f32.mrf.mxu0
  %v9104 = vadd.f32 %v8935, %v9103
  %v9105 = vpop.f32.mrf.mxu0
  %v9106 = vadd.f32 %v8937, %v9105
  %9107 = vmatmul.bf16.gmra.mxu0 %v7005
  %v9108 = vpop.f32.mrf.mxu0
  %v9109 = vadd.f32 %v8940, %v9108
  %v9110 = vpop.f32.mrf.mxu0
  %v9111 = vadd.f32 %v8942, %v9110
  %9112 = vmatmul.bf16.gmra.mxu0 %v7009
  %v9113 = vpop.f32.mrf.mxu0
  %v9114 = vadd.f32 %v8945, %v9113
  %v9115 = vpop.f32.mrf.mxu0
  %v9116 = vadd.f32 %v8947, %v9115
  %9117 = vmatmul.bf16.gmra.mxu0 %v7013
  %v9118 = vpop.f32.mrf.mxu0
  %v9119 = vadd.f32 %v8950, %v9118
  %v9120 = vpop.f32.mrf.mxu0
  %v9121 = vadd.f32 %v8952, %v9120
  %9122 = vmatmul.bf16.gmra.mxu0 %v7017
  %v9123 = vpop.f32.mrf.mxu0
  %v9124 = vadd.f32 %v8955, %v9123
  %v9125 = vpop.f32.mrf.mxu0
  %v9126 = vadd.f32 %v8957, %v9125
  %9127 = vmatmul.bf16.gmra.mxu0 %v7021
  %v9128 = vpop.f32.mrf.mxu0
  %v9129 = vadd.f32 %v8960, %v9128
  %v9130 = vpop.f32.mrf.mxu0
  %v9131 = vadd.f32 %v8962, %v9130
  %9132 = vmatmul.bf16.gmra.mxu0 %v7025
  %v9133 = vpop.f32.mrf.mxu0
  %v9134 = vadd.f32 %v8965, %v9133
  %v9135 = vpop.f32.mrf.mxu0
  %v9136 = vadd.f32 %v8967, %v9135
  %9137 = vmatmul.bf16.gmra.mxu0 %v7029
  %v9138 = vpop.f32.mrf.mxu0
  %v9139 = vadd.f32 %v8970, %v9138
  %v9140 = vpop.f32.mrf.mxu0
  %v9141 = vadd.f32 %v8972, %v9140
  %9142 = vmatmul.bf16.gmra.mxu0 %v7033
  %v9143 = vpop.f32.mrf.mxu0
  %v9144 = vadd.f32 %v8975, %v9143
  %v9145 = vpop.f32.mrf.mxu0
  %v9146 = vadd.f32 %v8977, %v9145
  %9147 = vmatmul.bf16.gmra.mxu0 %v7037
  %v9148 = vpop.f32.mrf.mxu0
  %v9149 = vadd.f32 %v8980, %v9148
  %v9150 = vpop.f32.mrf.mxu0
  %v9151 = vadd.f32 %v8982, %v9150
  %9152 = vmatmul.bf16.gmra.mxu0 %v7041
  %v9153 = vpop.f32.mrf.mxu0
  %v9154 = vadd.f32 %v8985, %v9153
  %v9155 = vpop.f32.mrf.mxu0
  %v9156 = vadd.f32 %v8987, %v9155
  %9157 = vmatmul.bf16.gmra.mxu0 %v7045
  %v9158 = vpop.f32.mrf.mxu0
  %v9159 = vadd.f32 %v8990, %v9158
  %v9160 = vpop.f32.mrf.mxu0
  %v9161 = vadd.f32 %v8992, %v9160
  %9162 = vmatmul.bf16.gmra.mxu0 %v7049
  %v9163 = vpop.f32.mrf.mxu0
  %v9164 = vadd.f32 %v8995, %v9163
  %v9165 = vpop.f32.mrf.mxu0
  %v9166 = vadd.f32 %v8997, %v9165
  %9167 = vmatmul.bf16.gmra.mxu0 %v7053
  %v9168 = vpop.f32.mrf.mxu0
  %v9169 = vadd.f32 %v9000, %v9168
  %v9170 = vpop.f32.mrf.mxu0
  %v9171 = vadd.f32 %v9002, %v9170
  %9172 = vmatmul.bf16.gmra.mxu0 %v7057
  %v9173 = vpop.f32.mrf.mxu0
  %v9174 = vadd.f32 %v9005, %v9173
  %v9175 = vpop.f32.mrf.mxu0
  %v9176 = vadd.f32 %v9007, %v9175
  %9177 = vmatmul.bf16.gmra.mxu0 %v7061
  %v9178 = vpop.f32.mrf.mxu0
  %v9179 = vadd.f32 %v9010, %v9178
  %v9180 = vpop.f32.mrf.mxu0
  %v9181 = vadd.f32 %v9012, %v9180
  %9182 = vmatmul.bf16.gmra.mxu0 %v7065
  %v9183 = vpop.f32.mrf.mxu0
  %v9184 = vadd.f32 %v9015, %v9183
  %v9185 = vpop.f32.mrf.mxu0
  %v9186 = vadd.f32 %v9017, %v9185
  %9187 = vmatmul.bf16.gmra.mxu0 %v7069
  %v9188 = vpop.f32.mrf.mxu0
  %v9189 = vadd.f32 %v9020, %v9188
  %v9190 = vpop.f32.mrf.mxu0
  %v9191 = vadd.f32 %v9022, %v9190
  %9192 = vmatmul.bf16.gmra.mxu0 %v7073
  %v9193 = vpop.f32.mrf.mxu0
  %v9194 = vadd.f32 %v9025, %v9193
  %v9195 = vpop.f32.mrf.mxu0
  %v9196 = vadd.f32 %v9027, %v9195
  %9197 = vmatmul.bf16.gmra.mxu0 %v7077
  %v9198 = vpop.f32.mrf.mxu0
  %v9199 = vadd.f32 %v9030, %v9198
  %v9200 = vpop.f32.mrf.mxu0
  %v9201 = vadd.f32 %v9032, %v9200
  %9202 = vmatmul.bf16.gmra.mxu0 %v7081
  %v9203 = vpop.f32.mrf.mxu0
  %v9204 = vadd.f32 %v9035, %v9203
  %v9205 = vpop.f32.mrf.mxu0
  %v9206 = vadd.f32 %v9037, %v9205
  %9207 = vmatmul.bf16.gmra.mxu0 %v7085
  %v9208 = vpop.f32.mrf.mxu0
  %v9209 = vadd.f32 %v9040, %v9208
  %v9210 = vpop.f32.mrf.mxu0
  %v9211 = vadd.f32 %v9042, %v9210
  %9212 = vmatmul.bf16.gmra.mxu0 %v7089
  %v9213 = vpop.f32.mrf.mxu0
  %v9214 = vadd.f32 %v9045, %v9213
  %v9215 = vpop.f32.mrf.mxu0
  %v9216 = vadd.f32 %v9047, %v9215
  %9217 = vmatmul.bf16.gmra.mxu0 %v7093
  %v9218 = vpop.f32.mrf.mxu0
  %v9219 = vadd.f32 %v9050, %v9218
  %v9220 = vpop.f32.mrf.mxu0
  %v9221 = vadd.f32 %v9052, %v9220
  %9222 = vmatmul.bf16.gmra.mxu0 %v7097
  %v9223 = vpop.f32.mrf.mxu0
  %v9224 = vadd.f32 %v9055, %v9223
  %v9225 = vpop.f32.mrf.mxu0
  %v9226 = vadd.f32 %v9057, %v9225
  %9227 = vdwg.mxu0
  %9228 = vmatpush.bf16.msra.mxu0 %v7650
  %9229 = vmatpush.bf16.msra.mxu0 %v7646
  %9230 = vmatpush.bf16.msra.mxu0 %v7642
  %9231 = vmatpush.bf16.msra.mxu0 %v7638
  %9232 = vmatpush.bf16.msra.mxu0 %v7634
  %9233 = vmatpush.bf16.msra.mxu0 %v7630
  %9234 = vmatpush.bf16.msra.mxu0 %v7626
  %9235 = vmatpush.bf16.msra.mxu0 %v7622
  %9236 = vmatmul.bf16.gmra.mxu0 %v6970
  %v9237 = vpop.f32.mrf.mxu0
  %v9238 = vadd.f32 %v7230, %v9237
  %v9239 = vpop.f32.mrf.mxu0
  %v9240 = vadd.f32 %v7230, %v9239
  %9241 = vmatmul.bf16.gmra.mxu0 %v6974
  %v9242 = vpop.f32.mrf.mxu0
  %v9243 = vadd.f32 %v7230, %v9242
  %v9244 = vpop.f32.mrf.mxu0
  %v9245 = vadd.f32 %v7230, %v9244
  %9246 = vmatmul.bf16.gmra.mxu0 %v6978
  %v9247 = vpop.f32.mrf.mxu0
  %v9248 = vadd.f32 %v7230, %v9247
  %v9249 = vpop.f32.mrf.mxu0
  %v9250 = vadd.f32 %v7230, %v9249
  %9251 = vmatmul.bf16.gmra.mxu0 %v6982
  %v9252 = vpop.f32.mrf.mxu0
  %v9253 = vadd.f32 %v7230, %v9252
  %v9254 = vpop.f32.mrf.mxu0
  %v9255 = vadd.f32 %v7230, %v9254
  %9256 = vmatmul.bf16.gmra.mxu0 %v6986
  %v9257 = vpop.f32.mrf.mxu0
  %v9258 = vadd.f32 %v7230, %v9257
  %v9259 = vpop.f32.mrf.mxu0
  %v9260 = vadd.f32 %v7230, %v9259
  %9261 = vmatmul.bf16.gmra.mxu0 %v6990
  %v9262 = vpop.f32.mrf.mxu0
  %v9263 = vadd.f32 %v7230, %v9262
  %v9264 = vpop.f32.mrf.mxu0
  %v9265 = vadd.f32 %v7230, %v9264
  %9266 = vmatmul.bf16.gmra.mxu0 %v6994
  %v9267 = vpop.f32.mrf.mxu0
  %v9268 = vadd.f32 %v7230, %v9267
  %v9269 = vpop.f32.mrf.mxu0
  %v9270 = vadd.f32 %v7230, %v9269
  %9271 = vmatmul.bf16.gmra.mxu0 %v6998
  %v9272 = vpop.f32.mrf.mxu0
  %v9273 = vadd.f32 %v7230, %v9272
  %v9274 = vpop.f32.mrf.mxu0
  %v9275 = vadd.f32 %v7230, %v9274
  %9276 = vmatmul.bf16.gmra.mxu0 %v7002
  %v9277 = vpop.f32.mrf.mxu0
  %v9278 = vadd.f32 %v7230, %v9277
  %v9279 = vpop.f32.mrf.mxu0
  %v9280 = vadd.f32 %v7230, %v9279
  %9281 = vmatmul.bf16.gmra.mxu0 %v7006
  %v9282 = vpop.f32.mrf.mxu0
  %v9283 = vadd.f32 %v7230, %v9282
  %v9284 = vpop.f32.mrf.mxu0
  %v9285 = vadd.f32 %v7230, %v9284
  %9286 = vmatmul.bf16.gmra.mxu0 %v7010
  %v9287 = vpop.f32.mrf.mxu0
  %v9288 = vadd.f32 %v7230, %v9287
  %v9289 = vpop.f32.mrf.mxu0
  %v9290 = vadd.f32 %v7230, %v9289
  %9291 = vmatmul.bf16.gmra.mxu0 %v7014
  %v9292 = vpop.f32.mrf.mxu0
  %v9293 = vadd.f32 %v7230, %v9292
  %v9294 = vpop.f32.mrf.mxu0
  %v9295 = vadd.f32 %v7230, %v9294
  %9296 = vmatmul.bf16.gmra.mxu0 %v7018
  %v9297 = vpop.f32.mrf.mxu0
  %v9298 = vadd.f32 %v7230, %v9297
  %v9299 = vpop.f32.mrf.mxu0
  %v9300 = vadd.f32 %v7230, %v9299
  %9301 = vmatmul.bf16.gmra.mxu0 %v7022
  %v9302 = vpop.f32.mrf.mxu0
  %v9303 = vadd.f32 %v7230, %v9302
  %v9304 = vpop.f32.mrf.mxu0
  %v9305 = vadd.f32 %v7230, %v9304
  %9306 = vmatmul.bf16.gmra.mxu0 %v7026
  %v9307 = vpop.f32.mrf.mxu0
  %v9308 = vadd.f32 %v7230, %v9307
  %v9309 = vpop.f32.mrf.mxu0
  %v9310 = vadd.f32 %v7230, %v9309
  %9311 = vmatmul.bf16.gmra.mxu0 %v7030
  %v9312 = vpop.f32.mrf.mxu0
  %v9313 = vadd.f32 %v7230, %v9312
  %v9314 = vpop.f32.mrf.mxu0
  %v9315 = vadd.f32 %v7230, %v9314
  %9316 = vmatmul.bf16.gmra.mxu0 %v7034
  %v9317 = vpop.f32.mrf.mxu0
  %v9318 = vadd.f32 %v7230, %v9317
  %v9319 = vpop.f32.mrf.mxu0
  %v9320 = vadd.f32 %v7230, %v9319
  %9321 = vmatmul.bf16.gmra.mxu0 %v7038
  %v9322 = vpop.f32.mrf.mxu0
  %v9323 = vadd.f32 %v7230, %v9322
  %v9324 = vpop.f32.mrf.mxu0
  %v9325 = vadd.f32 %v7230, %v9324
  %9326 = vmatmul.bf16.gmra.mxu0 %v7042
  %v9327 = vpop.f32.mrf.mxu0
  %v9328 = vadd.f32 %v7230, %v9327
  %v9329 = vpop.f32.mrf.mxu0
  %v9330 = vadd.f32 %v7230, %v9329
  %9331 = vmatmul.bf16.gmra.mxu0 %v7046
  %v9332 = vpop.f32.mrf.mxu0
  %v9333 = vadd.f32 %v7230, %v9332
  %v9334 = vpop.f32.mrf.mxu0
  %v9335 = vadd.f32 %v7230, %v9334
  %9336 = vmatmul.bf16.gmra.mxu0 %v7050
  %v9337 = vpop.f32.mrf.mxu0
  %v9338 = vadd.f32 %v7230, %v9337
  %v9339 = vpop.f32.mrf.mxu0
  %v9340 = vadd.f32 %v7230, %v9339
  %9341 = vmatmul.bf16.gmra.mxu0 %v7054
  %v9342 = vpop.f32.mrf.mxu0
  %v9343 = vadd.f32 %v7230, %v9342
  %v9344 = vpop.f32.mrf.mxu0
  %v9345 = vadd.f32 %v7230, %v9344
  %9346 = vmatmul.bf16.gmra.mxu0 %v7058
  %v9347 = vpop.f32.mrf.mxu0
  %v9348 = vadd.f32 %v7230, %v9347
  %v9349 = vpop.f32.mrf.mxu0
  %v9350 = vadd.f32 %v7230, %v9349
  %9351 = vmatmul.bf16.gmra.mxu0 %v7062
  %v9352 = vpop.f32.mrf.mxu0
  %v9353 = vadd.f32 %v7230, %v9352
  %v9354 = vpop.f32.mrf.mxu0
  %v9355 = vadd.f32 %v7230, %v9354
  %9356 = vmatmul.bf16.gmra.mxu0 %v7066
  %v9357 = vpop.f32.mrf.mxu0
  %v9358 = vadd.f32 %v7230, %v9357
  %v9359 = vpop.f32.mrf.mxu0
  %v9360 = vadd.f32 %v7230, %v9359
  %9361 = vmatmul.bf16.gmra.mxu0 %v7070
  %v9362 = vpop.f32.mrf.mxu0
  %v9363 = vadd.f32 %v7230, %v9362
  %v9364 = vpop.f32.mrf.mxu0
  %v9365 = vadd.f32 %v7230, %v9364
  %9366 = vmatmul.bf16.gmra.mxu0 %v7074
  %v9367 = vpop.f32.mrf.mxu0
  %v9368 = vadd.f32 %v7230, %v9367
  %v9369 = vpop.f32.mrf.mxu0
  %v9370 = vadd.f32 %v7230, %v9369
  %9371 = vmatmul.bf16.gmra.mxu0 %v7078
  %v9372 = vpop.f32.mrf.mxu0
  %v9373 = vadd.f32 %v7230, %v9372
  %v9374 = vpop.f32.mrf.mxu0
  %v9375 = vadd.f32 %v7230, %v9374
  %9376 = vmatmul.bf16.gmra.mxu0 %v7082
  %v9377 = vpop.f32.mrf.mxu0
  %v9378 = vadd.f32 %v7230, %v9377
  %v9379 = vpop.f32.mrf.mxu0
  %v9380 = vadd.f32 %v7230, %v9379
  %9381 = vmatmul.bf16.gmra.mxu0 %v7086
  %v9382 = vpop.f32.mrf.mxu0
  %v9383 = vadd.f32 %v7230, %v9382
  %v9384 = vpop.f32.mrf.mxu0
  %v9385 = vadd.f32 %v7230, %v9384
  %9386 = vmatmul.bf16.gmra.mxu0 %v7090
  %v9387 = vpop.f32.mrf.mxu0
  %v9388 = vadd.f32 %v7230, %v9387
  %v9389 = vpop.f32.mrf.mxu0
  %v9390 = vadd.f32 %v7230, %v9389
  %9391 = vmatmul.bf16.gmra.mxu0 %v7094
  %v9392 = vpop.f32.mrf.mxu0
  %v9393 = vadd.f32 %v7230, %v9392
  %v9394 = vpop.f32.mrf.mxu0
  %v9395 = vadd.f32 %v7230, %v9394
  %9396 = vdwg.mxu0
  %9397 = vmatpush.bf16.msra.mxu0 %v7682
  %9398 = vmatpush.bf16.msra.mxu0 %v7678
  %9399 = vmatpush.bf16.msra.mxu0 %v7674
  %9400 = vmatpush.bf16.msra.mxu0 %v7670
  %9401 = vmatpush.bf16.msra.mxu0 %v7666
  %9402 = vmatpush.bf16.msra.mxu0 %v7662
  %9403 = vmatpush.bf16.msra.mxu0 %v7658
  %9404 = vmatpush.bf16.msra.mxu0 %v7654
  %9405 = vmatmul.bf16.gmra.mxu0 %v6971
  %v9406 = vpop.f32.mrf.mxu0
  %v9407 = vadd.f32 %v9238, %v9406
  %v9408 = vpop.f32.mrf.mxu0
  %v9409 = vadd.f32 %v9240, %v9408
  %9410 = vmatmul.bf16.gmra.mxu0 %v6975
  %v9411 = vpop.f32.mrf.mxu0
  %v9412 = vadd.f32 %v9243, %v9411
  %v9413 = vpop.f32.mrf.mxu0
  %v9414 = vadd.f32 %v9245, %v9413
  %9415 = vmatmul.bf16.gmra.mxu0 %v6979
  %v9416 = vpop.f32.mrf.mxu0
  %v9417 = vadd.f32 %v9248, %v9416
  %v9418 = vpop.f32.mrf.mxu0
  %v9419 = vadd.f32 %v9250, %v9418
  %9420 = vmatmul.bf16.gmra.mxu0 %v6983
  %v9421 = vpop.f32.mrf.mxu0
  %v9422 = vadd.f32 %v9253, %v9421
  %v9423 = vpop.f32.mrf.mxu0
  %v9424 = vadd.f32 %v9255, %v9423
  %9425 = vmatmul.bf16.gmra.mxu0 %v6987
  %v9426 = vpop.f32.mrf.mxu0
  %v9427 = vadd.f32 %v9258, %v9426
  %v9428 = vpop.f32.mrf.mxu0
  %v9429 = vadd.f32 %v9260, %v9428
  %9430 = vmatmul.bf16.gmra.mxu0 %v6991
  %v9431 = vpop.f32.mrf.mxu0
  %v9432 = vadd.f32 %v9263, %v9431
  %v9433 = vpop.f32.mrf.mxu0
  %v9434 = vadd.f32 %v9265, %v9433
  %9435 = vmatmul.bf16.gmra.mxu0 %v6995
  %v9436 = vpop.f32.mrf.mxu0
  %v9437 = vadd.f32 %v9268, %v9436
  %v9438 = vpop.f32.mrf.mxu0
  %v9439 = vadd.f32 %v9270, %v9438
  %9440 = vmatmul.bf16.gmra.mxu0 %v6999
  %v9441 = vpop.f32.mrf.mxu0
  %v9442 = vadd.f32 %v9273, %v9441
  %v9443 = vpop.f32.mrf.mxu0
  %v9444 = vadd.f32 %v9275, %v9443
  %9445 = vmatmul.bf16.gmra.mxu0 %v7003
  %v9446 = vpop.f32.mrf.mxu0
  %v9447 = vadd.f32 %v9278, %v9446
  %v9448 = vpop.f32.mrf.mxu0
  %v9449 = vadd.f32 %v9280, %v9448
  %9450 = vmatmul.bf16.gmra.mxu0 %v7007
  %v9451 = vpop.f32.mrf.mxu0
  %v9452 = vadd.f32 %v9283, %v9451
  %v9453 = vpop.f32.mrf.mxu0
  %v9454 = vadd.f32 %v9285, %v9453
  %9455 = vmatmul.bf16.gmra.mxu0 %v7011
  %v9456 = vpop.f32.mrf.mxu0
  %v9457 = vadd.f32 %v9288, %v9456
  %v9458 = vpop.f32.mrf.mxu0
  %v9459 = vadd.f32 %v9290, %v9458
  %9460 = vmatmul.bf16.gmra.mxu0 %v7015
  %v9461 = vpop.f32.mrf.mxu0
  %v9462 = vadd.f32 %v9293, %v9461
  %v9463 = vpop.f32.mrf.mxu0
  %v9464 = vadd.f32 %v9295, %v9463
  %9465 = vmatmul.bf16.gmra.mxu0 %v7019
  %v9466 = vpop.f32.mrf.mxu0
  %v9467 = vadd.f32 %v9298, %v9466
  %v9468 = vpop.f32.mrf.mxu0
  %v9469 = vadd.f32 %v9300, %v9468
  %9470 = vmatmul.bf16.gmra.mxu0 %v7023
  %v9471 = vpop.f32.mrf.mxu0
  %v9472 = vadd.f32 %v9303, %v9471
  %v9473 = vpop.f32.mrf.mxu0
  %v9474 = vadd.f32 %v9305, %v9473
  %9475 = vmatmul.bf16.gmra.mxu0 %v7027
  %v9476 = vpop.f32.mrf.mxu0
  %v9477 = vadd.f32 %v9308, %v9476
  %v9478 = vpop.f32.mrf.mxu0
  %v9479 = vadd.f32 %v9310, %v9478
  %9480 = vmatmul.bf16.gmra.mxu0 %v7031
  %v9481 = vpop.f32.mrf.mxu0
  %v9482 = vadd.f32 %v9313, %v9481
  %v9483 = vpop.f32.mrf.mxu0
  %v9484 = vadd.f32 %v9315, %v9483
  %9485 = vmatmul.bf16.gmra.mxu0 %v7035
  %v9486 = vpop.f32.mrf.mxu0
  %v9487 = vadd.f32 %v9318, %v9486
  %v9488 = vpop.f32.mrf.mxu0
  %v9489 = vadd.f32 %v9320, %v9488
  %9490 = vmatmul.bf16.gmra.mxu0 %v7039
  %v9491 = vpop.f32.mrf.mxu0
  %v9492 = vadd.f32 %v9323, %v9491
  %v9493 = vpop.f32.mrf.mxu0
  %v9494 = vadd.f32 %v9325, %v9493
  %9495 = vmatmul.bf16.gmra.mxu0 %v7043
  %v9496 = vpop.f32.mrf.mxu0
  %v9497 = vadd.f32 %v9328, %v9496
  %v9498 = vpop.f32.mrf.mxu0
  %v9499 = vadd.f32 %v9330, %v9498
  %9500 = vmatmul.bf16.gmra.mxu0 %v7047
  %v9501 = vpop.f32.mrf.mxu0
  %v9502 = vadd.f32 %v9333, %v9501
  %v9503 = vpop.f32.mrf.mxu0
  %v9504 = vadd.f32 %v9335, %v9503
  %9505 = vmatmul.bf16.gmra.mxu0 %v7051
  %v9506 = vpop.f32.mrf.mxu0
  %v9507 = vadd.f32 %v9338, %v9506
  %v9508 = vpop.f32.mrf.mxu0
  %v9509 = vadd.f32 %v9340, %v9508
  %9510 = vmatmul.bf16.gmra.mxu0 %v7055
  %v9511 = vpop.f32.mrf.mxu0
  %v9512 = vadd.f32 %v9343, %v9511
  %v9513 = vpop.f32.mrf.mxu0
  %v9514 = vadd.f32 %v9345, %v9513
  %9515 = vmatmul.bf16.gmra.mxu0 %v7059
  %v9516 = vpop.f32.mrf.mxu0
  %v9517 = vadd.f32 %v9348, %v9516
  %v9518 = vpop.f32.mrf.mxu0
  %v9519 = vadd.f32 %v9350, %v9518
  %9520 = vmatmul.bf16.gmra.mxu0 %v7063
  %v9521 = vpop.f32.mrf.mxu0
  %v9522 = vadd.f32 %v9353, %v9521
  %v9523 = vpop.f32.mrf.mxu0
  %v9524 = vadd.f32 %v9355, %v9523
  %9525 = vmatmul.bf16.gmra.mxu0 %v7067
  %v9526 = vpop.f32.mrf.mxu0
  %v9527 = vadd.f32 %v9358, %v9526
  %v9528 = vpop.f32.mrf.mxu0
  %v9529 = vadd.f32 %v9360, %v9528
  %9530 = vmatmul.bf16.gmra.mxu0 %v7071
  %v9531 = vpop.f32.mrf.mxu0
  %v9532 = vadd.f32 %v9363, %v9531
  %v9533 = vpop.f32.mrf.mxu0
  %v9534 = vadd.f32 %v9365, %v9533
  %9535 = vmatmul.bf16.gmra.mxu0 %v7075
  %v9536 = vpop.f32.mrf.mxu0
  %v9537 = vadd.f32 %v9368, %v9536
  %v9538 = vpop.f32.mrf.mxu0
  %v9539 = vadd.f32 %v9370, %v9538
  %9540 = vmatmul.bf16.gmra.mxu0 %v7079
  %v9541 = vpop.f32.mrf.mxu0
  %v9542 = vadd.f32 %v9373, %v9541
  %v9543 = vpop.f32.mrf.mxu0
  %v9544 = vadd.f32 %v9375, %v9543
  %9545 = vmatmul.bf16.gmra.mxu0 %v7083
  %v9546 = vpop.f32.mrf.mxu0
  %v9547 = vadd.f32 %v9378, %v9546
  %v9548 = vpop.f32.mrf.mxu0
  %v9549 = vadd.f32 %v9380, %v9548
  %9550 = vmatmul.bf16.gmra.mxu0 %v7087
  %v9551 = vpop.f32.mrf.mxu0
  %v9552 = vadd.f32 %v9383, %v9551
  %v9553 = vpop.f32.mrf.mxu0
  %v9554 = vadd.f32 %v9385, %v9553
  %9555 = vmatmul.bf16.gmra.mxu0 %v7091
  %v9556 = vpop.f32.mrf.mxu0
  %v9557 = vadd.f32 %v9388, %v9556
  %v9558 = vpop.f32.mrf.mxu0
  %v9559 = vadd.f32 %v9390, %v9558
  %9560 = vmatmul.bf16.gmra.mxu0 %v7095
  %v9561 = vpop.f32.mrf.mxu0
  %v9562 = vadd.f32 %v9393, %v9561
  %v9563 = vpop.f32.mrf.mxu0
  %v9564 = vadd.f32 %v9395, %v9563
  %9565 = vdwg.mxu0
  %9566 = vmatpush.bf16.msra.mxu0 %v7714
  %9567 = vmatpush.bf16.msra.mxu0 %v7710
  %9568 = vmatpush.bf16.msra.mxu0 %v7706
  %9569 = vmatpush.bf16.msra.mxu0 %v7702
  %9570 = vmatpush.bf16.msra.mxu0 %v7698
  %9571 = vmatpush.bf16.msra.mxu0 %v7694
  %9572 = vmatpush.bf16.msra.mxu0 %v7690
  %9573 = vmatpush.bf16.msra.mxu0 %v7686
  %9574 = vmatmul.bf16.gmra.mxu0 %v6972
  %v9575 = vpop.f32.mrf.mxu0
  %v9576 = vadd.f32 %v9407, %v9575
  %v9577 = vpop.f32.mrf.mxu0
  %v9578 = vadd.f32 %v9409, %v9577
  %9579 = vmatmul.bf16.gmra.mxu0 %v6976
  %v9580 = vpop.f32.mrf.mxu0
  %v9581 = vadd.f32 %v9412, %v9580
  %v9582 = vpop.f32.mrf.mxu0
  %v9583 = vadd.f32 %v9414, %v9582
  %9584 = vmatmul.bf16.gmra.mxu0 %v6980
  %v9585 = vpop.f32.mrf.mxu0
  %v9586 = vadd.f32 %v9417, %v9585
  %v9587 = vpop.f32.mrf.mxu0
  %v9588 = vadd.f32 %v9419, %v9587
  %9589 = vmatmul.bf16.gmra.mxu0 %v6984
  %v9590 = vpop.f32.mrf.mxu0
  %v9591 = vadd.f32 %v9422, %v9590
  %v9592 = vpop.f32.mrf.mxu0
  %v9593 = vadd.f32 %v9424, %v9592
  %9594 = vmatmul.bf16.gmra.mxu0 %v6988
  %v9595 = vpop.f32.mrf.mxu0
  %v9596 = vadd.f32 %v9427, %v9595
  %v9597 = vpop.f32.mrf.mxu0
  %v9598 = vadd.f32 %v9429, %v9597
  %9599 = vmatmul.bf16.gmra.mxu0 %v6992
  %v9600 = vpop.f32.mrf.mxu0
  %v9601 = vadd.f32 %v9432, %v9600
  %v9602 = vpop.f32.mrf.mxu0
  %v9603 = vadd.f32 %v9434, %v9602
  %9604 = vmatmul.bf16.gmra.mxu0 %v6996
  %v9605 = vpop.f32.mrf.mxu0
  %v9606 = vadd.f32 %v9437, %v9605
  %v9607 = vpop.f32.mrf.mxu0
  %v9608 = vadd.f32 %v9439, %v9607
  %9609 = vmatmul.bf16.gmra.mxu0 %v7000
  %v9610 = vpop.f32.mrf.mxu0
  %v9611 = vadd.f32 %v9442, %v9610
  %v9612 = vpop.f32.mrf.mxu0
  %v9613 = vadd.f32 %v9444, %v9612
  %9614 = vmatmul.bf16.gmra.mxu0 %v7004
  %v9615 = vpop.f32.mrf.mxu0
  %v9616 = vadd.f32 %v9447, %v9615
  %v9617 = vpop.f32.mrf.mxu0
  %v9618 = vadd.f32 %v9449, %v9617
  %9619 = vmatmul.bf16.gmra.mxu0 %v7008
  %v9620 = vpop.f32.mrf.mxu0
  %v9621 = vadd.f32 %v9452, %v9620
  %v9622 = vpop.f32.mrf.mxu0
  %v9623 = vadd.f32 %v9454, %v9622
  %9624 = vmatmul.bf16.gmra.mxu0 %v7012
  %v9625 = vpop.f32.mrf.mxu0
  %v9626 = vadd.f32 %v9457, %v9625
  %v9627 = vpop.f32.mrf.mxu0
  %v9628 = vadd.f32 %v9459, %v9627
  %9629 = vmatmul.bf16.gmra.mxu0 %v7016
  %v9630 = vpop.f32.mrf.mxu0
  %v9631 = vadd.f32 %v9462, %v9630
  %v9632 = vpop.f32.mrf.mxu0
  %v9633 = vadd.f32 %v9464, %v9632
  %9634 = vmatmul.bf16.gmra.mxu0 %v7020
  %v9635 = vpop.f32.mrf.mxu0
  %v9636 = vadd.f32 %v9467, %v9635
  %v9637 = vpop.f32.mrf.mxu0
  %v9638 = vadd.f32 %v9469, %v9637
  %9639 = vmatmul.bf16.gmra.mxu0 %v7024
  %v9640 = vpop.f32.mrf.mxu0
  %v9641 = vadd.f32 %v9472, %v9640
  %v9642 = vpop.f32.mrf.mxu0
  %v9643 = vadd.f32 %v9474, %v9642
  %9644 = vmatmul.bf16.gmra.mxu0 %v7028
  %v9645 = vpop.f32.mrf.mxu0
  %v9646 = vadd.f32 %v9477, %v9645
  %v9647 = vpop.f32.mrf.mxu0
  %v9648 = vadd.f32 %v9479, %v9647
  %9649 = vmatmul.bf16.gmra.mxu0 %v7032
  %v9650 = vpop.f32.mrf.mxu0
  %v9651 = vadd.f32 %v9482, %v9650
  %v9652 = vpop.f32.mrf.mxu0
  %v9653 = vadd.f32 %v9484, %v9652
  %9654 = vmatmul.bf16.gmra.mxu0 %v7036
  %v9655 = vpop.f32.mrf.mxu0
  %v9656 = vadd.f32 %v9487, %v9655
  %v9657 = vpop.f32.mrf.mxu0
  %v9658 = vadd.f32 %v9489, %v9657
  %9659 = vmatmul.bf16.gmra.mxu0 %v7040
  %v9660 = vpop.f32.mrf.mxu0
  %v9661 = vadd.f32 %v9492, %v9660
  %v9662 = vpop.f32.mrf.mxu0
  %v9663 = vadd.f32 %v9494, %v9662
  %9664 = vmatmul.bf16.gmra.mxu0 %v7044
  %v9665 = vpop.f32.mrf.mxu0
  %v9666 = vadd.f32 %v9497, %v9665
  %v9667 = vpop.f32.mrf.mxu0
  %v9668 = vadd.f32 %v9499, %v9667
  %9669 = vmatmul.bf16.gmra.mxu0 %v7048
  %v9670 = vpop.f32.mrf.mxu0
  %v9671 = vadd.f32 %v9502, %v9670
  %v9672 = vpop.f32.mrf.mxu0
  %v9673 = vadd.f32 %v9504, %v9672
  %9674 = vmatmul.bf16.gmra.mxu0 %v7052
  %v9675 = vpop.f32.mrf.mxu0
  %v9676 = vadd.f32 %v9507, %v9675
  %v9677 = vpop.f32.mrf.mxu0
  %v9678 = vadd.f32 %v9509, %v9677
  %9679 = vmatmul.bf16.gmra.mxu0 %v7056
  %v9680 = vpop.f32.mrf.mxu0
  %v9681 = vadd.f32 %v9512, %v9680
  %v9682 = vpop.f32.mrf.mxu0
  %v9683 = vadd.f32 %v9514, %v9682
  %9684 = vmatmul.bf16.gmra.mxu0 %v7060
  %v9685 = vpop.f32.mrf.mxu0
  %v9686 = vadd.f32 %v9517, %v9685
  %v9687 = vpop.f32.mrf.mxu0
  %v9688 = vadd.f32 %v9519, %v9687
  %9689 = vmatmul.bf16.gmra.mxu0 %v7064
  %v9690 = vpop.f32.mrf.mxu0
  %v9691 = vadd.f32 %v9522, %v9690
  %v9692 = vpop.f32.mrf.mxu0
  %v9693 = vadd.f32 %v9524, %v9692
  %9694 = vmatmul.bf16.gmra.mxu0 %v7068
  %v9695 = vpop.f32.mrf.mxu0
  %v9696 = vadd.f32 %v9527, %v9695
  %v9697 = vpop.f32.mrf.mxu0
  %v9698 = vadd.f32 %v9529, %v9697
  %9699 = vmatmul.bf16.gmra.mxu0 %v7072
  %v9700 = vpop.f32.mrf.mxu0
  %v9701 = vadd.f32 %v9532, %v9700
  %v9702 = vpop.f32.mrf.mxu0
  %v9703 = vadd.f32 %v9534, %v9702
  %9704 = vmatmul.bf16.gmra.mxu0 %v7076
  %v9705 = vpop.f32.mrf.mxu0
  %v9706 = vadd.f32 %v9537, %v9705
  %v9707 = vpop.f32.mrf.mxu0
  %v9708 = vadd.f32 %v9539, %v9707
  %9709 = vmatmul.bf16.gmra.mxu0 %v7080
  %v9710 = vpop.f32.mrf.mxu0
  %v9711 = vadd.f32 %v9542, %v9710
  %v9712 = vpop.f32.mrf.mxu0
  %v9713 = vadd.f32 %v9544, %v9712
  %9714 = vmatmul.bf16.gmra.mxu0 %v7084
  %v9715 = vpop.f32.mrf.mxu0
  %v9716 = vadd.f32 %v9547, %v9715
  %v9717 = vpop.f32.mrf.mxu0
  %v9718 = vadd.f32 %v9549, %v9717
  %9719 = vmatmul.bf16.gmra.mxu0 %v7088
  %v9720 = vpop.f32.mrf.mxu0
  %v9721 = vadd.f32 %v9552, %v9720
  %v9722 = vpop.f32.mrf.mxu0
  %v9723 = vadd.f32 %v9554, %v9722
  %9724 = vmatmul.bf16.gmra.mxu0 %v7092
  %v9725 = vpop.f32.mrf.mxu0
  %v9726 = vadd.f32 %v9557, %v9725
  %v9727 = vpop.f32.mrf.mxu0
  %v9728 = vadd.f32 %v9559, %v9727
  %9729 = vmatmul.bf16.gmra.mxu0 %v7096
  %v9730 = vpop.f32.mrf.mxu0
  %v9731 = vadd.f32 %v9562, %v9730
  %v9732 = vpop.f32.mrf.mxu0
  %v9733 = vadd.f32 %v9564, %v9732
  %9734 = vdwg.mxu0
  %9735 = vmatpush.bf16.msra.mxu0 %v7746
  %9736 = vmatpush.bf16.msra.mxu0 %v7742
  %9737 = vmatpush.bf16.msra.mxu0 %v7738
  %9738 = vmatpush.bf16.msra.mxu0 %v7734
  %9739 = vmatpush.bf16.msra.mxu0 %v7730
  %9740 = vmatpush.bf16.msra.mxu0 %v7726
  %9741 = vmatpush.bf16.msra.mxu0 %v7722
  %9742 = vmatpush.bf16.msra.mxu0 %v7718
  %9743 = vmatmul.bf16.gmra.mxu0 %v6973
  %v9744 = vpop.f32.mrf.mxu0
  %v9745 = vadd.f32 %v9576, %v9744
  %v9746 = vpop.f32.mrf.mxu0
  %v9747 = vadd.f32 %v9578, %v9746
  %9748 = vmatmul.bf16.gmra.mxu0 %v6977
  %v9749 = vpop.f32.mrf.mxu0
  %v9750 = vadd.f32 %v9581, %v9749
  %v9751 = vpop.f32.mrf.mxu0
  %v9752 = vadd.f32 %v9583, %v9751
  %9753 = vmatmul.bf16.gmra.mxu0 %v6981
  %v9754 = vpop.f32.mrf.mxu0
  %v9755 = vadd.f32 %v9586, %v9754
  %v9756 = vpop.f32.mrf.mxu0
  %v9757 = vadd.f32 %v9588, %v9756
  %9758 = vmatmul.bf16.gmra.mxu0 %v6985
  %v9759 = vpop.f32.mrf.mxu0
  %v9760 = vadd.f32 %v9591, %v9759
  %v9761 = vpop.f32.mrf.mxu0
  %v9762 = vadd.f32 %v9593, %v9761
  %9763 = vmatmul.bf16.gmra.mxu0 %v6989
  %v9764 = vpop.f32.mrf.mxu0
  %v9765 = vadd.f32 %v9596, %v9764
  %v9766 = vpop.f32.mrf.mxu0
  %v9767 = vadd.f32 %v9598, %v9766
  %9768 = vmatmul.bf16.gmra.mxu0 %v6993
  %v9769 = vpop.f32.mrf.mxu0
  %v9770 = vadd.f32 %v9601, %v9769
  %v9771 = vpop.f32.mrf.mxu0
  %v9772 = vadd.f32 %v9603, %v9771
  %9773 = vmatmul.bf16.gmra.mxu0 %v6997
  %v9774 = vpop.f32.mrf.mxu0
  %v9775 = vadd.f32 %v9606, %v9774
  %v9776 = vpop.f32.mrf.mxu0
  %v9777 = vadd.f32 %v9608, %v9776
  %9778 = vmatmul.bf16.gmra.mxu0 %v7001
  %v9779 = vpop.f32.mrf.mxu0
  %v9780 = vadd.f32 %v9611, %v9779
  %v9781 = vpop.f32.mrf.mxu0
  %v9782 = vadd.f32 %v9613, %v9781
  %9783 = vmatmul.bf16.gmra.mxu0 %v7005
  %v9784 = vpop.f32.mrf.mxu0
  %v9785 = vadd.f32 %v9616, %v9784
  %v9786 = vpop.f32.mrf.mxu0
  %v9787 = vadd.f32 %v9618, %v9786
  %9788 = vmatmul.bf16.gmra.mxu0 %v7009
  %v9789 = vpop.f32.mrf.mxu0
  %v9790 = vadd.f32 %v9621, %v9789
  %v9791 = vpop.f32.mrf.mxu0
  %v9792 = vadd.f32 %v9623, %v9791
  %9793 = vmatmul.bf16.gmra.mxu0 %v7013
  %v9794 = vpop.f32.mrf.mxu0
  %v9795 = vadd.f32 %v9626, %v9794
  %v9796 = vpop.f32.mrf.mxu0
  %v9797 = vadd.f32 %v9628, %v9796
  %9798 = vmatmul.bf16.gmra.mxu0 %v7017
  %v9799 = vpop.f32.mrf.mxu0
  %v9800 = vadd.f32 %v9631, %v9799
  %v9801 = vpop.f32.mrf.mxu0
  %v9802 = vadd.f32 %v9633, %v9801
  %9803 = vmatmul.bf16.gmra.mxu0 %v7021
  %v9804 = vpop.f32.mrf.mxu0
  %v9805 = vadd.f32 %v9636, %v9804
  %v9806 = vpop.f32.mrf.mxu0
  %v9807 = vadd.f32 %v9638, %v9806
  %9808 = vmatmul.bf16.gmra.mxu0 %v7025
  %v9809 = vpop.f32.mrf.mxu0
  %v9810 = vadd.f32 %v9641, %v9809
  %v9811 = vpop.f32.mrf.mxu0
  %v9812 = vadd.f32 %v9643, %v9811
  %9813 = vmatmul.bf16.gmra.mxu0 %v7029
  %v9814 = vpop.f32.mrf.mxu0
  %v9815 = vadd.f32 %v9646, %v9814
  %v9816 = vpop.f32.mrf.mxu0
  %v9817 = vadd.f32 %v9648, %v9816
  %9818 = vmatmul.bf16.gmra.mxu0 %v7033
  %v9819 = vpop.f32.mrf.mxu0
  %v9820 = vadd.f32 %v9651, %v9819
  %v9821 = vpop.f32.mrf.mxu0
  %v9822 = vadd.f32 %v9653, %v9821
  %9823 = vmatmul.bf16.gmra.mxu0 %v7037
  %v9824 = vpop.f32.mrf.mxu0
  %v9825 = vadd.f32 %v9656, %v9824
  %v9826 = vpop.f32.mrf.mxu0
  %v9827 = vadd.f32 %v9658, %v9826
  %9828 = vmatmul.bf16.gmra.mxu0 %v7041
  %v9829 = vpop.f32.mrf.mxu0
  %v9830 = vadd.f32 %v9661, %v9829
  %v9831 = vpop.f32.mrf.mxu0
  %v9832 = vadd.f32 %v9663, %v9831
  %9833 = vmatmul.bf16.gmra.mxu0 %v7045
  %v9834 = vpop.f32.mrf.mxu0
  %v9835 = vadd.f32 %v9666, %v9834
  %v9836 = vpop.f32.mrf.mxu0
  %v9837 = vadd.f32 %v9668, %v9836
  %9838 = vmatmul.bf16.gmra.mxu0 %v7049
  %v9839 = vpop.f32.mrf.mxu0
  %v9840 = vadd.f32 %v9671, %v9839
  %v9841 = vpop.f32.mrf.mxu0
  %v9842 = vadd.f32 %v9673, %v9841
  %9843 = vmatmul.bf16.gmra.mxu0 %v7053
  %v9844 = vpop.f32.mrf.mxu0
  %v9845 = vadd.f32 %v9676, %v9844
  %v9846 = vpop.f32.mrf.mxu0
  %v9847 = vadd.f32 %v9678, %v9846
  %9848 = vmatmul.bf16.gmra.mxu0 %v7057
  %v9849 = vpop.f32.mrf.mxu0
  %v9850 = vadd.f32 %v9681, %v9849
  %v9851 = vpop.f32.mrf.mxu0
  %v9852 = vadd.f32 %v9683, %v9851
  %9853 = vmatmul.bf16.gmra.mxu0 %v7061
  %v9854 = vpop.f32.mrf.mxu0
  %v9855 = vadd.f32 %v9686, %v9854
  %v9856 = vpop.f32.mrf.mxu0
  %v9857 = vadd.f32 %v9688, %v9856
  %9858 = vmatmul.bf16.gmra.mxu0 %v7065
  %v9859 = vpop.f32.mrf.mxu0
  %v9860 = vadd.f32 %v9691, %v9859
  %v9861 = vpop.f32.mrf.mxu0
  %v9862 = vadd.f32 %v9693, %v9861
  %9863 = vmatmul.bf16.gmra.mxu0 %v7069
  %v9864 = vpop.f32.mrf.mxu0
  %v9865 = vadd.f32 %v9696, %v9864
  %v9866 = vpop.f32.mrf.mxu0
  %v9867 = vadd.f32 %v9698, %v9866
  %9868 = vmatmul.bf16.gmra.mxu0 %v7073
  %v9869 = vpop.f32.mrf.mxu0
  %v9870 = vadd.f32 %v9701, %v9869
  %v9871 = vpop.f32.mrf.mxu0
  %v9872 = vadd.f32 %v9703, %v9871
  %9873 = vmatmul.bf16.gmra.mxu0 %v7077
  %v9874 = vpop.f32.mrf.mxu0
  %v9875 = vadd.f32 %v9706, %v9874
  %v9876 = vpop.f32.mrf.mxu0
  %v9877 = vadd.f32 %v9708, %v9876
  %9878 = vmatmul.bf16.gmra.mxu0 %v7081
  %v9879 = vpop.f32.mrf.mxu0
  %v9880 = vadd.f32 %v9711, %v9879
  %v9881 = vpop.f32.mrf.mxu0
  %v9882 = vadd.f32 %v9713, %v9881
  %9883 = vmatmul.bf16.gmra.mxu0 %v7085
  %v9884 = vpop.f32.mrf.mxu0
  %v9885 = vadd.f32 %v9716, %v9884
  %v9886 = vpop.f32.mrf.mxu0
  %v9887 = vadd.f32 %v9718, %v9886
  %9888 = vmatmul.bf16.gmra.mxu0 %v7089
  %v9889 = vpop.f32.mrf.mxu0
  %v9890 = vadd.f32 %v9721, %v9889
  %v9891 = vpop.f32.mrf.mxu0
  %v9892 = vadd.f32 %v9723, %v9891
  %9893 = vmatmul.bf16.gmra.mxu0 %v7093
  %v9894 = vpop.f32.mrf.mxu0
  %v9895 = vadd.f32 %v9726, %v9894
  %v9896 = vpop.f32.mrf.mxu0
  %v9897 = vadd.f32 %v9728, %v9896
  %9898 = vmatmul.bf16.gmra.mxu0 %v7097
  %v9899 = vpop.f32.mrf.mxu0
  %v9900 = vadd.f32 %v9731, %v9899
  %v9901 = vpop.f32.mrf.mxu0
  %v9902 = vadd.f32 %v9733, %v9901
  %9903 = vdwg.mxu0
  %9904 = vmatpush.bf16.msra.mxu0 %v7651
  %9905 = vmatpush.bf16.msra.mxu0 %v7647
  %9906 = vmatpush.bf16.msra.mxu0 %v7643
  %9907 = vmatpush.bf16.msra.mxu0 %v7639
  %9908 = vmatpush.bf16.msra.mxu0 %v7635
  %9909 = vmatpush.bf16.msra.mxu0 %v7631
  %9910 = vmatpush.bf16.msra.mxu0 %v7627
  %9911 = vmatpush.bf16.msra.mxu0 %v7623
  %9912 = vmatmul.bf16.gmra.mxu0 %v6970
  %v9913 = vpop.f32.mrf.mxu0
  %v9914 = vadd.f32 %v7231, %v9913
  %v9915 = vpop.f32.mrf.mxu0
  %v9916 = vadd.f32 %v7231, %v9915
  %9917 = vmatmul.bf16.gmra.mxu0 %v6974
  %v9918 = vpop.f32.mrf.mxu0
  %v9919 = vadd.f32 %v7231, %v9918
  %v9920 = vpop.f32.mrf.mxu0
  %v9921 = vadd.f32 %v7231, %v9920
  %9922 = vmatmul.bf16.gmra.mxu0 %v6978
  %v9923 = vpop.f32.mrf.mxu0
  %v9924 = vadd.f32 %v7231, %v9923
  %v9925 = vpop.f32.mrf.mxu0
  %v9926 = vadd.f32 %v7231, %v9925
  %9927 = vmatmul.bf16.gmra.mxu0 %v6982
  %v9928 = vpop.f32.mrf.mxu0
  %v9929 = vadd.f32 %v7231, %v9928
  %v9930 = vpop.f32.mrf.mxu0
  %v9931 = vadd.f32 %v7231, %v9930
  %9932 = vmatmul.bf16.gmra.mxu0 %v6986
  %v9933 = vpop.f32.mrf.mxu0
  %v9934 = vadd.f32 %v7231, %v9933
  %v9935 = vpop.f32.mrf.mxu0
  %v9936 = vadd.f32 %v7231, %v9935
  %9937 = vmatmul.bf16.gmra.mxu0 %v6990
  %v9938 = vpop.f32.mrf.mxu0
  %v9939 = vadd.f32 %v7231, %v9938
  %v9940 = vpop.f32.mrf.mxu0
  %v9941 = vadd.f32 %v7231, %v9940
  %9942 = vmatmul.bf16.gmra.mxu0 %v6994
  %v9943 = vpop.f32.mrf.mxu0
  %v9944 = vadd.f32 %v7231, %v9943
  %v9945 = vpop.f32.mrf.mxu0
  %v9946 = vadd.f32 %v7231, %v9945
  %9947 = vmatmul.bf16.gmra.mxu0 %v6998
  %v9948 = vpop.f32.mrf.mxu0
  %v9949 = vadd.f32 %v7231, %v9948
  %v9950 = vpop.f32.mrf.mxu0
  %v9951 = vadd.f32 %v7231, %v9950
  %9952 = vmatmul.bf16.gmra.mxu0 %v7002
  %v9953 = vpop.f32.mrf.mxu0
  %v9954 = vadd.f32 %v7231, %v9953
  %v9955 = vpop.f32.mrf.mxu0
  %v9956 = vadd.f32 %v7231, %v9955
  %9957 = vmatmul.bf16.gmra.mxu0 %v7006
  %v9958 = vpop.f32.mrf.mxu0
  %v9959 = vadd.f32 %v7231, %v9958
  %v9960 = vpop.f32.mrf.mxu0
  %v9961 = vadd.f32 %v7231, %v9960
  %9962 = vmatmul.bf16.gmra.mxu0 %v7010
  %v9963 = vpop.f32.mrf.mxu0
  %v9964 = vadd.f32 %v7231, %v9963
  %v9965 = vpop.f32.mrf.mxu0
  %v9966 = vadd.f32 %v7231, %v9965
  %9967 = vmatmul.bf16.gmra.mxu0 %v7014
  %v9968 = vpop.f32.mrf.mxu0
  %v9969 = vadd.f32 %v7231, %v9968
  %v9970 = vpop.f32.mrf.mxu0
  %v9971 = vadd.f32 %v7231, %v9970
  %9972 = vmatmul.bf16.gmra.mxu0 %v7018
  %v9973 = vpop.f32.mrf.mxu0
  %v9974 = vadd.f32 %v7231, %v9973
  %v9975 = vpop.f32.mrf.mxu0
  %v9976 = vadd.f32 %v7231, %v9975
  %9977 = vmatmul.bf16.gmra.mxu0 %v7022
  %v9978 = vpop.f32.mrf.mxu0
  %v9979 = vadd.f32 %v7231, %v9978
  %v9980 = vpop.f32.mrf.mxu0
  %v9981 = vadd.f32 %v7231, %v9980
  %9982 = vmatmul.bf16.gmra.mxu0 %v7026
  %v9983 = vpop.f32.mrf.mxu0
  %v9984 = vadd.f32 %v7231, %v9983
  %v9985 = vpop.f32.mrf.mxu0
  %v9986 = vadd.f32 %v7231, %v9985
  %9987 = vmatmul.bf16.gmra.mxu0 %v7030
  %v9988 = vpop.f32.mrf.mxu0
  %v9989 = vadd.f32 %v7231, %v9988
  %v9990 = vpop.f32.mrf.mxu0
  %v9991 = vadd.f32 %v7231, %v9990
  %9992 = vmatmul.bf16.gmra.mxu0 %v7034
  %v9993 = vpop.f32.mrf.mxu0
  %v9994 = vadd.f32 %v7231, %v9993
  %v9995 = vpop.f32.mrf.mxu0
  %v9996 = vadd.f32 %v7231, %v9995
  %9997 = vmatmul.bf16.gmra.mxu0 %v7038
  %v9998 = vpop.f32.mrf.mxu0
  %v9999 = vadd.f32 %v7231, %v9998
  %v10000 = vpop.f32.mrf.mxu0
  %v10001 = vadd.f32 %v7231, %v10000
  %10002 = vmatmul.bf16.gmra.mxu0 %v7042
  %v10003 = vpop.f32.mrf.mxu0
  %v10004 = vadd.f32 %v7231, %v10003
  %v10005 = vpop.f32.mrf.mxu0
  %v10006 = vadd.f32 %v7231, %v10005
  %10007 = vmatmul.bf16.gmra.mxu0 %v7046
  %v10008 = vpop.f32.mrf.mxu0
  %v10009 = vadd.f32 %v7231, %v10008
  %v10010 = vpop.f32.mrf.mxu0
  %v10011 = vadd.f32 %v7231, %v10010
  %10012 = vmatmul.bf16.gmra.mxu0 %v7050
  %v10013 = vpop.f32.mrf.mxu0
  %v10014 = vadd.f32 %v7231, %v10013
  %v10015 = vpop.f32.mrf.mxu0
  %v10016 = vadd.f32 %v7231, %v10015
  %10017 = vmatmul.bf16.gmra.mxu0 %v7054
  %v10018 = vpop.f32.mrf.mxu0
  %v10019 = vadd.f32 %v7231, %v10018
  %v10020 = vpop.f32.mrf.mxu0
  %v10021 = vadd.f32 %v7231, %v10020
  %10022 = vmatmul.bf16.gmra.mxu0 %v7058
  %v10023 = vpop.f32.mrf.mxu0
  %v10024 = vadd.f32 %v7231, %v10023
  %v10025 = vpop.f32.mrf.mxu0
  %v10026 = vadd.f32 %v7231, %v10025
  %10027 = vmatmul.bf16.gmra.mxu0 %v7062
  %v10028 = vpop.f32.mrf.mxu0
  %v10029 = vadd.f32 %v7231, %v10028
  %v10030 = vpop.f32.mrf.mxu0
  %v10031 = vadd.f32 %v7231, %v10030
  %10032 = vmatmul.bf16.gmra.mxu0 %v7066
  %v10033 = vpop.f32.mrf.mxu0
  %v10034 = vadd.f32 %v7231, %v10033
  %v10035 = vpop.f32.mrf.mxu0
  %v10036 = vadd.f32 %v7231, %v10035
  %10037 = vmatmul.bf16.gmra.mxu0 %v7070
  %v10038 = vpop.f32.mrf.mxu0
  %v10039 = vadd.f32 %v7231, %v10038
  %v10040 = vpop.f32.mrf.mxu0
  %v10041 = vadd.f32 %v7231, %v10040
  %10042 = vmatmul.bf16.gmra.mxu0 %v7074
  %v10043 = vpop.f32.mrf.mxu0
  %v10044 = vadd.f32 %v7231, %v10043
  %v10045 = vpop.f32.mrf.mxu0
  %v10046 = vadd.f32 %v7231, %v10045
  %10047 = vmatmul.bf16.gmra.mxu0 %v7078
  %v10048 = vpop.f32.mrf.mxu0
  %v10049 = vadd.f32 %v7231, %v10048
  %v10050 = vpop.f32.mrf.mxu0
  %v10051 = vadd.f32 %v7231, %v10050
  %10052 = vmatmul.bf16.gmra.mxu0 %v7082
  %v10053 = vpop.f32.mrf.mxu0
  %v10054 = vadd.f32 %v7231, %v10053
  %v10055 = vpop.f32.mrf.mxu0
  %v10056 = vadd.f32 %v7231, %v10055
  %10057 = vmatmul.bf16.gmra.mxu0 %v7086
  %v10058 = vpop.f32.mrf.mxu0
  %v10059 = vadd.f32 %v7231, %v10058
  %v10060 = vpop.f32.mrf.mxu0
  %v10061 = vadd.f32 %v7231, %v10060
  %10062 = vmatmul.bf16.gmra.mxu0 %v7090
  %v10063 = vpop.f32.mrf.mxu0
  %v10064 = vadd.f32 %v7231, %v10063
  %v10065 = vpop.f32.mrf.mxu0
  %v10066 = vadd.f32 %v7231, %v10065
  %10067 = vmatmul.bf16.gmra.mxu0 %v7094
  %v10068 = vpop.f32.mrf.mxu0
  %v10069 = vadd.f32 %v7231, %v10068
  %v10070 = vpop.f32.mrf.mxu0
  %v10071 = vadd.f32 %v7231, %v10070
  %10072 = vdwg.mxu0
  %10073 = vmatpush.bf16.msra.mxu0 %v7683
  %10074 = vmatpush.bf16.msra.mxu0 %v7679
  %10075 = vmatpush.bf16.msra.mxu0 %v7675
  %10076 = vmatpush.bf16.msra.mxu0 %v7671
  %10077 = vmatpush.bf16.msra.mxu0 %v7667
  %10078 = vmatpush.bf16.msra.mxu0 %v7663
  %10079 = vmatpush.bf16.msra.mxu0 %v7659
  %10080 = vmatpush.bf16.msra.mxu0 %v7655
  %10081 = vmatmul.bf16.gmra.mxu0 %v6971
  %v10082 = vpop.f32.mrf.mxu0
  %v10083 = vadd.f32 %v9914, %v10082
  %v10084 = vpop.f32.mrf.mxu0
  %v10085 = vadd.f32 %v9916, %v10084
  %10086 = vmatmul.bf16.gmra.mxu0 %v6975
  %v10087 = vpop.f32.mrf.mxu0
  %v10088 = vadd.f32 %v9919, %v10087
  %v10089 = vpop.f32.mrf.mxu0
  %v10090 = vadd.f32 %v9921, %v10089
  %10091 = vmatmul.bf16.gmra.mxu0 %v6979
  %v10092 = vpop.f32.mrf.mxu0
  %v10093 = vadd.f32 %v9924, %v10092
  %v10094 = vpop.f32.mrf.mxu0
  %v10095 = vadd.f32 %v9926, %v10094
  %10096 = vmatmul.bf16.gmra.mxu0 %v6983
  %v10097 = vpop.f32.mrf.mxu0
  %v10098 = vadd.f32 %v9929, %v10097
  %v10099 = vpop.f32.mrf.mxu0
  %v10100 = vadd.f32 %v9931, %v10099
  %10101 = vmatmul.bf16.gmra.mxu0 %v6987
  %v10102 = vpop.f32.mrf.mxu0
  %v10103 = vadd.f32 %v9934, %v10102
  %v10104 = vpop.f32.mrf.mxu0
  %v10105 = vadd.f32 %v9936, %v10104
  %10106 = vmatmul.bf16.gmra.mxu0 %v6991
  %v10107 = vpop.f32.mrf.mxu0
  %v10108 = vadd.f32 %v9939, %v10107
  %v10109 = vpop.f32.mrf.mxu0
  %v10110 = vadd.f32 %v9941, %v10109
  %10111 = vmatmul.bf16.gmra.mxu0 %v6995
  %v10112 = vpop.f32.mrf.mxu0
  %v10113 = vadd.f32 %v9944, %v10112
  %v10114 = vpop.f32.mrf.mxu0
  %v10115 = vadd.f32 %v9946, %v10114
  %10116 = vmatmul.bf16.gmra.mxu0 %v6999
  %v10117 = vpop.f32.mrf.mxu0
  %v10118 = vadd.f32 %v9949, %v10117
  %v10119 = vpop.f32.mrf.mxu0
  %v10120 = vadd.f32 %v9951, %v10119
  %10121 = vmatmul.bf16.gmra.mxu0 %v7003
  %v10122 = vpop.f32.mrf.mxu0
  %v10123 = vadd.f32 %v9954, %v10122
  %v10124 = vpop.f32.mrf.mxu0
  %v10125 = vadd.f32 %v9956, %v10124
  %10126 = vmatmul.bf16.gmra.mxu0 %v7007
  %v10127 = vpop.f32.mrf.mxu0
  %v10128 = vadd.f32 %v9959, %v10127
  %v10129 = vpop.f32.mrf.mxu0
  %v10130 = vadd.f32 %v9961, %v10129
  %10131 = vmatmul.bf16.gmra.mxu0 %v7011
  %v10132 = vpop.f32.mrf.mxu0
  %v10133 = vadd.f32 %v9964, %v10132
  %v10134 = vpop.f32.mrf.mxu0
  %v10135 = vadd.f32 %v9966, %v10134
  %10136 = vmatmul.bf16.gmra.mxu0 %v7015
  %v10137 = vpop.f32.mrf.mxu0
  %v10138 = vadd.f32 %v9969, %v10137
  %v10139 = vpop.f32.mrf.mxu0
  %v10140 = vadd.f32 %v9971, %v10139
  %10141 = vmatmul.bf16.gmra.mxu0 %v7019
  %v10142 = vpop.f32.mrf.mxu0
  %v10143 = vadd.f32 %v9974, %v10142
  %v10144 = vpop.f32.mrf.mxu0
  %v10145 = vadd.f32 %v9976, %v10144
  %10146 = vmatmul.bf16.gmra.mxu0 %v7023
  %v10147 = vpop.f32.mrf.mxu0
  %v10148 = vadd.f32 %v9979, %v10147
  %v10149 = vpop.f32.mrf.mxu0
  %v10150 = vadd.f32 %v9981, %v10149
  %10151 = vmatmul.bf16.gmra.mxu0 %v7027
  %v10152 = vpop.f32.mrf.mxu0
  %v10153 = vadd.f32 %v9984, %v10152
  %v10154 = vpop.f32.mrf.mxu0
  %v10155 = vadd.f32 %v9986, %v10154
  %10156 = vmatmul.bf16.gmra.mxu0 %v7031
  %v10157 = vpop.f32.mrf.mxu0
  %v10158 = vadd.f32 %v9989, %v10157
  %v10159 = vpop.f32.mrf.mxu0
  %v10160 = vadd.f32 %v9991, %v10159
  %10161 = vmatmul.bf16.gmra.mxu0 %v7035
  %v10162 = vpop.f32.mrf.mxu0
  %v10163 = vadd.f32 %v9994, %v10162
  %v10164 = vpop.f32.mrf.mxu0
  %v10165 = vadd.f32 %v9996, %v10164
  %10166 = vmatmul.bf16.gmra.mxu0 %v7039
  %v10167 = vpop.f32.mrf.mxu0
  %v10168 = vadd.f32 %v9999, %v10167
  %v10169 = vpop.f32.mrf.mxu0
  %v10170 = vadd.f32 %v10001, %v10169
  %10171 = vmatmul.bf16.gmra.mxu0 %v7043
  %v10172 = vpop.f32.mrf.mxu0
  %v10173 = vadd.f32 %v10004, %v10172
  %v10174 = vpop.f32.mrf.mxu0
  %v10175 = vadd.f32 %v10006, %v10174
  %10176 = vmatmul.bf16.gmra.mxu0 %v7047
  %v10177 = vpop.f32.mrf.mxu0
  %v10178 = vadd.f32 %v10009, %v10177
  %v10179 = vpop.f32.mrf.mxu0
  %v10180 = vadd.f32 %v10011, %v10179
  %10181 = vmatmul.bf16.gmra.mxu0 %v7051
  %v10182 = vpop.f32.mrf.mxu0
  %v10183 = vadd.f32 %v10014, %v10182
  %v10184 = vpop.f32.mrf.mxu0
  %v10185 = vadd.f32 %v10016, %v10184
  %10186 = vmatmul.bf16.gmra.mxu0 %v7055
  %v10187 = vpop.f32.mrf.mxu0
  %v10188 = vadd.f32 %v10019, %v10187
  %v10189 = vpop.f32.mrf.mxu0
  %v10190 = vadd.f32 %v10021, %v10189
  %10191 = vmatmul.bf16.gmra.mxu0 %v7059
  %v10192 = vpop.f32.mrf.mxu0
  %v10193 = vadd.f32 %v10024, %v10192
  %v10194 = vpop.f32.mrf.mxu0
  %v10195 = vadd.f32 %v10026, %v10194
  %10196 = vmatmul.bf16.gmra.mxu0 %v7063
  %v10197 = vpop.f32.mrf.mxu0
  %v10198 = vadd.f32 %v10029, %v10197
  %v10199 = vpop.f32.mrf.mxu0
  %v10200 = vadd.f32 %v10031, %v10199
  %10201 = vmatmul.bf16.gmra.mxu0 %v7067
  %v10202 = vpop.f32.mrf.mxu0
  %v10203 = vadd.f32 %v10034, %v10202
  %v10204 = vpop.f32.mrf.mxu0
  %v10205 = vadd.f32 %v10036, %v10204
  %10206 = vmatmul.bf16.gmra.mxu0 %v7071
  %v10207 = vpop.f32.mrf.mxu0
  %v10208 = vadd.f32 %v10039, %v10207
  %v10209 = vpop.f32.mrf.mxu0
  %v10210 = vadd.f32 %v10041, %v10209
  %10211 = vmatmul.bf16.gmra.mxu0 %v7075
  %v10212 = vpop.f32.mrf.mxu0
  %v10213 = vadd.f32 %v10044, %v10212
  %v10214 = vpop.f32.mrf.mxu0
  %v10215 = vadd.f32 %v10046, %v10214
  %10216 = vmatmul.bf16.gmra.mxu0 %v7079
  %v10217 = vpop.f32.mrf.mxu0
  %v10218 = vadd.f32 %v10049, %v10217
  %v10219 = vpop.f32.mrf.mxu0
  %v10220 = vadd.f32 %v10051, %v10219
  %10221 = vmatmul.bf16.gmra.mxu0 %v7083
  %v10222 = vpop.f32.mrf.mxu0
  %v10223 = vadd.f32 %v10054, %v10222
  %v10224 = vpop.f32.mrf.mxu0
  %v10225 = vadd.f32 %v10056, %v10224
  %10226 = vmatmul.bf16.gmra.mxu0 %v7087
  %v10227 = vpop.f32.mrf.mxu0
  %v10228 = vadd.f32 %v10059, %v10227
  %v10229 = vpop.f32.mrf.mxu0
  %v10230 = vadd.f32 %v10061, %v10229
  %10231 = vmatmul.bf16.gmra.mxu0 %v7091
  %v10232 = vpop.f32.mrf.mxu0
  %v10233 = vadd.f32 %v10064, %v10232
  %v10234 = vpop.f32.mrf.mxu0
  %v10235 = vadd.f32 %v10066, %v10234
  %10236 = vmatmul.bf16.gmra.mxu0 %v7095
  %v10237 = vpop.f32.mrf.mxu0
  %v10238 = vadd.f32 %v10069, %v10237
  %v10239 = vpop.f32.mrf.mxu0
  %v10240 = vadd.f32 %v10071, %v10239
  %10241 = vdwg.mxu0
  %10242 = vmatpush.bf16.msra.mxu0 %v7715
  %10243 = vmatpush.bf16.msra.mxu0 %v7711
  %10244 = vmatpush.bf16.msra.mxu0 %v7707
  %10245 = vmatpush.bf16.msra.mxu0 %v7703
  %10246 = vmatpush.bf16.msra.mxu0 %v7699
  %10247 = vmatpush.bf16.msra.mxu0 %v7695
  %10248 = vmatpush.bf16.msra.mxu0 %v7691
  %10249 = vmatpush.bf16.msra.mxu0 %v7687
  %10250 = vmatmul.bf16.gmra.mxu0 %v6972
  %v10251 = vpop.f32.mrf.mxu0
  %v10252 = vadd.f32 %v10083, %v10251
  %v10253 = vpop.f32.mrf.mxu0
  %v10254 = vadd.f32 %v10085, %v10253
  %10255 = vmatmul.bf16.gmra.mxu0 %v6976
  %v10256 = vpop.f32.mrf.mxu0
  %v10257 = vadd.f32 %v10088, %v10256
  %v10258 = vpop.f32.mrf.mxu0
  %v10259 = vadd.f32 %v10090, %v10258
  %10260 = vmatmul.bf16.gmra.mxu0 %v6980
  %v10261 = vpop.f32.mrf.mxu0
  %v10262 = vadd.f32 %v10093, %v10261
  %v10263 = vpop.f32.mrf.mxu0
  %v10264 = vadd.f32 %v10095, %v10263
  %10265 = vmatmul.bf16.gmra.mxu0 %v6984
  %v10266 = vpop.f32.mrf.mxu0
  %v10267 = vadd.f32 %v10098, %v10266
  %v10268 = vpop.f32.mrf.mxu0
  %v10269 = vadd.f32 %v10100, %v10268
  %10270 = vmatmul.bf16.gmra.mxu0 %v6988
  %v10271 = vpop.f32.mrf.mxu0
  %v10272 = vadd.f32 %v10103, %v10271
  %v10273 = vpop.f32.mrf.mxu0
  %v10274 = vadd.f32 %v10105, %v10273
  %10275 = vmatmul.bf16.gmra.mxu0 %v6992
  %v10276 = vpop.f32.mrf.mxu0
  %v10277 = vadd.f32 %v10108, %v10276
  %v10278 = vpop.f32.mrf.mxu0
  %v10279 = vadd.f32 %v10110, %v10278
  %10280 = vmatmul.bf16.gmra.mxu0 %v6996
  %v10281 = vpop.f32.mrf.mxu0
  %v10282 = vadd.f32 %v10113, %v10281
  %v10283 = vpop.f32.mrf.mxu0
  %v10284 = vadd.f32 %v10115, %v10283
  %10285 = vmatmul.bf16.gmra.mxu0 %v7000
  %v10286 = vpop.f32.mrf.mxu0
  %v10287 = vadd.f32 %v10118, %v10286
  %v10288 = vpop.f32.mrf.mxu0
  %v10289 = vadd.f32 %v10120, %v10288
  %10290 = vmatmul.bf16.gmra.mxu0 %v7004
  %v10291 = vpop.f32.mrf.mxu0
  %v10292 = vadd.f32 %v10123, %v10291
  %v10293 = vpop.f32.mrf.mxu0
  %v10294 = vadd.f32 %v10125, %v10293
  %10295 = vmatmul.bf16.gmra.mxu0 %v7008
  %v10296 = vpop.f32.mrf.mxu0
  %v10297 = vadd.f32 %v10128, %v10296
  %v10298 = vpop.f32.mrf.mxu0
  %v10299 = vadd.f32 %v10130, %v10298
  %10300 = vmatmul.bf16.gmra.mxu0 %v7012
  %v10301 = vpop.f32.mrf.mxu0
  %v10302 = vadd.f32 %v10133, %v10301
  %v10303 = vpop.f32.mrf.mxu0
  %v10304 = vadd.f32 %v10135, %v10303
  %10305 = vmatmul.bf16.gmra.mxu0 %v7016
  %v10306 = vpop.f32.mrf.mxu0
  %v10307 = vadd.f32 %v10138, %v10306
  %v10308 = vpop.f32.mrf.mxu0
  %v10309 = vadd.f32 %v10140, %v10308
  %10310 = vmatmul.bf16.gmra.mxu0 %v7020
  %v10311 = vpop.f32.mrf.mxu0
  %v10312 = vadd.f32 %v10143, %v10311
  %v10313 = vpop.f32.mrf.mxu0
  %v10314 = vadd.f32 %v10145, %v10313
  %10315 = vmatmul.bf16.gmra.mxu0 %v7024
  %v10316 = vpop.f32.mrf.mxu0
  %v10317 = vadd.f32 %v10148, %v10316
  %v10318 = vpop.f32.mrf.mxu0
  %v10319 = vadd.f32 %v10150, %v10318
  %10320 = vmatmul.bf16.gmra.mxu0 %v7028
  %v10321 = vpop.f32.mrf.mxu0
  %v10322 = vadd.f32 %v10153, %v10321
  %v10323 = vpop.f32.mrf.mxu0
  %v10324 = vadd.f32 %v10155, %v10323
  %10325 = vmatmul.bf16.gmra.mxu0 %v7032
  %v10326 = vpop.f32.mrf.mxu0
  %v10327 = vadd.f32 %v10158, %v10326
  %v10328 = vpop.f32.mrf.mxu0
  %v10329 = vadd.f32 %v10160, %v10328
  %10330 = vmatmul.bf16.gmra.mxu0 %v7036
  %v10331 = vpop.f32.mrf.mxu0
  %v10332 = vadd.f32 %v10163, %v10331
  %v10333 = vpop.f32.mrf.mxu0
  %v10334 = vadd.f32 %v10165, %v10333
  %10335 = vmatmul.bf16.gmra.mxu0 %v7040
  %v10336 = vpop.f32.mrf.mxu0
  %v10337 = vadd.f32 %v10168, %v10336
  %v10338 = vpop.f32.mrf.mxu0
  %v10339 = vadd.f32 %v10170, %v10338
  %10340 = vmatmul.bf16.gmra.mxu0 %v7044
  %v10341 = vpop.f32.mrf.mxu0
  %v10342 = vadd.f32 %v10173, %v10341
  %v10343 = vpop.f32.mrf.mxu0
  %v10344 = vadd.f32 %v10175, %v10343
  %10345 = vmatmul.bf16.gmra.mxu0 %v7048
  %v10346 = vpop.f32.mrf.mxu0
  %v10347 = vadd.f32 %v10178, %v10346
  %v10348 = vpop.f32.mrf.mxu0
  %v10349 = vadd.f32 %v10180, %v10348
  %10350 = vmatmul.bf16.gmra.mxu0 %v7052
  %v10351 = vpop.f32.mrf.mxu0
  %v10352 = vadd.f32 %v10183, %v10351
  %v10353 = vpop.f32.mrf.mxu0
  %v10354 = vadd.f32 %v10185, %v10353
  %10355 = vmatmul.bf16.gmra.mxu0 %v7056
  %v10356 = vpop.f32.mrf.mxu0
  %v10357 = vadd.f32 %v10188, %v10356
  %v10358 = vpop.f32.mrf.mxu0
  %v10359 = vadd.f32 %v10190, %v10358
  %10360 = vmatmul.bf16.gmra.mxu0 %v7060
  %v10361 = vpop.f32.mrf.mxu0
  %v10362 = vadd.f32 %v10193, %v10361
  %v10363 = vpop.f32.mrf.mxu0
  %v10364 = vadd.f32 %v10195, %v10363
  %10365 = vmatmul.bf16.gmra.mxu0 %v7064
  %v10366 = vpop.f32.mrf.mxu0
  %v10367 = vadd.f32 %v10198, %v10366
  %v10368 = vpop.f32.mrf.mxu0
  %v10369 = vadd.f32 %v10200, %v10368
  %10370 = vmatmul.bf16.gmra.mxu0 %v7068
  %v10371 = vpop.f32.mrf.mxu0
  %v10372 = vadd.f32 %v10203, %v10371
  %v10373 = vpop.f32.mrf.mxu0
  %v10374 = vadd.f32 %v10205, %v10373
  %10375 = vmatmul.bf16.gmra.mxu0 %v7072
  %v10376 = vpop.f32.mrf.mxu0
  %v10377 = vadd.f32 %v10208, %v10376
  %v10378 = vpop.f32.mrf.mxu0
  %v10379 = vadd.f32 %v10210, %v10378
  %10380 = vmatmul.bf16.gmra.mxu0 %v7076
  %v10381 = vpop.f32.mrf.mxu0
  %v10382 = vadd.f32 %v10213, %v10381
  %v10383 = vpop.f32.mrf.mxu0
  %v10384 = vadd.f32 %v10215, %v10383
  %10385 = vmatmul.bf16.gmra.mxu0 %v7080
  %v10386 = vpop.f32.mrf.mxu0
  %v10387 = vadd.f32 %v10218, %v10386
  %v10388 = vpop.f32.mrf.mxu0
  %v10389 = vadd.f32 %v10220, %v10388
  %10390 = vmatmul.bf16.gmra.mxu0 %v7084
  %v10391 = vpop.f32.mrf.mxu0
  %v10392 = vadd.f32 %v10223, %v10391
  %v10393 = vpop.f32.mrf.mxu0
  %v10394 = vadd.f32 %v10225, %v10393
  %10395 = vmatmul.bf16.gmra.mxu0 %v7088
  %v10396 = vpop.f32.mrf.mxu0
  %v10397 = vadd.f32 %v10228, %v10396
  %v10398 = vpop.f32.mrf.mxu0
  %v10399 = vadd.f32 %v10230, %v10398
  %10400 = vmatmul.bf16.gmra.mxu0 %v7092
  %v10401 = vpop.f32.mrf.mxu0
  %v10402 = vadd.f32 %v10233, %v10401
  %v10403 = vpop.f32.mrf.mxu0
  %v10404 = vadd.f32 %v10235, %v10403
  %10405 = vmatmul.bf16.gmra.mxu0 %v7096
  %v10406 = vpop.f32.mrf.mxu0
  %v10407 = vadd.f32 %v10238, %v10406
  %v10408 = vpop.f32.mrf.mxu0
  %v10409 = vadd.f32 %v10240, %v10408
  %10410 = vdwg.mxu0
  %10411 = vmatpush.bf16.msra.mxu0 %v7747
  %10412 = vmatpush.bf16.msra.mxu0 %v7743
  %10413 = vmatpush.bf16.msra.mxu0 %v7739
  %10414 = vmatpush.bf16.msra.mxu0 %v7735
  %10415 = vmatpush.bf16.msra.mxu0 %v7731
  %10416 = vmatpush.bf16.msra.mxu0 %v7727
  %10417 = vmatpush.bf16.msra.mxu0 %v7723
  %10418 = vmatpush.bf16.msra.mxu0 %v7719
  %10419 = vmatmul.bf16.gmra.mxu0 %v6973
  %v10420 = vpop.f32.mrf.mxu0
  %v10421 = vadd.f32 %v10252, %v10420
  %v10422 = vpop.f32.mrf.mxu0
  %v10423 = vadd.f32 %v10254, %v10422
  %10424 = vmatmul.bf16.gmra.mxu0 %v6977
  %v10425 = vpop.f32.mrf.mxu0
  %v10426 = vadd.f32 %v10257, %v10425
  %v10427 = vpop.f32.mrf.mxu0
  %v10428 = vadd.f32 %v10259, %v10427
  %10429 = vmatmul.bf16.gmra.mxu0 %v6981
  %v10430 = vpop.f32.mrf.mxu0
  %v10431 = vadd.f32 %v10262, %v10430
  %v10432 = vpop.f32.mrf.mxu0
  %v10433 = vadd.f32 %v10264, %v10432
  %10434 = vmatmul.bf16.gmra.mxu0 %v6985
  %v10435 = vpop.f32.mrf.mxu0
  %v10436 = vadd.f32 %v10267, %v10435
  %v10437 = vpop.f32.mrf.mxu0
  %v10438 = vadd.f32 %v10269, %v10437
  %10439 = vmatmul.bf16.gmra.mxu0 %v6989
  %v10440 = vpop.f32.mrf.mxu0
  %v10441 = vadd.f32 %v10272, %v10440
  %v10442 = vpop.f32.mrf.mxu0
  %v10443 = vadd.f32 %v10274, %v10442
  %10444 = vmatmul.bf16.gmra.mxu0 %v6993
  %v10445 = vpop.f32.mrf.mxu0
  %v10446 = vadd.f32 %v10277, %v10445
  %v10447 = vpop.f32.mrf.mxu0
  %v10448 = vadd.f32 %v10279, %v10447
  %10449 = vmatmul.bf16.gmra.mxu0 %v6997
  %v10450 = vpop.f32.mrf.mxu0
  %v10451 = vadd.f32 %v10282, %v10450
  %v10452 = vpop.f32.mrf.mxu0
  %v10453 = vadd.f32 %v10284, %v10452
  %10454 = vmatmul.bf16.gmra.mxu0 %v7001
  %v10455 = vpop.f32.mrf.mxu0
  %v10456 = vadd.f32 %v10287, %v10455
  %v10457 = vpop.f32.mrf.mxu0
  %v10458 = vadd.f32 %v10289, %v10457
  %10459 = vmatmul.bf16.gmra.mxu0 %v7005
  %v10460 = vpop.f32.mrf.mxu0
  %v10461 = vadd.f32 %v10292, %v10460
  %v10462 = vpop.f32.mrf.mxu0
  %v10463 = vadd.f32 %v10294, %v10462
  %10464 = vmatmul.bf16.gmra.mxu0 %v7009
  %v10465 = vpop.f32.mrf.mxu0
  %v10466 = vadd.f32 %v10297, %v10465
  %v10467 = vpop.f32.mrf.mxu0
  %v10468 = vadd.f32 %v10299, %v10467
  %10469 = vmatmul.bf16.gmra.mxu0 %v7013
  %v10470 = vpop.f32.mrf.mxu0
  %v10471 = vadd.f32 %v10302, %v10470
  %v10472 = vpop.f32.mrf.mxu0
  %v10473 = vadd.f32 %v10304, %v10472
  %10474 = vmatmul.bf16.gmra.mxu0 %v7017
  %v10475 = vpop.f32.mrf.mxu0
  %v10476 = vadd.f32 %v10307, %v10475
  %v10477 = vpop.f32.mrf.mxu0
  %v10478 = vadd.f32 %v10309, %v10477
  %10479 = vmatmul.bf16.gmra.mxu0 %v7021
  %v10480 = vpop.f32.mrf.mxu0
  %v10481 = vadd.f32 %v10312, %v10480
  %v10482 = vpop.f32.mrf.mxu0
  %v10483 = vadd.f32 %v10314, %v10482
  %10484 = vmatmul.bf16.gmra.mxu0 %v7025
  %v10485 = vpop.f32.mrf.mxu0
  %v10486 = vadd.f32 %v10317, %v10485
  %v10487 = vpop.f32.mrf.mxu0
  %v10488 = vadd.f32 %v10319, %v10487
  %10489 = vmatmul.bf16.gmra.mxu0 %v7029
  %v10490 = vpop.f32.mrf.mxu0
  %v10491 = vadd.f32 %v10322, %v10490
  %v10492 = vpop.f32.mrf.mxu0
  %v10493 = vadd.f32 %v10324, %v10492
  %10494 = vmatmul.bf16.gmra.mxu0 %v7033
  %v10495 = vpop.f32.mrf.mxu0
  %v10496 = vadd.f32 %v10327, %v10495
  %v10497 = vpop.f32.mrf.mxu0
  %v10498 = vadd.f32 %v10329, %v10497
  %10499 = vmatmul.bf16.gmra.mxu0 %v7037
  %v10500 = vpop.f32.mrf.mxu0
  %v10501 = vadd.f32 %v10332, %v10500
  %v10502 = vpop.f32.mrf.mxu0
  %v10503 = vadd.f32 %v10334, %v10502
  %10504 = vmatmul.bf16.gmra.mxu0 %v7041
  %v10505 = vpop.f32.mrf.mxu0
  %v10506 = vadd.f32 %v10337, %v10505
  %v10507 = vpop.f32.mrf.mxu0
  %v10508 = vadd.f32 %v10339, %v10507
  %10509 = vmatmul.bf16.gmra.mxu0 %v7045
  %v10510 = vpop.f32.mrf.mxu0
  %v10511 = vadd.f32 %v10342, %v10510
  %v10512 = vpop.f32.mrf.mxu0
  %v10513 = vadd.f32 %v10344, %v10512
  %10514 = vmatmul.bf16.gmra.mxu0 %v7049
  %v10515 = vpop.f32.mrf.mxu0
  %v10516 = vadd.f32 %v10347, %v10515
  %v10517 = vpop.f32.mrf.mxu0
  %v10518 = vadd.f32 %v10349, %v10517
  %10519 = vmatmul.bf16.gmra.mxu0 %v7053
  %v10520 = vpop.f32.mrf.mxu0
  %v10521 = vadd.f32 %v10352, %v10520
  %v10522 = vpop.f32.mrf.mxu0
  %v10523 = vadd.f32 %v10354, %v10522
  %10524 = vmatmul.bf16.gmra.mxu0 %v7057
  %v10525 = vpop.f32.mrf.mxu0
  %v10526 = vadd.f32 %v10357, %v10525
  %v10527 = vpop.f32.mrf.mxu0
  %v10528 = vadd.f32 %v10359, %v10527
  %10529 = vmatmul.bf16.gmra.mxu0 %v7061
  %v10530 = vpop.f32.mrf.mxu0
  %v10531 = vadd.f32 %v10362, %v10530
  %v10532 = vpop.f32.mrf.mxu0
  %v10533 = vadd.f32 %v10364, %v10532
  %10534 = vmatmul.bf16.gmra.mxu0 %v7065
  %v10535 = vpop.f32.mrf.mxu0
  %v10536 = vadd.f32 %v10367, %v10535
  %v10537 = vpop.f32.mrf.mxu0
  %v10538 = vadd.f32 %v10369, %v10537
  %10539 = vmatmul.bf16.gmra.mxu0 %v7069
  %v10540 = vpop.f32.mrf.mxu0
  %v10541 = vadd.f32 %v10372, %v10540
  %v10542 = vpop.f32.mrf.mxu0
  %v10543 = vadd.f32 %v10374, %v10542
  %10544 = vmatmul.bf16.gmra.mxu0 %v7073
  %v10545 = vpop.f32.mrf.mxu0
  %v10546 = vadd.f32 %v10377, %v10545
  %v10547 = vpop.f32.mrf.mxu0
  %v10548 = vadd.f32 %v10379, %v10547
  %10549 = vmatmul.bf16.gmra.mxu0 %v7077
  %v10550 = vpop.f32.mrf.mxu0
  %v10551 = vadd.f32 %v10382, %v10550
  %v10552 = vpop.f32.mrf.mxu0
  %v10553 = vadd.f32 %v10384, %v10552
  %10554 = vmatmul.bf16.gmra.mxu0 %v7081
  %v10555 = vpop.f32.mrf.mxu0
  %v10556 = vadd.f32 %v10387, %v10555
  %v10557 = vpop.f32.mrf.mxu0
  %v10558 = vadd.f32 %v10389, %v10557
  %10559 = vmatmul.bf16.gmra.mxu0 %v7085
  %v10560 = vpop.f32.mrf.mxu0
  %v10561 = vadd.f32 %v10392, %v10560
  %v10562 = vpop.f32.mrf.mxu0
  %v10563 = vadd.f32 %v10394, %v10562
  %10564 = vmatmul.bf16.gmra.mxu0 %v7089
  %v10565 = vpop.f32.mrf.mxu0
  %v10566 = vadd.f32 %v10397, %v10565
  %v10567 = vpop.f32.mrf.mxu0
  %v10568 = vadd.f32 %v10399, %v10567
  %10569 = vmatmul.bf16.gmra.mxu0 %v7093
  %v10570 = vpop.f32.mrf.mxu0
  %v10571 = vadd.f32 %v10402, %v10570
  %v10572 = vpop.f32.mrf.mxu0
  %v10573 = vadd.f32 %v10404, %v10572
  %10574 = vmatmul.bf16.gmra.mxu0 %v7097
  %v10575 = vpop.f32.mrf.mxu0
  %v10576 = vadd.f32 %v10407, %v10575
  %v10577 = vpop.f32.mrf.mxu0
  %v10578 = vadd.f32 %v10409, %v10577
  %10579 = vdwg.mxu0
  %v10580 = vmax.f32 %v8393, 0.0
  %v10581 = vmax.f32 %v9069, 0.0
  %v10582 = vmax.f32 %v9745, 0.0
  %v10583 = vmax.f32 %v10421, 0.0
  %v10584 = vmax.f32 %v8395, 0.0
  %v10585 = vmax.f32 %v9071, 0.0
  %v10586 = vmax.f32 %v9747, 0.0
  %v10587 = vmax.f32 %v10423, 0.0
  %v10588 = vmax.f32 %v8398, 0.0
  %v10589 = vmax.f32 %v9074, 0.0
  %v10590 = vmax.f32 %v9750, 0.0
  %v10591 = vmax.f32 %v10426, 0.0
  %v10592 = vmax.f32 %v8400, 0.0
  %v10593 = vmax.f32 %v9076, 0.0
  %v10594 = vmax.f32 %v9752, 0.0
  %v10595 = vmax.f32 %v10428, 0.0
  %v10596 = vmax.f32 %v8403, 0.0
  %v10597 = vmax.f32 %v9079, 0.0
  %v10598 = vmax.f32 %v9755, 0.0
  %v10599 = vmax.f32 %v10431, 0.0
  %v10600 = vmax.f32 %v8405, 0.0
  %v10601 = vmax.f32 %v9081, 0.0
  %v10602 = vmax.f32 %v9757, 0.0
  %v10603 = vmax.f32 %v10433, 0.0
  %v10604 = vmax.f32 %v8408, 0.0
  %v10605 = vmax.f32 %v9084, 0.0
  %v10606 = vmax.f32 %v9760, 0.0
  %v10607 = vmax.f32 %v10436, 0.0
  %v10608 = vmax.f32 %v8410, 0.0
  %v10609 = vmax.f32 %v9086, 0.0
  %v10610 = vmax.f32 %v9762, 0.0
  %v10611 = vmax.f32 %v10438, 0.0
  %v10612 = vmax.f32 %v8413, 0.0
  %v10613 = vmax.f32 %v9089, 0.0
  %v10614 = vmax.f32 %v9765, 0.0
  %v10615 = vmax.f32 %v10441, 0.0
  %v10616 = vmax.f32 %v8415, 0.0
  %v10617 = vmax.f32 %v9091, 0.0
  %v10618 = vmax.f32 %v9767, 0.0
  %v10619 = vmax.f32 %v10443, 0.0
  %v10620 = vmax.f32 %v8418, 0.0
  %v10621 = vmax.f32 %v9094, 0.0
  %v10622 = vmax.f32 %v9770, 0.0
  %v10623 = vmax.f32 %v10446, 0.0
  %v10624 = vmax.f32 %v8420, 0.0
  %v10625 = vmax.f32 %v9096, 0.0
  %v10626 = vmax.f32 %v9772, 0.0
  %v10627 = vmax.f32 %v10448, 0.0
  %v10628 = vmax.f32 %v8423, 0.0
  %v10629 = vmax.f32 %v9099, 0.0
  %v10630 = vmax.f32 %v9775, 0.0
  %v10631 = vmax.f32 %v10451, 0.0
  %v10632 = vmax.f32 %v8425, 0.0
  %v10633 = vmax.f32 %v9101, 0.0
  %v10634 = vmax.f32 %v9777, 0.0
  %v10635 = vmax.f32 %v10453, 0.0
  %v10636 = vmax.f32 %v8428, 0.0
  %v10637 = vmax.f32 %v9104, 0.0
  %v10638 = vmax.f32 %v9780, 0.0
  %v10639 = vmax.f32 %v10456, 0.0
  %v10640 = vmax.f32 %v8430, 0.0
  %v10641 = vmax.f32 %v9106, 0.0
  %v10642 = vmax.f32 %v9782, 0.0
  %v10643 = vmax.f32 %v10458, 0.0
  %v10644 = vmax.f32 %v8433, 0.0
  %v10645 = vmax.f32 %v9109, 0.0
  %v10646 = vmax.f32 %v9785, 0.0
  %v10647 = vmax.f32 %v10461, 0.0
  %v10648 = vmax.f32 %v8435, 0.0
  %v10649 = vmax.f32 %v9111, 0.0
  %v10650 = vmax.f32 %v9787, 0.0
  %v10651 = vmax.f32 %v10463, 0.0
  %v10652 = vmax.f32 %v8438, 0.0
  %v10653 = vmax.f32 %v9114, 0.0
  %v10654 = vmax.f32 %v9790, 0.0
  %v10655 = vmax.f32 %v10466, 0.0
  %v10656 = vmax.f32 %v8440, 0.0
  %v10657 = vmax.f32 %v9116, 0.0
  %v10658 = vmax.f32 %v9792, 0.0
  %v10659 = vmax.f32 %v10468, 0.0
  %v10660 = vmax.f32 %v8443, 0.0
  %v10661 = vmax.f32 %v9119, 0.0
  %v10662 = vmax.f32 %v9795, 0.0
  %v10663 = vmax.f32 %v10471, 0.0
  %v10664 = vmax.f32 %v8445, 0.0
  %v10665 = vmax.f32 %v9121, 0.0
  %v10666 = vmax.f32 %v9797, 0.0
  %v10667 = vmax.f32 %v10473, 0.0
  %v10668 = vmax.f32 %v8448, 0.0
  %v10669 = vmax.f32 %v9124, 0.0
  %v10670 = vmax.f32 %v9800, 0.0
  %v10671 = vmax.f32 %v10476, 0.0
  %v10672 = vmax.f32 %v8450, 0.0
  %v10673 = vmax.f32 %v9126, 0.0
  %v10674 = vmax.f32 %v9802, 0.0
  %v10675 = vmax.f32 %v10478, 0.0
  %v10676 = vmax.f32 %v8453, 0.0
  %v10677 = vmax.f32 %v9129, 0.0
  %v10678 = vmax.f32 %v9805, 0.0
  %v10679 = vmax.f32 %v10481, 0.0
  %v10680 = vmax.f32 %v8455, 0.0
  %v10681 = vmax.f32 %v9131, 0.0
  %v10682 = vmax.f32 %v9807, 0.0
  %v10683 = vmax.f32 %v10483, 0.0
  %v10684 = vmax.f32 %v8458, 0.0
  %v10685 = vmax.f32 %v9134, 0.0
  %v10686 = vmax.f32 %v9810, 0.0
  %v10687 = vmax.f32 %v10486, 0.0
  %v10688 = vmax.f32 %v8460, 0.0
  %v10689 = vmax.f32 %v9136, 0.0
  %v10690 = vmax.f32 %v9812, 0.0
  %v10691 = vmax.f32 %v10488, 0.0
  %v10692 = vmax.f32 %v8463, 0.0
  %v10693 = vmax.f32 %v9139, 0.0
  %v10694 = vmax.f32 %v9815, 0.0
  %v10695 = vmax.f32 %v10491, 0.0
  %v10696 = vmax.f32 %v8465, 0.0
  %v10697 = vmax.f32 %v9141, 0.0
  %v10698 = vmax.f32 %v9817, 0.0
  %v10699 = vmax.f32 %v10493, 0.0
  %v10700 = vmax.f32 %v8468, 0.0
  %v10701 = vmax.f32 %v9144, 0.0
  %v10702 = vmax.f32 %v9820, 0.0
  %v10703 = vmax.f32 %v10496, 0.0
  %v10704 = vmax.f32 %v8470, 0.0
  %v10705 = vmax.f32 %v9146, 0.0
  %v10706 = vmax.f32 %v9822, 0.0
  %v10707 = vmax.f32 %v10498, 0.0
  %v10708 = vmax.f32 %v8473, 0.0
  %v10709 = vmax.f32 %v9149, 0.0
  %v10710 = vmax.f32 %v9825, 0.0
  %v10711 = vmax.f32 %v10501, 0.0
  %v10712 = vmax.f32 %v8475, 0.0
  %v10713 = vmax.f32 %v9151, 0.0
  %v10714 = vmax.f32 %v9827, 0.0
  %v10715 = vmax.f32 %v10503, 0.0
  %v10716 = vmax.f32 %v8478, 0.0
  %v10717 = vmax.f32 %v9154, 0.0
  %v10718 = vmax.f32 %v9830, 0.0
  %v10719 = vmax.f32 %v10506, 0.0
  %v10720 = vmax.f32 %v8480, 0.0
  %v10721 = vmax.f32 %v9156, 0.0
  %v10722 = vmax.f32 %v9832, 0.0
  %v10723 = vmax.f32 %v10508, 0.0
  %v10724 = vmax.f32 %v8483, 0.0
  %v10725 = vmax.f32 %v9159, 0.0
  %v10726 = vmax.f32 %v9835, 0.0
  %v10727 = vmax.f32 %v10511, 0.0
  %v10728 = vmax.f32 %v8485, 0.0
  %v10729 = vmax.f32 %v9161, 0.0
  %v10730 = vmax.f32 %v9837, 0.0
  %v10731 = vmax.f32 %v10513, 0.0
  %v10732 = vmax.f32 %v8488, 0.0
  %v10733 = vmax.f32 %v9164, 0.0
  %v10734 = vmax.f32 %v9840, 0.0
  %v10735 = vmax.f32 %v10516, 0.0
  %v10736 = vmax.f32 %v8490, 0.0
  %v10737 = vmax.f32 %v9166, 0.0
  %v10738 = vmax.f32 %v9842, 0.0
  %v10739 = vmax.f32 %v10518, 0.0
  %v10740 = vmax.f32 %v8493, 0.0
  %v10741 = vmax.f32 %v9169, 0.0
  %v10742 = vmax.f32 %v9845, 0.0
  %v10743 = vmax.f32 %v10521, 0.0
  %v10744 = vmax.f32 %v8495, 0.0
  %v10745 = vmax.f32 %v9171, 0.0
  %v10746 = vmax.f32 %v9847, 0.0
  %v10747 = vmax.f32 %v10523, 0.0
  %v10748 = vmax.f32 %v8498, 0.0
  %v10749 = vmax.f32 %v9174, 0.0
  %v10750 = vmax.f32 %v9850, 0.0
  %v10751 = vmax.f32 %v10526, 0.0
  %v10752 = vmax.f32 %v8500, 0.0
  %v10753 = vmax.f32 %v9176, 0.0
  %v10754 = vmax.f32 %v9852, 0.0
  %v10755 = vmax.f32 %v10528, 0.0
  %v10756 = vmax.f32 %v8503, 0.0
  %v10757 = vmax.f32 %v9179, 0.0
  %v10758 = vmax.f32 %v9855, 0.0
  %v10759 = vmax.f32 %v10531, 0.0
  %v10760 = vmax.f32 %v8505, 0.0
  %v10761 = vmax.f32 %v9181, 0.0
  %v10762 = vmax.f32 %v9857, 0.0
  %v10763 = vmax.f32 %v10533, 0.0
  %v10764 = vmax.f32 %v8508, 0.0
  %v10765 = vmax.f32 %v9184, 0.0
  %v10766 = vmax.f32 %v9860, 0.0
  %v10767 = vmax.f32 %v10536, 0.0
  %v10768 = vmax.f32 %v8510, 0.0
  %v10769 = vmax.f32 %v9186, 0.0
  %v10770 = vmax.f32 %v9862, 0.0
  %v10771 = vmax.f32 %v10538, 0.0
  %v10772 = vmax.f32 %v8513, 0.0
  %v10773 = vmax.f32 %v9189, 0.0
  %v10774 = vmax.f32 %v9865, 0.0
  %v10775 = vmax.f32 %v10541, 0.0
  %v10776 = vmax.f32 %v8515, 0.0
  %v10777 = vmax.f32 %v9191, 0.0
  %v10778 = vmax.f32 %v9867, 0.0
  %v10779 = vmax.f32 %v10543, 0.0
  %v10780 = vmax.f32 %v8518, 0.0
  %v10781 = vmax.f32 %v9194, 0.0
  %v10782 = vmax.f32 %v9870, 0.0
  %v10783 = vmax.f32 %v10546, 0.0
  %v10784 = vmax.f32 %v8520, 0.0
  %v10785 = vmax.f32 %v9196, 0.0
  %v10786 = vmax.f32 %v9872, 0.0
  %v10787 = vmax.f32 %v10548, 0.0
  %v10788 = vmax.f32 %v8523, 0.0
  %v10789 = vmax.f32 %v9199, 0.0
  %v10790 = vmax.f32 %v9875, 0.0
  %v10791 = vmax.f32 %v10551, 0.0
  %v10792 = vmax.f32 %v8525, 0.0
  %v10793 = vmax.f32 %v9201, 0.0
  %v10794 = vmax.f32 %v9877, 0.0
  %v10795 = vmax.f32 %v10553, 0.0
  %v10796 = vmax.f32 %v8528, 0.0
  %v10797 = vmax.f32 %v9204, 0.0
  %v10798 = vmax.f32 %v9880, 0.0
  %v10799 = vmax.f32 %v10556, 0.0
  %v10800 = vmax.f32 %v8530, 0.0
  %v10801 = vmax.f32 %v9206, 0.0
  %v10802 = vmax.f32 %v9882, 0.0
  %v10803 = vmax.f32 %v10558, 0.0
  %v10804 = vmax.f32 %v8533, 0.0
  %v10805 = vmax.f32 %v9209, 0.0
  %v10806 = vmax.f32 %v9885, 0.0
  %v10807 = vmax.f32 %v10561, 0.0
  %v10808 = vmax.f32 %v8535, 0.0
  %v10809 = vmax.f32 %v9211, 0.0
  %v10810 = vmax.f32 %v9887, 0.0
  %v10811 = vmax.f32 %v10563, 0.0
  %v10812 = vmax.f32 %v8538, 0.0
  %v10813 = vmax.f32 %v9214, 0.0
  %v10814 = vmax.f32 %v9890, 0.0
  %v10815 = vmax.f32 %v10566, 0.0
  %v10816 = vmax.f32 %v8540, 0.0
  %v10817 = vmax.f32 %v9216, 0.0
  %v10818 = vmax.f32 %v9892, 0.0
  %v10819 = vmax.f32 %v10568, 0.0
  %v10820 = vmax.f32 %v8543, 0.0
  %v10821 = vmax.f32 %v9219, 0.0
  %v10822 = vmax.f32 %v9895, 0.0
  %v10823 = vmax.f32 %v10571, 0.0
  %v10824 = vmax.f32 %v8545, 0.0
  %v10825 = vmax.f32 %v9221, 0.0
  %v10826 = vmax.f32 %v9897, 0.0
  %v10827 = vmax.f32 %v10573, 0.0
  %v10828 = vmax.f32 %v8548, 0.0
  %v10829 = vmax.f32 %v9224, 0.0
  %v10830 = vmax.f32 %v9900, 0.0
  %v10831 = vmax.f32 %v10576, 0.0
  %v10832 = vmax.f32 %v8550, 0.0
  %v10833 = vmax.f32 %v9226, 0.0
  %v10834 = vmax.f32 %v9902, 0.0
  %v10835 = vmax.f32 %v10578, 0.0
  %v10836 = vpack.c.bf16 %v10584, %v10580
  %v10837 = vpack.c.bf16 %v10585, %v10581
  %v10838 = vpack.c.bf16 %v10586, %v10582
  %v10839 = vpack.c.bf16 %v10587, %v10583
  %v10840 = vpack.c.bf16 %v10592, %v10588
  %v10841 = vpack.c.bf16 %v10593, %v10589
  %v10842 = vpack.c.bf16 %v10594, %v10590
  %v10843 = vpack.c.bf16 %v10595, %v10591
  %v10844 = vpack.c.bf16 %v10600, %v10596
  %v10845 = vpack.c.bf16 %v10601, %v10597
  %v10846 = vpack.c.bf16 %v10602, %v10598
  %v10847 = vpack.c.bf16 %v10603, %v10599
  %v10848 = vpack.c.bf16 %v10608, %v10604
  %v10849 = vpack.c.bf16 %v10609, %v10605
  %v10850 = vpack.c.bf16 %v10610, %v10606
  %v10851 = vpack.c.bf16 %v10611, %v10607
  %v10852 = vpack.c.bf16 %v10616, %v10612
  %v10853 = vpack.c.bf16 %v10617, %v10613
  %v10854 = vpack.c.bf16 %v10618, %v10614
  %v10855 = vpack.c.bf16 %v10619, %v10615
  %v10856 = vpack.c.bf16 %v10624, %v10620
  %v10857 = vpack.c.bf16 %v10625, %v10621
  %v10858 = vpack.c.bf16 %v10626, %v10622
  %v10859 = vpack.c.bf16 %v10627, %v10623
  %v10860 = vpack.c.bf16 %v10632, %v10628
  %v10861 = vpack.c.bf16 %v10633, %v10629
  %v10862 = vpack.c.bf16 %v10634, %v10630
  %v10863 = vpack.c.bf16 %v10635, %v10631
  %v10864 = vpack.c.bf16 %v10640, %v10636
  %v10865 = vpack.c.bf16 %v10641, %v10637
  %v10866 = vpack.c.bf16 %v10642, %v10638
  %v10867 = vpack.c.bf16 %v10643, %v10639
  %v10868 = vpack.c.bf16 %v10648, %v10644
  %v10869 = vpack.c.bf16 %v10649, %v10645
  %v10870 = vpack.c.bf16 %v10650, %v10646
  %v10871 = vpack.c.bf16 %v10651, %v10647
  %v10872 = vpack.c.bf16 %v10656, %v10652
  %v10873 = vpack.c.bf16 %v10657, %v10653
  %v10874 = vpack.c.bf16 %v10658, %v10654
  %v10875 = vpack.c.bf16 %v10659, %v10655
  %v10876 = vpack.c.bf16 %v10664, %v10660
  %v10877 = vpack.c.bf16 %v10665, %v10661
  %v10878 = vpack.c.bf16 %v10666, %v10662
  %v10879 = vpack.c.bf16 %v10667, %v10663
  %v10880 = vpack.c.bf16 %v10672, %v10668
  %v10881 = vpack.c.bf16 %v10673, %v10669
  %v10882 = vpack.c.bf16 %v10674, %v10670
  %v10883 = vpack.c.bf16 %v10675, %v10671
  %v10884 = vpack.c.bf16 %v10680, %v10676
  %v10885 = vpack.c.bf16 %v10681, %v10677
  %v10886 = vpack.c.bf16 %v10682, %v10678
  %v10887 = vpack.c.bf16 %v10683, %v10679
  %v10888 = vpack.c.bf16 %v10688, %v10684
  %v10889 = vpack.c.bf16 %v10689, %v10685
  %v10890 = vpack.c.bf16 %v10690, %v10686
  %v10891 = vpack.c.bf16 %v10691, %v10687
  %v10892 = vpack.c.bf16 %v10696, %v10692
  %v10893 = vpack.c.bf16 %v10697, %v10693
  %v10894 = vpack.c.bf16 %v10698, %v10694
  %v10895 = vpack.c.bf16 %v10699, %v10695
  %v10896 = vpack.c.bf16 %v10704, %v10700
  %v10897 = vpack.c.bf16 %v10705, %v10701
  %v10898 = vpack.c.bf16 %v10706, %v10702
  %v10899 = vpack.c.bf16 %v10707, %v10703
  %v10900 = vpack.c.bf16 %v10712, %v10708
  %v10901 = vpack.c.bf16 %v10713, %v10709
  %v10902 = vpack.c.bf16 %v10714, %v10710
  %v10903 = vpack.c.bf16 %v10715, %v10711
  %v10904 = vpack.c.bf16 %v10720, %v10716
  %v10905 = vpack.c.bf16 %v10721, %v10717
  %v10906 = vpack.c.bf16 %v10722, %v10718
  %v10907 = vpack.c.bf16 %v10723, %v10719
  %v10908 = vpack.c.bf16 %v10728, %v10724
  %v10909 = vpack.c.bf16 %v10729, %v10725
  %v10910 = vpack.c.bf16 %v10730, %v10726
  %v10911 = vpack.c.bf16 %v10731, %v10727
  %v10912 = vpack.c.bf16 %v10736, %v10732
  %v10913 = vpack.c.bf16 %v10737, %v10733
  %v10914 = vpack.c.bf16 %v10738, %v10734
  %v10915 = vpack.c.bf16 %v10739, %v10735
  %v10916 = vpack.c.bf16 %v10744, %v10740
  %v10917 = vpack.c.bf16 %v10745, %v10741
  %v10918 = vpack.c.bf16 %v10746, %v10742
  %v10919 = vpack.c.bf16 %v10747, %v10743
  %v10920 = vpack.c.bf16 %v10752, %v10748
  %v10921 = vpack.c.bf16 %v10753, %v10749
  %v10922 = vpack.c.bf16 %v10754, %v10750
  %v10923 = vpack.c.bf16 %v10755, %v10751
  %v10924 = vpack.c.bf16 %v10760, %v10756
  %v10925 = vpack.c.bf16 %v10761, %v10757
  %v10926 = vpack.c.bf16 %v10762, %v10758
  %v10927 = vpack.c.bf16 %v10763, %v10759
  %v10928 = vpack.c.bf16 %v10768, %v10764
  %v10929 = vpack.c.bf16 %v10769, %v10765
  %v10930 = vpack.c.bf16 %v10770, %v10766
  %v10931 = vpack.c.bf16 %v10771, %v10767
  %v10932 = vpack.c.bf16 %v10776, %v10772
  %v10933 = vpack.c.bf16 %v10777, %v10773
  %v10934 = vpack.c.bf16 %v10778, %v10774
  %v10935 = vpack.c.bf16 %v10779, %v10775
  %v10936 = vpack.c.bf16 %v10784, %v10780
  %v10937 = vpack.c.bf16 %v10785, %v10781
  %v10938 = vpack.c.bf16 %v10786, %v10782
  %v10939 = vpack.c.bf16 %v10787, %v10783
  %v10940 = vpack.c.bf16 %v10792, %v10788
  %v10941 = vpack.c.bf16 %v10793, %v10789
  %v10942 = vpack.c.bf16 %v10794, %v10790
  %v10943 = vpack.c.bf16 %v10795, %v10791
  %v10944 = vpack.c.bf16 %v10800, %v10796
  %v10945 = vpack.c.bf16 %v10801, %v10797
  %v10946 = vpack.c.bf16 %v10802, %v10798
  %v10947 = vpack.c.bf16 %v10803, %v10799
  %v10948 = vpack.c.bf16 %v10808, %v10804
  %v10949 = vpack.c.bf16 %v10809, %v10805
  %v10950 = vpack.c.bf16 %v10810, %v10806
  %v10951 = vpack.c.bf16 %v10811, %v10807
  %v10952 = vpack.c.bf16 %v10816, %v10812
  %v10953 = vpack.c.bf16 %v10817, %v10813
  %v10954 = vpack.c.bf16 %v10818, %v10814
  %v10955 = vpack.c.bf16 %v10819, %v10815
  %v10956 = vpack.c.bf16 %v10824, %v10820
  %v10957 = vpack.c.bf16 %v10825, %v10821
  %v10958 = vpack.c.bf16 %v10826, %v10822
  %v10959 = vpack.c.bf16 %v10827, %v10823
  %v10960 = vpack.c.bf16 %v10832, %v10828
  %v10961 = vpack.c.bf16 %v10833, %v10829
  %v10962 = vpack.c.bf16 %v10834, %v10830
  %v10963 = vpack.c.bf16 %v10835, %v10831
  %v10964 = vld [vmem:[%s5] sm:$0xf]
  %v10965 = vld [vmem:[%s5 + $0x4] sm:$0xf]
  %v10966 = vld [vmem:[%s5 + $0x8] sm:$0xf]
  %v10967 = vld [vmem:[%s5 + $0xc] sm:$0xf]
  %v10968 = vld [vmem:[%s5 + $0x10] sm:$0xf]
  %v10969 = vld [vmem:[%s5 + $0x14] sm:$0xf]
  %v10970 = vld [vmem:[%s5 + $0x18] sm:$0xf]
  %v10971 = vld [vmem:[%s5 + $0x1c] sm:$0xf]
  %v10972 = vld [vmem:[%s5 + $0x20] sm:$0xf]
  %v10973 = vld [vmem:[%s5 + $0x24] sm:$0xf]
  %v10974 = vld [vmem:[%s5 + $0x28] sm:$0xf]
  %v10975 = vld [vmem:[%s5 + $0x2c] sm:$0xf]
  %v10976 = vld [vmem:[%s5 + $0x30] sm:$0xf]
  %v10977 = vld [vmem:[%s5 + $0x34] sm:$0xf]
  %v10978 = vld [vmem:[%s5 + $0x38] sm:$0xf]
  %v10979 = vld [vmem:[%s5 + $0x3c] sm:$0xf]
  %v10980 = vld [vmem:[%s5 + $0x40] sm:$0xf]
  %v10981 = vld [vmem:[%s5 + $0x44] sm:$0xf]
  %v10982 = vld [vmem:[%s5 + $0x48] sm:$0xf]
  %v10983 = vld [vmem:[%s5 + $0x4c] sm:$0xf]
  %v10984 = vld [vmem:[%s5 + $0x50] sm:$0xf]
  %v10985 = vld [vmem:[%s5 + $0x54] sm:$0xf]
  %v10986 = vld [vmem:[%s5 + $0x58] sm:$0xf]
  %v10987 = vld [vmem:[%s5 + $0x5c] sm:$0xf]
  %v10988 = vld [vmem:[%s5 + $0x60] sm:$0xf]
  %v10989 = vld [vmem:[%s5 + $0x64] sm:$0xf]
  %v10990 = vld [vmem:[%s5 + $0x68] sm:$0xf]
  %v10991 = vld [vmem:[%s5 + $0x6c] sm:$0xf]
  %v10992 = vld [vmem:[%s5 + $0x70] sm:$0xf]
  %v10993 = vld [vmem:[%s5 + $0x74] sm:$0xf]
  %v10994 = vld [vmem:[%s5 + $0x78] sm:$0xf]
  %v10995 = vld [vmem:[%s5 + $0x7c] sm:$0xf]
  %v10996 = vld [vmem:[%s5 + $0x80] sm:$0xf]
  %v10997 = vld [vmem:[%s5 + $0x84] sm:$0xf]
  %v10998 = vld [vmem:[%s5 + $0x88] sm:$0xf]
  %v10999 = vld [vmem:[%s5 + $0x8c] sm:$0xf]
  %v11000 = vld [vmem:[%s5 + $0x90] sm:$0xf]
  %v11001 = vld [vmem:[%s5 + $0x94] sm:$0xf]
  %v11002 = vld [vmem:[%s5 + $0x98] sm:$0xf]
  %v11003 = vld [vmem:[%s5 + $0x9c] sm:$0xf]
  %v11004 = vld [vmem:[%s5 + $0xa0] sm:$0xf]
  %v11005 = vld [vmem:[%s5 + $0xa4] sm:$0xf]
  %v11006 = vld [vmem:[%s5 + $0xa8] sm:$0xf]
  %v11007 = vld [vmem:[%s5 + $0xac] sm:$0xf]
  %v11008 = vld [vmem:[%s5 + $0xb0] sm:$0xf]
  %v11009 = vld [vmem:[%s5 + $0xb4] sm:$0xf]
  %v11010 = vld [vmem:[%s5 + $0xb8] sm:$0xf]
  %v11011 = vld [vmem:[%s5 + $0xbc] sm:$0xf]
  %v11012 = vld [vmem:[%s5 + $0xc0] sm:$0xf]
  %v11013 = vld [vmem:[%s5 + $0xc4] sm:$0xf]
  %v11014 = vld [vmem:[%s5 + $0xc8] sm:$0xf]
  %v11015 = vld [vmem:[%s5 + $0xcc] sm:$0xf]
  %v11016 = vld [vmem:[%s5 + $0xd0] sm:$0xf]
  %v11017 = vld [vmem:[%s5 + $0xd4] sm:$0xf]
  %v11018 = vld [vmem:[%s5 + $0xd8] sm:$0xf]
  %v11019 = vld [vmem:[%s5 + $0xdc] sm:$0xf]
  %v11020 = vld [vmem:[%s5 + $0xe0] sm:$0xf]
  %v11021 = vld [vmem:[%s5 + $0xe4] sm:$0xf]
  %v11022 = vld [vmem:[%s5 + $0xe8] sm:$0xf]
  %v11023 = vld [vmem:[%s5 + $0xec] sm:$0xf]
  %v11024 = vld [vmem:[%s5 + $0xf0] sm:$0xf]
  %v11025 = vld [vmem:[%s5 + $0xf4] sm:$0xf]
  %v11026 = vld [vmem:[%s5 + $0xf8] sm:$0xf]
  %v11027 = vld [vmem:[%s5 + $0xfc] sm:$0xf]
  %v11028 = vld [vmem:[%s6] sm:$0x1]
  %v11030 = vperm.slane %v11028, 0
  %v11096 = vunpack.c.l.b16 %v10964
  %v11097 = vunpack.c.l.b16 %v10965
  %v11098 = vunpack.c.l.b16 %v10966
  %v11099 = vunpack.c.l.b16 %v10967
  %v11100 = vunpack.c.l.b16 %v10968
  %v11101 = vunpack.c.l.b16 %v10969
  %v11102 = vunpack.c.l.b16 %v10970
  %v11103 = vunpack.c.l.b16 %v10971
  %v11104 = vunpack.c.l.b16 %v10972
  %v11105 = vunpack.c.l.b16 %v10973
  %v11106 = vunpack.c.l.b16 %v10974
  %v11107 = vunpack.c.l.b16 %v10975
  %v11108 = vunpack.c.l.b16 %v10976
  %v11109 = vunpack.c.l.b16 %v10977
  %v11110 = vunpack.c.l.b16 %v10978
  %v11111 = vunpack.c.l.b16 %v10979
  %v11112 = vunpack.c.l.b16 %v10980
  %v11113 = vunpack.c.l.b16 %v10981
  %v11114 = vunpack.c.l.b16 %v10982
  %v11115 = vunpack.c.l.b16 %v10983
  %v11116 = vunpack.c.l.b16 %v10984
  %v11117 = vunpack.c.l.b16 %v10985
  %v11118 = vunpack.c.l.b16 %v10986
  %v11119 = vunpack.c.l.b16 %v10987
  %v11120 = vunpack.c.l.b16 %v10988
  %v11121 = vunpack.c.l.b16 %v10989
  %v11122 = vunpack.c.l.b16 %v10990
  %v11123 = vunpack.c.l.b16 %v10991
  %v11124 = vunpack.c.l.b16 %v10992
  %v11125 = vunpack.c.l.b16 %v10993
  %v11126 = vunpack.c.l.b16 %v10994
  %v11127 = vunpack.c.l.b16 %v10995
  %v11128 = vunpack.c.l.b16 %v10996
  %v11129 = vunpack.c.l.b16 %v10997
  %v11130 = vunpack.c.l.b16 %v10998
  %v11131 = vunpack.c.l.b16 %v10999
  %v11132 = vunpack.c.l.b16 %v11000
  %v11133 = vunpack.c.l.b16 %v11001
  %v11134 = vunpack.c.l.b16 %v11002
  %v11135 = vunpack.c.l.b16 %v11003
  %v11136 = vunpack.c.l.b16 %v11004
  %v11137 = vunpack.c.l.b16 %v11005
  %v11138 = vunpack.c.l.b16 %v11006
  %v11139 = vunpack.c.l.b16 %v11007
  %v11140 = vunpack.c.l.b16 %v11008
  %v11141 = vunpack.c.l.b16 %v11009
  %v11142 = vunpack.c.l.b16 %v11010
  %v11143 = vunpack.c.l.b16 %v11011
  %v11144 = vunpack.c.l.b16 %v11012
  %v11145 = vunpack.c.l.b16 %v11013
  %v11146 = vunpack.c.l.b16 %v11014
  %v11147 = vunpack.c.l.b16 %v11015
  %v11148 = vunpack.c.l.b16 %v11016
  %v11149 = vunpack.c.l.b16 %v11017
  %v11150 = vunpack.c.l.b16 %v11018
  %v11151 = vunpack.c.l.b16 %v11019
  %v11152 = vunpack.c.l.b16 %v11020
  %v11153 = vunpack.c.l.b16 %v11021
  %v11154 = vunpack.c.l.b16 %v11022
  %v11155 = vunpack.c.l.b16 %v11023
  %v11156 = vunpack.c.l.b16 %v11024
  %v11157 = vunpack.c.l.b16 %v11025
  %v11158 = vunpack.c.l.b16 %v11026
  %v11159 = vunpack.c.l.b16 %v11027
  %v11160 = vpack.c.b16 %v11097, %v11096
  %v11161 = vpack.c.b16 %v11099, %v11098
  %v11162 = vpack.c.b16 %v11101, %v11100
  %v11163 = vpack.c.b16 %v11103, %v11102
  %v11164 = vpack.c.b16 %v11105, %v11104
  %v11165 = vpack.c.b16 %v11107, %v11106
  %v11166 = vpack.c.b16 %v11109, %v11108
  %v11167 = vpack.c.b16 %v11111, %v11110
  %v11168 = vpack.c.b16 %v11113, %v11112
  %v11169 = vpack.c.b16 %v11115, %v11114
  %v11170 = vpack.c.b16 %v11117, %v11116
  %v11171 = vpack.c.b16 %v11119, %v11118
  %v11172 = vpack.c.b16 %v11121, %v11120
  %v11173 = vpack.c.b16 %v11123, %v11122
  %v11174 = vpack.c.b16 %v11125, %v11124
  %v11175 = vpack.c.b16 %v11127, %v11126
  %v11176 = vpack.c.b16 %v11129, %v11128
  %v11177 = vpack.c.b16 %v11131, %v11130
  %v11178 = vpack.c.b16 %v11133, %v11132
  %v11179 = vpack.c.b16 %v11135, %v11134
  %v11180 = vpack.c.b16 %v11137, %v11136
  %v11181 = vpack.c.b16 %v11139, %v11138
  %v11182 = vpack.c.b16 %v11141, %v11140
  %v11183 = vpack.c.b16 %v11143, %v11142
  %v11184 = vpack.c.b16 %v11145, %v11144
  %v11185 = vpack.c.b16 %v11147, %v11146
  %v11186 = vpack.c.b16 %v11149, %v11148
  %v11187 = vpack.c.b16 %v11151, %v11150
  %v11188 = vpack.c.b16 %v11153, %v11152
  %v11189 = vpack.c.b16 %v11155, %v11154
  %v11190 = vpack.c.b16 %v11157, %v11156
  %v11191 = vpack.c.b16 %v11159, %v11158
  %11224 = vmatpush.bf16.msra.mxu0 %v11167
  %11225 = vmatpush.bf16.msra.mxu0 %v11166
  %11226 = vmatpush.bf16.msra.mxu0 %v11165
  %11227 = vmatpush.bf16.msra.mxu0 %v11164
  %11228 = vmatpush.bf16.msra.mxu0 %v11163
  %11229 = vmatpush.bf16.msra.mxu0 %v11162
  %11230 = vmatpush.bf16.msra.mxu0 %v11161
  %11231 = vmatpush.bf16.msra.mxu0 %v11160
  %11232 = vmatmul.bf16.gmra.mxu0 %v10836
  %v11233 = vpop.f32.mrf.mxu0
  %v11234 = vadd.f32 %v11030, %v11233
  %v11235 = vpop.f32.mrf.mxu0
  %v11236 = vadd.f32 %v11030, %v11235
  %11237 = vmatmul.bf16.gmra.mxu0 %v10840
  %v11238 = vpop.f32.mrf.mxu0
  %v11239 = vadd.f32 %v11030, %v11238
  %v11240 = vpop.f32.mrf.mxu0
  %v11241 = vadd.f32 %v11030, %v11240
  %11242 = vmatmul.bf16.gmra.mxu0 %v10844
  %v11243 = vpop.f32.mrf.mxu0
  %v11244 = vadd.f32 %v11030, %v11243
  %v11245 = vpop.f32.mrf.mxu0
  %v11246 = vadd.f32 %v11030, %v11245
  %11247 = vmatmul.bf16.gmra.mxu0 %v10848
  %v11248 = vpop.f32.mrf.mxu0
  %v11249 = vadd.f32 %v11030, %v11248
  %v11250 = vpop.f32.mrf.mxu0
  %v11251 = vadd.f32 %v11030, %v11250
  %11252 = vmatmul.bf16.gmra.mxu0 %v10852
  %v11253 = vpop.f32.mrf.mxu0
  %v11254 = vadd.f32 %v11030, %v11253
  %v11255 = vpop.f32.mrf.mxu0
  %v11256 = vadd.f32 %v11030, %v11255
  %11257 = vmatmul.bf16.gmra.mxu0 %v10856
  %v11258 = vpop.f32.mrf.mxu0
  %v11259 = vadd.f32 %v11030, %v11258
  %v11260 = vpop.f32.mrf.mxu0
  %v11261 = vadd.f32 %v11030, %v11260
  %11262 = vmatmul.bf16.gmra.mxu0 %v10860
  %v11263 = vpop.f32.mrf.mxu0
  %v11264 = vadd.f32 %v11030, %v11263
  %v11265 = vpop.f32.mrf.mxu0
  %v11266 = vadd.f32 %v11030, %v11265
  %11267 = vmatmul.bf16.gmra.mxu0 %v10864
  %v11268 = vpop.f32.mrf.mxu0
  %v11269 = vadd.f32 %v11030, %v11268
  %v11270 = vpop.f32.mrf.mxu0
  %v11271 = vadd.f32 %v11030, %v11270
  %11272 = vmatmul.bf16.gmra.mxu0 %v10868
  %v11273 = vpop.f32.mrf.mxu0
  %v11274 = vadd.f32 %v11030, %v11273
  %v11275 = vpop.f32.mrf.mxu0
  %v11276 = vadd.f32 %v11030, %v11275
  %11277 = vmatmul.bf16.gmra.mxu0 %v10872
  %v11278 = vpop.f32.mrf.mxu0
  %v11279 = vadd.f32 %v11030, %v11278
  %v11280 = vpop.f32.mrf.mxu0
  %v11281 = vadd.f32 %v11030, %v11280
  %11282 = vmatmul.bf16.gmra.mxu0 %v10876
  %v11283 = vpop.f32.mrf.mxu0
  %v11284 = vadd.f32 %v11030, %v11283
  %v11285 = vpop.f32.mrf.mxu0
  %v11286 = vadd.f32 %v11030, %v11285
  %11287 = vmatmul.bf16.gmra.mxu0 %v10880
  %v11288 = vpop.f32.mrf.mxu0
  %v11289 = vadd.f32 %v11030, %v11288
  %v11290 = vpop.f32.mrf.mxu0
  %v11291 = vadd.f32 %v11030, %v11290
  %11292 = vmatmul.bf16.gmra.mxu0 %v10884
  %v11293 = vpop.f32.mrf.mxu0
  %v11294 = vadd.f32 %v11030, %v11293
  %v11295 = vpop.f32.mrf.mxu0
  %v11296 = vadd.f32 %v11030, %v11295
  %11297 = vmatmul.bf16.gmra.mxu0 %v10888
  %v11298 = vpop.f32.mrf.mxu0
  %v11299 = vadd.f32 %v11030, %v11298
  %v11300 = vpop.f32.mrf.mxu0
  %v11301 = vadd.f32 %v11030, %v11300
  %11302 = vmatmul.bf16.gmra.mxu0 %v10892
  %v11303 = vpop.f32.mrf.mxu0
  %v11304 = vadd.f32 %v11030, %v11303
  %v11305 = vpop.f32.mrf.mxu0
  %v11306 = vadd.f32 %v11030, %v11305
  %11307 = vmatmul.bf16.gmra.mxu0 %v10896
  %v11308 = vpop.f32.mrf.mxu0
  %v11309 = vadd.f32 %v11030, %v11308
  %v11310 = vpop.f32.mrf.mxu0
  %v11311 = vadd.f32 %v11030, %v11310
  %11312 = vmatmul.bf16.gmra.mxu0 %v10900
  %v11313 = vpop.f32.mrf.mxu0
  %v11314 = vadd.f32 %v11030, %v11313
  %v11315 = vpop.f32.mrf.mxu0
  %v11316 = vadd.f32 %v11030, %v11315
  %11317 = vmatmul.bf16.gmra.mxu0 %v10904
  %v11318 = vpop.f32.mrf.mxu0
  %v11319 = vadd.f32 %v11030, %v11318
  %v11320 = vpop.f32.mrf.mxu0
  %v11321 = vadd.f32 %v11030, %v11320
  %11322 = vmatmul.bf16.gmra.mxu0 %v10908
  %v11323 = vpop.f32.mrf.mxu0
  %v11324 = vadd.f32 %v11030, %v11323
  %v11325 = vpop.f32.mrf.mxu0
  %v11326 = vadd.f32 %v11030, %v11325
  %11327 = vmatmul.bf16.gmra.mxu0 %v10912
  %v11328 = vpop.f32.mrf.mxu0
  %v11329 = vadd.f32 %v11030, %v11328
  %v11330 = vpop.f32.mrf.mxu0
  %v11331 = vadd.f32 %v11030, %v11330
  %11332 = vmatmul.bf16.gmra.mxu0 %v10916
  %v11333 = vpop.f32.mrf.mxu0
  %v11334 = vadd.f32 %v11030, %v11333
  %v11335 = vpop.f32.mrf.mxu0
  %v11336 = vadd.f32 %v11030, %v11335
  %11337 = vmatmul.bf16.gmra.mxu0 %v10920
  %v11338 = vpop.f32.mrf.mxu0
  %v11339 = vadd.f32 %v11030, %v11338
  %v11340 = vpop.f32.mrf.mxu0
  %v11341 = vadd.f32 %v11030, %v11340
  %11342 = vmatmul.bf16.gmra.mxu0 %v10924
  %v11343 = vpop.f32.mrf.mxu0
  %v11344 = vadd.f32 %v11030, %v11343
  %v11345 = vpop.f32.mrf.mxu0
  %v11346 = vadd.f32 %v11030, %v11345
  %11347 = vmatmul.bf16.gmra.mxu0 %v10928
  %v11348 = vpop.f32.mrf.mxu0
  %v11349 = vadd.f32 %v11030, %v11348
  %v11350 = vpop.f32.mrf.mxu0
  %v11351 = vadd.f32 %v11030, %v11350
  %11352 = vmatmul.bf16.gmra.mxu0 %v10932
  %v11353 = vpop.f32.mrf.mxu0
  %v11354 = vadd.f32 %v11030, %v11353
  %v11355 = vpop.f32.mrf.mxu0
  %v11356 = vadd.f32 %v11030, %v11355
  %11357 = vmatmul.bf16.gmra.mxu0 %v10936
  %v11358 = vpop.f32.mrf.mxu0
  %v11359 = vadd.f32 %v11030, %v11358
  %v11360 = vpop.f32.mrf.mxu0
  %v11361 = vadd.f32 %v11030, %v11360
  %11362 = vmatmul.bf16.gmra.mxu0 %v10940
  %v11363 = vpop.f32.mrf.mxu0
  %v11364 = vadd.f32 %v11030, %v11363
  %v11365 = vpop.f32.mrf.mxu0
  %v11366 = vadd.f32 %v11030, %v11365
  %11367 = vmatmul.bf16.gmra.mxu0 %v10944
  %v11368 = vpop.f32.mrf.mxu0
  %v11369 = vadd.f32 %v11030, %v11368
  %v11370 = vpop.f32.mrf.mxu0
  %v11371 = vadd.f32 %v11030, %v11370
  %11372 = vmatmul.bf16.gmra.mxu0 %v10948
  %v11373 = vpop.f32.mrf.mxu0
  %v11374 = vadd.f32 %v11030, %v11373
  %v11375 = vpop.f32.mrf.mxu0
  %v11376 = vadd.f32 %v11030, %v11375
  %11377 = vmatmul.bf16.gmra.mxu0 %v10952
  %v11378 = vpop.f32.mrf.mxu0
  %v11379 = vadd.f32 %v11030, %v11378
  %v11380 = vpop.f32.mrf.mxu0
  %v11381 = vadd.f32 %v11030, %v11380
  %11382 = vmatmul.bf16.gmra.mxu0 %v10956
  %v11383 = vpop.f32.mrf.mxu0
  %v11384 = vadd.f32 %v11030, %v11383
  %v11385 = vpop.f32.mrf.mxu0
  %v11386 = vadd.f32 %v11030, %v11385
  %11387 = vmatmul.bf16.gmra.mxu0 %v10960
  %v11388 = vpop.f32.mrf.mxu0
  %v11389 = vadd.f32 %v11030, %v11388
  %v11390 = vpop.f32.mrf.mxu0
  %v11391 = vadd.f32 %v11030, %v11390
  %11392 = vdwg.mxu0
  %11393 = vmatpush.bf16.msra.mxu0 %v11175
  %11394 = vmatpush.bf16.msra.mxu0 %v11174
  %11395 = vmatpush.bf16.msra.mxu0 %v11173
  %11396 = vmatpush.bf16.msra.mxu0 %v11172
  %11397 = vmatpush.bf16.msra.mxu0 %v11171
  %11398 = vmatpush.bf16.msra.mxu0 %v11170
  %11399 = vmatpush.bf16.msra.mxu0 %v11169
  %11400 = vmatpush.bf16.msra.mxu0 %v11168
  %11401 = vmatmul.bf16.gmra.mxu0 %v10837
  %v11402 = vpop.f32.mrf.mxu0
  %v11403 = vadd.f32 %v11234, %v11402
  %v11404 = vpop.f32.mrf.mxu0
  %v11405 = vadd.f32 %v11236, %v11404
  %11406 = vmatmul.bf16.gmra.mxu0 %v10841
  %v11407 = vpop.f32.mrf.mxu0
  %v11408 = vadd.f32 %v11239, %v11407
  %v11409 = vpop.f32.mrf.mxu0
  %v11410 = vadd.f32 %v11241, %v11409
  %11411 = vmatmul.bf16.gmra.mxu0 %v10845
  %v11412 = vpop.f32.mrf.mxu0
  %v11413 = vadd.f32 %v11244, %v11412
  %v11414 = vpop.f32.mrf.mxu0
  %v11415 = vadd.f32 %v11246, %v11414
  %11416 = vmatmul.bf16.gmra.mxu0 %v10849
  %v11417 = vpop.f32.mrf.mxu0
  %v11418 = vadd.f32 %v11249, %v11417
  %v11419 = vpop.f32.mrf.mxu0
  %v11420 = vadd.f32 %v11251, %v11419
  %11421 = vmatmul.bf16.gmra.mxu0 %v10853
  %v11422 = vpop.f32.mrf.mxu0
  %v11423 = vadd.f32 %v11254, %v11422
  %v11424 = vpop.f32.mrf.mxu0
  %v11425 = vadd.f32 %v11256, %v11424
  %11426 = vmatmul.bf16.gmra.mxu0 %v10857
  %v11427 = vpop.f32.mrf.mxu0
  %v11428 = vadd.f32 %v11259, %v11427
  %v11429 = vpop.f32.mrf.mxu0
  %v11430 = vadd.f32 %v11261, %v11429
  %11431 = vmatmul.bf16.gmra.mxu0 %v10861
  %v11432 = vpop.f32.mrf.mxu0
  %v11433 = vadd.f32 %v11264, %v11432
  %v11434 = vpop.f32.mrf.mxu0
  %v11435 = vadd.f32 %v11266, %v11434
  %11436 = vmatmul.bf16.gmra.mxu0 %v10865
  %v11437 = vpop.f32.mrf.mxu0
  %v11438 = vadd.f32 %v11269, %v11437
  %v11439 = vpop.f32.mrf.mxu0
  %v11440 = vadd.f32 %v11271, %v11439
  %11441 = vmatmul.bf16.gmra.mxu0 %v10869
  %v11442 = vpop.f32.mrf.mxu0
  %v11443 = vadd.f32 %v11274, %v11442
  %v11444 = vpop.f32.mrf.mxu0
  %v11445 = vadd.f32 %v11276, %v11444
  %11446 = vmatmul.bf16.gmra.mxu0 %v10873
  %v11447 = vpop.f32.mrf.mxu0
  %v11448 = vadd.f32 %v11279, %v11447
  %v11449 = vpop.f32.mrf.mxu0
  %v11450 = vadd.f32 %v11281, %v11449
  %11451 = vmatmul.bf16.gmra.mxu0 %v10877
  %v11452 = vpop.f32.mrf.mxu0
  %v11453 = vadd.f32 %v11284, %v11452
  %v11454 = vpop.f32.mrf.mxu0
  %v11455 = vadd.f32 %v11286, %v11454
  %11456 = vmatmul.bf16.gmra.mxu0 %v10881
  %v11457 = vpop.f32.mrf.mxu0
  %v11458 = vadd.f32 %v11289, %v11457
  %v11459 = vpop.f32.mrf.mxu0
  %v11460 = vadd.f32 %v11291, %v11459
  %11461 = vmatmul.bf16.gmra.mxu0 %v10885
  %v11462 = vpop.f32.mrf.mxu0
  %v11463 = vadd.f32 %v11294, %v11462
  %v11464 = vpop.f32.mrf.mxu0
  %v11465 = vadd.f32 %v11296, %v11464
  %11466 = vmatmul.bf16.gmra.mxu0 %v10889
  %v11467 = vpop.f32.mrf.mxu0
  %v11468 = vadd.f32 %v11299, %v11467
  %v11469 = vpop.f32.mrf.mxu0
  %v11470 = vadd.f32 %v11301, %v11469
  %11471 = vmatmul.bf16.gmra.mxu0 %v10893
  %v11472 = vpop.f32.mrf.mxu0
  %v11473 = vadd.f32 %v11304, %v11472
  %v11474 = vpop.f32.mrf.mxu0
  %v11475 = vadd.f32 %v11306, %v11474
  %11476 = vmatmul.bf16.gmra.mxu0 %v10897
  %v11477 = vpop.f32.mrf.mxu0
  %v11478 = vadd.f32 %v11309, %v11477
  %v11479 = vpop.f32.mrf.mxu0
  %v11480 = vadd.f32 %v11311, %v11479
  %11481 = vmatmul.bf16.gmra.mxu0 %v10901
  %v11482 = vpop.f32.mrf.mxu0
  %v11483 = vadd.f32 %v11314, %v11482
  %v11484 = vpop.f32.mrf.mxu0
  %v11485 = vadd.f32 %v11316, %v11484
  %11486 = vmatmul.bf16.gmra.mxu0 %v10905
  %v11487 = vpop.f32.mrf.mxu0
  %v11488 = vadd.f32 %v11319, %v11487
  %v11489 = vpop.f32.mrf.mxu0
  %v11490 = vadd.f32 %v11321, %v11489
  %11491 = vmatmul.bf16.gmra.mxu0 %v10909
  %v11492 = vpop.f32.mrf.mxu0
  %v11493 = vadd.f32 %v11324, %v11492
  %v11494 = vpop.f32.mrf.mxu0
  %v11495 = vadd.f32 %v11326, %v11494
  %11496 = vmatmul.bf16.gmra.mxu0 %v10913
  %v11497 = vpop.f32.mrf.mxu0
  %v11498 = vadd.f32 %v11329, %v11497
  %v11499 = vpop.f32.mrf.mxu0
  %v11500 = vadd.f32 %v11331, %v11499
  %11501 = vmatmul.bf16.gmra.mxu0 %v10917
  %v11502 = vpop.f32.mrf.mxu0
  %v11503 = vadd.f32 %v11334, %v11502
  %v11504 = vpop.f32.mrf.mxu0
  %v11505 = vadd.f32 %v11336, %v11504
  %11506 = vmatmul.bf16.gmra.mxu0 %v10921
  %v11507 = vpop.f32.mrf.mxu0
  %v11508 = vadd.f32 %v11339, %v11507
  %v11509 = vpop.f32.mrf.mxu0
  %v11510 = vadd.f32 %v11341, %v11509
  %11511 = vmatmul.bf16.gmra.mxu0 %v10925
  %v11512 = vpop.f32.mrf.mxu0
  %v11513 = vadd.f32 %v11344, %v11512
  %v11514 = vpop.f32.mrf.mxu0
  %v11515 = vadd.f32 %v11346, %v11514
  %11516 = vmatmul.bf16.gmra.mxu0 %v10929
  %v11517 = vpop.f32.mrf.mxu0
  %v11518 = vadd.f32 %v11349, %v11517
  %v11519 = vpop.f32.mrf.mxu0
  %v11520 = vadd.f32 %v11351, %v11519
  %11521 = vmatmul.bf16.gmra.mxu0 %v10933
  %v11522 = vpop.f32.mrf.mxu0
  %v11523 = vadd.f32 %v11354, %v11522
  %v11524 = vpop.f32.mrf.mxu0
  %v11525 = vadd.f32 %v11356, %v11524
  %11526 = vmatmul.bf16.gmra.mxu0 %v10937
  %v11527 = vpop.f32.mrf.mxu0
  %v11528 = vadd.f32 %v11359, %v11527
  %v11529 = vpop.f32.mrf.mxu0
  %v11530 = vadd.f32 %v11361, %v11529
  %11531 = vmatmul.bf16.gmra.mxu0 %v10941
  %v11532 = vpop.f32.mrf.mxu0
  %v11533 = vadd.f32 %v11364, %v11532
  %v11534 = vpop.f32.mrf.mxu0
  %v11535 = vadd.f32 %v11366, %v11534
  %11536 = vmatmul.bf16.gmra.mxu0 %v10945
  %v11537 = vpop.f32.mrf.mxu0
  %v11538 = vadd.f32 %v11369, %v11537
  %v11539 = vpop.f32.mrf.mxu0
  %v11540 = vadd.f32 %v11371, %v11539
  %11541 = vmatmul.bf16.gmra.mxu0 %v10949
  %v11542 = vpop.f32.mrf.mxu0
  %v11543 = vadd.f32 %v11374, %v11542
  %v11544 = vpop.f32.mrf.mxu0
  %v11545 = vadd.f32 %v11376, %v11544
  %11546 = vmatmul.bf16.gmra.mxu0 %v10953
  %v11547 = vpop.f32.mrf.mxu0
  %v11548 = vadd.f32 %v11379, %v11547
  %v11549 = vpop.f32.mrf.mxu0
  %v11550 = vadd.f32 %v11381, %v11549
  %11551 = vmatmul.bf16.gmra.mxu0 %v10957
  %v11552 = vpop.f32.mrf.mxu0
  %v11553 = vadd.f32 %v11384, %v11552
  %v11554 = vpop.f32.mrf.mxu0
  %v11555 = vadd.f32 %v11386, %v11554
  %11556 = vmatmul.bf16.gmra.mxu0 %v10961
  %v11557 = vpop.f32.mrf.mxu0
  %v11558 = vadd.f32 %v11389, %v11557
  %v11559 = vpop.f32.mrf.mxu0
  %v11560 = vadd.f32 %v11391, %v11559
  %11561 = vdwg.mxu0
  %11562 = vmatpush.bf16.msra.mxu0 %v11183
  %11563 = vmatpush.bf16.msra.mxu0 %v11182
  %11564 = vmatpush.bf16.msra.mxu0 %v11181
  %11565 = vmatpush.bf16.msra.mxu0 %v11180
  %11566 = vmatpush.bf16.msra.mxu0 %v11179
  %11567 = vmatpush.bf16.msra.mxu0 %v11178
  %11568 = vmatpush.bf16.msra.mxu0 %v11177
  %11569 = vmatpush.bf16.msra.mxu0 %v11176
  %11570 = vmatmul.bf16.gmra.mxu0 %v10838
  %v11571 = vpop.f32.mrf.mxu0
  %v11572 = vadd.f32 %v11403, %v11571
  %v11573 = vpop.f32.mrf.mxu0
  %v11574 = vadd.f32 %v11405, %v11573
  %11575 = vmatmul.bf16.gmra.mxu0 %v10842
  %v11576 = vpop.f32.mrf.mxu0
  %v11577 = vadd.f32 %v11408, %v11576
  %v11578 = vpop.f32.mrf.mxu0
  %v11579 = vadd.f32 %v11410, %v11578
  %11580 = vmatmul.bf16.gmra.mxu0 %v10846
  %v11581 = vpop.f32.mrf.mxu0
  %v11582 = vadd.f32 %v11413, %v11581
  %v11583 = vpop.f32.mrf.mxu0
  %v11584 = vadd.f32 %v11415, %v11583
  %11585 = vmatmul.bf16.gmra.mxu0 %v10850
  %v11586 = vpop.f32.mrf.mxu0
  %v11587 = vadd.f32 %v11418, %v11586
  %v11588 = vpop.f32.mrf.mxu0
  %v11589 = vadd.f32 %v11420, %v11588
  %11590 = vmatmul.bf16.gmra.mxu0 %v10854
  %v11591 = vpop.f32.mrf.mxu0
  %v11592 = vadd.f32 %v11423, %v11591
  %v11593 = vpop.f32.mrf.mxu0
  %v11594 = vadd.f32 %v11425, %v11593
  %11595 = vmatmul.bf16.gmra.mxu0 %v10858
  %v11596 = vpop.f32.mrf.mxu0
  %v11597 = vadd.f32 %v11428, %v11596
  %v11598 = vpop.f32.mrf.mxu0
  %v11599 = vadd.f32 %v11430, %v11598
  %11600 = vmatmul.bf16.gmra.mxu0 %v10862
  %v11601 = vpop.f32.mrf.mxu0
  %v11602 = vadd.f32 %v11433, %v11601
  %v11603 = vpop.f32.mrf.mxu0
  %v11604 = vadd.f32 %v11435, %v11603
  %11605 = vmatmul.bf16.gmra.mxu0 %v10866
  %v11606 = vpop.f32.mrf.mxu0
  %v11607 = vadd.f32 %v11438, %v11606
  %v11608 = vpop.f32.mrf.mxu0
  %v11609 = vadd.f32 %v11440, %v11608
  %11610 = vmatmul.bf16.gmra.mxu0 %v10870
  %v11611 = vpop.f32.mrf.mxu0
  %v11612 = vadd.f32 %v11443, %v11611
  %v11613 = vpop.f32.mrf.mxu0
  %v11614 = vadd.f32 %v11445, %v11613
  %11615 = vmatmul.bf16.gmra.mxu0 %v10874
  %v11616 = vpop.f32.mrf.mxu0
  %v11617 = vadd.f32 %v11448, %v11616
  %v11618 = vpop.f32.mrf.mxu0
  %v11619 = vadd.f32 %v11450, %v11618
  %11620 = vmatmul.bf16.gmra.mxu0 %v10878
  %v11621 = vpop.f32.mrf.mxu0
  %v11622 = vadd.f32 %v11453, %v11621
  %v11623 = vpop.f32.mrf.mxu0
  %v11624 = vadd.f32 %v11455, %v11623
  %11625 = vmatmul.bf16.gmra.mxu0 %v10882
  %v11626 = vpop.f32.mrf.mxu0
  %v11627 = vadd.f32 %v11458, %v11626
  %v11628 = vpop.f32.mrf.mxu0
  %v11629 = vadd.f32 %v11460, %v11628
  %11630 = vmatmul.bf16.gmra.mxu0 %v10886
  %v11631 = vpop.f32.mrf.mxu0
  %v11632 = vadd.f32 %v11463, %v11631
  %v11633 = vpop.f32.mrf.mxu0
  %v11634 = vadd.f32 %v11465, %v11633
  %11635 = vmatmul.bf16.gmra.mxu0 %v10890
  %v11636 = vpop.f32.mrf.mxu0
  %v11637 = vadd.f32 %v11468, %v11636
  %v11638 = vpop.f32.mrf.mxu0
  %v11639 = vadd.f32 %v11470, %v11638
  %11640 = vmatmul.bf16.gmra.mxu0 %v10894
  %v11641 = vpop.f32.mrf.mxu0
  %v11642 = vadd.f32 %v11473, %v11641
  %v11643 = vpop.f32.mrf.mxu0
  %v11644 = vadd.f32 %v11475, %v11643
  %11645 = vmatmul.bf16.gmra.mxu0 %v10898
  %v11646 = vpop.f32.mrf.mxu0
  %v11647 = vadd.f32 %v11478, %v11646
  %v11648 = vpop.f32.mrf.mxu0
  %v11649 = vadd.f32 %v11480, %v11648
  %11650 = vmatmul.bf16.gmra.mxu0 %v10902
  %v11651 = vpop.f32.mrf.mxu0
  %v11652 = vadd.f32 %v11483, %v11651
  %v11653 = vpop.f32.mrf.mxu0
  %v11654 = vadd.f32 %v11485, %v11653
  %11655 = vmatmul.bf16.gmra.mxu0 %v10906
  %v11656 = vpop.f32.mrf.mxu0
  %v11657 = vadd.f32 %v11488, %v11656
  %v11658 = vpop.f32.mrf.mxu0
  %v11659 = vadd.f32 %v11490, %v11658
  %11660 = vmatmul.bf16.gmra.mxu0 %v10910
  %v11661 = vpop.f32.mrf.mxu0
  %v11662 = vadd.f32 %v11493, %v11661
  %v11663 = vpop.f32.mrf.mxu0
  %v11664 = vadd.f32 %v11495, %v11663
  %11665 = vmatmul.bf16.gmra.mxu0 %v10914
  %v11666 = vpop.f32.mrf.mxu0
  %v11667 = vadd.f32 %v11498, %v11666
  %v11668 = vpop.f32.mrf.mxu0
  %v11669 = vadd.f32 %v11500, %v11668
  %11670 = vmatmul.bf16.gmra.mxu0 %v10918
  %v11671 = vpop.f32.mrf.mxu0
  %v11672 = vadd.f32 %v11503, %v11671
  %v11673 = vpop.f32.mrf.mxu0
  %v11674 = vadd.f32 %v11505, %v11673
  %11675 = vmatmul.bf16.gmra.mxu0 %v10922
  %v11676 = vpop.f32.mrf.mxu0
  %v11677 = vadd.f32 %v11508, %v11676
  %v11678 = vpop.f32.mrf.mxu0
  %v11679 = vadd.f32 %v11510, %v11678
  %11680 = vmatmul.bf16.gmra.mxu0 %v10926
  %v11681 = vpop.f32.mrf.mxu0
  %v11682 = vadd.f32 %v11513, %v11681
  %v11683 = vpop.f32.mrf.mxu0
  %v11684 = vadd.f32 %v11515, %v11683
  %11685 = vmatmul.bf16.gmra.mxu0 %v10930
  %v11686 = vpop.f32.mrf.mxu0
  %v11687 = vadd.f32 %v11518, %v11686
  %v11688 = vpop.f32.mrf.mxu0
  %v11689 = vadd.f32 %v11520, %v11688
  %11690 = vmatmul.bf16.gmra.mxu0 %v10934
  %v11691 = vpop.f32.mrf.mxu0
  %v11692 = vadd.f32 %v11523, %v11691
  %v11693 = vpop.f32.mrf.mxu0
  %v11694 = vadd.f32 %v11525, %v11693
  %11695 = vmatmul.bf16.gmra.mxu0 %v10938
  %v11696 = vpop.f32.mrf.mxu0
  %v11697 = vadd.f32 %v11528, %v11696
  %v11698 = vpop.f32.mrf.mxu0
  %v11699 = vadd.f32 %v11530, %v11698
  %11700 = vmatmul.bf16.gmra.mxu0 %v10942
  %v11701 = vpop.f32.mrf.mxu0
  %v11702 = vadd.f32 %v11533, %v11701
  %v11703 = vpop.f32.mrf.mxu0
  %v11704 = vadd.f32 %v11535, %v11703
  %11705 = vmatmul.bf16.gmra.mxu0 %v10946
  %v11706 = vpop.f32.mrf.mxu0
  %v11707 = vadd.f32 %v11538, %v11706
  %v11708 = vpop.f32.mrf.mxu0
  %v11709 = vadd.f32 %v11540, %v11708
  %11710 = vmatmul.bf16.gmra.mxu0 %v10950
  %v11711 = vpop.f32.mrf.mxu0
  %v11712 = vadd.f32 %v11543, %v11711
  %v11713 = vpop.f32.mrf.mxu0
  %v11714 = vadd.f32 %v11545, %v11713
  %11715 = vmatmul.bf16.gmra.mxu0 %v10954
  %v11716 = vpop.f32.mrf.mxu0
  %v11717 = vadd.f32 %v11548, %v11716
  %v11718 = vpop.f32.mrf.mxu0
  %v11719 = vadd.f32 %v11550, %v11718
  %11720 = vmatmul.bf16.gmra.mxu0 %v10958
  %v11721 = vpop.f32.mrf.mxu0
  %v11722 = vadd.f32 %v11553, %v11721
  %v11723 = vpop.f32.mrf.mxu0
  %v11724 = vadd.f32 %v11555, %v11723
  %11725 = vmatmul.bf16.gmra.mxu0 %v10962
  %v11726 = vpop.f32.mrf.mxu0
  %v11727 = vadd.f32 %v11558, %v11726
  %v11728 = vpop.f32.mrf.mxu0
  %v11729 = vadd.f32 %v11560, %v11728
  %11730 = vdwg.mxu0
  %11731 = vmatpush.bf16.msra.mxu0 %v11191
  %11732 = vmatpush.bf16.msra.mxu0 %v11190
  %11733 = vmatpush.bf16.msra.mxu0 %v11189
  %11734 = vmatpush.bf16.msra.mxu0 %v11188
  %11735 = vmatpush.bf16.msra.mxu0 %v11187
  %11736 = vmatpush.bf16.msra.mxu0 %v11186
  %11737 = vmatpush.bf16.msra.mxu0 %v11185
  %11738 = vmatpush.bf16.msra.mxu0 %v11184
  %11739 = vmatmul.bf16.gmra.mxu0 %v10839
  %v11740 = vpop.f32.mrf.mxu0
  %v11741 = vadd.f32 %v11572, %v11740
  %v11742 = vpop.f32.mrf.mxu0
  %v11743 = vadd.f32 %v11574, %v11742
  %11744 = vmatmul.bf16.gmra.mxu0 %v10843
  %v11745 = vpop.f32.mrf.mxu0
  %v11746 = vadd.f32 %v11577, %v11745
  %v11747 = vpop.f32.mrf.mxu0
  %v11748 = vadd.f32 %v11579, %v11747
  %11749 = vmatmul.bf16.gmra.mxu0 %v10847
  %v11750 = vpop.f32.mrf.mxu0
  %v11751 = vadd.f32 %v11582, %v11750
  %v11752 = vpop.f32.mrf.mxu0
  %v11753 = vadd.f32 %v11584, %v11752
  %11754 = vmatmul.bf16.gmra.mxu0 %v10851
  %v11755 = vpop.f32.mrf.mxu0
  %v11756 = vadd.f32 %v11587, %v11755
  %v11757 = vpop.f32.mrf.mxu0
  %v11758 = vadd.f32 %v11589, %v11757
  %11759 = vmatmul.bf16.gmra.mxu0 %v10855
  %v11760 = vpop.f32.mrf.mxu0
  %v11761 = vadd.f32 %v11592, %v11760
  %v11762 = vpop.f32.mrf.mxu0
  %v11763 = vadd.f32 %v11594, %v11762
  %11764 = vmatmul.bf16.gmra.mxu0 %v10859
  %v11765 = vpop.f32.mrf.mxu0
  %v11766 = vadd.f32 %v11597, %v11765
  %v11767 = vpop.f32.mrf.mxu0
  %v11768 = vadd.f32 %v11599, %v11767
  %11769 = vmatmul.bf16.gmra.mxu0 %v10863
  %v11770 = vpop.f32.mrf.mxu0
  %v11771 = vadd.f32 %v11602, %v11770
  %v11772 = vpop.f32.mrf.mxu0
  %v11773 = vadd.f32 %v11604, %v11772
  %11774 = vmatmul.bf16.gmra.mxu0 %v10867
  %v11775 = vpop.f32.mrf.mxu0
  %v11776 = vadd.f32 %v11607, %v11775
  %v11777 = vpop.f32.mrf.mxu0
  %v11778 = vadd.f32 %v11609, %v11777
  %11779 = vmatmul.bf16.gmra.mxu0 %v10871
  %v11780 = vpop.f32.mrf.mxu0
  %v11781 = vadd.f32 %v11612, %v11780
  %v11782 = vpop.f32.mrf.mxu0
  %v11783 = vadd.f32 %v11614, %v11782
  %11784 = vmatmul.bf16.gmra.mxu0 %v10875
  %v11785 = vpop.f32.mrf.mxu0
  %v11786 = vadd.f32 %v11617, %v11785
  %v11787 = vpop.f32.mrf.mxu0
  %v11788 = vadd.f32 %v11619, %v11787
  %11789 = vmatmul.bf16.gmra.mxu0 %v10879
  %v11790 = vpop.f32.mrf.mxu0
  %v11791 = vadd.f32 %v11622, %v11790
  %v11792 = vpop.f32.mrf.mxu0
  %v11793 = vadd.f32 %v11624, %v11792
  %11794 = vmatmul.bf16.gmra.mxu0 %v10883
  %v11795 = vpop.f32.mrf.mxu0
  %v11796 = vadd.f32 %v11627, %v11795
  %v11797 = vpop.f32.mrf.mxu0
  %v11798 = vadd.f32 %v11629, %v11797
  %11799 = vmatmul.bf16.gmra.mxu0 %v10887
  %v11800 = vpop.f32.mrf.mxu0
  %v11801 = vadd.f32 %v11632, %v11800
  %v11802 = vpop.f32.mrf.mxu0
  %v11803 = vadd.f32 %v11634, %v11802
  %11804 = vmatmul.bf16.gmra.mxu0 %v10891
  %v11805 = vpop.f32.mrf.mxu0
  %v11806 = vadd.f32 %v11637, %v11805
  %v11807 = vpop.f32.mrf.mxu0
  %v11808 = vadd.f32 %v11639, %v11807
  %11809 = vmatmul.bf16.gmra.mxu0 %v10895
  %v11810 = vpop.f32.mrf.mxu0
  %v11811 = vadd.f32 %v11642, %v11810
  %v11812 = vpop.f32.mrf.mxu0
  %v11813 = vadd.f32 %v11644, %v11812
  %11814 = vmatmul.bf16.gmra.mxu0 %v10899
  %v11815 = vpop.f32.mrf.mxu0
  %v11816 = vadd.f32 %v11647, %v11815
  %v11817 = vpop.f32.mrf.mxu0
  %v11818 = vadd.f32 %v11649, %v11817
  %11819 = vmatmul.bf16.gmra.mxu0 %v10903
  %v11820 = vpop.f32.mrf.mxu0
  %v11821 = vadd.f32 %v11652, %v11820
  %v11822 = vpop.f32.mrf.mxu0
  %v11823 = vadd.f32 %v11654, %v11822
  %11824 = vmatmul.bf16.gmra.mxu0 %v10907
  %v11825 = vpop.f32.mrf.mxu0
  %v11826 = vadd.f32 %v11657, %v11825
  %v11827 = vpop.f32.mrf.mxu0
  %v11828 = vadd.f32 %v11659, %v11827
  %11829 = vmatmul.bf16.gmra.mxu0 %v10911
  %v11830 = vpop.f32.mrf.mxu0
  %v11831 = vadd.f32 %v11662, %v11830
  %v11832 = vpop.f32.mrf.mxu0
  %v11833 = vadd.f32 %v11664, %v11832
  %11834 = vmatmul.bf16.gmra.mxu0 %v10915
  %v11835 = vpop.f32.mrf.mxu0
  %v11836 = vadd.f32 %v11667, %v11835
  %v11837 = vpop.f32.mrf.mxu0
  %v11838 = vadd.f32 %v11669, %v11837
  %11839 = vmatmul.bf16.gmra.mxu0 %v10919
  %v11840 = vpop.f32.mrf.mxu0
  %v11841 = vadd.f32 %v11672, %v11840
  %v11842 = vpop.f32.mrf.mxu0
  %v11843 = vadd.f32 %v11674, %v11842
  %11844 = vmatmul.bf16.gmra.mxu0 %v10923
  %v11845 = vpop.f32.mrf.mxu0
  %v11846 = vadd.f32 %v11677, %v11845
  %v11847 = vpop.f32.mrf.mxu0
  %v11848 = vadd.f32 %v11679, %v11847
  %11849 = vmatmul.bf16.gmra.mxu0 %v10927
  %v11850 = vpop.f32.mrf.mxu0
  %v11851 = vadd.f32 %v11682, %v11850
  %v11852 = vpop.f32.mrf.mxu0
  %v11853 = vadd.f32 %v11684, %v11852
  %11854 = vmatmul.bf16.gmra.mxu0 %v10931
  %v11855 = vpop.f32.mrf.mxu0
  %v11856 = vadd.f32 %v11687, %v11855
  %v11857 = vpop.f32.mrf.mxu0
  %v11858 = vadd.f32 %v11689, %v11857
  %11859 = vmatmul.bf16.gmra.mxu0 %v10935
  %v11860 = vpop.f32.mrf.mxu0
  %v11861 = vadd.f32 %v11692, %v11860
  %v11862 = vpop.f32.mrf.mxu0
  %v11863 = vadd.f32 %v11694, %v11862
  %11864 = vmatmul.bf16.gmra.mxu0 %v10939
  %v11865 = vpop.f32.mrf.mxu0
  %v11866 = vadd.f32 %v11697, %v11865
  %v11867 = vpop.f32.mrf.mxu0
  %v11868 = vadd.f32 %v11699, %v11867
  %11869 = vmatmul.bf16.gmra.mxu0 %v10943
  %v11870 = vpop.f32.mrf.mxu0
  %v11871 = vadd.f32 %v11702, %v11870
  %v11872 = vpop.f32.mrf.mxu0
  %v11873 = vadd.f32 %v11704, %v11872
  %11874 = vmatmul.bf16.gmra.mxu0 %v10947
  %v11875 = vpop.f32.mrf.mxu0
  %v11876 = vadd.f32 %v11707, %v11875
  %v11877 = vpop.f32.mrf.mxu0
  %v11878 = vadd.f32 %v11709, %v11877
  %11879 = vmatmul.bf16.gmra.mxu0 %v10951
  %v11880 = vpop.f32.mrf.mxu0
  %v11881 = vadd.f32 %v11712, %v11880
  %v11882 = vpop.f32.mrf.mxu0
  %v11883 = vadd.f32 %v11714, %v11882
  %11884 = vmatmul.bf16.gmra.mxu0 %v10955
  %v11885 = vpop.f32.mrf.mxu0
  %v11886 = vadd.f32 %v11717, %v11885
  %v11887 = vpop.f32.mrf.mxu0
  %v11888 = vadd.f32 %v11719, %v11887
  %11889 = vmatmul.bf16.gmra.mxu0 %v10959
  %v11890 = vpop.f32.mrf.mxu0
  %v11891 = vadd.f32 %v11722, %v11890
  %v11892 = vpop.f32.mrf.mxu0
  %v11893 = vadd.f32 %v11724, %v11892
  %11894 = vmatmul.bf16.gmra.mxu0 %v10963
  %v11895 = vpop.f32.mrf.mxu0
  %v11896 = vadd.f32 %v11727, %v11895
  %v11897 = vpop.f32.mrf.mxu0
  %v11898 = vadd.f32 %v11729, %v11897
  %11899 = vdwg.mxu0
  %v11900 = vmax.f32 %v11741, 0.0
  %v11901 = vmax.f32 %v11743, 0.0
  %v11902 = vmax.f32 %v11746, 0.0
  %v11903 = vmax.f32 %v11748, 0.0
  %v11904 = vmax.f32 %v11751, 0.0
  %v11905 = vmax.f32 %v11753, 0.0
  %v11906 = vmax.f32 %v11756, 0.0
  %v11907 = vmax.f32 %v11758, 0.0
  %v11908 = vmax.f32 %v11761, 0.0
  %v11909 = vmax.f32 %v11763, 0.0
  %v11910 = vmax.f32 %v11766, 0.0
  %v11911 = vmax.f32 %v11768, 0.0
  %v11912 = vmax.f32 %v11771, 0.0
  %v11913 = vmax.f32 %v11773, 0.0
  %v11914 = vmax.f32 %v11776, 0.0
  %v11915 = vmax.f32 %v11778, 0.0
  %v11916 = vmax.f32 %v11781, 0.0
  %v11917 = vmax.f32 %v11783, 0.0
  %v11918 = vmax.f32 %v11786, 0.0
  %v11919 = vmax.f32 %v11788, 0.0
  %v11920 = vmax.f32 %v11791, 0.0
  %v11921 = vmax.f32 %v11793, 0.0
  %v11922 = vmax.f32 %v11796, 0.0
  %v11923 = vmax.f32 %v11798, 0.0
  %v11924 = vmax.f32 %v11801, 0.0
  %v11925 = vmax.f32 %v11803, 0.0
  %v11926 = vmax.f32 %v11806, 0.0
  %v11927 = vmax.f32 %v11808, 0.0
  %v11928 = vmax.f32 %v11811, 0.0
  %v11929 = vmax.f32 %v11813, 0.0
  %v11930 = vmax.f32 %v11816, 0.0
  %v11931 = vmax.f32 %v11818, 0.0
  %v11932 = vmax.f32 %v11821, 0.0
  %v11933 = vmax.f32 %v11823, 0.0
  %v11934 = vmax.f32 %v11826, 0.0
  %v11935 = vmax.f32 %v11828, 0.0
  %v11936 = vmax.f32 %v11831, 0.0
  %v11937 = vmax.f32 %v11833, 0.0
  %v11938 = vmax.f32 %v11836, 0.0
  %v11939 = vmax.f32 %v11838, 0.0
  %v11940 = vmax.f32 %v11841, 0.0
  %v11941 = vmax.f32 %v11843, 0.0
  %v11942 = vmax.f32 %v11846, 0.0
  %v11943 = vmax.f32 %v11848, 0.0
  %v11944 = vmax.f32 %v11851, 0.0
  %v11945 = vmax.f32 %v11853, 0.0
  %v11946 = vmax.f32 %v11856, 0.0
  %v11947 = vmax.f32 %v11858, 0.0
  %v11948 = vmax.f32 %v11861, 0.0
  %v11949 = vmax.f32 %v11863, 0.0
  %v11950 = vmax.f32 %v11866, 0.0
  %v11951 = vmax.f32 %v11868, 0.0
  %v11952 = vmax.f32 %v11871, 0.0
  %v11953 = vmax.f32 %v11873, 0.0
  %v11954 = vmax.f32 %v11876, 0.0
  %v11955 = vmax.f32 %v11878, 0.0
  %v11956 = vmax.f32 %v11881, 0.0
  %v11957 = vmax.f32 %v11883, 0.0
  %v11958 = vmax.f32 %v11886, 0.0
  %v11959 = vmax.f32 %v11888, 0.0
  %v11960 = vmax.f32 %v11891, 0.0
  %v11961 = vmax.f32 %v11893, 0.0
  %v11962 = vmax.f32 %v11896, 0.0
  %v11963 = vmax.f32 %v11898, 0.0
  %v11964 = vpack.c.bf16 %v11900, %v11900
  %v11965 = vpack.c.bf16 %v11901, %v11901
  %v11966 = vpack.c.bf16 %v11902, %v11902
  %v11967 = vpack.c.bf16 %v11903, %v11903
  %v11968 = vpack.c.bf16 %v11904, %v11904
  %v11969 = vpack.c.bf16 %v11905, %v11905
  %v11970 = vpack.c.bf16 %v11906, %v11906
  %v11971 = vpack.c.bf16 %v11907, %v11907
  %v11972 = vpack.c.bf16 %v11908, %v11908
  %v11973 = vpack.c.bf16 %v11909, %v11909
  %v11974 = vpack.c.bf16 %v11910, %v11910
  %v11975 = vpack.c.bf16 %v11911, %v11911
  %v11976 = vpack.c.bf16 %v11912, %v11912
  %v11977 = vpack.c.bf16 %v11913, %v11913
  %v11978 = vpack.c.bf16 %v11914, %v11914
  %v11979 = vpack.c.bf16 %v11915, %v11915
  %v11980 = vpack.c.bf16 %v11916, %v11916
  %v11981 = vpack.c.bf16 %v11917, %v11917
  %v11982 = vpack.c.bf16 %v11918, %v11918
  %v11983 = vpack.c.bf16 %v11919, %v11919
  %v11984 = vpack.c.bf16 %v11920, %v11920
  %v11985 = vpack.c.bf16 %v11921, %v11921
  %v11986 = vpack.c.bf16 %v11922, %v11922
  %v11987 = vpack.c.bf16 %v11923, %v11923
  %v11988 = vpack.c.bf16 %v11924, %v11924
  %v11989 = vpack.c.bf16 %v11925, %v11925
  %v11990 = vpack.c.bf16 %v11926, %v11926
  %v11991 = vpack.c.bf16 %v11927, %v11927
  %v11992 = vpack.c.bf16 %v11928, %v11928
  %v11993 = vpack.c.bf16 %v11929, %v11929
  %v11994 = vpack.c.bf16 %v11930, %v11930
  %v11995 = vpack.c.bf16 %v11931, %v11931
  %v11996 = vpack.c.bf16 %v11932, %v11932
  %v11997 = vpack.c.bf16 %v11933, %v11933
  %v11998 = vpack.c.bf16 %v11934, %v11934
  %v11999 = vpack.c.bf16 %v11935, %v11935
  %v12000 = vpack.c.bf16 %v11936, %v11936
  %v12001 = vpack.c.bf16 %v11937, %v11937
  %v12002 = vpack.c.bf16 %v11938, %v11938
  %v12003 = vpack.c.bf16 %v11939, %v11939
  %v12004 = vpack.c.bf16 %v11940, %v11940
  %v12005 = vpack.c.bf16 %v11941, %v11941
  %v12006 = vpack.c.bf16 %v11942, %v11942
  %v12007 = vpack.c.bf16 %v11943, %v11943
  %v12008 = vpack.c.bf16 %v11944, %v11944
  %v12009 = vpack.c.bf16 %v11945, %v11945
  %v12010 = vpack.c.bf16 %v11946, %v11946
  %v12011 = vpack.c.bf16 %v11947, %v11947
  %v12012 = vpack.c.bf16 %v11948, %v11948
  %v12013 = vpack.c.bf16 %v11949, %v11949
  %v12014 = vpack.c.bf16 %v11950, %v11950
  %v12015 = vpack.c.bf16 %v11951, %v11951
  %v12016 = vpack.c.bf16 %v11952, %v11952
  %v12017 = vpack.c.bf16 %v11953, %v11953
  %v12018 = vpack.c.bf16 %v11954, %v11954
  %v12019 = vpack.c.bf16 %v11955, %v11955
  %v12020 = vpack.c.bf16 %v11956, %v11956
  %v12021 = vpack.c.bf16 %v11957, %v11957
  %v12022 = vpack.c.bf16 %v11958, %v11958
  %v12023 = vpack.c.bf16 %v11959, %v11959
  %v12024 = vpack.c.bf16 %v11960, %v11960
  %v12025 = vpack.c.bf16 %v11961, %v11961
  %v12026 = vpack.c.bf16 %v11962, %v11962
  %v12027 = vpack.c.bf16 %v11963, %v11963
  %12028 = vst [vmem:[%s7] sm:$0xf] %v11964
  %12029 = vst [vmem:[%s7 + $0x4] sm:$0xf] %v11965
  %12030 = vst [vmem:[%s7 + $0x8] sm:$0xf] %v11966
  %12031 = vst [vmem:[%s7 + $0xc] sm:$0xf] %v11967
  %12032 = vst [vmem:[%s7 + $0x10] sm:$0xf] %v11968
  %12033 = vst [vmem:[%s7 + $0x14] sm:$0xf] %v11969
  %12034 = vst [vmem:[%s7 + $0x18] sm:$0xf] %v11970
  %12035 = vst [vmem:[%s7 + $0x1c] sm:$0xf] %v11971
  %12036 = vst [vmem:[%s7 + $0x20] sm:$0xf] %v11972
  %12037 = vst [vmem:[%s7 + $0x24] sm:$0xf] %v11973
  %12038 = vst [vmem:[%s7 + $0x28] sm:$0xf] %v11974
  %12039 = vst [vmem:[%s7 + $0x2c] sm:$0xf] %v11975
  %12040 = vst [vmem:[%s7 + $0x30] sm:$0xf] %v11976
  %12041 = vst [vmem:[%s7 + $0x34] sm:$0xf] %v11977
  %12042 = vst [vmem:[%s7 + $0x38] sm:$0xf] %v11978
  %12043 = vst [vmem:[%s7 + $0x3c] sm:$0xf] %v11979
  %12044 = vst [vmem:[%s7 + $0x40] sm:$0xf] %v11980
  %12045 = vst [vmem:[%s7 + $0x44] sm:$0xf] %v11981
  %12046 = vst [vmem:[%s7 + $0x48] sm:$0xf] %v11982
  %12047 = vst [vmem:[%s7 + $0x4c] sm:$0xf] %v11983
  %12048 = vst [vmem:[%s7 + $0x50] sm:$0xf] %v11984
  %12049 = vst [vmem:[%s7 + $0x54] sm:$0xf] %v11985
  %12050 = vst [vmem:[%s7 + $0x58] sm:$0xf] %v11986
  %12051 = vst [vmem:[%s7 + $0x5c] sm:$0xf] %v11987
  %12052 = vst [vmem:[%s7 + $0x60] sm:$0xf] %v11988
  %12053 = vst [vmem:[%s7 + $0x64] sm:$0xf] %v11989
  %12054 = vst [vmem:[%s7 + $0x68] sm:$0xf] %v11990
  %12055 = vst [vmem:[%s7 + $0x6c] sm:$0xf] %v11991
  %12056 = vst [vmem:[%s7 + $0x70] sm:$0xf] %v11992
  %12057 = vst [vmem:[%s7 + $0x74] sm:$0xf] %v11993
  %12058 = vst [vmem:[%s7 + $0x78] sm:$0xf] %v11994
  %12059 = vst [vmem:[%s7 + $0x7c] sm:$0xf] %v11995
  %12060 = vst [vmem:[%s7 + $0x80] sm:$0xf] %v11996
  %12061 = vst [vmem:[%s7 + $0x84] sm:$0xf] %v11997
  %12062 = vst [vmem:[%s7 + $0x88] sm:$0xf] %v11998
  %12063 = vst [vmem:[%s7 + $0x8c] sm:$0xf] %v11999
  %12064 = vst [vmem:[%s7 + $0x90] sm:$0xf] %v12000
  %12065 = vst [vmem:[%s7 + $0x94] sm:$0xf] %v12001
  %12066 = vst [vmem:[%s7 + $0x98] sm:$0xf] %v12002
  %12067 = vst [vmem:[%s7 + $0x9c] sm:$0xf] %v12003
  %12068 = vst [vmem:[%s7 + $0xa0] sm:$0xf] %v12004
  %12069 = vst [vmem:[%s7 + $0xa4] sm:$0xf] %v12005
  %12070 = vst [vmem:[%s7 + $0xa8] sm:$0xf] %v12006
  %12071 = vst [vmem:[%s7 + $0xac] sm:$0xf] %v12007
  %12072 = vst [vmem:[%s7 + $0xb0] sm:$0xf] %v12008
  %12073 = vst [vmem:[%s7 + $0xb4] sm:$0xf] %v12009
  %12074 = vst [vmem:[%s7 + $0xb8] sm:$0xf] %v12010
  %12075 = vst [vmem:[%s7 + $0xbc] sm:$0xf] %v12011
  %12076 = vst [vmem:[%s7 + $0xc0] sm:$0xf] %v12012
  %12077 = vst [vmem:[%s7 + $0xc4] sm:$0xf] %v12013
  %12078 = vst [vmem:[%s7 + $0xc8] sm:$0xf] %v12014
  %12079 = vst [vmem:[%s7 + $0xcc] sm:$0xf] %v12015
  %12080 = vst [vmem:[%s7 + $0xd0] sm:$0xf] %v12016
  %12081 = vst [vmem:[%s7 + $0xd4] sm:$0xf] %v12017
  %12082 = vst [vmem:[%s7 + $0xd8] sm:$0xf] %v12018
  %12083 = vst [vmem:[%s7 + $0xdc] sm:$0xf] %v12019
  %12084 = vst [vmem:[%s7 + $0xe0] sm:$0xf] %v12020
  %12085 = vst [vmem:[%s7 + $0xe4] sm:$0xf] %v12021
  %12086 = vst [vmem:[%s7 + $0xe8] sm:$0xf] %v12022
  %12087 = vst [vmem:[%s7 + $0xec] sm:$0xf] %v12023
  %12088 = vst [vmem:[%s7 + $0xf0] sm:$0xf] %v12024
  %12089 = vst [vmem:[%s7 + $0xf4] sm:$0xf] %v12025
  %12090 = vst [vmem:[%s7 + $0xf8] sm:$0xf] %v12026
  %12091 = vst [vmem:[%s7 + $0xfc] sm:$0xf] %v12027
  // Predicated region
  $region30: #{neural_network_forward.1} parent=0 // pred_check
    _
  $region31: #{neural_network_forward.1} parent=0 // pred_check_branch
    %12093 = sbr.rel (0) target = $region33
  $region32: #{neural_network_forward.1} parent=0 // pred_region
    _
  $region33: #{neural_network_forward.1} parent=0 // pred_fallthru
    _
  // Predicated region
  $region34: #{neural_network_forward.1} parent=0 // pred_check
    _
  $region35: #{neural_network_forward.1} parent=0 // pred_check_branch
    %12095 = sbr.rel (0) target = $region37
  $region36: #{neural_network_forward.1} parent=0 // pred_region
    _
  $region37: #{neural_network_forward.1} parent=0 // pred_fallthru
    _

</llo_original>
